<compile_context>
chip_gen: v7x
topology: tpu7x:2x2x1
jax: 0.10.0
libtpu: 0.0.40
codegen_flags: <defaults>
</compile_context>

<pallas_src>
import jax
import jax.numpy as jnp
from jax.experimental import pallas as pl
from jax.experimental.pallas import tpu as pltpu


# ----------------------------------------------------------------------------
# Fused LeNet5 kernel (one grid step == one image)
# ----------------------------------------------------------------------------
def _lenet5_kernel(x_ref, a1_ref, b1_ref, s1e_ref, s1o_ref,
                   a2_ref, b2_ref, s2e_ref, s2o_ref,
                   w1_ref, fb1_ref, w2_ref, fb2_ref, w3_ref, fb3_ref,
                   o_ref):
    f32 = jnp.float32

    # ---- conv1 (5x5, Cin=1, Cout=6) as 5 row-shifted matmuls -> (60, 360) ----
    # column layout: [even-wo block (q, co) | odd-wo block (q, co)], co fastest
    y1 = jnp.dot(x_ref[0, 0:60, :], a1_ref[0], preferred_element_type=f32)
    for di in range(1, 5):
        y1 = y1 + jnp.dot(x_ref[0, di:di + 60, :], a1_ref[di],
                          preferred_element_type=f32)
    y1 = jnp.maximum(y1 + b1_ref[...], 0.0)                 # bias + ReLU

    # ---- 2x2 max pool #1 ----
    z1 = jnp.maximum(y1[:, 0:180], y1[:, 180:360])          # width pool  (60, 180)
    p1 = jnp.maximum(jnp.dot(s1e_ref[...], z1, preferred_element_type=f32),
                     jnp.dot(s1o_ref[...], z1, preferred_element_type=f32))
    # p1: (30, 180), rows = pooled height, cols = (w', c) channel-fastest

    # ---- conv2 (5x5, Cin=6, Cout=16) -> (26, 416) ----
    y2 = jnp.dot(p1[0:26, :], a2_ref[0], preferred_element_type=f32)
    for di in range(1, 5):
        y2 = y2 + jnp.dot(p1[di:di + 26, :], a2_ref[di],
                          preferred_element_type=f32)
    y2 = jnp.maximum(y2 + b2_ref[...], 0.0)

    # ---- 2x2 max pool #2 ----
    z2 = jnp.maximum(y2[:, 0:208], y2[:, 208:416])          # (26, 208)
    p2 = jnp.maximum(jnp.dot(s2e_ref[...], z2, preferred_element_type=f32),
                     jnp.dot(s2o_ref[...], z2, preferred_element_type=f32))
    # p2: (13, 208) == (h', w'*16 + c)

    # ---- fc1 as a sum of 13 row x block matmuls (avoids in-kernel flatten) ----
    acc = jnp.dot(p2[0:1, :], w1_ref[0], preferred_element_type=f32)
    for h in range(1, 13):
        acc = acc + jnp.dot(p2[h:h + 1, :], w1_ref[h], preferred_element_type=f32)
    h1 = jnp.maximum(acc + fb1_ref[...], 0.0)                # (1, 128)

    # ---- fc2 + ReLU, fc3 ----
    h2 = jnp.maximum(jnp.dot(h1, w2_ref[...], preferred_element_type=f32)
                     + fb2_ref[...], 0.0)
    out = jnp.dot(h2, w3_ref[...], preferred_element_type=f32) + fb3_ref[...]

    o_ref[0] = out                                           # (1, 128)


# ----------------------------------------------------------------------------
# Parameters
# ----------------------------------------------------------------------------
def init_params(key, num_classes=2):
    ks = jax.random.split(key, 10)
    s = 0.05
    return {
        "conv1_w": s * jax.random.normal(ks[0], (6, 1, 5, 5), jnp.float32),
        "conv1_b": s * jax.random.normal(ks[1], (6,), jnp.float32),
        "conv2_w": s * jax.random.normal(ks[2], (16, 6, 5, 5), jnp.float32),
        "conv2_b": s * jax.random.normal(ks[3], (16,), jnp.float32),
        "fc1_w": s * jax.random.normal(ks[4], (120, 16 * 13 * 13), jnp.float32),
        "fc1_b": s * jax.random.normal(ks[5], (120,), jnp.float32),
        "fc2_w": s * jax.random.normal(ks[6], (84, 120), jnp.float32),
        "fc2_b": s * jax.random.normal(ks[7], (84,), jnp.float32),
        "fc3_w": s * jax.random.normal(ks[8], (num_classes, 84), jnp.float32),
        "fc3_b": s * jax.random.normal(ks[9], (num_classes,), jnp.float32),
    }


def prepare_params(p, num_classes=2):
    """One-time packing of weights into the kernel's matmul-friendly layouts.

    Conv weights become per-kernel-row matrices A[di] of shape (W*Cin, Wo*Cout)
    whose output columns are ordered [even-wo | odd-wo] with channels fastest,
    so ReLU + 2x2 pooling reduce to slab-max + one-hot selection matmuls.
    """
    f32 = jnp.float32

    # --- conv1: A1[di] : (64, 360), col = s*180 + q*6 + co, wo = 2q+s ---
    tgt1 = (2 * jnp.arange(30)[None, :, None] + jnp.arange(2)[:, None, None]
            + jnp.arange(5)[None, None, :])                       # (2, 30, 5)
    oh1 = (jnp.arange(64)[:, None, None, None] == tgt1[None]).astype(f32)  # (64,2,30,5)
    w1t = jnp.transpose(p["conv1_w"][:, 0], (1, 2, 0))             # (5, 5, 6) [di,dj,co]
    A1 = jnp.einsum("wsqd,kdc->kwsqc", oh1, w1t).reshape(5, 64, 360)
    b1r = jnp.tile(p["conv1_b"], 60).reshape(1, 360)

    # pool-1 row selection (even / odd conv1 output rows)
    S1e = (jnp.arange(60)[None, :] == (2 * jnp.arange(30))[:, None]).astype(f32)
    S1o = (jnp.arange(60)[None, :] == (2 * jnp.arange(30) + 1)[:, None]).astype(f32)

    # --- conv2: A2[di] : (180, 416), row = wi*6+ci, col = s*208 + q*16 + co ---
    tgt2 = (2 * jnp.arange(13)[None, :, None] + jnp.arange(2)[:, None, None]
            + jnp.arange(5)[None, None, :])                       # (2, 13, 5)
    oh2 = (jnp.arange(30)[:, None, None, None] == tgt2[None]).astype(f32)  # (30,2,13,5)
    w2t = jnp.transpose(p["conv2_w"], (2, 3, 1, 0))                # (5, 5, 6, 16)
    A2 = jnp.einsum("wsqd,kdic->kwisqc", oh2, w2t).reshape(5, 180, 416)
    b2r = jnp.tile(p["conv2_b"], 26).reshape(1, 416)

    S2e = (jnp.arange(26)[None, :] == (2 * jnp.arange(13))[:, None]).astype(f32)
    S2o = (jnp.arange(26)[None, :] == (2 * jnp.arange(13) + 1)[:, None]).astype(f32)

    # --- fc1: PyTorch flatten order is (c, h, w); kernel features are (h, w, c) ---
    W1 = p["fc1_w"].reshape(120, 16, 13, 13)          # [j, c, h, w]
    W1 = jnp.transpose(W1, (2, 3, 1, 0))              # (13, 13, 16, 120) [h, w, c, j]
    W1p = jnp.pad(W1.reshape(13, 208, 120), ((0, 0), (0, 0), (0, 8)))  # (13, 208, 128)
    b1f = jnp.pad(p["fc1_b"], (0, 8)).reshape(1, 128)

    W2p = jnp.pad(p["fc2_w"].T, ((0, 8), (0, 44)))                      # (128, 128)
    b2f = jnp.pad(p["fc2_b"], (0, 44)).reshape(1, 128)
    W3p = jnp.pad(p["fc3_w"].T, ((0, 44), (0, 128 - num_classes)))      # (128, 128)
    b3f = jnp.pad(p["fc3_b"], (0, 128 - num_classes)).reshape(1, 128)

    return {"A1": A1, "b1r": b1r, "S1e": S1e, "S1o": S1o,
            "A2": A2, "b2r": b2r, "S2e": S2e, "S2o": S2o,
            "W1p": W1p, "b1f": b1f, "W2p": W2p, "b2f": b2f,
            "W3p": W3p, "b3f": b3f}


# ----------------------------------------------------------------------------
# Forward pass (one pallas_call for the whole network)
# ----------------------------------------------------------------------------
def lenet5_forward(x_nchw, pp, num_classes=2):
    B = x_nchw.shape[0]
    x3 = x_nchw.reshape(B, 64, 64)           # Cin == 1

    const2 = lambda b: (0, 0)
    const3 = lambda b: (0, 0, 0)
    out = pl.pallas_call(
        _lenet5_kernel,
        out_shape=jax.ShapeDtypeStruct((B, 1, 128), jnp.float32),
        grid=(B,),
        in_specs=[
            pl.BlockSpec((1, 64, 64), lambda b: (b, 0, 0)),     # image
            pl.BlockSpec((5, 64, 360), const3),                 # A1
            pl.BlockSpec((1, 360), const2),                     # conv1 bias row
            pl.BlockSpec((30, 60), const2),                     # S1e
            pl.BlockSpec((30, 60), const2),                     # S1o
            pl.BlockSpec((5, 180, 416), const3),                # A2
            pl.BlockSpec((1, 416), const2),                     # conv2 bias row
            pl.BlockSpec((13, 26), const2),                     # S2e
            pl.BlockSpec((13, 26), const2),                     # S2o
            pl.BlockSpec((13, 208, 128), const3),               # fc1 weight blocks
            pl.BlockSpec((1, 128), const2),                     # fc1 bias
            pl.BlockSpec((128, 128), const2),                   # fc2 weight
            pl.BlockSpec((1, 128), const2),                     # fc2 bias
            pl.BlockSpec((128, 128), const2),                   # fc3 weight
            pl.BlockSpec((1, 128), const2),                     # fc3 bias
        ],
        out_specs=pl.BlockSpec((1, 1, 128), lambda b: (b, 0, 0)),
        compiler_params=pltpu.CompilerParams(
            dimension_semantics=("parallel",)),
    )(x3, pp["A1"], pp["b1r"], pp["S1e"], pp["S1o"],
      pp["A2"], pp["b2r"], pp["S2e"], pp["S2o"],
      pp["W1p"], pp["b1f"], pp["W2p"], pp["b2f"], pp["W3p"], pp["b3f"])

    return out.reshape(B, 128)[:, :num_classes]


# ----------------------------------------------------------------------------
# Pure-JAX reference for correctness checking.
# ----------------------------------------------------------------------------
def _reference_forward(x, p):
    def conv(x, w, b):
        y = jax.lax.conv_general_dilated(
            x, w, window_strides=(1, 1), padding="VALID",
            dimension_numbers=("NCHW", "OIHW", "NCHW"))
        return y + b.reshape(1, -1, 1, 1)

    def pool(x):
        return jax.lax.reduce_window(
            x, -jnp.inf, jax.lax.max, (1, 1, 2, 2), (1, 1, 2, 2), "VALID")

    y = jax.nn.relu(conv(x, p["conv1_w"], p["conv1_b"]))
    y = pool(y)
    y = jax.nn.relu(conv(y, p["conv2_w"], p["conv2_b"]))
    y = pool(y)
    y = y.reshape(y.shape[0], -1)
    y = jax.nn.relu(y @ p["fc1_w"].T + p["fc1_b"])
    y = jax.nn.relu(y @ p["fc2_w"].T + p["fc2_b"])
    return y @ p["fc3_w"].T + p["fc3_b"]


if __name__ == "__main__":
    key = jax.random.PRNGKey(0)
    k_param, k_x = jax.random.split(key)
    params = init_params(k_param, num_classes=2)
    prepped = prepare_params(params, num_classes=2)
    x = jax.random.normal(k_x, (2, 1, 64, 64), jnp.float32)   # NCHW, as PyTorch

    fwd = jax.jit(lenet5_forward)
    out = jax.block_until_ready(fwd(x, prepped))
    assert out.shape == (2, 2), out.shape

    ref = _reference_forward(x, params)
    assert jnp.allclose(out, ref, atol=2e-3, rtol=2e-3), (out, ref)

    print("KERNEL_OK")
</pallas_src>

<mosaic_0001>
module attributes {stable_mosaic.version = 11 : i64} {
  func.func @_lenet5_kernel(%arg0: i32, %arg1: memref<1x64x64xf32, #tpu.memory_space<vmem>>, %arg2: memref<5x64x360xf32, #tpu.memory_space<vmem>>, %arg3: memref<1x360xf32, #tpu.memory_space<vmem>>, %arg4: memref<30x60xf32, #tpu.memory_space<vmem>>, %arg5: memref<30x60xf32, #tpu.memory_space<vmem>>, %arg6: memref<5x180x416xf32, #tpu.memory_space<vmem>>, %arg7: memref<1x416xf32, #tpu.memory_space<vmem>>, %arg8: memref<13x26xf32, #tpu.memory_space<vmem>>, %arg9: memref<13x26xf32, #tpu.memory_space<vmem>>, %arg10: memref<13x208x128xf32, #tpu.memory_space<vmem>>, %arg11: memref<1x128xf32, #tpu.memory_space<vmem>>, %arg12: memref<128x128xf32, #tpu.memory_space<vmem>>, %arg13: memref<1x128xf32, #tpu.memory_space<vmem>>, %arg14: memref<128x128xf32, #tpu.memory_space<vmem>>, %arg15: memref<1x128xf32, #tpu.memory_space<vmem>>, %arg16: memref<1x1x128xf32, #tpu.memory_space<vmem>>) attributes {dimension_semantics = [#tpu.dimension_semantics<parallel>], iteration_bounds = array<i64: 2>, scalar_prefetch = 0 : i64, scratch_operands = 0 : i64, tpu.core_type = #tpu.core_type<tc>, window_params = [{transform_indices = @transform_0, window_bounds = array<i64: 1, 64, 64>}, {pipeline_mode = #tpu.pipeline_mode<synchronous>, transform_indices = @transform_1, window_bounds = array<i64: 5, 64, 360>}, {pipeline_mode = #tpu.pipeline_mode<synchronous>, transform_indices = @transform_2, window_bounds = array<i64: 1, 360>}, {pipeline_mode = #tpu.pipeline_mode<synchronous>, transform_indices = @transform_3, window_bounds = array<i64: 30, 60>}, {pipeline_mode = #tpu.pipeline_mode<synchronous>, transform_indices = @transform_4, window_bounds = array<i64: 30, 60>}, {pipeline_mode = #tpu.pipeline_mode<synchronous>, transform_indices = @transform_5, window_bounds = array<i64: 5, 180, 416>}, {pipeline_mode = #tpu.pipeline_mode<synchronous>, transform_indices = @transform_6, window_bounds = array<i64: 1, 416>}, {pipeline_mode = #tpu.pipeline_mode<synchronous>, transform_indices = @transform_7, window_bounds = array<i64: 13, 26>}, {pipeline_mode = #tpu.pipeline_mode<synchronous>, transform_indices = @transform_8, window_bounds = array<i64: 13, 26>}, {pipeline_mode = #tpu.pipeline_mode<synchronous>, transform_indices = @transform_9, window_bounds = array<i64: 13, 208, 128>}, {pipeline_mode = #tpu.pipeline_mode<synchronous>, transform_indices = @transform_10, window_bounds = array<i64: 1, 128>}, {pipeline_mode = #tpu.pipeline_mode<synchronous>, transform_indices = @transform_11, window_bounds = array<i64: 128, 128>}, {pipeline_mode = #tpu.pipeline_mode<synchronous>, transform_indices = @transform_12, window_bounds = array<i64: 1, 128>}, {pipeline_mode = #tpu.pipeline_mode<synchronous>, transform_indices = @transform_13, window_bounds = array<i64: 128, 128>}, {pipeline_mode = #tpu.pipeline_mode<synchronous>, transform_indices = @transform_14, window_bounds = array<i64: 1, 128>}, {transform_indices = @transform_15, window_bounds = array<i64: 1, 1, 128>}]} {
    %c0 = arith.constant 0 : index
    %c0_0 = arith.constant 0 : index
    %c0_1 = arith.constant 0 : index
    %0 = vector.load %arg1[%c0, %c0_0, %c0_1] : memref<1x64x64xf32, #tpu.memory_space<vmem>>, vector<1x60x64xf32>
    %1 = vector.shape_cast %0 : vector<1x60x64xf32> to vector<60x64xf32>
    %c0_2 = arith.constant 0 : index
    %c0_3 = arith.constant 0 : index
    %c0_4 = arith.constant 0 : index
    %2 = vector.load %arg2[%c0_2, %c0_3, %c0_4] : memref<5x64x360xf32, #tpu.memory_space<vmem>>, vector<1x64x360xf32>
    %3 = vector.shape_cast %2 : vector<1x64x360xf32> to vector<64x360xf32>
    %cst = arith.constant dense<0.000000e+00> : vector<60x360xf32>
    %4 = tpu.matmul %1, %3, %cst {dimension_numbers = #tpu.dot_dimension_numbers<[1], [0], [0], [1], [0, 0, 1, 1], [], []>} : vector<60x64xf32>, vector<64x360xf32>, vector<60x360xf32> -> vector<60x360xf32>
    %c0_5 = arith.constant 0 : index
    %c1 = arith.constant 1 : index
    %c0_6 = arith.constant 0 : index
    %5 = vector.load %arg1[%c0_5, %c1, %c0_6] : memref<1x64x64xf32, #tpu.memory_space<vmem>>, vector<1x60x64xf32>
    %6 = vector.shape_cast %5 : vector<1x60x64xf32> to vector<60x64xf32>
    %c1_7 = arith.constant 1 : index
    %c0_8 = arith.constant 0 : index
    %c0_9 = arith.constant 0 : index
    %7 = vector.load %arg2[%c1_7, %c0_8, %c0_9] : memref<5x64x360xf32, #tpu.memory_space<vmem>>, vector<1x64x360xf32>
    %8 = vector.shape_cast %7 : vector<1x64x360xf32> to vector<64x360xf32>
    %cst_10 = arith.constant dense<0.000000e+00> : vector<60x360xf32>
    %9 = tpu.matmul %6, %8, %cst_10 {dimension_numbers = #tpu.dot_dimension_numbers<[1], [0], [0], [1], [0, 0, 1, 1], [], []>} : vector<60x64xf32>, vector<64x360xf32>, vector<60x360xf32> -> vector<60x360xf32>
    %10 = arith.addf %4, %9 : vector<60x360xf32>
    %c0_11 = arith.constant 0 : index
    %c2 = arith.constant 2 : index
    %c0_12 = arith.constant 0 : index
    %11 = vector.load %arg1[%c0_11, %c2, %c0_12] : memref<1x64x64xf32, #tpu.memory_space<vmem>>, vector<1x60x64xf32>
    %12 = vector.shape_cast %11 : vector<1x60x64xf32> to vector<60x64xf32>
    %c2_13 = arith.constant 2 : index
    %c0_14 = arith.constant 0 : index
    %c0_15 = arith.constant 0 : index
    %13 = vector.load %arg2[%c2_13, %c0_14, %c0_15] : memref<5x64x360xf32, #tpu.memory_space<vmem>>, vector<1x64x360xf32>
    %14 = vector.shape_cast %13 : vector<1x64x360xf32> to vector<64x360xf32>
    %cst_16 = arith.constant dense<0.000000e+00> : vector<60x360xf32>
    %15 = tpu.matmul %12, %14, %cst_16 {dimension_numbers = #tpu.dot_dimension_numbers<[1], [0], [0], [1], [0, 0, 1, 1], [], []>} : vector<60x64xf32>, vector<64x360xf32>, vector<60x360xf32> -> vector<60x360xf32>
    %16 = arith.addf %10, %15 : vector<60x360xf32>
    %c0_17 = arith.constant 0 : index
    %c3 = arith.constant 3 : index
    %c0_18 = arith.constant 0 : index
    %17 = vector.load %arg1[%c0_17, %c3, %c0_18] : memref<1x64x64xf32, #tpu.memory_space<vmem>>, vector<1x60x64xf32>
    %18 = vector.shape_cast %17 : vector<1x60x64xf32> to vector<60x64xf32>
    %c3_19 = arith.constant 3 : index
    %c0_20 = arith.constant 0 : index
    %c0_21 = arith.constant 0 : index
    %19 = vector.load %arg2[%c3_19, %c0_20, %c0_21] : memref<5x64x360xf32, #tpu.memory_space<vmem>>, vector<1x64x360xf32>
    %20 = vector.shape_cast %19 : vector<1x64x360xf32> to vector<64x360xf32>
    %cst_22 = arith.constant dense<0.000000e+00> : vector<60x360xf32>
    %21 = tpu.matmul %18, %20, %cst_22 {dimension_numbers = #tpu.dot_dimension_numbers<[1], [0], [0], [1], [0, 0, 1, 1], [], []>} : vector<60x64xf32>, vector<64x360xf32>, vector<60x360xf32> -> vector<60x360xf32>
    %22 = arith.addf %16, %21 : vector<60x360xf32>
    %c0_23 = arith.constant 0 : index
    %c4 = arith.constant 4 : index
    %c0_24 = arith.constant 0 : index
    %23 = vector.load %arg1[%c0_23, %c4, %c0_24] : memref<1x64x64xf32, #tpu.memory_space<vmem>>, vector<1x60x64xf32>
    %24 = vector.shape_cast %23 : vector<1x60x64xf32> to vector<60x64xf32>
    %c4_25 = arith.constant 4 : index
    %c0_26 = arith.constant 0 : index
    %c0_27 = arith.constant 0 : index
    %25 = vector.load %arg2[%c4_25, %c0_26, %c0_27] : memref<5x64x360xf32, #tpu.memory_space<vmem>>, vector<1x64x360xf32>
    %26 = vector.shape_cast %25 : vector<1x64x360xf32> to vector<64x360xf32>
    %cst_28 = arith.constant dense<0.000000e+00> : vector<60x360xf32>
    %27 = tpu.matmul %24, %26, %cst_28 {dimension_numbers = #tpu.dot_dimension_numbers<[1], [0], [0], [1], [0, 0, 1, 1], [], []>} : vector<60x64xf32>, vector<64x360xf32>, vector<60x360xf32> -> vector<60x360xf32>
    %28 = arith.addf %22, %27 : vector<60x360xf32>
    %c0_29 = arith.constant 0 : index
    %c0_30 = arith.constant 0 : index
    %29 = vector.load %arg3[%c0_29, %c0_30] : memref<1x360xf32, #tpu.memory_space<vmem>>, vector<1x360xf32>
    %30 = vector.broadcast %29 : vector<1x360xf32> to vector<60x360xf32>
    %31 = arith.addf %28, %30 : vector<60x360xf32>
    %cst_31 = arith.constant 0.000000e+00 : f32
    %32 = vector.broadcast %cst_31 : f32 to vector<60x360xf32>
    %33 = arith.maximumf %31, %32 : vector<60x360xf32>
    %34 = vector.extract_strided_slice %33 {offsets = [0, 0], sizes = [60, 180], strides = [1, 1]} : vector<60x360xf32> to vector<60x180xf32>
    %35 = vector.extract_strided_slice %33 {offsets = [0, 180], sizes = [60, 180], strides = [1, 1]} : vector<60x360xf32> to vector<60x180xf32>
    %36 = arith.maximumf %34, %35 : vector<60x180xf32>
    %c0_32 = arith.constant 0 : index
    %c0_33 = arith.constant 0 : index
    %37 = vector.load %arg4[%c0_32, %c0_33] : memref<30x60xf32, #tpu.memory_space<vmem>>, vector<30x60xf32>
    %cst_34 = arith.constant dense<0.000000e+00> : vector<30x180xf32>
    %38 = tpu.matmul %37, %36, %cst_34 {dimension_numbers = #tpu.dot_dimension_numbers<[1], [0], [0], [1], [0, 0, 1, 1], [], []>} : vector<30x60xf32>, vector<60x180xf32>, vector<30x180xf32> -> vector<30x180xf32>
    %c0_35 = arith.constant 0 : index
    %c0_36 = arith.constant 0 : index
    %39 = vector.load %arg5[%c0_35, %c0_36] : memref<30x60xf32, #tpu.memory_space<vmem>>, vector<30x60xf32>
    %cst_37 = arith.constant dense<0.000000e+00> : vector<30x180xf32>
    %40 = tpu.matmul %39, %36, %cst_37 {dimension_numbers = #tpu.dot_dimension_numbers<[1], [0], [0], [1], [0, 0, 1, 1], [], []>} : vector<30x60xf32>, vector<60x180xf32>, vector<30x180xf32> -> vector<30x180xf32>
    %41 = arith.maximumf %38, %40 : vector<30x180xf32>
    %42 = vector.extract_strided_slice %41 {offsets = [0, 0], sizes = [26, 180], strides = [1, 1]} : vector<30x180xf32> to vector<26x180xf32>
    %c0_38 = arith.constant 0 : index
    %c0_39 = arith.constant 0 : index
    %c0_40 = arith.constant 0 : index
    %43 = vector.load %arg6[%c0_38, %c0_39, %c0_40] : memref<5x180x416xf32, #tpu.memory_space<vmem>>, vector<1x180x416xf32>
    %44 = vector.shape_cast %43 : vector<1x180x416xf32> to vector<180x416xf32>
    %cst_41 = arith.constant dense<0.000000e+00> : vector<26x416xf32>
    %45 = tpu.matmul %42, %44, %cst_41 {dimension_numbers = #tpu.dot_dimension_numbers<[1], [0], [0], [1], [0, 0, 1, 1], [], []>} : vector<26x180xf32>, vector<180x416xf32>, vector<26x416xf32> -> vector<26x416xf32>
    %46 = vector.extract_strided_slice %41 {offsets = [1, 0], sizes = [26, 180], strides = [1, 1]} : vector<30x180xf32> to vector<26x180xf32>
    %c1_42 = arith.constant 1 : index
    %c0_43 = arith.constant 0 : index
    %c0_44 = arith.constant 0 : index
    %47 = vector.load %arg6[%c1_42, %c0_43, %c0_44] : memref<5x180x416xf32, #tpu.memory_space<vmem>>, vector<1x180x416xf32>
    %48 = vector.shape_cast %47 : vector<1x180x416xf32> to vector<180x416xf32>
    %cst_45 = arith.constant dense<0.000000e+00> : vector<26x416xf32>
    %49 = tpu.matmul %46, %48, %cst_45 {dimension_numbers = #tpu.dot_dimension_numbers<[1], [0], [0], [1], [0, 0, 1, 1], [], []>} : vector<26x180xf32>, vector<180x416xf32>, vector<26x416xf32> -> vector<26x416xf32>
    %50 = arith.addf %45, %49 : vector<26x416xf32>
    %51 = vector.extract_strided_slice %41 {offsets = [2, 0], sizes = [26, 180], strides = [1, 1]} : vector<30x180xf32> to vector<26x180xf32>
    %c2_46 = arith.constant 2 : index
    %c0_47 = arith.constant 0 : index
    %c0_48 = arith.constant 0 : index
    %52 = vector.load %arg6[%c2_46, %c0_47, %c0_48] : memref<5x180x416xf32, #tpu.memory_space<vmem>>, vector<1x180x416xf32>
    %53 = vector.shape_cast %52 : vector<1x180x416xf32> to vector<180x416xf32>
    %cst_49 = arith.constant dense<0.000000e+00> : vector<26x416xf32>
    %54 = tpu.matmul %51, %53, %cst_49 {dimension_numbers = #tpu.dot_dimension_numbers<[1], [0], [0], [1], [0, 0, 1, 1], [], []>} : vector<26x180xf32>, vector<180x416xf32>, vector<26x416xf32> -> vector<26x416xf32>
    %55 = arith.addf %50, %54 : vector<26x416xf32>
    %56 = vector.extract_strided_slice %41 {offsets = [3, 0], sizes = [26, 180], strides = [1, 1]} : vector<30x180xf32> to vector<26x180xf32>
    %c3_50 = arith.constant 3 : index
    %c0_51 = arith.constant 0 : index
    %c0_52 = arith.constant 0 : index
    %57 = vector.load %arg6[%c3_50, %c0_51, %c0_52] : memref<5x180x416xf32, #tpu.memory_space<vmem>>, vector<1x180x416xf32>
    %58 = vector.shape_cast %57 : vector<1x180x416xf32> to vector<180x416xf32>
    %cst_53 = arith.constant dense<0.000000e+00> : vector<26x416xf32>
    %59 = tpu.matmul %56, %58, %cst_53 {dimension_numbers = #tpu.dot_dimension_numbers<[1], [0], [0], [1], [0, 0, 1, 1], [], []>} : vector<26x180xf32>, vector<180x416xf32>, vector<26x416xf32> -> vector<26x416xf32>
    %60 = arith.addf %55, %59 : vector<26x416xf32>
    %61 = vector.extract_strided_slice %41 {offsets = [4, 0], sizes = [26, 180], strides = [1, 1]} : vector<30x180xf32> to vector<26x180xf32>
    %c4_54 = arith.constant 4 : index
    %c0_55 = arith.constant 0 : index
    %c0_56 = arith.constant 0 : index
    %62 = vector.load %arg6[%c4_54, %c0_55, %c0_56] : memref<5x180x416xf32, #tpu.memory_space<vmem>>, vector<1x180x416xf32>
    %63 = vector.shape_cast %62 : vector<1x180x416xf32> to vector<180x416xf32>
    %cst_57 = arith.constant dense<0.000000e+00> : vector<26x416xf32>
    %64 = tpu.matmul %61, %63, %cst_57 {dimension_numbers = #tpu.dot_dimension_numbers<[1], [0], [0], [1], [0, 0, 1, 1], [], []>} : vector<26x180xf32>, vector<180x416xf32>, vector<26x416xf32> -> vector<26x416xf32>
    %65 = arith.addf %60, %64 : vector<26x416xf32>
    %c0_58 = arith.constant 0 : index
    %c0_59 = arith.constant 0 : index
    %66 = vector.load %arg7[%c0_58, %c0_59] : memref<1x416xf32, #tpu.memory_space<vmem>>, vector<1x416xf32>
    %67 = vector.broadcast %66 : vector<1x416xf32> to vector<26x416xf32>
    %68 = arith.addf %65, %67 : vector<26x416xf32>
    %cst_60 = arith.constant 0.000000e+00 : f32
    %69 = vector.broadcast %cst_60 : f32 to vector<26x416xf32>
    %70 = arith.maximumf %68, %69 : vector<26x416xf32>
    %71 = vector.extract_strided_slice %70 {offsets = [0, 0], sizes = [26, 208], strides = [1, 1]} : vector<26x416xf32> to vector<26x208xf32>
    %72 = vector.extract_strided_slice %70 {offsets = [0, 208], sizes = [26, 208], strides = [1, 1]} : vector<26x416xf32> to vector<26x208xf32>
    %73 = arith.maximumf %71, %72 : vector<26x208xf32>
    %c0_61 = arith.constant 0 : index
    %c0_62 = arith.constant 0 : index
    %74 = vector.load %arg8[%c0_61, %c0_62] : memref<13x26xf32, #tpu.memory_space<vmem>>, vector<13x26xf32>
    %cst_63 = arith.constant dense<0.000000e+00> : vector<13x208xf32>
    %75 = tpu.matmul %74, %73, %cst_63 {dimension_numbers = #tpu.dot_dimension_numbers<[1], [0], [0], [1], [0, 0, 1, 1], [], []>} : vector<13x26xf32>, vector<26x208xf32>, vector<13x208xf32> -> vector<13x208xf32>
    %c0_64 = arith.constant 0 : index
    %c0_65 = arith.constant 0 : index
    %76 = vector.load %arg9[%c0_64, %c0_65] : memref<13x26xf32, #tpu.memory_space<vmem>>, vector<13x26xf32>
    %cst_66 = arith.constant dense<0.000000e+00> : vector<13x208xf32>
    %77 = tpu.matmul %76, %73, %cst_66 {dimension_numbers = #tpu.dot_dimension_numbers<[1], [0], [0], [1], [0, 0, 1, 1], [], []>} : vector<13x26xf32>, vector<26x208xf32>, vector<13x208xf32> -> vector<13x208xf32>
    %78 = arith.maximumf %75, %77 : vector<13x208xf32>
    %79 = vector.extract_strided_slice %78 {offsets = [0, 0], sizes = [1, 208], strides = [1, 1]} : vector<13x208xf32> to vector<1x208xf32>
    %c0_67 = arith.constant 0 : index
    %c0_68 = arith.constant 0 : index
    %c0_69 = arith.constant 0 : index
    %80 = vector.load %arg10[%c0_67, %c0_68, %c0_69] : memref<13x208x128xf32, #tpu.memory_space<vmem>>, vector<1x208x128xf32>
    %81 = vector.shape_cast %80 : vector<1x208x128xf32> to vector<208x128xf32>
    %cst_70 = arith.constant dense<0.000000e+00> : vector<1x128xf32>
    %82 = tpu.matmul %79, %81, %cst_70 {dimension_numbers = #tpu.dot_dimension_numbers<[1], [0], [0], [1], [0, 0, 1, 1], [], []>} : vector<1x208xf32>, vector<208x128xf32>, vector<1x128xf32> -> vector<1x128xf32>
    %83 = vector.extract_strided_slice %78 {offsets = [1, 0], sizes = [1, 208], strides = [1, 1]} : vector<13x208xf32> to vector<1x208xf32>
    %c1_71 = arith.constant 1 : index
    %c0_72 = arith.constant 0 : index
    %c0_73 = arith.constant 0 : index
    %84 = vector.load %arg10[%c1_71, %c0_72, %c0_73] : memref<13x208x128xf32, #tpu.memory_space<vmem>>, vector<1x208x128xf32>
    %85 = vector.shape_cast %84 : vector<1x208x128xf32> to vector<208x128xf32>
    %cst_74 = arith.constant dense<0.000000e+00> : vector<1x128xf32>
    %86 = tpu.matmul %83, %85, %cst_74 {dimension_numbers = #tpu.dot_dimension_numbers<[1], [0], [0], [1], [0, 0, 1, 1], [], []>} : vector<1x208xf32>, vector<208x128xf32>, vector<1x128xf32> -> vector<1x128xf32>
    %87 = arith.addf %82, %86 : vector<1x128xf32>
    %88 = vector.extract_strided_slice %78 {offsets = [2, 0], sizes = [1, 208], strides = [1, 1]} : vector<13x208xf32> to vector<1x208xf32>
    %c2_75 = arith.constant 2 : index
    %c0_76 = arith.constant 0 : index
    %c0_77 = arith.constant 0 : index
    %89 = vector.load %arg10[%c2_75, %c0_76, %c0_77] : memref<13x208x128xf32, #tpu.memory_space<vmem>>, vector<1x208x128xf32>
    %90 = vector.shape_cast %89 : vector<1x208x128xf32> to vector<208x128xf32>
    %cst_78 = arith.constant dense<0.000000e+00> : vector<1x128xf32>
    %91 = tpu.matmul %88, %90, %cst_78 {dimension_numbers = #tpu.dot_dimension_numbers<[1], [0], [0], [1], [0, 0, 1, 1], [], []>} : vector<1x208xf32>, vector<208x128xf32>, vector<1x128xf32> -> vector<1x128xf32>
    %92 = arith.addf %87, %91 : vector<1x128xf32>
    %93 = vector.extract_strided_slice %78 {offsets = [3, 0], sizes = [1, 208], strides = [1, 1]} : vector<13x208xf32> to vector<1x208xf32>
    %c3_79 = arith.constant 3 : index
    %c0_80 = arith.constant 0 : index
    %c0_81 = arith.constant 0 : index
    %94 = vector.load %arg10[%c3_79, %c0_80, %c0_81] : memref<13x208x128xf32, #tpu.memory_space<vmem>>, vector<1x208x128xf32>
    %95 = vector.shape_cast %94 : vector<1x208x128xf32> to vector<208x128xf32>
    %cst_82 = arith.constant dense<0.000000e+00> : vector<1x128xf32>
    %96 = tpu.matmul %93, %95, %cst_82 {dimension_numbers = #tpu.dot_dimension_numbers<[1], [0], [0], [1], [0, 0, 1, 1], [], []>} : vector<1x208xf32>, vector<208x128xf32>, vector<1x128xf32> -> vector<1x128xf32>
    %97 = arith.addf %92, %96 : vector<1x128xf32>
    %98 = vector.extract_strided_slice %78 {offsets = [4, 0], sizes = [1, 208], strides = [1, 1]} : vector<13x208xf32> to vector<1x208xf32>
    %c4_83 = arith.constant 4 : index
    %c0_84 = arith.constant 0 : index
    %c0_85 = arith.constant 0 : index
    %99 = vector.load %arg10[%c4_83, %c0_84, %c0_85] : memref<13x208x128xf32, #tpu.memory_space<vmem>>, vector<1x208x128xf32>
    %100 = vector.shape_cast %99 : vector<1x208x128xf32> to vector<208x128xf32>
    %cst_86 = arith.constant dense<0.000000e+00> : vector<1x128xf32>
    %101 = tpu.matmul %98, %100, %cst_86 {dimension_numbers = #tpu.dot_dimension_numbers<[1], [0], [0], [1], [0, 0, 1, 1], [], []>} : vector<1x208xf32>, vector<208x128xf32>, vector<1x128xf32> -> vector<1x128xf32>
    %102 = arith.addf %97, %101 : vector<1x128xf32>
    %103 = vector.extract_strided_slice %78 {offsets = [5, 0], sizes = [1, 208], strides = [1, 1]} : vector<13x208xf32> to vector<1x208xf32>
    %c5 = arith.constant 5 : index
    %c0_87 = arith.constant 0 : index
    %c0_88 = arith.constant 0 : index
    %104 = vector.load %arg10[%c5, %c0_87, %c0_88] : memref<13x208x128xf32, #tpu.memory_space<vmem>>, vector<1x208x128xf32>
    %105 = vector.shape_cast %104 : vector<1x208x128xf32> to vector<208x128xf32>
    %cst_89 = arith.constant dense<0.000000e+00> : vector<1x128xf32>
    %106 = tpu.matmul %103, %105, %cst_89 {dimension_numbers = #tpu.dot_dimension_numbers<[1], [0], [0], [1], [0, 0, 1, 1], [], []>} : vector<1x208xf32>, vector<208x128xf32>, vector<1x128xf32> -> vector<1x128xf32>
    %107 = arith.addf %102, %106 : vector<1x128xf32>
    %108 = vector.extract_strided_slice %78 {offsets = [6, 0], sizes = [1, 208], strides = [1, 1]} : vector<13x208xf32> to vector<1x208xf32>
    %c6 = arith.constant 6 : index
    %c0_90 = arith.constant 0 : index
    %c0_91 = arith.constant 0 : index
    %109 = vector.load %arg10[%c6, %c0_90, %c0_91] : memref<13x208x128xf32, #tpu.memory_space<vmem>>, vector<1x208x128xf32>
    %110 = vector.shape_cast %109 : vector<1x208x128xf32> to vector<208x128xf32>
    %cst_92 = arith.constant dense<0.000000e+00> : vector<1x128xf32>
    %111 = tpu.matmul %108, %110, %cst_92 {dimension_numbers = #tpu.dot_dimension_numbers<[1], [0], [0], [1], [0, 0, 1, 1], [], []>} : vector<1x208xf32>, vector<208x128xf32>, vector<1x128xf32> -> vector<1x128xf32>
    %112 = arith.addf %107, %111 : vector<1x128xf32>
    %113 = vector.extract_strided_slice %78 {offsets = [7, 0], sizes = [1, 208], strides = [1, 1]} : vector<13x208xf32> to vector<1x208xf32>
    %c7 = arith.constant 7 : index
    %c0_93 = arith.constant 0 : index
    %c0_94 = arith.constant 0 : index
    %114 = vector.load %arg10[%c7, %c0_93, %c0_94] : memref<13x208x128xf32, #tpu.memory_space<vmem>>, vector<1x208x128xf32>
    %115 = vector.shape_cast %114 : vector<1x208x128xf32> to vector<208x128xf32>
    %cst_95 = arith.constant dense<0.000000e+00> : vector<1x128xf32>
    %116 = tpu.matmul %113, %115, %cst_95 {dimension_numbers = #tpu.dot_dimension_numbers<[1], [0], [0], [1], [0, 0, 1, 1], [], []>} : vector<1x208xf32>, vector<208x128xf32>, vector<1x128xf32> -> vector<1x128xf32>
    %117 = arith.addf %112, %116 : vector<1x128xf32>
    %118 = vector.extract_strided_slice %78 {offsets = [8, 0], sizes = [1, 208], strides = [1, 1]} : vector<13x208xf32> to vector<1x208xf32>
    %c8 = arith.constant 8 : index
    %c0_96 = arith.constant 0 : index
    %c0_97 = arith.constant 0 : index
    %119 = vector.load %arg10[%c8, %c0_96, %c0_97] : memref<13x208x128xf32, #tpu.memory_space<vmem>>, vector<1x208x128xf32>
    %120 = vector.shape_cast %119 : vector<1x208x128xf32> to vector<208x128xf32>
    %cst_98 = arith.constant dense<0.000000e+00> : vector<1x128xf32>
    %121 = tpu.matmul %118, %120, %cst_98 {dimension_numbers = #tpu.dot_dimension_numbers<[1], [0], [0], [1], [0, 0, 1, 1], [], []>} : vector<1x208xf32>, vector<208x128xf32>, vector<1x128xf32> -> vector<1x128xf32>
    %122 = arith.addf %117, %121 : vector<1x128xf32>
    %123 = vector.extract_strided_slice %78 {offsets = [9, 0], sizes = [1, 208], strides = [1, 1]} : vector<13x208xf32> to vector<1x208xf32>
    %c9 = arith.constant 9 : index
    %c0_99 = arith.constant 0 : index
    %c0_100 = arith.constant 0 : index
    %124 = vector.load %arg10[%c9, %c0_99, %c0_100] : memref<13x208x128xf32, #tpu.memory_space<vmem>>, vector<1x208x128xf32>
    %125 = vector.shape_cast %124 : vector<1x208x128xf32> to vector<208x128xf32>
    %cst_101 = arith.constant dense<0.000000e+00> : vector<1x128xf32>
    %126 = tpu.matmul %123, %125, %cst_101 {dimension_numbers = #tpu.dot_dimension_numbers<[1], [0], [0], [1], [0, 0, 1, 1], [], []>} : vector<1x208xf32>, vector<208x128xf32>, vector<1x128xf32> -> vector<1x128xf32>
    %127 = arith.addf %122, %126 : vector<1x128xf32>
    %128 = vector.extract_strided_slice %78 {offsets = [10, 0], sizes = [1, 208], strides = [1, 1]} : vector<13x208xf32> to vector<1x208xf32>
    %c10 = arith.constant 10 : index
    %c0_102 = arith.constant 0 : index
    %c0_103 = arith.constant 0 : index
    %129 = vector.load %arg10[%c10, %c0_102, %c0_103] : memref<13x208x128xf32, #tpu.memory_space<vmem>>, vector<1x208x128xf32>
    %130 = vector.shape_cast %129 : vector<1x208x128xf32> to vector<208x128xf32>
    %cst_104 = arith.constant dense<0.000000e+00> : vector<1x128xf32>
    %131 = tpu.matmul %128, %130, %cst_104 {dimension_numbers = #tpu.dot_dimension_numbers<[1], [0], [0], [1], [0, 0, 1, 1], [], []>} : vector<1x208xf32>, vector<208x128xf32>, vector<1x128xf32> -> vector<1x128xf32>
    %132 = arith.addf %127, %131 : vector<1x128xf32>
    %133 = vector.extract_strided_slice %78 {offsets = [11, 0], sizes = [1, 208], strides = [1, 1]} : vector<13x208xf32> to vector<1x208xf32>
    %c11 = arith.constant 11 : index
    %c0_105 = arith.constant 0 : index
    %c0_106 = arith.constant 0 : index
    %134 = vector.load %arg10[%c11, %c0_105, %c0_106] : memref<13x208x128xf32, #tpu.memory_space<vmem>>, vector<1x208x128xf32>
    %135 = vector.shape_cast %134 : vector<1x208x128xf32> to vector<208x128xf32>
    %cst_107 = arith.constant dense<0.000000e+00> : vector<1x128xf32>
    %136 = tpu.matmul %133, %135, %cst_107 {dimension_numbers = #tpu.dot_dimension_numbers<[1], [0], [0], [1], [0, 0, 1, 1], [], []>} : vector<1x208xf32>, vector<208x128xf32>, vector<1x128xf32> -> vector<1x128xf32>
    %137 = arith.addf %132, %136 : vector<1x128xf32>
    %138 = vector.extract_strided_slice %78 {offsets = [12, 0], sizes = [1, 208], strides = [1, 1]} : vector<13x208xf32> to vector<1x208xf32>
    %c12 = arith.constant 12 : index
    %c0_108 = arith.constant 0 : index
    %c0_109 = arith.constant 0 : index
    %139 = vector.load %arg10[%c12, %c0_108, %c0_109] : memref<13x208x128xf32, #tpu.memory_space<vmem>>, vector<1x208x128xf32>
    %140 = vector.shape_cast %139 : vector<1x208x128xf32> to vector<208x128xf32>
    %cst_110 = arith.constant dense<0.000000e+00> : vector<1x128xf32>
    %141 = tpu.matmul %138, %140, %cst_110 {dimension_numbers = #tpu.dot_dimension_numbers<[1], [0], [0], [1], [0, 0, 1, 1], [], []>} : vector<1x208xf32>, vector<208x128xf32>, vector<1x128xf32> -> vector<1x128xf32>
    %142 = arith.addf %137, %141 : vector<1x128xf32>
    %c0_111 = arith.constant 0 : index
    %c0_112 = arith.constant 0 : index
    %143 = vector.load %arg11[%c0_111, %c0_112] : memref<1x128xf32, #tpu.memory_space<vmem>>, vector<1x128xf32>
    %144 = arith.addf %142, %143 : vector<1x128xf32>
    %cst_113 = arith.constant 0.000000e+00 : f32
    %145 = vector.broadcast %cst_113 : f32 to vector<1x128xf32>
    %146 = arith.maximumf %144, %145 : vector<1x128xf32>
    %c0_114 = arith.constant 0 : index
    %c0_115 = arith.constant 0 : index
    %147 = vector.load %arg12[%c0_114, %c0_115] : memref<128x128xf32, #tpu.memory_space<vmem>>, vector<128x128xf32>
    %cst_116 = arith.constant dense<0.000000e+00> : vector<1x128xf32>
    %148 = tpu.matmul %146, %147, %cst_116 {dimension_numbers = #tpu.dot_dimension_numbers<[1], [0], [0], [1], [0, 0, 1, 1], [], []>} : vector<1x128xf32>, vector<128x128xf32>, vector<1x128xf32> -> vector<1x128xf32>
    %c0_117 = arith.constant 0 : index
    %c0_118 = arith.constant 0 : index
    %149 = vector.load %arg13[%c0_117, %c0_118] : memref<1x128xf32, #tpu.memory_space<vmem>>, vector<1x128xf32>
    %150 = arith.addf %148, %149 : vector<1x128xf32>
    %cst_119 = arith.constant 0.000000e+00 : f32
    %151 = vector.broadcast %cst_119 : f32 to vector<1x128xf32>
    %152 = arith.maximumf %150, %151 : vector<1x128xf32>
    %c0_120 = arith.constant 0 : index
    %c0_121 = arith.constant 0 : index
    %153 = vector.load %arg14[%c0_120, %c0_121] : memref<128x128xf32, #tpu.memory_space<vmem>>, vector<128x128xf32>
    %cst_122 = arith.constant dense<0.000000e+00> : vector<1x128xf32>
    %154 = tpu.matmul %152, %153, %cst_122 {dimension_numbers = #tpu.dot_dimension_numbers<[1], [0], [0], [1], [0, 0, 1, 1], [], []>} : vector<1x128xf32>, vector<128x128xf32>, vector<1x128xf32> -> vector<1x128xf32>
    %c0_123 = arith.constant 0 : index
    %c0_124 = arith.constant 0 : index
    %155 = vector.load %arg15[%c0_123, %c0_124] : memref<1x128xf32, #tpu.memory_space<vmem>>, vector<1x128xf32>
    %156 = arith.addf %154, %155 : vector<1x128xf32>
    %c0_125 = arith.constant 0 : index
    %c0_126 = arith.constant 0 : index
    %c0_127 = arith.constant 0 : index
    %157 = vector.load %arg16[%c0_125, %c0_126, %c0_127] : memref<1x1x128xf32, #tpu.memory_space<vmem>>, vector<1x1x128xf32>
    %158 = vector.shape_cast %157 : vector<1x1x128xf32> to vector<1x128xf32>
    %159 = vector.shape_cast %156 : vector<1x128xf32> to vector<1x1x128xf32>
    tpu.vector_store %arg16[%c0_125, %c0_126, %c0_127], %159 {strides = array<i32>} : memref<1x1x128xf32, #tpu.memory_space<vmem>>, vector<1x1x128xf32>,
    return
  }
  func.func @transform_0(%arg0: i32) -> (i32, i32, i32) {
    %c0_i32 = arith.constant 0 : i32
    %c0_i32_0 = arith.constant 0 : i32
    %c0_i32_1 = arith.constant 0 : i32
    return %arg0, %c0_i32, %c0_i32_0 : i32, i32, i32
  }
  func.func @transform_1(%arg0: i32) -> (i32, i32, i32) {
    %c0_i32 = arith.constant 0 : i32
    %c0_i32_0 = arith.constant 0 : i32
    %c0_i32_1 = arith.constant 0 : i32
    %c0_i32_2 = arith.constant 0 : i32
    return %c0_i32, %c0_i32_0, %c0_i32_1 : i32, i32, i32
  }
  func.func @transform_2(%arg0: i32) -> (i32, i32) {
    %c0_i32 = arith.constant 0 : i32
    %c0_i32_0 = arith.constant 0 : i32
    %c0_i32_1 = arith.constant 0 : i32
    return %c0_i32, %c0_i32_0 : i32, i32
  }
  func.func @transform_3(%arg0: i32) -> (i32, i32) {
    %c0_i32 = arith.constant 0 : i32
    %c0_i32_0 = arith.constant 0 : i32
    %c0_i32_1 = arith.constant 0 : i32
    return %c0_i32, %c0_i32_0 : i32, i32
  }
  func.func @transform_4(%arg0: i32) -> (i32, i32) {
    %c0_i32 = arith.constant 0 : i32
    %c0_i32_0 = arith.constant 0 : i32
    %c0_i32_1 = arith.constant 0 : i32
    return %c0_i32, %c0_i32_0 : i32, i32
  }
  func.func @transform_5(%arg0: i32) -> (i32, i32, i32) {
    %c0_i32 = arith.constant 0 : i32
    %c0_i32_0 = arith.constant 0 : i32
    %c0_i32_1 = arith.constant 0 : i32
    %c0_i32_2 = arith.constant 0 : i32
    return %c0_i32, %c0_i32_0, %c0_i32_1 : i32, i32, i32
  }
  func.func @transform_6(%arg0: i32) -> (i32, i32) {
    %c0_i32 = arith.constant 0 : i32
    %c0_i32_0 = arith.constant 0 : i32
    %c0_i32_1 = arith.constant 0 : i32
    return %c0_i32, %c0_i32_0 : i32, i32
  }
  func.func @transform_7(%arg0: i32) -> (i32, i32) {
    %c0_i32 = arith.constant 0 : i32
    %c0_i32_0 = arith.constant 0 : i32
    %c0_i32_1 = arith.constant 0 : i32
    return %c0_i32, %c0_i32_0 : i32, i32
  }
  func.func @transform_8(%arg0: i32) -> (i32, i32) {
    %c0_i32 = arith.constant 0 : i32
    %c0_i32_0 = arith.constant 0 : i32
    %c0_i32_1 = arith.constant 0 : i32
    return %c0_i32, %c0_i32_0 : i32, i32
  }
  func.func @transform_9(%arg0: i32) -> (i32, i32, i32) {
    %c0_i32 = arith.constant 0 : i32
    %c0_i32_0 = arith.constant 0 : i32
    %c0_i32_1 = arith.constant 0 : i32
    %c0_i32_2 = arith.constant 0 : i32
    return %c0_i32, %c0_i32_0, %c0_i32_1 : i32, i32, i32
  }
  func.func @transform_10(%arg0: i32) -> (i32, i32) {
    %c0_i32 = arith.constant 0 : i32
    %c0_i32_0 = arith.constant 0 : i32
    %c0_i32_1 = arith.constant 0 : i32
    return %c0_i32, %c0_i32_0 : i32, i32
  }
  func.func @transform_11(%arg0: i32) -> (i32, i32) {
    %c0_i32 = arith.constant 0 : i32
    %c0_i32_0 = arith.constant 0 : i32
    %c0_i32_1 = arith.constant 0 : i32
    return %c0_i32, %c0_i32_0 : i32, i32
  }
  func.func @transform_12(%arg0: i32) -> (i32, i32) {
    %c0_i32 = arith.constant 0 : i32
    %c0_i32_0 = arith.constant 0 : i32
    %c0_i32_1 = arith.constant 0 : i32
    return %c0_i32, %c0_i32_0 : i32, i32
  }
  func.func @transform_13(%arg0: i32) -> (i32, i32) {
    %c0_i32 = arith.constant 0 : i32
    %c0_i32_0 = arith.constant 0 : i32
    %c0_i32_1 = arith.constant 0 : i32
    return %c0_i32, %c0_i32_0 : i32, i32
  }
  func.func @transform_14(%arg0: i32) -> (i32, i32) {
    %c0_i32 = arith.constant 0 : i32
    %c0_i32_0 = arith.constant 0 : i32
    %c0_i32_1 = arith.constant 0 : i32
    return %c0_i32, %c0_i32_0 : i32, i32
  }
  func.func @transform_15(%arg0: i32) -> (i32, i32, i32) {
    %c0_i32 = arith.constant 0 : i32
    %c0_i32_0 = arith.constant 0 : i32
    %c0_i32_1 = arith.constant 0 : i32
    return %arg0, %c0_i32, %c0_i32_0 : i32, i32, i32
  }
}

</mosaic_0001>

<llo_original>
// kernel: lenet5_forward.1
$region0: #{lenet5_forward.1}
  #allocation0 [shape = 'u32[]', space=smem, size = 0x4, offset = 0x4, fixed_abs, tag = 'smem constant byte address 0x4 - core index']
  #allocation1 [shape = 'u32[144,128]{1,0:T(1,128)}', space=vmem, size = 0x12000, scoped, tag = 'internal scratch']
  %s0 = inlined_call_operand.hbm [shape: f32[2,64,64], index: 0, kind: input, shape index: {}]
  %s1 = inlined_call_operand.hbm [shape: f32[5,64,360], index: 1, kind: input, shape index: {}]
  %s2 = inlined_call_operand.hbm [shape: f32[1,360], index: 2, kind: input, shape index: {}]
  %s3 = inlined_call_operand.hbm [shape: f32[30,60], index: 3, kind: input, shape index: {}]
  %s4 = inlined_call_operand.hbm [shape: f32[30,60], index: 4, kind: input, shape index: {}]
  %s5 = inlined_call_operand.hbm [shape: f32[5,180,416], index: 5, kind: input, shape index: {}]
  %s6 = inlined_call_operand.hbm [shape: f32[1,416], index: 6, kind: input, shape index: {}]
  %s7 = inlined_call_operand.hbm [shape: f32[13,26], index: 7, kind: input, shape index: {}]
  %s8 = inlined_call_operand.hbm [shape: f32[13,26], index: 8, kind: input, shape index: {}]
  %s9 = inlined_call_operand.hbm [shape: f32[13,208,128], index: 9, kind: input, shape index: {}]
  %s10 = inlined_call_operand.hbm [shape: f32[1,128], index: 10, kind: input, shape index: {}]
  %s11 = inlined_call_operand.hbm [shape: f32[128,128], index: 11, kind: input, shape index: {}]
  %s12 = inlined_call_operand.hbm [shape: f32[1,128], index: 12, kind: input, shape index: {}]
  %s13 = inlined_call_operand.hbm [shape: f32[128,128], index: 13, kind: input, shape index: {}]
  %s14 = inlined_call_operand.hbm [shape: f32[1,128], index: 14, kind: input, shape index: {}]
  %s15 = inlined_call_operand.hbm [shape: f32[2,1,128], index: 15, kind: output, shape index: {}]
  %s16 = sld [smem:[#allocation0]]
  $region153: #{lenet5_forward.1} parent=0
    _
  %s18 = ssub.s32 1, %s16
  %s19 = scalar_select 0, %s18, %s16
  $region1: #{lenet5_forward.1} parent=0
    #allocation2 [shape = 'u8[65536]{0}', space=vmem, size = 0x10000, scoped, tag = 'input window, operand 0']
    #allocation3 [shape = 's32[2]{0}', space=sflag, size = 0x8, scoped, tag = 'scoped memory for lenet5_forward.1']
    #allocation4 [shape = 's32[2]{0}', space=sflag, size = 0x8, scoped, tag = 'scoped memory for lenet5_forward.1']
    #allocation5 [shape = 'u8[491520]{0}', space=vmem, size = 0x78000, scoped, tag = 'input window, operand 1, single buffered']
    #allocation6 [shape = 's32[1]{0}', space=sflag, size = 0x4, scoped, tag = 'scoped memory for lenet5_forward.1']
    #allocation7 [shape = 'u8[1536]{0}', space=vmem, size = 0x800, scoped, tag = 'input window, operand 2, single buffered']
    #allocation8 [shape = 'u8[16384]{0}', space=vmem, size = 0x4000, scoped, tag = 'input window, operand 3, single buffered']
    #allocation9 [shape = 's32[1]{0}', space=sflag, size = 0x4, scoped, tag = 'scoped memory for lenet5_forward.1']
    #allocation10 [shape = 'u8[16384]{0}', space=vmem, size = 0x4000, scoped, tag = 'input window, operand 4, single buffered']
    #allocation11 [shape = 'u8[1884160]{0}', space=vmem, size = 0x1cc000, scoped, tag = 'input window, operand 5, single buffered']
    #allocation12 [shape = 's32[1]{0}', space=sflag, size = 0x4, scoped, tag = 'scoped memory for lenet5_forward.1']
    #allocation13 [shape = 'u8[2048]{0}', space=vmem, size = 0x800, scoped, tag = 'input window, operand 6, single buffered']
    #allocation14 [shape = 'u8[8192]{0}', space=vmem, size = 0x2000, scoped, tag = 'input window, operand 7, single buffered']
    #allocation15 [shape = 's32[1]{0}', space=sflag, size = 0x4, scoped, tag = 'scoped memory for lenet5_forward.1']
    #allocation16 [shape = 'u8[8192]{0}', space=vmem, size = 0x2000, scoped, tag = 'input window, operand 8, single buffered']
    #allocation17 [shape = 'u8[1384448]{0}', space=vmem, size = 0x152000, scoped, tag = 'input window, operand 9, single buffered']
    #allocation18 [shape = 's32[1]{0}', space=sflag, size = 0x4, scoped, tag = 'scoped memory for lenet5_forward.1']
    #allocation19 [shape = 'u8[512]{0}', space=vmem, size = 0x400, scoped, tag = 'input window, operand 10, single buffered']
    #allocation20 [shape = 'u8[65536]{0}', space=vmem, size = 0x10000, scoped, tag = 'input window, operand 11, single buffered']
    #allocation21 [shape = 's32[1]{0}', space=sflag, size = 0x4, scoped, tag = 'scoped memory for lenet5_forward.1']
    #allocation22 [shape = 'u8[512]{0}', space=vmem, size = 0x400, scoped, tag = 'input window, operand 12, single buffered']
    #allocation23 [shape = 'u8[65536]{0}', space=vmem, size = 0x10000, scoped, tag = 'input window, operand 13, single buffered']
    #allocation24 [shape = 's32[1]{0}', space=sflag, size = 0x4, scoped, tag = 'scoped memory for lenet5_forward.1']
    #allocation25 [shape = 'u8[512]{0}', space=vmem, size = 0x400, scoped, tag = 'input window, operand 14, single buffered']
    #allocation26 [shape = 'u8[1024]{0}', space=vmem, size = 0x400, scoped, tag = 'output window, operand 0']
    %20 = vsyncpa [#allocation3], 0
    %s21 = scalar_lea.sflag [#allocation3], 1
    %22 = vsyncpa %s21, 0
    %23 = vsyncpa [#allocation6], 0
    %24 = vsyncpa [#allocation9], 0
    %25 = vsyncpa [#allocation12], 0
    %26 = vsyncpa [#allocation15], 0
    %27 = vsyncpa [#allocation18], 0
    %28 = vsyncpa [#allocation21], 0
    %29 = vsyncpa [#allocation24], 0
    %30 = vsyncpa [#allocation4], 0
    %s31 = scalar_lea.sflag [#allocation4], 1
    %32 = vsyncpa %s31, 0
    loop: start=0, step=1, limit=4
    $region2: #{lenet5_forward.1} parent=1 // loop_pre_header
      _
    $region3: #{lenet5_forward.1} parent=1 // loop_header
      %s34 = sphi 0, %s38
      %p35 = scmp.ge.s32.totalorder %s34, 4
      %s44 = sphi 0, %s46
      %s47 = sphi 0, %s44
      %s48 = sphi 0, %s47
      %s64 = sphi 0, %s48
      %s68 = sphi 0, %s68
      %s70 = sphi 0, %s68
      %s71 = sphi 0, %s70
      %s85 = sphi 0, %s71
      %s89 = sphi 0, %s89
      %s91 = sphi 0, %s89
      %s92 = sphi 0, %s91
      %s106 = sphi 0, %s92
      %s110 = sphi 0, %s110
      %s112 = sphi 0, %s110
      %s113 = sphi 0, %s112
      %s127 = sphi 0, %s113
      %s131 = sphi 0, %s131
      %s133 = sphi 0, %s131
      %s134 = sphi 0, %s133
      %s148 = sphi 0, %s134
      %s152 = sphi 0, %s152
      %s154 = sphi 0, %s152
      %s155 = sphi 0, %s154
      %s169 = sphi 0, %s155
      %s173 = sphi 0, %s173
      %s175 = sphi 0, %s173
      %s176 = sphi 0, %s175
      %s190 = sphi 0, %s176
      %s194 = sphi 0, %s194
      %s196 = sphi 0, %s194
      %s197 = sphi 0, %s196
      %s211 = sphi 0, %s197
      %s215 = sphi 0, %s215
      %s217 = sphi 0, %s215
      %s218 = sphi 0, %s217
      %s232 = sphi 0, %s218
      %s236 = sphi 0, %s236
      %s238 = sphi 0, %s236
      %s239 = sphi 0, %s238
      %s253 = sphi 0, %s239
      %s257 = sphi 0, %s257
      %s259 = sphi 0, %s257
      %s260 = sphi 0, %s259
      %s274 = sphi 0, %s260
      %s278 = sphi 0, %s278
      %s280 = sphi 0, %s278
      %s281 = sphi 0, %s280
      %s295 = sphi 0, %s281
      %s299 = sphi 0, %s299
      %s301 = sphi 0, %s299
      %s302 = sphi 0, %s301
      %s316 = sphi 0, %s302
      %s320 = sphi 0, %s320
      %s322 = sphi 0, %s320
      %s323 = sphi 0, %s322
      %s337 = sphi 0, %s323
      %s341 = sphi 0, %s341
      %s343 = sphi 0, %s341
      %s344 = sphi 0, %s343
      %s358 = sphi 0, %s344
      %s364 = sphi 0, %s366
      %s367 = sphi 0, %s364
      %s368 = sphi 0, %s367
      %s384 = sphi 0, %s368
    $region4: #{lenet5_forward.1} parent=1 // loop_header_branch
      %37 = sbr.rel (%p35) target = $region8
    $region5: #{lenet5_forward.1} parent=1 // loop_body
      %s39 = ssub.s32 %s34, 1
      %s40 = ssub.s32 %s34, 2
      %s41 = sadd.s32 %s34, 1
      %s42 = ssub.s32 %s34, %s41
      %p43 = scmp.eq.s32.totalorder %s42, 0
      %s45 = sadd.s32 %s44, 1
      %s46 = scalar_select %p43, %s44, %s45
      %p49 = pneg %p43
      %p50 = scmp.eq.s32.totalorder %s34, 1
      %p51 = por %p49, %p50
      %p52 = scmp.ne.s32.totalorder %s44, %s47
      %p53 = scmp.eq.s32.totalorder %s34, 0
      %p54 = por %p52, %p53
      %p55 = scmp.ne.s32.totalorder %s44, %s47
      %p56 = scmp.eq.s32.totalorder %s39, 1
      %p57 = por %p55, %p56
      %p58 = scmp.ne.s32.totalorder %s47, %s48
      %p59 = scmp.eq.s32.totalorder %s39, 0
      %p60 = por %p58, %p59
      %p61 = scmp.ne.s32.totalorder %s47, %s48
      %p62 = scmp.eq.s32.totalorder %s40, 1
      %p63 = por %p61, %p62
      %p65 = scmp.ne.s32.totalorder %s48, %s64
      %p66 = scmp.eq.s32.totalorder %s40, 0
      %p67 = por %p65, %p66
      %s69 = sadd.s32 %s68, 1
      %p72 = scmp.eq.s32.totalorder %s34, 1
      %p73 = scmp.ne.s32.totalorder %s68, %s70
      %p74 = scmp.eq.s32.totalorder %s34, 0
      %p75 = por %p73, %p74
      %p76 = scmp.ne.s32.totalorder %s68, %s70
      %p77 = scmp.eq.s32.totalorder %s39, 1
      %p78 = por %p76, %p77
      %p79 = scmp.ne.s32.totalorder %s70, %s71
      %p80 = scmp.eq.s32.totalorder %s39, 0
      %p81 = por %p79, %p80
      %p82 = scmp.ne.s32.totalorder %s70, %s71
      %p83 = scmp.eq.s32.totalorder %s40, 1
      %p84 = por %p82, %p83
      %p86 = scmp.ne.s32.totalorder %s71, %s85
      %p87 = scmp.eq.s32.totalorder %s40, 0
      %p88 = por %p86, %p87
      %s90 = sadd.s32 %s89, 1
      %p93 = scmp.eq.s32.totalorder %s34, 1
      %p94 = scmp.ne.s32.totalorder %s89, %s91
      %p95 = scmp.eq.s32.totalorder %s34, 0
      %p96 = por %p94, %p95
      %p97 = scmp.ne.s32.totalorder %s89, %s91
      %p98 = scmp.eq.s32.totalorder %s39, 1
      %p99 = por %p97, %p98
      %p100 = scmp.ne.s32.totalorder %s91, %s92
      %p101 = scmp.eq.s32.totalorder %s39, 0
      %p102 = por %p100, %p101
      %p103 = scmp.ne.s32.totalorder %s91, %s92
      %p104 = scmp.eq.s32.totalorder %s40, 1
      %p105 = por %p103, %p104
      %p107 = scmp.ne.s32.totalorder %s92, %s106
      %p108 = scmp.eq.s32.totalorder %s40, 0
      %p109 = por %p107, %p108
      %s111 = sadd.s32 %s110, 1
      %p114 = scmp.eq.s32.totalorder %s34, 1
      %p115 = scmp.ne.s32.totalorder %s110, %s112
      %p116 = scmp.eq.s32.totalorder %s34, 0
      %p117 = por %p115, %p116
      %p118 = scmp.ne.s32.totalorder %s110, %s112
      %p119 = scmp.eq.s32.totalorder %s39, 1
      %p120 = por %p118, %p119
      %p121 = scmp.ne.s32.totalorder %s112, %s113
      %p122 = scmp.eq.s32.totalorder %s39, 0
      %p123 = por %p121, %p122
      %p124 = scmp.ne.s32.totalorder %s112, %s113
      %p125 = scmp.eq.s32.totalorder %s40, 1
      %p126 = por %p124, %p125
      %p128 = scmp.ne.s32.totalorder %s113, %s127
      %p129 = scmp.eq.s32.totalorder %s40, 0
      %p130 = por %p128, %p129
      %s132 = sadd.s32 %s131, 1
      %p135 = scmp.eq.s32.totalorder %s34, 1
      %p136 = scmp.ne.s32.totalorder %s131, %s133
      %p137 = scmp.eq.s32.totalorder %s34, 0
      %p138 = por %p136, %p137
      %p139 = scmp.ne.s32.totalorder %s131, %s133
      %p140 = scmp.eq.s32.totalorder %s39, 1
      %p141 = por %p139, %p140
      %p142 = scmp.ne.s32.totalorder %s133, %s134
      %p143 = scmp.eq.s32.totalorder %s39, 0
      %p144 = por %p142, %p143
      %p145 = scmp.ne.s32.totalorder %s133, %s134
      %p146 = scmp.eq.s32.totalorder %s40, 1
      %p147 = por %p145, %p146
      %p149 = scmp.ne.s32.totalorder %s134, %s148
      %p150 = scmp.eq.s32.totalorder %s40, 0
      %p151 = por %p149, %p150
      %s153 = sadd.s32 %s152, 1
      %p156 = scmp.eq.s32.totalorder %s34, 1
      %p157 = scmp.ne.s32.totalorder %s152, %s154
      %p158 = scmp.eq.s32.totalorder %s34, 0
      %p159 = por %p157, %p158
      %p160 = scmp.ne.s32.totalorder %s152, %s154
      %p161 = scmp.eq.s32.totalorder %s39, 1
      %p162 = por %p160, %p161
      %p163 = scmp.ne.s32.totalorder %s154, %s155
      %p164 = scmp.eq.s32.totalorder %s39, 0
      %p165 = por %p163, %p164
      %p166 = scmp.ne.s32.totalorder %s154, %s155
      %p167 = scmp.eq.s32.totalorder %s40, 1
      %p168 = por %p166, %p167
      %p170 = scmp.ne.s32.totalorder %s155, %s169
      %p171 = scmp.eq.s32.totalorder %s40, 0
      %p172 = por %p170, %p171
      %s174 = sadd.s32 %s173, 1
      %p177 = scmp.eq.s32.totalorder %s34, 1
      %p178 = scmp.ne.s32.totalorder %s173, %s175
      %p179 = scmp.eq.s32.totalorder %s34, 0
      %p180 = por %p178, %p179
      %p181 = scmp.ne.s32.totalorder %s173, %s175
      %p182 = scmp.eq.s32.totalorder %s39, 1
      %p183 = por %p181, %p182
      %p184 = scmp.ne.s32.totalorder %s175, %s176
      %p185 = scmp.eq.s32.totalorder %s39, 0
      %p186 = por %p184, %p185
      %p187 = scmp.ne.s32.totalorder %s175, %s176
      %p188 = scmp.eq.s32.totalorder %s40, 1
      %p189 = por %p187, %p188
      %p191 = scmp.ne.s32.totalorder %s176, %s190
      %p192 = scmp.eq.s32.totalorder %s40, 0
      %p193 = por %p191, %p192
      %s195 = sadd.s32 %s194, 1
      %p198 = scmp.eq.s32.totalorder %s34, 1
      %p199 = scmp.ne.s32.totalorder %s194, %s196
      %p200 = scmp.eq.s32.totalorder %s34, 0
      %p201 = por %p199, %p200
      %p202 = scmp.ne.s32.totalorder %s194, %s196
      %p203 = scmp.eq.s32.totalorder %s39, 1
      %p204 = por %p202, %p203
      %p205 = scmp.ne.s32.totalorder %s196, %s197
      %p206 = scmp.eq.s32.totalorder %s39, 0
      %p207 = por %p205, %p206
      %p208 = scmp.ne.s32.totalorder %s196, %s197
      %p209 = scmp.eq.s32.totalorder %s40, 1
      %p210 = por %p208, %p209
      %p212 = scmp.ne.s32.totalorder %s197, %s211
      %p213 = scmp.eq.s32.totalorder %s40, 0
      %p214 = por %p212, %p213
      %s216 = sadd.s32 %s215, 1
      %p219 = scmp.eq.s32.totalorder %s34, 1
      %p220 = scmp.ne.s32.totalorder %s215, %s217
      %p221 = scmp.eq.s32.totalorder %s34, 0
      %p222 = por %p220, %p221
      %p223 = scmp.ne.s32.totalorder %s215, %s217
      %p224 = scmp.eq.s32.totalorder %s39, 1
      %p225 = por %p223, %p224
      %p226 = scmp.ne.s32.totalorder %s217, %s218
      %p227 = scmp.eq.s32.totalorder %s39, 0
      %p228 = por %p226, %p227
      %p229 = scmp.ne.s32.totalorder %s217, %s218
      %p230 = scmp.eq.s32.totalorder %s40, 1
      %p231 = por %p229, %p230
      %p233 = scmp.ne.s32.totalorder %s218, %s232
      %p234 = scmp.eq.s32.totalorder %s40, 0
      %p235 = por %p233, %p234
      %s237 = sadd.s32 %s236, 1
      %p240 = scmp.eq.s32.totalorder %s34, 1
      %p241 = scmp.ne.s32.totalorder %s236, %s238
      %p242 = scmp.eq.s32.totalorder %s34, 0
      %p243 = por %p241, %p242
      %p244 = scmp.ne.s32.totalorder %s236, %s238
      %p245 = scmp.eq.s32.totalorder %s39, 1
      %p246 = por %p244, %p245
      %p247 = scmp.ne.s32.totalorder %s238, %s239
      %p248 = scmp.eq.s32.totalorder %s39, 0
      %p249 = por %p247, %p248
      %p250 = scmp.ne.s32.totalorder %s238, %s239
      %p251 = scmp.eq.s32.totalorder %s40, 1
      %p252 = por %p250, %p251
      %p254 = scmp.ne.s32.totalorder %s239, %s253
      %p255 = scmp.eq.s32.totalorder %s40, 0
      %p256 = por %p254, %p255
      %s258 = sadd.s32 %s257, 1
      %p261 = scmp.eq.s32.totalorder %s34, 1
      %p262 = scmp.ne.s32.totalorder %s257, %s259
      %p263 = scmp.eq.s32.totalorder %s34, 0
      %p264 = por %p262, %p263
      %p265 = scmp.ne.s32.totalorder %s257, %s259
      %p266 = scmp.eq.s32.totalorder %s39, 1
      %p267 = por %p265, %p266
      %p268 = scmp.ne.s32.totalorder %s259, %s260
      %p269 = scmp.eq.s32.totalorder %s39, 0
      %p270 = por %p268, %p269
      %p271 = scmp.ne.s32.totalorder %s259, %s260
      %p272 = scmp.eq.s32.totalorder %s40, 1
      %p273 = por %p271, %p272
      %p275 = scmp.ne.s32.totalorder %s260, %s274
      %p276 = scmp.eq.s32.totalorder %s40, 0
      %p277 = por %p275, %p276
      %s279 = sadd.s32 %s278, 1
      %p282 = scmp.eq.s32.totalorder %s34, 1
      %p283 = scmp.ne.s32.totalorder %s278, %s280
      %p284 = scmp.eq.s32.totalorder %s34, 0
      %p285 = por %p283, %p284
      %p286 = scmp.ne.s32.totalorder %s278, %s280
      %p287 = scmp.eq.s32.totalorder %s39, 1
      %p288 = por %p286, %p287
      %p289 = scmp.ne.s32.totalorder %s280, %s281
      %p290 = scmp.eq.s32.totalorder %s39, 0
      %p291 = por %p289, %p290
      %p292 = scmp.ne.s32.totalorder %s280, %s281
      %p293 = scmp.eq.s32.totalorder %s40, 1
      %p294 = por %p292, %p293
      %p296 = scmp.ne.s32.totalorder %s281, %s295
      %p297 = scmp.eq.s32.totalorder %s40, 0
      %p298 = por %p296, %p297
      %s300 = sadd.s32 %s299, 1
      %p303 = scmp.eq.s32.totalorder %s34, 1
      %p304 = scmp.ne.s32.totalorder %s299, %s301
      %p305 = scmp.eq.s32.totalorder %s34, 0
      %p306 = por %p304, %p305
      %p307 = scmp.ne.s32.totalorder %s299, %s301
      %p308 = scmp.eq.s32.totalorder %s39, 1
      %p309 = por %p307, %p308
      %p310 = scmp.ne.s32.totalorder %s301, %s302
      %p311 = scmp.eq.s32.totalorder %s39, 0
      %p312 = por %p310, %p311
      %p313 = scmp.ne.s32.totalorder %s301, %s302
      %p314 = scmp.eq.s32.totalorder %s40, 1
      %p315 = por %p313, %p314
      %p317 = scmp.ne.s32.totalorder %s302, %s316
      %p318 = scmp.eq.s32.totalorder %s40, 0
      %p319 = por %p317, %p318
      %s321 = sadd.s32 %s320, 1
      %p324 = scmp.eq.s32.totalorder %s34, 1
      %p325 = scmp.ne.s32.totalorder %s320, %s322
      %p326 = scmp.eq.s32.totalorder %s34, 0
      %p327 = por %p325, %p326
      %p328 = scmp.ne.s32.totalorder %s320, %s322
      %p329 = scmp.eq.s32.totalorder %s39, 1
      %p330 = por %p328, %p329
      %p331 = scmp.ne.s32.totalorder %s322, %s323
      %p332 = scmp.eq.s32.totalorder %s39, 0
      %p333 = por %p331, %p332
      %p334 = scmp.ne.s32.totalorder %s322, %s323
      %p335 = scmp.eq.s32.totalorder %s40, 1
      %p336 = por %p334, %p335
      %p338 = scmp.ne.s32.totalorder %s323, %s337
      %p339 = scmp.eq.s32.totalorder %s40, 0
      %p340 = por %p338, %p339
      %s342 = sadd.s32 %s341, 1
      %p345 = scmp.eq.s32.totalorder %s34, 1
      %p346 = scmp.ne.s32.totalorder %s341, %s343
      %p347 = scmp.eq.s32.totalorder %s34, 0
      %p348 = por %p346, %p347
      %p349 = scmp.ne.s32.totalorder %s341, %s343
      %p350 = scmp.eq.s32.totalorder %s39, 1
      %p351 = por %p349, %p350
      %p352 = scmp.ne.s32.totalorder %s343, %s344
      %p353 = scmp.eq.s32.totalorder %s39, 0
      %p354 = por %p352, %p353
      %p355 = scmp.ne.s32.totalorder %s343, %s344
      %p356 = scmp.eq.s32.totalorder %s40, 1
      %p357 = por %p355, %p356
      %p359 = scmp.ne.s32.totalorder %s344, %s358
      %p360 = scmp.eq.s32.totalorder %s40, 0
      %p361 = por %p359, %p360
      %s362 = ssub.s32 %s34, %s41
      %p363 = scmp.eq.s32.totalorder %s362, 0
      %s365 = sadd.s32 %s364, 1
      %s366 = scalar_select %p363, %s364, %s365
      %p369 = pneg %p363
      %p370 = scmp.eq.s32.totalorder %s34, 1
      %p371 = por %p369, %p370
      %p372 = scmp.ne.s32.totalorder %s364, %s367
      %p373 = scmp.eq.s32.totalorder %s34, 0
      %p374 = por %p372, %p373
      %p375 = scmp.ne.s32.totalorder %s364, %s367
      %p376 = scmp.eq.s32.totalorder %s39, 1
      %p377 = por %p375, %p376
      %p378 = scmp.ne.s32.totalorder %s367, %s368
      %p379 = scmp.eq.s32.totalorder %s39, 0
      %p380 = por %p378, %p379
      %p381 = scmp.ne.s32.totalorder %s367, %s368
      %p382 = scmp.eq.s32.totalorder %s40, 1
      %p383 = por %p381, %p382
      %p385 = scmp.ne.s32.totalorder %s368, %s384
      %p386 = scmp.eq.s32.totalorder %s40, 0
      %p387 = por %p385, %p386
      %p388 = scmp.le.s32.totalorder 1, %s34
      %p389 = scmp.lt.s32.totalorder %s34, 3
      %p390 = pnand %p388, %p389
      %p391 = pneg %p390
      // Predicated region
      $region9: #{lenet5_forward.1} parent=5 // pred_check
        _
      $region10: #{lenet5_forward.1} parent=5 // pred_check_branch
        %393 = sbr.rel (%p390) target = $region12
      $region11: #{lenet5_forward.1} parent=5 // pred_region
        %s394 = ssub.s32 %s34, 1
        // Predicated region
        $region13: #{lenet5_forward.1} parent=11 // pred_check
          %p395 = pneg %p81
        $region14: #{lenet5_forward.1} parent=11 // pred_check_branch
          %397 = sbr.rel (%p395) target = $region16
        $region15: #{lenet5_forward.1} parent=11 // pred_region
          %s399 = ssub.s32 15360, 15360
          %400 = vsyncadd [#allocation6], %s399
          %s401 = sshll.u32 [#allocation5], 4
          %s402 = int_to_ptr.vmem [resolvable:$true] %s401
          %407 = dma.hbm_to_vmem [thread:$0]  %s1, 15360, %s402, [#allocation6], 384, 384, 24
        $region16: #{lenet5_forward.1} parent=11 // pred_fallthru
          _
        // Predicated region
        $region17: #{lenet5_forward.1} parent=11 // pred_check
          %p408 = pneg %p102
        $region18: #{lenet5_forward.1} parent=11 // pred_check_branch
          %410 = sbr.rel (%p408) target = $region20
        $region19: #{lenet5_forward.1} parent=11 // pred_region
          %s412 = ssub.s32 48, 48
          %413 = vsyncadd [#allocation6], %s412
          %s415 = sshll.u32 [#allocation7], 4
          %s416 = int_to_ptr.vmem [resolvable:$true] %s415
          %418 = dma.hbm_to_vmem [thread:$0]  %s2, 48, %s416, [#allocation6]
        $region20: #{lenet5_forward.1} parent=11 // pred_fallthru
          _
        // Predicated region
        $region21: #{lenet5_forward.1} parent=11 // pred_check
          %p419 = pneg %p123
        $region22: #{lenet5_forward.1} parent=11 // pred_check_branch
          %421 = sbr.rel (%p419) target = $region24
        $region23: #{lenet5_forward.1} parent=11 // pred_region
          %s423 = ssub.s32 512, 512
          %424 = vsyncadd [#allocation9], %s423
          %s425 = sshll.u32 [#allocation8], 4
          %s426 = int_to_ptr.vmem [resolvable:$true] %s425
          %431 = dma.hbm_to_vmem [thread:$0]  %s3, 512, %s426, [#allocation9], 128, 128, 8
        $region24: #{lenet5_forward.1} parent=11 // pred_fallthru
          _
        // Predicated region
        $region25: #{lenet5_forward.1} parent=11 // pred_check
          %p432 = pneg %p144
        $region26: #{lenet5_forward.1} parent=11 // pred_check_branch
          %434 = sbr.rel (%p432) target = $region28
        $region27: #{lenet5_forward.1} parent=11 // pred_region
          %s436 = ssub.s32 512, 512
          %437 = vsyncadd [#allocation9], %s436
          %s438 = sshll.u32 [#allocation10], 4
          %s439 = int_to_ptr.vmem [resolvable:$true] %s438
          %444 = dma.hbm_to_vmem [thread:$0]  %s4, 512, %s439, [#allocation9], 128, 128, 8
        $region28: #{lenet5_forward.1} parent=11 // pred_fallthru
          _
        // Predicated region
        $region29: #{lenet5_forward.1} parent=11 // pred_check
          %p445 = pneg %p165
        $region30: #{lenet5_forward.1} parent=11 // pred_check_branch
          %447 = sbr.rel (%p445) target = $region32
        $region31: #{lenet5_forward.1} parent=11 // pred_region
          %s449 = ssub.s32 58880, 58880
          %450 = vsyncadd [#allocation12], %s449
          %s451 = sshll.u32 [#allocation11], 4
          %s452 = int_to_ptr.vmem [resolvable:$true] %s451
          %457 = dma.hbm_to_vmem [thread:$0]  %s5, 58880, %s452, [#allocation12], 512, 512, 32
        $region32: #{lenet5_forward.1} parent=11 // pred_fallthru
          _
        // Predicated region
        $region33: #{lenet5_forward.1} parent=11 // pred_check
          %p458 = pneg %p186
        $region34: #{lenet5_forward.1} parent=11 // pred_check_branch
          %460 = sbr.rel (%p458) target = $region36
        $region35: #{lenet5_forward.1} parent=11 // pred_region
          %s462 = ssub.s32 64, 64
          %463 = vsyncadd [#allocation12], %s462
          %s465 = sshll.u32 [#allocation13], 4
          %s466 = int_to_ptr.vmem [resolvable:$true] %s465
          %468 = dma.hbm_to_vmem [thread:$0]  %s6, 64, %s466, [#allocation12]
        $region36: #{lenet5_forward.1} parent=11 // pred_fallthru
          _
        // Predicated region
        $region37: #{lenet5_forward.1} parent=11 // pred_check
          %p469 = pneg %p207
        $region38: #{lenet5_forward.1} parent=11 // pred_check_branch
          %471 = sbr.rel (%p469) target = $region40
        $region39: #{lenet5_forward.1} parent=11 // pred_region
          %s473 = ssub.s32 256, 256
          %474 = vsyncadd [#allocation15], %s473
          %s475 = sshll.u32 [#allocation14], 4
          %s476 = int_to_ptr.vmem [resolvable:$true] %s475
          %481 = dma.hbm_to_vmem [thread:$0]  %s7, 256, %s476, [#allocation15], 128, 128, 8
        $region40: #{lenet5_forward.1} parent=11 // pred_fallthru
          _
        // Predicated region
        $region41: #{lenet5_forward.1} parent=11 // pred_check
          %p482 = pneg %p228
        $region42: #{lenet5_forward.1} parent=11 // pred_check_branch
          %484 = sbr.rel (%p482) target = $region44
        $region43: #{lenet5_forward.1} parent=11 // pred_region
          %s486 = ssub.s32 256, 256
          %487 = vsyncadd [#allocation15], %s486
          %s488 = sshll.u32 [#allocation16], 4
          %s489 = int_to_ptr.vmem [resolvable:$true] %s488
          %494 = dma.hbm_to_vmem [thread:$0]  %s8, 256, %s489, [#allocation15], 128, 128, 8
        $region44: #{lenet5_forward.1} parent=11 // pred_fallthru
          _
        // Predicated region
        $region45: #{lenet5_forward.1} parent=11 // pred_check
          %p495 = pneg %p249
        $region46: #{lenet5_forward.1} parent=11 // pred_check_branch
          %497 = sbr.rel (%p495) target = $region48
        $region47: #{lenet5_forward.1} parent=11 // pred_region
          %s499 = ssub.s32 43264, 43264
          %500 = vsyncadd [#allocation18], %s499
          %s501 = sshll.u32 [#allocation17], 4
          %s502 = int_to_ptr.vmem [resolvable:$true] %s501
          %507 = dma.hbm_to_vmem [thread:$0]  %s9, 43264, %s502, [#allocation18], 128, 128, 8
        $region48: #{lenet5_forward.1} parent=11 // pred_fallthru
          _
        // Predicated region
        $region49: #{lenet5_forward.1} parent=11 // pred_check
          %p508 = pneg %p270
        $region50: #{lenet5_forward.1} parent=11 // pred_check_branch
          %510 = sbr.rel (%p508) target = $region52
        $region51: #{lenet5_forward.1} parent=11 // pred_region
          %s512 = ssub.s32 16, 16
          %513 = vsyncadd [#allocation18], %s512
          %s515 = sshll.u32 [#allocation19], 4
          %s516 = int_to_ptr.vmem [resolvable:$true] %s515
          %518 = dma.hbm_to_vmem [thread:$0]  %s10, 16, %s516, [#allocation18]
        $region52: #{lenet5_forward.1} parent=11 // pred_fallthru
          _
        // Predicated region
        $region53: #{lenet5_forward.1} parent=11 // pred_check
          %p519 = pneg %p291
        $region54: #{lenet5_forward.1} parent=11 // pred_check_branch
          %521 = sbr.rel (%p519) target = $region56
        $region55: #{lenet5_forward.1} parent=11 // pred_region
          %s523 = ssub.s32 2048, 2048
          %524 = vsyncadd [#allocation21], %s523
          %s525 = sshll.u32 [#allocation20], 4
          %s526 = int_to_ptr.vmem [resolvable:$true] %s525
          %531 = dma.hbm_to_vmem [thread:$0]  %s11, 2048, %s526, [#allocation21], 128, 128, 8
        $region56: #{lenet5_forward.1} parent=11 // pred_fallthru
          _
        // Predicated region
        $region57: #{lenet5_forward.1} parent=11 // pred_check
          %p532 = pneg %p312
        $region58: #{lenet5_forward.1} parent=11 // pred_check_branch
          %534 = sbr.rel (%p532) target = $region60
        $region59: #{lenet5_forward.1} parent=11 // pred_region
          %s536 = ssub.s32 16, 16
          %537 = vsyncadd [#allocation21], %s536
          %s539 = sshll.u32 [#allocation22], 4
          %s540 = int_to_ptr.vmem [resolvable:$true] %s539
          %542 = dma.hbm_to_vmem [thread:$0]  %s12, 16, %s540, [#allocation21]
        $region60: #{lenet5_forward.1} parent=11 // pred_fallthru
          _
        // Predicated region
        $region61: #{lenet5_forward.1} parent=11 // pred_check
          %p543 = pneg %p333
        $region62: #{lenet5_forward.1} parent=11 // pred_check_branch
          %545 = sbr.rel (%p543) target = $region64
        $region63: #{lenet5_forward.1} parent=11 // pred_region
          %s547 = ssub.s32 2048, 2048
          %548 = vsyncadd [#allocation24], %s547
          %s549 = sshll.u32 [#allocation23], 4
          %s550 = int_to_ptr.vmem [resolvable:$true] %s549
          %555 = dma.hbm_to_vmem [thread:$0]  %s13, 2048, %s550, [#allocation24], 128, 128, 8
        $region64: #{lenet5_forward.1} parent=11 // pred_fallthru
          _
        // Predicated region
        $region65: #{lenet5_forward.1} parent=11 // pred_check
          %p556 = pneg %p354
        $region66: #{lenet5_forward.1} parent=11 // pred_check_branch
          %558 = sbr.rel (%p556) target = $region68
        $region67: #{lenet5_forward.1} parent=11 // pred_region
          %s560 = ssub.s32 16, 16
          %561 = vsyncadd [#allocation24], %s560
          %s563 = sshll.u32 [#allocation25], 4
          %s564 = int_to_ptr.vmem [resolvable:$true] %s563
          %566 = dma.hbm_to_vmem [thread:$0]  %s14, 16, %s564, [#allocation24]
        $region68: #{lenet5_forward.1} parent=11 // pred_fallthru
          _
      $region12: #{lenet5_forward.1} parent=5 // pred_fallthru
        _
      %p567 = scmp.lt.s32.totalorder %s34, 2
      // Predicated region
      $region69: #{lenet5_forward.1} parent=5 // pred_check
        %p568 = pneg %p567
      $region70: #{lenet5_forward.1} parent=5 // pred_check_branch
        %570 = sbr.rel (%p568) target = $region72
      $region71: #{lenet5_forward.1} parent=5 // pred_region
        // Predicated region
        $region73: #{lenet5_forward.1} parent=71 // pred_check
          %p571 = pneg %p54
        $region74: #{lenet5_forward.1} parent=71 // pred_check_branch
          %573 = sbr.rel (%p571) target = $region76
        $region75: #{lenet5_forward.1} parent=71 // pred_region
          %s574 = sand.u32 %s44, 1
          %s575 = scalar_lea.sflag [#allocation3], %s574
          %s576 = sand.u32 %s44, 1
          %s577 = smul.addr %s576, 64
          %s578 = scalar_lea.vmem [#allocation2], %s577
          %s580 = ssub.s32 1024, 1024
          %581 = vsyncadd %s575, %s580
          %s582 = smul.addr %s34, 8
          %s583 = smul.addr %s582, 128
          %s584 = scalar_lea.hbm %s0, %s583
          %s585 = sshll.u32 %s578, 4
          %s586 = int_to_ptr.vmem [resolvable:$true] %s585
          %591 = dma.hbm_to_vmem [thread:$0]  %s584, 1024, %s586, %s575, 128, 128, 8
        $region76: #{lenet5_forward.1} parent=71 // pred_fallthru
          _
      $region72: #{lenet5_forward.1} parent=5 // pred_fallthru
        _
      %p592 = scmp.le.s32.totalorder 1, %s34
      %p593 = scmp.lt.s32.totalorder %s34, 3
      %p594 = pnand %p592, %p593
      %p595 = pneg %p594
      // Predicated region
      $region77: #{lenet5_forward.1} parent=5 // pred_check
        _
      $region78: #{lenet5_forward.1} parent=5 // pred_check_branch
        %597 = sbr.rel (%p594) target = $region80
      $region79: #{lenet5_forward.1} parent=5 // pred_region
        %s598 = ssub.s32 %s34, 1
        %s599 = sand.u32 %s47, 1
        %s600 = scalar_lea.sflag [#allocation3], %s599
        %s601 = sand.u32 %s47, 1
        %s602 = smul.addr %s601, 64
        %s603 = scalar_lea.vmem [#allocation2], %s602
        // Predicated region
        $region81: #{lenet5_forward.1} parent=79 // pred_check
          %p604 = pneg %p60
        $region82: #{lenet5_forward.1} parent=79 // pred_check_branch
          %606 = sbr.rel (%p604) target = $region84
        $region83: #{lenet5_forward.1} parent=79 // pred_region
          %607 = dma.done %s600, 1024
        $region84: #{lenet5_forward.1} parent=79 // pred_fallthru
          _
        // Predicated region
        $region85: #{lenet5_forward.1} parent=79 // pred_check
          %p608 = pneg %p81
        $region86: #{lenet5_forward.1} parent=79 // pred_check_branch
          %610 = sbr.rel (%p608) target = $region88
        $region87: #{lenet5_forward.1} parent=79 // pred_region
          %611 = dma.done [#allocation6], 15360
        $region88: #{lenet5_forward.1} parent=79 // pred_fallthru
          _
        // Predicated region
        $region89: #{lenet5_forward.1} parent=79 // pred_check
          %p612 = pneg %p102
        $region90: #{lenet5_forward.1} parent=79 // pred_check_branch
          %614 = sbr.rel (%p612) target = $region92
        $region91: #{lenet5_forward.1} parent=79 // pred_region
          %615 = dma.done [#allocation6], 48
        $region92: #{lenet5_forward.1} parent=79 // pred_fallthru
          _
        // Predicated region
        $region93: #{lenet5_forward.1} parent=79 // pred_check
          %p616 = pneg %p123
        $region94: #{lenet5_forward.1} parent=79 // pred_check_branch
          %618 = sbr.rel (%p616) target = $region96
        $region95: #{lenet5_forward.1} parent=79 // pred_region
          %619 = dma.done [#allocation9], 512
        $region96: #{lenet5_forward.1} parent=79 // pred_fallthru
          _
        // Predicated region
        $region97: #{lenet5_forward.1} parent=79 // pred_check
          %p620 = pneg %p144
        $region98: #{lenet5_forward.1} parent=79 // pred_check_branch
          %622 = sbr.rel (%p620) target = $region100
        $region99: #{lenet5_forward.1} parent=79 // pred_region
          %623 = dma.done [#allocation9], 512
        $region100: #{lenet5_forward.1} parent=79 // pred_fallthru
          _
        // Predicated region
        $region101: #{lenet5_forward.1} parent=79 // pred_check
          %p624 = pneg %p165
        $region102: #{lenet5_forward.1} parent=79 // pred_check_branch
          %626 = sbr.rel (%p624) target = $region104
        $region103: #{lenet5_forward.1} parent=79 // pred_region
          %627 = dma.done [#allocation12], 58880
        $region104: #{lenet5_forward.1} parent=79 // pred_fallthru
          _
        // Predicated region
        $region105: #{lenet5_forward.1} parent=79 // pred_check
          %p628 = pneg %p186
        $region106: #{lenet5_forward.1} parent=79 // pred_check_branch
          %630 = sbr.rel (%p628) target = $region108
        $region107: #{lenet5_forward.1} parent=79 // pred_region
          %631 = dma.done [#allocation12], 64
        $region108: #{lenet5_forward.1} parent=79 // pred_fallthru
          _
        // Predicated region
        $region109: #{lenet5_forward.1} parent=79 // pred_check
          %p632 = pneg %p207
        $region110: #{lenet5_forward.1} parent=79 // pred_check_branch
          %634 = sbr.rel (%p632) target = $region112
        $region111: #{lenet5_forward.1} parent=79 // pred_region
          %635 = dma.done [#allocation15], 256
        $region112: #{lenet5_forward.1} parent=79 // pred_fallthru
          _
        // Predicated region
        $region113: #{lenet5_forward.1} parent=79 // pred_check
          %p636 = pneg %p228
        $region114: #{lenet5_forward.1} parent=79 // pred_check_branch
          %638 = sbr.rel (%p636) target = $region116
        $region115: #{lenet5_forward.1} parent=79 // pred_region
          %639 = dma.done [#allocation15], 256
        $region116: #{lenet5_forward.1} parent=79 // pred_fallthru
          _
        // Predicated region
        $region117: #{lenet5_forward.1} parent=79 // pred_check
          %p640 = pneg %p249
        $region118: #{lenet5_forward.1} parent=79 // pred_check_branch
          %642 = sbr.rel (%p640) target = $region120
        $region119: #{lenet5_forward.1} parent=79 // pred_region
          %643 = dma.done [#allocation18], 43264
        $region120: #{lenet5_forward.1} parent=79 // pred_fallthru
          _
        // Predicated region
        $region121: #{lenet5_forward.1} parent=79 // pred_check
          %p644 = pneg %p270
        $region122: #{lenet5_forward.1} parent=79 // pred_check_branch
          %646 = sbr.rel (%p644) target = $region124
        $region123: #{lenet5_forward.1} parent=79 // pred_region
          %647 = dma.done [#allocation18], 16
        $region124: #{lenet5_forward.1} parent=79 // pred_fallthru
          _
        // Predicated region
        $region125: #{lenet5_forward.1} parent=79 // pred_check
          %p648 = pneg %p291
        $region126: #{lenet5_forward.1} parent=79 // pred_check_branch
          %650 = sbr.rel (%p648) target = $region128
        $region127: #{lenet5_forward.1} parent=79 // pred_region
          %651 = dma.done [#allocation21], 2048
        $region128: #{lenet5_forward.1} parent=79 // pred_fallthru
          _
        // Predicated region
        $region129: #{lenet5_forward.1} parent=79 // pred_check
          %p652 = pneg %p312
        $region130: #{lenet5_forward.1} parent=79 // pred_check_branch
          %654 = sbr.rel (%p652) target = $region132
        $region131: #{lenet5_forward.1} parent=79 // pred_region
          %655 = dma.done [#allocation21], 16
        $region132: #{lenet5_forward.1} parent=79 // pred_fallthru
          _
        // Predicated region
        $region133: #{lenet5_forward.1} parent=79 // pred_check
          %p656 = pneg %p333
        $region134: #{lenet5_forward.1} parent=79 // pred_check_branch
          %658 = sbr.rel (%p656) target = $region136
        $region135: #{lenet5_forward.1} parent=79 // pred_region
          %659 = dma.done [#allocation24], 2048
        $region136: #{lenet5_forward.1} parent=79 // pred_fallthru
          _
        // Predicated region
        $region137: #{lenet5_forward.1} parent=79 // pred_check
          %p660 = pneg %p354
        $region138: #{lenet5_forward.1} parent=79 // pred_check_branch
          %662 = sbr.rel (%p660) target = $region140
        $region139: #{lenet5_forward.1} parent=79 // pred_region
          %663 = dma.done [#allocation24], 16
        $region140: #{lenet5_forward.1} parent=79 // pred_fallthru
          _
        %s664 = sand.u32 %s47, 1
        %s665 = scalar_lea.sflag [#allocation3], %s664
        %s666 = sand.u32 %s47, 1
        %s667 = smul.addr %s666, 64
        %s668 = scalar_lea.vmem [#allocation2], %s667
        %p669 = pneg %p60
        %p670 = pneg %p57
        %p671 = pneg %p81
        %p672 = pneg %p78
        %p673 = pneg %p102
        %p674 = pneg %p99
        %p675 = pneg %p123
        %p676 = pneg %p120
        %p677 = pneg %p144
        %p678 = pneg %p141
        %p679 = pneg %p165
        %p680 = pneg %p162
        %p681 = pneg %p186
        %p682 = pneg %p183
        %p683 = pneg %p207
        %p684 = pneg %p204
        %p685 = pneg %p228
        %p686 = pneg %p225
        %p687 = pneg %p249
        %p688 = pneg %p246
        %p689 = pneg %p270
        %p690 = pneg %p267
        %p691 = pneg %p291
        %p692 = pneg %p288
        %p693 = pneg %p312
        %p694 = pneg %p309
        %p695 = pneg %p333
        %p696 = pneg %p330
        %p697 = pneg %p354
        %p698 = pneg %p351
        %p699 = pneg %p380
        %p700 = pneg %p377
        %s701 = sand.u32 %s367, 1
        %s702 = scalar_lea.sflag [#allocation4], %s701
        %s703 = sand.u32 %s367, 1
        %s704 = scalar_lea.vmem [#allocation26], %s703
        %v705 = vld [vmem:[%s603] sm:$0xff]
        %v706 = vld [vmem:[%s603 + $0x8] sm:$0xff]
        %v707 = vld [vmem:[%s603 + $0x10] sm:$0xff]
        %v708 = vld [vmem:[%s603 + $0x18] sm:$0xff]
        %v709 = vld [vmem:[%s603 + $0x20] sm:$0xff]
        %v710 = vld [vmem:[%s603 + $0x28] sm:$0xff]
        %v711 = vld [vmem:[%s603 + $0x30] sm:$0xff]
        %v712 = vld [vmem:[%s603 + $0x38] sm:$0xf]
        %v713 = vld [vmem:[#allocation5] sm:$0xff]
        %v714 = vld [vmem:[#allocation5 + $0x8] sm:$0xff]
        %v715 = vld [vmem:[#allocation5 + $0x10] sm:$0xff]
        %v716 = vld [vmem:[#allocation5 + $0x18] sm:$0xff]
        %v717 = vld [vmem:[#allocation5 + $0x20] sm:$0xff]
        %v718 = vld [vmem:[#allocation5 + $0x28] sm:$0xff]
        %v719 = vld [vmem:[#allocation5 + $0x30] sm:$0xff]
        %v720 = vld [vmem:[#allocation5 + $0x38] sm:$0xff]
        %v721 = vld [vmem:[#allocation5 + $0x40] sm:$0xff]
        %v722 = vld [vmem:[#allocation5 + $0x48] sm:$0xff]
        %v723 = vld [vmem:[#allocation5 + $0x50] sm:$0xff]
        %v724 = vld [vmem:[#allocation5 + $0x58] sm:$0xff]
        %v725 = vld [vmem:[#allocation5 + $0x60] sm:$0xff]
        %v726 = vld [vmem:[#allocation5 + $0x68] sm:$0xff]
        %v727 = vld [vmem:[#allocation5 + $0x70] sm:$0xff]
        %v728 = vld [vmem:[#allocation5 + $0x78] sm:$0xff]
        %v729 = vld [vmem:[#allocation5 + $0x80] sm:$0xff]
        %v730 = vld [vmem:[#allocation5 + $0x88] sm:$0xff]
        %v731 = vld [vmem:[#allocation5 + $0x90] sm:$0xff]
        %v732 = vld [vmem:[#allocation5 + $0x98] sm:$0xff]
        %v733 = vld [vmem:[#allocation5 + $0xa0] sm:$0xff]
        %v734 = vld [vmem:[#allocation5 + $0xa8] sm:$0xff]
        %v735 = vld [vmem:[#allocation5 + $0xb0] sm:$0xff]
        %v736 = vld [vmem:[#allocation5 + $0xb8] sm:$0xff]
        %v737 = vld [vmem:[%s603 + $0x1] sm:$0xff]
        %v738 = vld [vmem:[%s603 + $0x9] sm:$0xff]
        %v739 = vld [vmem:[%s603 + $0x11] sm:$0xff]
        %v740 = vld [vmem:[%s603 + $0x19] sm:$0xff]
        %v741 = vld [vmem:[%s603 + $0x21] sm:$0xff]
        %v742 = vld [vmem:[%s603 + $0x29] sm:$0xff]
        %v743 = vld [vmem:[%s603 + $0x31] sm:$0xff]
        %v744 = vld [vmem:[%s603 + $0x39] sm:$0xf]
        %s745 = scalar_lea.vmem [#allocation5], 192
        %v746 = vld [vmem:[%s745] sm:$0xff]
        %v747 = vld [vmem:[%s745 + $0x8] sm:$0xff]
        %v748 = vld [vmem:[%s745 + $0x10] sm:$0xff]
        %v749 = vld [vmem:[%s745 + $0x18] sm:$0xff]
        %v750 = vld [vmem:[%s745 + $0x20] sm:$0xff]
        %v751 = vld [vmem:[%s745 + $0x28] sm:$0xff]
        %v752 = vld [vmem:[%s745 + $0x30] sm:$0xff]
        %v753 = vld [vmem:[%s745 + $0x38] sm:$0xff]
        %v754 = vld [vmem:[%s745 + $0x40] sm:$0xff]
        %v755 = vld [vmem:[%s745 + $0x48] sm:$0xff]
        %v756 = vld [vmem:[%s745 + $0x50] sm:$0xff]
        %v757 = vld [vmem:[%s745 + $0x58] sm:$0xff]
        %v758 = vld [vmem:[%s745 + $0x60] sm:$0xff]
        %v759 = vld [vmem:[%s745 + $0x68] sm:$0xff]
        %v760 = vld [vmem:[%s745 + $0x70] sm:$0xff]
        %v761 = vld [vmem:[%s745 + $0x78] sm:$0xff]
        %v762 = vld [vmem:[%s745 + $0x80] sm:$0xff]
        %v763 = vld [vmem:[%s745 + $0x88] sm:$0xff]
        %v764 = vld [vmem:[%s745 + $0x90] sm:$0xff]
        %v765 = vld [vmem:[%s745 + $0x98] sm:$0xff]
        %v766 = vld [vmem:[%s745 + $0xa0] sm:$0xff]
        %v767 = vld [vmem:[%s745 + $0xa8] sm:$0xff]
        %v768 = vld [vmem:[%s745 + $0xb0] sm:$0xff]
        %v769 = vld [vmem:[%s745 + $0xb8] sm:$0xff]
        %vm770 = vcmask 523264
        %v772 = vsel %vm770, %v737, 0
        %v775 = vsel %vm770, %v738, 0
        %v778 = vsel %vm770, %v739, 0
        %v781 = vsel %vm770, %v740, 0
        %v784 = vsel %vm770, %v741, 0
        %v787 = vsel %vm770, %v742, 0
        %v790 = vsel %vm770, %v743, 0
        %v793 = vsel %vm770, %v744, 0
        %795 = vmatprep.subr.mxu0 %v747
        %796 = vmatpush1.msra.mxu0 %v746
        %797 = vmatprep.subr.mxu0 %v750
        %798 = vmatpush1.msra.mxu0 %v749
        %799 = vmatprep.subr.mxu0 %v753
        %800 = vmatpush1.msra.mxu0 %v752
        %801 = vmatprep.subr.mxu0 %v756
        %802 = vmatpush1.msra.mxu0 %v755
        %803 = vmatprep.subr.mxu0 %v759
        %804 = vmatpush1.msra.mxu0 %v758
        %805 = vmatprep.subr.mxu0 %v762
        %806 = vmatpush1.msra.mxu0 %v761
        %807 = vmatprep.subr.mxu0 %v765
        %808 = vmatpush1.msra.mxu0 %v764
        %809 = vmatprep.subr.mxu0 %v768
        %810 = vmatpush1.msra.mxu0 %v767
        %811 = vmatprep.subr.mxu0 0.0
        %812 = vmatpush1.msra.mxu0 0.0
        %813 = vmatprep.subr.mxu0 0.0
        %814 = vmatpush1.msra.mxu0 0.0
        %815 = vmatprep.subr.mxu0 0.0
        %816 = vmatpush1.msra.mxu0 0.0
        %817 = vmatprep.subr.mxu0 0.0
        %818 = vmatpush1.msra.mxu0 0.0
        %819 = vmatprep.subr.mxu0 0.0
        %820 = vmatpush1.msra.mxu0 0.0
        %821 = vmatprep.subr.mxu0 0.0
        %822 = vmatpush1.msra.mxu0 0.0
        %823 = vmatprep.subr.mxu0 0.0
        %824 = vmatpush1.msra.mxu0 0.0
        %825 = vmatprep.subr.mxu0 0.0
        %826 = vmatpush1.msra.mxu0 0.0
        %827 = vmatprep.subr.mxu0 0.0
        %828 = vmatpush1.msra.mxu0 0.0
        %829 = vmatprep.subr.mxu0 0.0
        %830 = vmatpush1.msra.mxu0 0.0
        %831 = vmatprep.subr.mxu0 0.0
        %832 = vmatpush1.msra.mxu0 0.0
        %833 = vmatprep.subr.mxu0 0.0
        %834 = vmatpush1.msra.mxu0 0.0
        %835 = vmatprep.subr.mxu0 0.0
        %836 = vmatpush1.msra.mxu0 0.0
        %837 = vmatprep.subr.mxu0 0.0
        %838 = vmatpush1.msra.mxu0 0.0
        %839 = vmatprep.subr.mxu0 0.0
        %840 = vmatpush1.msra.mxu0 0.0
        %841 = vmatprep.subr.mxu0 0.0
        %842 = vmatpush1.msra.mxu0 0.0
        %843 = vmatprep.subr.mxu0 0.0
        %844 = vmatpush1.msra.mxu0 0.0
        %845 = vmatprep.subr.mxu0 0.0
        %846 = vmatpush1.msra.mxu0 0.0
        %847 = vmatprep.subr.mxu0 0.0
        %848 = vmatpush1.msra.mxu0 0.0
        %849 = vmatprep.subr.mxu0 0.0
        %850 = vmatpush1.msra.mxu0 0.0
        %851 = vmatprep.subr.mxu0 0.0
        %852 = vmatpush1.msra.mxu0 0.0
        %853 = vmatprep.subr.mxu0 0.0
        %854 = vmatpush1.msra.mxu0 0.0
        %855 = vmatprep.subr.mxu0 0.0
        %856 = vmatpush1.msra.mxu0 0.0
        %857 = vmatprep.subr.mxu0 0.0
        %858 = vmatpush1.msra.mxu0 0.0
        %859 = vmatprep.mubr.f32.mxu0 0.0
        %860 = vmatmul.mubr.f32.gmra.mrb[0].mxu0 %v772
        %v861 = vpop.f32.mrb[0].mxu0
        %v862 = vadd.f32 0.0, %v861
        %v863 = vpop.f32.mrb[0].mxu0
        %v864 = vadd.f32 0.0, %v863
        %865 = vmatprep.mubr.f32.mxu0 0.0
        %866 = vmatmul.mubr.f32.gmra.mrb[0].mxu0 %v775
        %v867 = vpop.f32.mrb[0].mxu0
        %v868 = vadd.f32 0.0, %v867
        %v869 = vpop.f32.mrb[0].mxu0
        %v870 = vadd.f32 0.0, %v869
        %871 = vmatprep.mubr.f32.mxu0 0.0
        %872 = vmatmul.mubr.f32.gmra.mrb[0].mxu0 %v778
        %v873 = vpop.f32.mrb[0].mxu0
        %v874 = vadd.f32 0.0, %v873
        %v875 = vpop.f32.mrb[0].mxu0
        %v876 = vadd.f32 0.0, %v875
        %877 = vmatprep.mubr.f32.mxu0 0.0
        %878 = vmatmul.mubr.f32.gmra.mrb[0].mxu0 %v781
        %v879 = vpop.f32.mrb[0].mxu0
        %v880 = vadd.f32 0.0, %v879
        %v881 = vpop.f32.mrb[0].mxu0
        %v882 = vadd.f32 0.0, %v881
        %883 = vmatprep.mubr.f32.mxu0 0.0
        %884 = vmatmul.mubr.f32.gmra.mrb[0].mxu0 %v784
        %v885 = vpop.f32.mrb[0].mxu0
        %v886 = vadd.f32 0.0, %v885
        %v887 = vpop.f32.mrb[0].mxu0
        %v888 = vadd.f32 0.0, %v887
        %889 = vmatprep.mubr.f32.mxu0 0.0
        %890 = vmatmul.mubr.f32.gmra.mrb[0].mxu0 %v787
        %v891 = vpop.f32.mrb[0].mxu0
        %v892 = vadd.f32 0.0, %v891
        %v893 = vpop.f32.mrb[0].mxu0
        %v894 = vadd.f32 0.0, %v893
        %895 = vmatprep.mubr.f32.mxu0 0.0
        %896 = vmatmul.mubr.f32.gmra.mrb[0].mxu0 %v790
        %v897 = vpop.f32.mrb[0].mxu0
        %v898 = vadd.f32 0.0, %v897
        %v899 = vpop.f32.mrb[0].mxu0
        %v900 = vadd.f32 0.0, %v899
        %901 = vmatprep.mubr.f32.mxu0 0.0
        %902 = vmatmul.mubr.f32.gmra.mrb[0].mxu0 %v793
        %v903 = vpop.f32.mrb[0].mxu0
        %v904 = vadd.f32 0.0, %v903
        %v905 = vpop.f32.mrb[0].mxu0
        %v906 = vadd.f32 0.0, %v905
        %907 = vdwg.mxu0
        %908 = vmatprep.subr.mxu0 0.0
        %909 = vmatpush1.msra.mxu0 %v748
        %910 = vmatprep.subr.mxu0 0.0
        %911 = vmatpush1.msra.mxu0 %v751
        %912 = vmatprep.subr.mxu0 0.0
        %913 = vmatpush1.msra.mxu0 %v754
        %914 = vmatprep.subr.mxu0 0.0
        %915 = vmatpush1.msra.mxu0 %v757
        %916 = vmatprep.subr.mxu0 0.0
        %917 = vmatpush1.msra.mxu0 %v760
        %918 = vmatprep.subr.mxu0 0.0
        %919 = vmatpush1.msra.mxu0 %v763
        %920 = vmatprep.subr.mxu0 0.0
        %921 = vmatpush1.msra.mxu0 %v766
        %922 = vmatprep.subr.mxu0 0.0
        %923 = vmatpush1.msra.mxu0 %v769
        %924 = vmatprep.subr.mxu0 0.0
        %925 = vmatpush1.msra.mxu0 0.0
        %926 = vmatprep.subr.mxu0 0.0
        %927 = vmatpush1.msra.mxu0 0.0
        %928 = vmatprep.subr.mxu0 0.0
        %929 = vmatpush1.msra.mxu0 0.0
        %930 = vmatprep.subr.mxu0 0.0
        %931 = vmatpush1.msra.mxu0 0.0
        %932 = vmatprep.subr.mxu0 0.0
        %933 = vmatpush1.msra.mxu0 0.0
        %934 = vmatprep.subr.mxu0 0.0
        %935 = vmatpush1.msra.mxu0 0.0
        %936 = vmatprep.subr.mxu0 0.0
        %937 = vmatpush1.msra.mxu0 0.0
        %938 = vmatprep.subr.mxu0 0.0
        %939 = vmatpush1.msra.mxu0 0.0
        %940 = vmatprep.subr.mxu0 0.0
        %941 = vmatpush1.msra.mxu0 0.0
        %942 = vmatprep.subr.mxu0 0.0
        %943 = vmatpush1.msra.mxu0 0.0
        %944 = vmatprep.subr.mxu0 0.0
        %945 = vmatpush1.msra.mxu0 0.0
        %946 = vmatprep.subr.mxu0 0.0
        %947 = vmatpush1.msra.mxu0 0.0
        %948 = vmatprep.subr.mxu0 0.0
        %949 = vmatpush1.msra.mxu0 0.0
        %950 = vmatprep.subr.mxu0 0.0
        %951 = vmatpush1.msra.mxu0 0.0
        %952 = vmatprep.subr.mxu0 0.0
        %953 = vmatpush1.msra.mxu0 0.0
        %954 = vmatprep.subr.mxu0 0.0
        %955 = vmatpush1.msra.mxu0 0.0
        %956 = vmatprep.subr.mxu0 0.0
        %957 = vmatpush1.msra.mxu0 0.0
        %958 = vmatprep.subr.mxu0 0.0
        %959 = vmatpush1.msra.mxu0 0.0
        %960 = vmatprep.subr.mxu0 0.0
        %961 = vmatpush1.msra.mxu0 0.0
        %962 = vmatprep.subr.mxu0 0.0
        %963 = vmatpush1.msra.mxu0 0.0
        %964 = vmatprep.subr.mxu0 0.0
        %965 = vmatpush1.msra.mxu0 0.0
        %966 = vmatprep.subr.mxu0 0.0
        %967 = vmatpush1.msra.mxu0 0.0
        %968 = vmatprep.subr.mxu0 0.0
        %969 = vmatpush1.msra.mxu0 0.0
        %970 = vmatprep.subr.mxu0 0.0
        %971 = vmatpush1.msra.mxu0 0.0
        %972 = vmatprep.mubr.f32.mxu0 0.0
        %973 = vmatmul.mubr.f32.gmra.mrb[0].mxu0 %v772
        %v974 = vpop.f32.mrb[0].mxu0
        %v975 = vadd.f32 0.0, %v974
        %v976 = vpop.f32.mrb[0].mxu0
        %977 = vmatprep.mubr.f32.mxu0 0.0
        %978 = vmatmul.mubr.f32.gmra.mrb[0].mxu0 %v775
        %v979 = vpop.f32.mrb[0].mxu0
        %v980 = vadd.f32 0.0, %v979
        %v981 = vpop.f32.mrb[0].mxu0
        %982 = vmatprep.mubr.f32.mxu0 0.0
        %983 = vmatmul.mubr.f32.gmra.mrb[0].mxu0 %v778
        %v984 = vpop.f32.mrb[0].mxu0
        %v985 = vadd.f32 0.0, %v984
        %v986 = vpop.f32.mrb[0].mxu0
        %987 = vmatprep.mubr.f32.mxu0 0.0
        %988 = vmatmul.mubr.f32.gmra.mrb[0].mxu0 %v781
        %v989 = vpop.f32.mrb[0].mxu0
        %v990 = vadd.f32 0.0, %v989
        %v991 = vpop.f32.mrb[0].mxu0
        %992 = vmatprep.mubr.f32.mxu0 0.0
        %993 = vmatmul.mubr.f32.gmra.mrb[0].mxu0 %v784
        %v994 = vpop.f32.mrb[0].mxu0
        %v995 = vadd.f32 0.0, %v994
        %v996 = vpop.f32.mrb[0].mxu0
        %997 = vmatprep.mubr.f32.mxu0 0.0
        %998 = vmatmul.mubr.f32.gmra.mrb[0].mxu0 %v787
        %v999 = vpop.f32.mrb[0].mxu0
        %v1000 = vadd.f32 0.0, %v999
        %v1001 = vpop.f32.mrb[0].mxu0
        %1002 = vmatprep.mubr.f32.mxu0 0.0
        %1003 = vmatmul.mubr.f32.gmra.mrb[0].mxu0 %v790
        %v1004 = vpop.f32.mrb[0].mxu0
        %v1005 = vadd.f32 0.0, %v1004
        %v1006 = vpop.f32.mrb[0].mxu0
        %1007 = vmatprep.mubr.f32.mxu0 0.0
        %1008 = vmatmul.mubr.f32.gmra.mrb[0].mxu0 %v793
        %v1009 = vpop.f32.mrb[0].mxu0
        %v1010 = vadd.f32 0.0, %v1009
        %v1011 = vpop.f32.mrb[0].mxu0
        %1012 = vdwg.mxu0
        %v1014 = vsel %vm770, %v705, 0
        %v1017 = vsel %vm770, %v706, 0
        %v1020 = vsel %vm770, %v707, 0
        %v1023 = vsel %vm770, %v708, 0
        %v1026 = vsel %vm770, %v709, 0
        %v1029 = vsel %vm770, %v710, 0
        %v1032 = vsel %vm770, %v711, 0
        %v1035 = vsel %vm770, %v712, 0
        %1037 = vmatprep.subr.mxu0 %v714
        %1038 = vmatpush1.msra.mxu0 %v713
        %1039 = vmatprep.subr.mxu0 %v717
        %1040 = vmatpush1.msra.mxu0 %v716
        %1041 = vmatprep.subr.mxu0 %v720
        %1042 = vmatpush1.msra.mxu0 %v719
        %1043 = vmatprep.subr.mxu0 %v723
        %1044 = vmatpush1.msra.mxu0 %v722
        %1045 = vmatprep.subr.mxu0 %v726
        %1046 = vmatpush1.msra.mxu0 %v725
        %1047 = vmatprep.subr.mxu0 %v729
        %1048 = vmatpush1.msra.mxu0 %v728
        %1049 = vmatprep.subr.mxu0 %v732
        %1050 = vmatpush1.msra.mxu0 %v731
        %1051 = vmatprep.subr.mxu0 %v735
        %1052 = vmatpush1.msra.mxu0 %v734
        %1053 = vmatprep.subr.mxu0 0.0
        %1054 = vmatpush1.msra.mxu0 0.0
        %1055 = vmatprep.subr.mxu0 0.0
        %1056 = vmatpush1.msra.mxu0 0.0
        %1057 = vmatprep.subr.mxu0 0.0
        %1058 = vmatpush1.msra.mxu0 0.0
        %1059 = vmatprep.subr.mxu0 0.0
        %1060 = vmatpush1.msra.mxu0 0.0
        %1061 = vmatprep.subr.mxu0 0.0
        %1062 = vmatpush1.msra.mxu0 0.0
        %1063 = vmatprep.subr.mxu0 0.0
        %1064 = vmatpush1.msra.mxu0 0.0
        %1065 = vmatprep.subr.mxu0 0.0
        %1066 = vmatpush1.msra.mxu0 0.0
        %1067 = vmatprep.subr.mxu0 0.0
        %1068 = vmatpush1.msra.mxu0 0.0
        %1069 = vmatprep.subr.mxu0 0.0
        %1070 = vmatpush1.msra.mxu0 0.0
        %1071 = vmatprep.subr.mxu0 0.0
        %1072 = vmatpush1.msra.mxu0 0.0
        %1073 = vmatprep.subr.mxu0 0.0
        %1074 = vmatpush1.msra.mxu0 0.0
        %1075 = vmatprep.subr.mxu0 0.0
        %1076 = vmatpush1.msra.mxu0 0.0
        %1077 = vmatprep.subr.mxu0 0.0
        %1078 = vmatpush1.msra.mxu0 0.0
        %1079 = vmatprep.subr.mxu0 0.0
        %1080 = vmatpush1.msra.mxu0 0.0
        %1081 = vmatprep.subr.mxu0 0.0
        %1082 = vmatpush1.msra.mxu0 0.0
        %1083 = vmatprep.subr.mxu0 0.0
        %1084 = vmatpush1.msra.mxu0 0.0
        %1085 = vmatprep.subr.mxu0 0.0
        %1086 = vmatpush1.msra.mxu0 0.0
        %1087 = vmatprep.subr.mxu0 0.0
        %1088 = vmatpush1.msra.mxu0 0.0
        %1089 = vmatprep.subr.mxu0 0.0
        %1090 = vmatpush1.msra.mxu0 0.0
        %1091 = vmatprep.subr.mxu0 0.0
        %1092 = vmatpush1.msra.mxu0 0.0
        %1093 = vmatprep.subr.mxu0 0.0
        %1094 = vmatpush1.msra.mxu0 0.0
        %1095 = vmatprep.subr.mxu0 0.0
        %1096 = vmatpush1.msra.mxu0 0.0
        %1097 = vmatprep.subr.mxu0 0.0
        %1098 = vmatpush1.msra.mxu0 0.0
        %1099 = vmatprep.subr.mxu0 0.0
        %1100 = vmatpush1.msra.mxu0 0.0
        %1101 = vmatprep.mubr.f32.mxu0 0.0
        %1102 = vmatmul.mubr.f32.gmra.mrb[0].mxu0 %v1014
        %v1103 = vpop.f32.mrb[0].mxu0
        %v1104 = vadd.f32 %v862, %v1103
        %v1105 = vpop.f32.mrb[0].mxu0
        %v1106 = vadd.f32 %v864, %v1105
        %1107 = vmatprep.mubr.f32.mxu0 0.0
        %1108 = vmatmul.mubr.f32.gmra.mrb[0].mxu0 %v1017
        %v1109 = vpop.f32.mrb[0].mxu0
        %v1110 = vadd.f32 %v868, %v1109
        %v1111 = vpop.f32.mrb[0].mxu0
        %v1112 = vadd.f32 %v870, %v1111
        %1113 = vmatprep.mubr.f32.mxu0 0.0
        %1114 = vmatmul.mubr.f32.gmra.mrb[0].mxu0 %v1020
        %v1115 = vpop.f32.mrb[0].mxu0
        %v1116 = vadd.f32 %v874, %v1115
        %v1117 = vpop.f32.mrb[0].mxu0
        %v1118 = vadd.f32 %v876, %v1117
        %1119 = vmatprep.mubr.f32.mxu0 0.0
        %1120 = vmatmul.mubr.f32.gmra.mrb[0].mxu0 %v1023
        %v1121 = vpop.f32.mrb[0].mxu0
        %v1122 = vadd.f32 %v880, %v1121
        %v1123 = vpop.f32.mrb[0].mxu0
        %v1124 = vadd.f32 %v882, %v1123
        %1125 = vmatprep.mubr.f32.mxu0 0.0
        %1126 = vmatmul.mubr.f32.gmra.mrb[0].mxu0 %v1026
        %v1127 = vpop.f32.mrb[0].mxu0
        %v1128 = vadd.f32 %v886, %v1127
        %v1129 = vpop.f32.mrb[0].mxu0
        %v1130 = vadd.f32 %v888, %v1129
        %1131 = vmatprep.mubr.f32.mxu0 0.0
        %1132 = vmatmul.mubr.f32.gmra.mrb[0].mxu0 %v1029
        %v1133 = vpop.f32.mrb[0].mxu0
        %v1134 = vadd.f32 %v892, %v1133
        %v1135 = vpop.f32.mrb[0].mxu0
        %v1136 = vadd.f32 %v894, %v1135
        %1137 = vmatprep.mubr.f32.mxu0 0.0
        %1138 = vmatmul.mubr.f32.gmra.mrb[0].mxu0 %v1032
        %v1139 = vpop.f32.mrb[0].mxu0
        %v1140 = vadd.f32 %v898, %v1139
        %v1141 = vpop.f32.mrb[0].mxu0
        %v1142 = vadd.f32 %v900, %v1141
        %1143 = vmatprep.mubr.f32.mxu0 0.0
        %1144 = vmatmul.mubr.f32.gmra.mrb[0].mxu0 %v1035
        %v1145 = vpop.f32.mrb[0].mxu0
        %v1146 = vadd.f32 %v904, %v1145
        %v1147 = vpop.f32.mrb[0].mxu0
        %v1148 = vadd.f32 %v906, %v1147
        %1149 = vdwg.mxu0
        %1150 = vmatprep.subr.mxu0 0.0
        %1151 = vmatpush1.msra.mxu0 %v715
        %1152 = vmatprep.subr.mxu0 0.0
        %1153 = vmatpush1.msra.mxu0 %v718
        %1154 = vmatprep.subr.mxu0 0.0
        %1155 = vmatpush1.msra.mxu0 %v721
        %1156 = vmatprep.subr.mxu0 0.0
        %1157 = vmatpush1.msra.mxu0 %v724
        %1158 = vmatprep.subr.mxu0 0.0
        %1159 = vmatpush1.msra.mxu0 %v727
        %1160 = vmatprep.subr.mxu0 0.0
        %1161 = vmatpush1.msra.mxu0 %v730
        %1162 = vmatprep.subr.mxu0 0.0
        %1163 = vmatpush1.msra.mxu0 %v733
        %1164 = vmatprep.subr.mxu0 0.0
        %1165 = vmatpush1.msra.mxu0 %v736
        %1166 = vmatprep.subr.mxu0 0.0
        %1167 = vmatpush1.msra.mxu0 0.0
        %1168 = vmatprep.subr.mxu0 0.0
        %1169 = vmatpush1.msra.mxu0 0.0
        %1170 = vmatprep.subr.mxu0 0.0
        %1171 = vmatpush1.msra.mxu0 0.0
        %1172 = vmatprep.subr.mxu0 0.0
        %1173 = vmatpush1.msra.mxu0 0.0
        %1174 = vmatprep.subr.mxu0 0.0
        %1175 = vmatpush1.msra.mxu0 0.0
        %1176 = vmatprep.subr.mxu0 0.0
        %1177 = vmatpush1.msra.mxu0 0.0
        %1178 = vmatprep.subr.mxu0 0.0
        %1179 = vmatpush1.msra.mxu0 0.0
        %1180 = vmatprep.subr.mxu0 0.0
        %1181 = vmatpush1.msra.mxu0 0.0
        %1182 = vmatprep.subr.mxu0 0.0
        %1183 = vmatpush1.msra.mxu0 0.0
        %1184 = vmatprep.subr.mxu0 0.0
        %1185 = vmatpush1.msra.mxu0 0.0
        %1186 = vmatprep.subr.mxu0 0.0
        %1187 = vmatpush1.msra.mxu0 0.0
        %1188 = vmatprep.subr.mxu0 0.0
        %1189 = vmatpush1.msra.mxu0 0.0
        %1190 = vmatprep.subr.mxu0 0.0
        %1191 = vmatpush1.msra.mxu0 0.0
        %1192 = vmatprep.subr.mxu0 0.0
        %1193 = vmatpush1.msra.mxu0 0.0
        %1194 = vmatprep.subr.mxu0 0.0
        %1195 = vmatpush1.msra.mxu0 0.0
        %1196 = vmatprep.subr.mxu0 0.0
        %1197 = vmatpush1.msra.mxu0 0.0
        %1198 = vmatprep.subr.mxu0 0.0
        %1199 = vmatpush1.msra.mxu0 0.0
        %1200 = vmatprep.subr.mxu0 0.0
        %1201 = vmatpush1.msra.mxu0 0.0
        %1202 = vmatprep.subr.mxu0 0.0
        %1203 = vmatpush1.msra.mxu0 0.0
        %1204 = vmatprep.subr.mxu0 0.0
        %1205 = vmatpush1.msra.mxu0 0.0
        %1206 = vmatprep.subr.mxu0 0.0
        %1207 = vmatpush1.msra.mxu0 0.0
        %1208 = vmatprep.subr.mxu0 0.0
        %1209 = vmatpush1.msra.mxu0 0.0
        %1210 = vmatprep.subr.mxu0 0.0
        %1211 = vmatpush1.msra.mxu0 0.0
        %1212 = vmatprep.subr.mxu0 0.0
        %1213 = vmatpush1.msra.mxu0 0.0
        %1214 = vmatprep.mubr.f32.mxu0 0.0
        %1215 = vmatmul.mubr.f32.gmra.mrb[0].mxu0 %v1014
        %v1216 = vpop.f32.mrb[0].mxu0
        %v1217 = vadd.f32 %v975, %v1216
        %v1218 = vpop.f32.mrb[0].mxu0
        %1219 = vmatprep.mubr.f32.mxu0 0.0
        %1220 = vmatmul.mubr.f32.gmra.mrb[0].mxu0 %v1017
        %v1221 = vpop.f32.mrb[0].mxu0
        %v1222 = vadd.f32 %v980, %v1221
        %v1223 = vpop.f32.mrb[0].mxu0
        %1224 = vmatprep.mubr.f32.mxu0 0.0
        %1225 = vmatmul.mubr.f32.gmra.mrb[0].mxu0 %v1020
        %v1226 = vpop.f32.mrb[0].mxu0
        %v1227 = vadd.f32 %v985, %v1226
        %v1228 = vpop.f32.mrb[0].mxu0
        %1229 = vmatprep.mubr.f32.mxu0 0.0
        %1230 = vmatmul.mubr.f32.gmra.mrb[0].mxu0 %v1023
        %v1231 = vpop.f32.mrb[0].mxu0
        %v1232 = vadd.f32 %v990, %v1231
        %v1233 = vpop.f32.mrb[0].mxu0
        %1234 = vmatprep.mubr.f32.mxu0 0.0
        %1235 = vmatmul.mubr.f32.gmra.mrb[0].mxu0 %v1026
        %v1236 = vpop.f32.mrb[0].mxu0
        %v1237 = vadd.f32 %v995, %v1236
        %v1238 = vpop.f32.mrb[0].mxu0
        %1239 = vmatprep.mubr.f32.mxu0 0.0
        %1240 = vmatmul.mubr.f32.gmra.mrb[0].mxu0 %v1029
        %v1241 = vpop.f32.mrb[0].mxu0
        %v1242 = vadd.f32 %v1000, %v1241
        %v1243 = vpop.f32.mrb[0].mxu0
        %1244 = vmatprep.mubr.f32.mxu0 0.0
        %1245 = vmatmul.mubr.f32.gmra.mrb[0].mxu0 %v1032
        %v1246 = vpop.f32.mrb[0].mxu0
        %v1247 = vadd.f32 %v1005, %v1246
        %v1248 = vpop.f32.mrb[0].mxu0
        %1249 = vmatprep.mubr.f32.mxu0 0.0
        %1250 = vmatmul.mubr.f32.gmra.mrb[0].mxu0 %v1035
        %v1251 = vpop.f32.mrb[0].mxu0
        %v1252 = vadd.f32 %v1010, %v1251
        %v1253 = vpop.f32.mrb[0].mxu0
        %1254 = vdwg.mxu0
        %v1255 = vld [vmem:[%s603 + $0x2] sm:$0xff]
        %v1256 = vld [vmem:[%s603 + $0xa] sm:$0xff]
        %v1257 = vld [vmem:[%s603 + $0x12] sm:$0xff]
        %v1258 = vld [vmem:[%s603 + $0x1a] sm:$0xff]
        %v1259 = vld [vmem:[%s603 + $0x22] sm:$0xff]
        %v1260 = vld [vmem:[%s603 + $0x2a] sm:$0xff]
        %v1261 = vld [vmem:[%s603 + $0x32] sm:$0xff]
        %v1262 = vld [vmem:[%s603 + $0x3a] sm:$0xf]
        %s1263 = scalar_lea.vmem [#allocation5], 384
        %v1264 = vld [vmem:[%s1263] sm:$0xff]
        %v1265 = vld [vmem:[%s1263 + $0x8] sm:$0xff]
        %v1266 = vld [vmem:[%s1263 + $0x10] sm:$0xff]
        %v1267 = vld [vmem:[%s1263 + $0x18] sm:$0xff]
        %v1268 = vld [vmem:[%s1263 + $0x20] sm:$0xff]
        %v1269 = vld [vmem:[%s1263 + $0x28] sm:$0xff]
        %v1270 = vld [vmem:[%s1263 + $0x30] sm:$0xff]
        %v1271 = vld [vmem:[%s1263 + $0x38] sm:$0xff]
        %v1272 = vld [vmem:[%s1263 + $0x40] sm:$0xff]
        %v1273 = vld [vmem:[%s1263 + $0x48] sm:$0xff]
        %v1274 = vld [vmem:[%s1263 + $0x50] sm:$0xff]
        %v1275 = vld [vmem:[%s1263 + $0x58] sm:$0xff]
        %v1276 = vld [vmem:[%s1263 + $0x60] sm:$0xff]
        %v1277 = vld [vmem:[%s1263 + $0x68] sm:$0xff]
        %v1278 = vld [vmem:[%s1263 + $0x70] sm:$0xff]
        %v1279 = vld [vmem:[%s1263 + $0x78] sm:$0xff]
        %v1280 = vld [vmem:[%s1263 + $0x80] sm:$0xff]
        %v1281 = vld [vmem:[%s1263 + $0x88] sm:$0xff]
        %v1282 = vld [vmem:[%s1263 + $0x90] sm:$0xff]
        %v1283 = vld [vmem:[%s1263 + $0x98] sm:$0xff]
        %v1284 = vld [vmem:[%s1263 + $0xa0] sm:$0xff]
        %v1285 = vld [vmem:[%s1263 + $0xa8] sm:$0xff]
        %v1286 = vld [vmem:[%s1263 + $0xb0] sm:$0xff]
        %v1287 = vld [vmem:[%s1263 + $0xb8] sm:$0xff]
        %v1289 = vsel %vm770, %v1255, 0
        %v1292 = vsel %vm770, %v1256, 0
        %v1295 = vsel %vm770, %v1257, 0
        %v1298 = vsel %vm770, %v1258, 0
        %v1301 = vsel %vm770, %v1259, 0
        %v1304 = vsel %vm770, %v1260, 0
        %v1307 = vsel %vm770, %v1261, 0
        %v1310 = vsel %vm770, %v1262, 0
        %1312 = vmatprep.subr.mxu0 %v1265
        %1313 = vmatpush1.msra.mxu0 %v1264
        %1314 = vmatprep.subr.mxu0 %v1268
        %1315 = vmatpush1.msra.mxu0 %v1267
        %1316 = vmatprep.subr.mxu0 %v1271
        %1317 = vmatpush1.msra.mxu0 %v1270
        %1318 = vmatprep.subr.mxu0 %v1274
        %1319 = vmatpush1.msra.mxu0 %v1273
        %1320 = vmatprep.subr.mxu0 %v1277
        %1321 = vmatpush1.msra.mxu0 %v1276
        %1322 = vmatprep.subr.mxu0 %v1280
        %1323 = vmatpush1.msra.mxu0 %v1279
        %1324 = vmatprep.subr.mxu0 %v1283
        %1325 = vmatpush1.msra.mxu0 %v1282
        %1326 = vmatprep.subr.mxu0 %v1286
        %1327 = vmatpush1.msra.mxu0 %v1285
        %1328 = vmatprep.subr.mxu0 0.0
        %1329 = vmatpush1.msra.mxu0 0.0
        %1330 = vmatprep.subr.mxu0 0.0
        %1331 = vmatpush1.msra.mxu0 0.0
        %1332 = vmatprep.subr.mxu0 0.0
        %1333 = vmatpush1.msra.mxu0 0.0
        %1334 = vmatprep.subr.mxu0 0.0
        %1335 = vmatpush1.msra.mxu0 0.0
        %1336 = vmatprep.subr.mxu0 0.0
        %1337 = vmatpush1.msra.mxu0 0.0
        %1338 = vmatprep.subr.mxu0 0.0
        %1339 = vmatpush1.msra.mxu0 0.0
        %1340 = vmatprep.subr.mxu0 0.0
        %1341 = vmatpush1.msra.mxu0 0.0
        %1342 = vmatprep.subr.mxu0 0.0
        %1343 = vmatpush1.msra.mxu0 0.0
        %1344 = vmatprep.subr.mxu0 0.0
        %1345 = vmatpush1.msra.mxu0 0.0
        %1346 = vmatprep.subr.mxu0 0.0
        %1347 = vmatpush1.msra.mxu0 0.0
        %1348 = vmatprep.subr.mxu0 0.0
        %1349 = vmatpush1.msra.mxu0 0.0
        %1350 = vmatprep.subr.mxu0 0.0
        %1351 = vmatpush1.msra.mxu0 0.0
        %1352 = vmatprep.subr.mxu0 0.0
        %1353 = vmatpush1.msra.mxu0 0.0
        %1354 = vmatprep.subr.mxu0 0.0
        %1355 = vmatpush1.msra.mxu0 0.0
        %1356 = vmatprep.subr.mxu0 0.0
        %1357 = vmatpush1.msra.mxu0 0.0
        %1358 = vmatprep.subr.mxu0 0.0
        %1359 = vmatpush1.msra.mxu0 0.0
        %1360 = vmatprep.subr.mxu0 0.0
        %1361 = vmatpush1.msra.mxu0 0.0
        %1362 = vmatprep.subr.mxu0 0.0
        %1363 = vmatpush1.msra.mxu0 0.0
        %1364 = vmatprep.subr.mxu0 0.0
        %1365 = vmatpush1.msra.mxu0 0.0
        %1366 = vmatprep.subr.mxu0 0.0
        %1367 = vmatpush1.msra.mxu0 0.0
        %1368 = vmatprep.subr.mxu0 0.0
        %1369 = vmatpush1.msra.mxu0 0.0
        %1370 = vmatprep.subr.mxu0 0.0
        %1371 = vmatpush1.msra.mxu0 0.0
        %1372 = vmatprep.subr.mxu0 0.0
        %1373 = vmatpush1.msra.mxu0 0.0
        %1374 = vmatprep.subr.mxu0 0.0
        %1375 = vmatpush1.msra.mxu0 0.0
        %1376 = vmatprep.mubr.f32.mxu0 0.0
        %1377 = vmatmul.mubr.f32.gmra.mrb[0].mxu0 %v1289
        %v1378 = vpop.f32.mrb[0].mxu0
        %v1379 = vadd.f32 0.0, %v1378
        %v1380 = vpop.f32.mrb[0].mxu0
        %v1381 = vadd.f32 0.0, %v1380
        %1382 = vmatprep.mubr.f32.mxu0 0.0
        %1383 = vmatmul.mubr.f32.gmra.mrb[0].mxu0 %v1292
        %v1384 = vpop.f32.mrb[0].mxu0
        %v1385 = vadd.f32 0.0, %v1384
        %v1386 = vpop.f32.mrb[0].mxu0
        %v1387 = vadd.f32 0.0, %v1386
        %1388 = vmatprep.mubr.f32.mxu0 0.0
        %1389 = vmatmul.mubr.f32.gmra.mrb[0].mxu0 %v1295
        %v1390 = vpop.f32.mrb[0].mxu0
        %v1391 = vadd.f32 0.0, %v1390
        %v1392 = vpop.f32.mrb[0].mxu0
        %v1393 = vadd.f32 0.0, %v1392
        %1394 = vmatprep.mubr.f32.mxu0 0.0
        %1395 = vmatmul.mubr.f32.gmra.mrb[0].mxu0 %v1298
        %v1396 = vpop.f32.mrb[0].mxu0
        %v1397 = vadd.f32 0.0, %v1396
        %v1398 = vpop.f32.mrb[0].mxu0
        %v1399 = vadd.f32 0.0, %v1398
        %1400 = vmatprep.mubr.f32.mxu0 0.0
        %1401 = vmatmul.mubr.f32.gmra.mrb[0].mxu0 %v1301
        %v1402 = vpop.f32.mrb[0].mxu0
        %v1403 = vadd.f32 0.0, %v1402
        %v1404 = vpop.f32.mrb[0].mxu0
        %v1405 = vadd.f32 0.0, %v1404
        %1406 = vmatprep.mubr.f32.mxu0 0.0
        %1407 = vmatmul.mubr.f32.gmra.mrb[0].mxu0 %v1304
        %v1408 = vpop.f32.mrb[0].mxu0
        %v1409 = vadd.f32 0.0, %v1408
        %v1410 = vpop.f32.mrb[0].mxu0
        %v1411 = vadd.f32 0.0, %v1410
        %1412 = vmatprep.mubr.f32.mxu0 0.0
        %1413 = vmatmul.mubr.f32.gmra.mrb[0].mxu0 %v1307
        %v1414 = vpop.f32.mrb[0].mxu0
        %v1415 = vadd.f32 0.0, %v1414
        %v1416 = vpop.f32.mrb[0].mxu0
        %v1417 = vadd.f32 0.0, %v1416
        %1418 = vmatprep.mubr.f32.mxu0 0.0
        %1419 = vmatmul.mubr.f32.gmra.mrb[0].mxu0 %v1310
        %v1420 = vpop.f32.mrb[0].mxu0
        %v1421 = vadd.f32 0.0, %v1420
        %v1422 = vpop.f32.mrb[0].mxu0
        %v1423 = vadd.f32 0.0, %v1422
        %1424 = vdwg.mxu0
        %1425 = vmatprep.subr.mxu0 0.0
        %1426 = vmatpush1.msra.mxu0 %v1266
        %1427 = vmatprep.subr.mxu0 0.0
        %1428 = vmatpush1.msra.mxu0 %v1269
        %1429 = vmatprep.subr.mxu0 0.0
        %1430 = vmatpush1.msra.mxu0 %v1272
        %1431 = vmatprep.subr.mxu0 0.0
        %1432 = vmatpush1.msra.mxu0 %v1275
        %1433 = vmatprep.subr.mxu0 0.0
        %1434 = vmatpush1.msra.mxu0 %v1278
        %1435 = vmatprep.subr.mxu0 0.0
        %1436 = vmatpush1.msra.mxu0 %v1281
        %1437 = vmatprep.subr.mxu0 0.0
        %1438 = vmatpush1.msra.mxu0 %v1284
        %1439 = vmatprep.subr.mxu0 0.0
        %1440 = vmatpush1.msra.mxu0 %v1287
        %1441 = vmatprep.subr.mxu0 0.0
        %1442 = vmatpush1.msra.mxu0 0.0
        %1443 = vmatprep.subr.mxu0 0.0
        %1444 = vmatpush1.msra.mxu0 0.0
        %1445 = vmatprep.subr.mxu0 0.0
        %1446 = vmatpush1.msra.mxu0 0.0
        %1447 = vmatprep.subr.mxu0 0.0
        %1448 = vmatpush1.msra.mxu0 0.0
        %1449 = vmatprep.subr.mxu0 0.0
        %1450 = vmatpush1.msra.mxu0 0.0
        %1451 = vmatprep.subr.mxu0 0.0
        %1452 = vmatpush1.msra.mxu0 0.0
        %1453 = vmatprep.subr.mxu0 0.0
        %1454 = vmatpush1.msra.mxu0 0.0
        %1455 = vmatprep.subr.mxu0 0.0
        %1456 = vmatpush1.msra.mxu0 0.0
        %1457 = vmatprep.subr.mxu0 0.0
        %1458 = vmatpush1.msra.mxu0 0.0
        %1459 = vmatprep.subr.mxu0 0.0
        %1460 = vmatpush1.msra.mxu0 0.0
        %1461 = vmatprep.subr.mxu0 0.0
        %1462 = vmatpush1.msra.mxu0 0.0
        %1463 = vmatprep.subr.mxu0 0.0
        %1464 = vmatpush1.msra.mxu0 0.0
        %1465 = vmatprep.subr.mxu0 0.0
        %1466 = vmatpush1.msra.mxu0 0.0
        %1467 = vmatprep.subr.mxu0 0.0
        %1468 = vmatpush1.msra.mxu0 0.0
        %1469 = vmatprep.subr.mxu0 0.0
        %1470 = vmatpush1.msra.mxu0 0.0
        %1471 = vmatprep.subr.mxu0 0.0
        %1472 = vmatpush1.msra.mxu0 0.0
        %1473 = vmatprep.subr.mxu0 0.0
        %1474 = vmatpush1.msra.mxu0 0.0
        %1475 = vmatprep.subr.mxu0 0.0
        %1476 = vmatpush1.msra.mxu0 0.0
        %1477 = vmatprep.subr.mxu0 0.0
        %1478 = vmatpush1.msra.mxu0 0.0
        %1479 = vmatprep.subr.mxu0 0.0
        %1480 = vmatpush1.msra.mxu0 0.0
        %1481 = vmatprep.subr.mxu0 0.0
        %1482 = vmatpush1.msra.mxu0 0.0
        %1483 = vmatprep.subr.mxu0 0.0
        %1484 = vmatpush1.msra.mxu0 0.0
        %1485 = vmatprep.subr.mxu0 0.0
        %1486 = vmatpush1.msra.mxu0 0.0
        %1487 = vmatprep.subr.mxu0 0.0
        %1488 = vmatpush1.msra.mxu0 0.0
        %1489 = vmatprep.mubr.f32.mxu0 0.0
        %1490 = vmatmul.mubr.f32.gmra.mrb[0].mxu0 %v1289
        %v1491 = vpop.f32.mrb[0].mxu0
        %v1492 = vadd.f32 0.0, %v1491
        %v1493 = vpop.f32.mrb[0].mxu0
        %1494 = vmatprep.mubr.f32.mxu0 0.0
        %1495 = vmatmul.mubr.f32.gmra.mrb[0].mxu0 %v1292
        %v1496 = vpop.f32.mrb[0].mxu0
        %v1497 = vadd.f32 0.0, %v1496
        %v1498 = vpop.f32.mrb[0].mxu0
        %1499 = vmatprep.mubr.f32.mxu0 0.0
        %1500 = vmatmul.mubr.f32.gmra.mrb[0].mxu0 %v1295
        %v1501 = vpop.f32.mrb[0].mxu0
        %v1502 = vadd.f32 0.0, %v1501
        %v1503 = vpop.f32.mrb[0].mxu0
        %1504 = vmatprep.mubr.f32.mxu0 0.0
        %1505 = vmatmul.mubr.f32.gmra.mrb[0].mxu0 %v1298
        %v1506 = vpop.f32.mrb[0].mxu0
        %v1507 = vadd.f32 0.0, %v1506
        %v1508 = vpop.f32.mrb[0].mxu0
        %1509 = vmatprep.mubr.f32.mxu0 0.0
        %1510 = vmatmul.mubr.f32.gmra.mrb[0].mxu0 %v1301
        %v1511 = vpop.f32.mrb[0].mxu0
        %v1512 = vadd.f32 0.0, %v1511
        %v1513 = vpop.f32.mrb[0].mxu0
        %1514 = vmatprep.mubr.f32.mxu0 0.0
        %1515 = vmatmul.mubr.f32.gmra.mrb[0].mxu0 %v1304
        %v1516 = vpop.f32.mrb[0].mxu0
        %v1517 = vadd.f32 0.0, %v1516
        %v1518 = vpop.f32.mrb[0].mxu0
        %1519 = vmatprep.mubr.f32.mxu0 0.0
        %1520 = vmatmul.mubr.f32.gmra.mrb[0].mxu0 %v1307
        %v1521 = vpop.f32.mrb[0].mxu0
        %v1522 = vadd.f32 0.0, %v1521
        %v1523 = vpop.f32.mrb[0].mxu0
        %1524 = vmatprep.mubr.f32.mxu0 0.0
        %1525 = vmatmul.mubr.f32.gmra.mrb[0].mxu0 %v1310
        %v1526 = vpop.f32.mrb[0].mxu0
        %v1527 = vadd.f32 0.0, %v1526
        %v1528 = vpop.f32.mrb[0].mxu0
        %1529 = vdwg.mxu0
        %v1530 = vadd.f32 %v1104, %v1379
        %v1531 = vadd.f32 %v1106, %v1381
        %v1532 = vadd.f32 %v1217, %v1492
        %v1533 = vadd.f32 %v1110, %v1385
        %v1534 = vadd.f32 %v1112, %v1387
        %v1535 = vadd.f32 %v1222, %v1497
        %v1536 = vadd.f32 %v1116, %v1391
        %v1537 = vadd.f32 %v1118, %v1393
        %v1538 = vadd.f32 %v1227, %v1502
        %v1539 = vadd.f32 %v1122, %v1397
        %v1540 = vadd.f32 %v1124, %v1399
        %v1541 = vadd.f32 %v1232, %v1507
        %v1542 = vadd.f32 %v1128, %v1403
        %v1543 = vadd.f32 %v1130, %v1405
        %v1544 = vadd.f32 %v1237, %v1512
        %v1545 = vadd.f32 %v1134, %v1409
        %v1546 = vadd.f32 %v1136, %v1411
        %v1547 = vadd.f32 %v1242, %v1517
        %v1548 = vadd.f32 %v1140, %v1415
        %v1549 = vadd.f32 %v1142, %v1417
        %v1550 = vadd.f32 %v1247, %v1522
        %v1551 = vadd.f32 %v1146, %v1421
        %v1552 = vadd.f32 %v1148, %v1423
        %v1553 = vadd.f32 %v1252, %v1527
        %v1554 = vld [vmem:[%s603 + $0x3] sm:$0xff]
        %v1555 = vld [vmem:[%s603 + $0xb] sm:$0xff]
        %v1556 = vld [vmem:[%s603 + $0x13] sm:$0xff]
        %v1557 = vld [vmem:[%s603 + $0x1b] sm:$0xff]
        %v1558 = vld [vmem:[%s603 + $0x23] sm:$0xff]
        %v1559 = vld [vmem:[%s603 + $0x2b] sm:$0xff]
        %v1560 = vld [vmem:[%s603 + $0x33] sm:$0xff]
        %v1561 = vld [vmem:[%s603 + $0x3b] sm:$0xf]
        %s1562 = scalar_lea.vmem [#allocation5], 576
        %v1563 = vld [vmem:[%s1562] sm:$0xff]
        %v1564 = vld [vmem:[%s1562 + $0x8] sm:$0xff]
        %v1565 = vld [vmem:[%s1562 + $0x10] sm:$0xff]
        %v1566 = vld [vmem:[%s1562 + $0x18] sm:$0xff]
        %v1567 = vld [vmem:[%s1562 + $0x20] sm:$0xff]
        %v1568 = vld [vmem:[%s1562 + $0x28] sm:$0xff]
        %v1569 = vld [vmem:[%s1562 + $0x30] sm:$0xff]
        %v1570 = vld [vmem:[%s1562 + $0x38] sm:$0xff]
        %v1571 = vld [vmem:[%s1562 + $0x40] sm:$0xff]
        %v1572 = vld [vmem:[%s1562 + $0x48] sm:$0xff]
        %v1573 = vld [vmem:[%s1562 + $0x50] sm:$0xff]
        %v1574 = vld [vmem:[%s1562 + $0x58] sm:$0xff]
        %v1575 = vld [vmem:[%s1562 + $0x60] sm:$0xff]
        %v1576 = vld [vmem:[%s1562 + $0x68] sm:$0xff]
        %v1577 = vld [vmem:[%s1562 + $0x70] sm:$0xff]
        %v1578 = vld [vmem:[%s1562 + $0x78] sm:$0xff]
        %v1579 = vld [vmem:[%s1562 + $0x80] sm:$0xff]
        %v1580 = vld [vmem:[%s1562 + $0x88] sm:$0xff]
        %v1581 = vld [vmem:[%s1562 + $0x90] sm:$0xff]
        %v1582 = vld [vmem:[%s1562 + $0x98] sm:$0xff]
        %v1583 = vld [vmem:[%s1562 + $0xa0] sm:$0xff]
        %v1584 = vld [vmem:[%s1562 + $0xa8] sm:$0xff]
        %v1585 = vld [vmem:[%s1562 + $0xb0] sm:$0xff]
        %v1586 = vld [vmem:[%s1562 + $0xb8] sm:$0xff]
        %v1588 = vsel %vm770, %v1554, 0
        %v1591 = vsel %vm770, %v1555, 0
        %v1594 = vsel %vm770, %v1556, 0
        %v1597 = vsel %vm770, %v1557, 0
        %v1600 = vsel %vm770, %v1558, 0
        %v1603 = vsel %vm770, %v1559, 0
        %v1606 = vsel %vm770, %v1560, 0
        %v1609 = vsel %vm770, %v1561, 0
        %1611 = vmatprep.subr.mxu0 %v1564
        %1612 = vmatpush1.msra.mxu0 %v1563
        %1613 = vmatprep.subr.mxu0 %v1567
        %1614 = vmatpush1.msra.mxu0 %v1566
        %1615 = vmatprep.subr.mxu0 %v1570
        %1616 = vmatpush1.msra.mxu0 %v1569
        %1617 = vmatprep.subr.mxu0 %v1573
        %1618 = vmatpush1.msra.mxu0 %v1572
        %1619 = vmatprep.subr.mxu0 %v1576
        %1620 = vmatpush1.msra.mxu0 %v1575
        %1621 = vmatprep.subr.mxu0 %v1579
        %1622 = vmatpush1.msra.mxu0 %v1578
        %1623 = vmatprep.subr.mxu0 %v1582
        %1624 = vmatpush1.msra.mxu0 %v1581
        %1625 = vmatprep.subr.mxu0 %v1585
        %1626 = vmatpush1.msra.mxu0 %v1584
        %1627 = vmatprep.subr.mxu0 0.0
        %1628 = vmatpush1.msra.mxu0 0.0
        %1629 = vmatprep.subr.mxu0 0.0
        %1630 = vmatpush1.msra.mxu0 0.0
        %1631 = vmatprep.subr.mxu0 0.0
        %1632 = vmatpush1.msra.mxu0 0.0
        %1633 = vmatprep.subr.mxu0 0.0
        %1634 = vmatpush1.msra.mxu0 0.0
        %1635 = vmatprep.subr.mxu0 0.0
        %1636 = vmatpush1.msra.mxu0 0.0
        %1637 = vmatprep.subr.mxu0 0.0
        %1638 = vmatpush1.msra.mxu0 0.0
        %1639 = vmatprep.subr.mxu0 0.0
        %1640 = vmatpush1.msra.mxu0 0.0
        %1641 = vmatprep.subr.mxu0 0.0
        %1642 = vmatpush1.msra.mxu0 0.0
        %1643 = vmatprep.subr.mxu0 0.0
        %1644 = vmatpush1.msra.mxu0 0.0
        %1645 = vmatprep.subr.mxu0 0.0
        %1646 = vmatpush1.msra.mxu0 0.0
        %1647 = vmatprep.subr.mxu0 0.0
        %1648 = vmatpush1.msra.mxu0 0.0
        %1649 = vmatprep.subr.mxu0 0.0
        %1650 = vmatpush1.msra.mxu0 0.0
        %1651 = vmatprep.subr.mxu0 0.0
        %1652 = vmatpush1.msra.mxu0 0.0
        %1653 = vmatprep.subr.mxu0 0.0
        %1654 = vmatpush1.msra.mxu0 0.0
        %1655 = vmatprep.subr.mxu0 0.0
        %1656 = vmatpush1.msra.mxu0 0.0
        %1657 = vmatprep.subr.mxu0 0.0
        %1658 = vmatpush1.msra.mxu0 0.0
        %1659 = vmatprep.subr.mxu0 0.0
        %1660 = vmatpush1.msra.mxu0 0.0
        %1661 = vmatprep.subr.mxu0 0.0
        %1662 = vmatpush1.msra.mxu0 0.0
        %1663 = vmatprep.subr.mxu0 0.0
        %1664 = vmatpush1.msra.mxu0 0.0
        %1665 = vmatprep.subr.mxu0 0.0
        %1666 = vmatpush1.msra.mxu0 0.0
        %1667 = vmatprep.subr.mxu0 0.0
        %1668 = vmatpush1.msra.mxu0 0.0
        %1669 = vmatprep.subr.mxu0 0.0
        %1670 = vmatpush1.msra.mxu0 0.0
        %1671 = vmatprep.subr.mxu0 0.0
        %1672 = vmatpush1.msra.mxu0 0.0
        %1673 = vmatprep.subr.mxu0 0.0
        %1674 = vmatpush1.msra.mxu0 0.0
        %1675 = vmatprep.mubr.f32.mxu0 0.0
        %1676 = vmatmul.mubr.f32.gmra.mrb[0].mxu0 %v1588
        %v1677 = vpop.f32.mrb[0].mxu0
        %v1678 = vadd.f32 0.0, %v1677
        %v1679 = vpop.f32.mrb[0].mxu0
        %v1680 = vadd.f32 0.0, %v1679
        %1681 = vmatprep.mubr.f32.mxu0 0.0
        %1682 = vmatmul.mubr.f32.gmra.mrb[0].mxu0 %v1591
        %v1683 = vpop.f32.mrb[0].mxu0
        %v1684 = vadd.f32 0.0, %v1683
        %v1685 = vpop.f32.mrb[0].mxu0
        %v1686 = vadd.f32 0.0, %v1685
        %1687 = vmatprep.mubr.f32.mxu0 0.0
        %1688 = vmatmul.mubr.f32.gmra.mrb[0].mxu0 %v1594
        %v1689 = vpop.f32.mrb[0].mxu0
        %v1690 = vadd.f32 0.0, %v1689
        %v1691 = vpop.f32.mrb[0].mxu0
        %v1692 = vadd.f32 0.0, %v1691
        %1693 = vmatprep.mubr.f32.mxu0 0.0
        %1694 = vmatmul.mubr.f32.gmra.mrb[0].mxu0 %v1597
        %v1695 = vpop.f32.mrb[0].mxu0
        %v1696 = vadd.f32 0.0, %v1695
        %v1697 = vpop.f32.mrb[0].mxu0
        %v1698 = vadd.f32 0.0, %v1697
        %1699 = vmatprep.mubr.f32.mxu0 0.0
        %1700 = vmatmul.mubr.f32.gmra.mrb[0].mxu0 %v1600
        %v1701 = vpop.f32.mrb[0].mxu0
        %v1702 = vadd.f32 0.0, %v1701
        %v1703 = vpop.f32.mrb[0].mxu0
        %v1704 = vadd.f32 0.0, %v1703
        %1705 = vmatprep.mubr.f32.mxu0 0.0
        %1706 = vmatmul.mubr.f32.gmra.mrb[0].mxu0 %v1603
        %v1707 = vpop.f32.mrb[0].mxu0
        %v1708 = vadd.f32 0.0, %v1707
        %v1709 = vpop.f32.mrb[0].mxu0
        %v1710 = vadd.f32 0.0, %v1709
        %1711 = vmatprep.mubr.f32.mxu0 0.0
        %1712 = vmatmul.mubr.f32.gmra.mrb[0].mxu0 %v1606
        %v1713 = vpop.f32.mrb[0].mxu0
        %v1714 = vadd.f32 0.0, %v1713
        %v1715 = vpop.f32.mrb[0].mxu0
        %v1716 = vadd.f32 0.0, %v1715
        %1717 = vmatprep.mubr.f32.mxu0 0.0
        %1718 = vmatmul.mubr.f32.gmra.mrb[0].mxu0 %v1609
        %v1719 = vpop.f32.mrb[0].mxu0
        %v1720 = vadd.f32 0.0, %v1719
        %v1721 = vpop.f32.mrb[0].mxu0
        %v1722 = vadd.f32 0.0, %v1721
        %1723 = vdwg.mxu0
        %1724 = vmatprep.subr.mxu0 0.0
        %1725 = vmatpush1.msra.mxu0 %v1565
        %1726 = vmatprep.subr.mxu0 0.0
        %1727 = vmatpush1.msra.mxu0 %v1568
        %1728 = vmatprep.subr.mxu0 0.0
        %1729 = vmatpush1.msra.mxu0 %v1571
        %1730 = vmatprep.subr.mxu0 0.0
        %1731 = vmatpush1.msra.mxu0 %v1574
        %1732 = vmatprep.subr.mxu0 0.0
        %1733 = vmatpush1.msra.mxu0 %v1577
        %1734 = vmatprep.subr.mxu0 0.0
        %1735 = vmatpush1.msra.mxu0 %v1580
        %1736 = vmatprep.subr.mxu0 0.0
        %1737 = vmatpush1.msra.mxu0 %v1583
        %1738 = vmatprep.subr.mxu0 0.0
        %1739 = vmatpush1.msra.mxu0 %v1586
        %1740 = vmatprep.subr.mxu0 0.0
        %1741 = vmatpush1.msra.mxu0 0.0
        %1742 = vmatprep.subr.mxu0 0.0
        %1743 = vmatpush1.msra.mxu0 0.0
        %1744 = vmatprep.subr.mxu0 0.0
        %1745 = vmatpush1.msra.mxu0 0.0
        %1746 = vmatprep.subr.mxu0 0.0
        %1747 = vmatpush1.msra.mxu0 0.0
        %1748 = vmatprep.subr.mxu0 0.0
        %1749 = vmatpush1.msra.mxu0 0.0
        %1750 = vmatprep.subr.mxu0 0.0
        %1751 = vmatpush1.msra.mxu0 0.0
        %1752 = vmatprep.subr.mxu0 0.0
        %1753 = vmatpush1.msra.mxu0 0.0
        %1754 = vmatprep.subr.mxu0 0.0
        %1755 = vmatpush1.msra.mxu0 0.0
        %1756 = vmatprep.subr.mxu0 0.0
        %1757 = vmatpush1.msra.mxu0 0.0
        %1758 = vmatprep.subr.mxu0 0.0
        %1759 = vmatpush1.msra.mxu0 0.0
        %1760 = vmatprep.subr.mxu0 0.0
        %1761 = vmatpush1.msra.mxu0 0.0
        %1762 = vmatprep.subr.mxu0 0.0
        %1763 = vmatpush1.msra.mxu0 0.0
        %1764 = vmatprep.subr.mxu0 0.0
        %1765 = vmatpush1.msra.mxu0 0.0
        %1766 = vmatprep.subr.mxu0 0.0
        %1767 = vmatpush1.msra.mxu0 0.0
        %1768 = vmatprep.subr.mxu0 0.0
        %1769 = vmatpush1.msra.mxu0 0.0
        %1770 = vmatprep.subr.mxu0 0.0
        %1771 = vmatpush1.msra.mxu0 0.0
        %1772 = vmatprep.subr.mxu0 0.0
        %1773 = vmatpush1.msra.mxu0 0.0
        %1774 = vmatprep.subr.mxu0 0.0
        %1775 = vmatpush1.msra.mxu0 0.0
        %1776 = vmatprep.subr.mxu0 0.0
        %1777 = vmatpush1.msra.mxu0 0.0
        %1778 = vmatprep.subr.mxu0 0.0
        %1779 = vmatpush1.msra.mxu0 0.0
        %1780 = vmatprep.subr.mxu0 0.0
        %1781 = vmatpush1.msra.mxu0 0.0
        %1782 = vmatprep.subr.mxu0 0.0
        %1783 = vmatpush1.msra.mxu0 0.0
        %1784 = vmatprep.subr.mxu0 0.0
        %1785 = vmatpush1.msra.mxu0 0.0
        %1786 = vmatprep.subr.mxu0 0.0
        %1787 = vmatpush1.msra.mxu0 0.0
        %1788 = vmatprep.mubr.f32.mxu0 0.0
        %1789 = vmatmul.mubr.f32.gmra.mrb[0].mxu0 %v1588
        %v1790 = vpop.f32.mrb[0].mxu0
        %v1791 = vadd.f32 0.0, %v1790
        %v1792 = vpop.f32.mrb[0].mxu0
        %1793 = vmatprep.mubr.f32.mxu0 0.0
        %1794 = vmatmul.mubr.f32.gmra.mrb[0].mxu0 %v1591
        %v1795 = vpop.f32.mrb[0].mxu0
        %v1796 = vadd.f32 0.0, %v1795
        %v1797 = vpop.f32.mrb[0].mxu0
        %1798 = vmatprep.mubr.f32.mxu0 0.0
        %1799 = vmatmul.mubr.f32.gmra.mrb[0].mxu0 %v1594
        %v1800 = vpop.f32.mrb[0].mxu0
        %v1801 = vadd.f32 0.0, %v1800
        %v1802 = vpop.f32.mrb[0].mxu0
        %1803 = vmatprep.mubr.f32.mxu0 0.0
        %1804 = vmatmul.mubr.f32.gmra.mrb[0].mxu0 %v1597
        %v1805 = vpop.f32.mrb[0].mxu0
        %v1806 = vadd.f32 0.0, %v1805
        %v1807 = vpop.f32.mrb[0].mxu0
        %1808 = vmatprep.mubr.f32.mxu0 0.0
        %1809 = vmatmul.mubr.f32.gmra.mrb[0].mxu0 %v1600
        %v1810 = vpop.f32.mrb[0].mxu0
        %v1811 = vadd.f32 0.0, %v1810
        %v1812 = vpop.f32.mrb[0].mxu0
        %1813 = vmatprep.mubr.f32.mxu0 0.0
        %1814 = vmatmul.mubr.f32.gmra.mrb[0].mxu0 %v1603
        %v1815 = vpop.f32.mrb[0].mxu0
        %v1816 = vadd.f32 0.0, %v1815
        %v1817 = vpop.f32.mrb[0].mxu0
        %1818 = vmatprep.mubr.f32.mxu0 0.0
        %1819 = vmatmul.mubr.f32.gmra.mrb[0].mxu0 %v1606
        %v1820 = vpop.f32.mrb[0].mxu0
        %v1821 = vadd.f32 0.0, %v1820
        %v1822 = vpop.f32.mrb[0].mxu0
        %1823 = vmatprep.mubr.f32.mxu0 0.0
        %1824 = vmatmul.mubr.f32.gmra.mrb[0].mxu0 %v1609
        %v1825 = vpop.f32.mrb[0].mxu0
        %v1826 = vadd.f32 0.0, %v1825
        %v1827 = vpop.f32.mrb[0].mxu0
        %1828 = vdwg.mxu0
        %v1829 = vadd.f32 %v1530, %v1678
        %v1830 = vadd.f32 %v1531, %v1680
        %v1831 = vadd.f32 %v1532, %v1791
        %v1832 = vadd.f32 %v1533, %v1684
        %v1833 = vadd.f32 %v1534, %v1686
        %v1834 = vadd.f32 %v1535, %v1796
        %v1835 = vadd.f32 %v1536, %v1690
        %v1836 = vadd.f32 %v1537, %v1692
        %v1837 = vadd.f32 %v1538, %v1801
        %v1838 = vadd.f32 %v1539, %v1696
        %v1839 = vadd.f32 %v1540, %v1698
        %v1840 = vadd.f32 %v1541, %v1806
        %v1841 = vadd.f32 %v1542, %v1702
        %v1842 = vadd.f32 %v1543, %v1704
        %v1843 = vadd.f32 %v1544, %v1811
        %v1844 = vadd.f32 %v1545, %v1708
        %v1845 = vadd.f32 %v1546, %v1710
        %v1846 = vadd.f32 %v1547, %v1816
        %v1847 = vadd.f32 %v1548, %v1714
        %v1848 = vadd.f32 %v1549, %v1716
        %v1849 = vadd.f32 %v1550, %v1821
        %v1850 = vadd.f32 %v1551, %v1720
        %v1851 = vadd.f32 %v1552, %v1722
        %v1852 = vadd.f32 %v1553, %v1826
        %v1853 = vld [vmem:[%s603 + $0x4] sm:$0xff]
        %v1854 = vld [vmem:[%s603 + $0xc] sm:$0xff]
        %v1855 = vld [vmem:[%s603 + $0x14] sm:$0xff]
        %v1856 = vld [vmem:[%s603 + $0x1c] sm:$0xff]
        %v1857 = vld [vmem:[%s603 + $0x24] sm:$0xff]
        %v1858 = vld [vmem:[%s603 + $0x2c] sm:$0xff]
        %v1859 = vld [vmem:[%s603 + $0x34] sm:$0xff]
        %v1860 = vld [vmem:[%s603 + $0x3c] sm:$0xf]
        %s1861 = scalar_lea.vmem [#allocation5], 768
        %v1862 = vld [vmem:[%s1861] sm:$0xff]
        %v1863 = vld [vmem:[%s1861 + $0x8] sm:$0xff]
        %v1864 = vld [vmem:[%s1861 + $0x10] sm:$0xff]
        %v1865 = vld [vmem:[%s1861 + $0x18] sm:$0xff]
        %v1866 = vld [vmem:[%s1861 + $0x20] sm:$0xff]
        %v1867 = vld [vmem:[%s1861 + $0x28] sm:$0xff]
        %v1868 = vld [vmem:[%s1861 + $0x30] sm:$0xff]
        %v1869 = vld [vmem:[%s1861 + $0x38] sm:$0xff]
        %v1870 = vld [vmem:[%s1861 + $0x40] sm:$0xff]
        %v1871 = vld [vmem:[%s1861 + $0x48] sm:$0xff]
        %v1872 = vld [vmem:[%s1861 + $0x50] sm:$0xff]
        %v1873 = vld [vmem:[%s1861 + $0x58] sm:$0xff]
        %v1874 = vld [vmem:[%s1861 + $0x60] sm:$0xff]
        %v1875 = vld [vmem:[%s1861 + $0x68] sm:$0xff]
        %v1876 = vld [vmem:[%s1861 + $0x70] sm:$0xff]
        %v1877 = vld [vmem:[%s1861 + $0x78] sm:$0xff]
        %v1878 = vld [vmem:[%s1861 + $0x80] sm:$0xff]
        %v1879 = vld [vmem:[%s1861 + $0x88] sm:$0xff]
        %v1880 = vld [vmem:[%s1861 + $0x90] sm:$0xff]
        %v1881 = vld [vmem:[%s1861 + $0x98] sm:$0xff]
        %v1882 = vld [vmem:[%s1861 + $0xa0] sm:$0xff]
        %v1883 = vld [vmem:[%s1861 + $0xa8] sm:$0xff]
        %v1884 = vld [vmem:[%s1861 + $0xb0] sm:$0xff]
        %v1885 = vld [vmem:[%s1861 + $0xb8] sm:$0xff]
        %v1887 = vsel %vm770, %v1853, 0
        %v1890 = vsel %vm770, %v1854, 0
        %v1893 = vsel %vm770, %v1855, 0
        %v1896 = vsel %vm770, %v1856, 0
        %v1899 = vsel %vm770, %v1857, 0
        %v1902 = vsel %vm770, %v1858, 0
        %v1905 = vsel %vm770, %v1859, 0
        %v1908 = vsel %vm770, %v1860, 0
        %1910 = vmatprep.subr.mxu0 %v1863
        %1911 = vmatpush1.msra.mxu0 %v1862
        %1912 = vmatprep.subr.mxu0 %v1866
        %1913 = vmatpush1.msra.mxu0 %v1865
        %1914 = vmatprep.subr.mxu0 %v1869
        %1915 = vmatpush1.msra.mxu0 %v1868
        %1916 = vmatprep.subr.mxu0 %v1872
        %1917 = vmatpush1.msra.mxu0 %v1871
        %1918 = vmatprep.subr.mxu0 %v1875
        %1919 = vmatpush1.msra.mxu0 %v1874
        %1920 = vmatprep.subr.mxu0 %v1878
        %1921 = vmatpush1.msra.mxu0 %v1877
        %1922 = vmatprep.subr.mxu0 %v1881
        %1923 = vmatpush1.msra.mxu0 %v1880
        %1924 = vmatprep.subr.mxu0 %v1884
        %1925 = vmatpush1.msra.mxu0 %v1883
        %1926 = vmatprep.subr.mxu0 0.0
        %1927 = vmatpush1.msra.mxu0 0.0
        %1928 = vmatprep.subr.mxu0 0.0
        %1929 = vmatpush1.msra.mxu0 0.0
        %1930 = vmatprep.subr.mxu0 0.0
        %1931 = vmatpush1.msra.mxu0 0.0
        %1932 = vmatprep.subr.mxu0 0.0
        %1933 = vmatpush1.msra.mxu0 0.0
        %1934 = vmatprep.subr.mxu0 0.0
        %1935 = vmatpush1.msra.mxu0 0.0
        %1936 = vmatprep.subr.mxu0 0.0
        %1937 = vmatpush1.msra.mxu0 0.0
        %1938 = vmatprep.subr.mxu0 0.0
        %1939 = vmatpush1.msra.mxu0 0.0
        %1940 = vmatprep.subr.mxu0 0.0
        %1941 = vmatpush1.msra.mxu0 0.0
        %1942 = vmatprep.subr.mxu0 0.0
        %1943 = vmatpush1.msra.mxu0 0.0
        %1944 = vmatprep.subr.mxu0 0.0
        %1945 = vmatpush1.msra.mxu0 0.0
        %1946 = vmatprep.subr.mxu0 0.0
        %1947 = vmatpush1.msra.mxu0 0.0
        %1948 = vmatprep.subr.mxu0 0.0
        %1949 = vmatpush1.msra.mxu0 0.0
        %1950 = vmatprep.subr.mxu0 0.0
        %1951 = vmatpush1.msra.mxu0 0.0
        %1952 = vmatprep.subr.mxu0 0.0
        %1953 = vmatpush1.msra.mxu0 0.0
        %1954 = vmatprep.subr.mxu0 0.0
        %1955 = vmatpush1.msra.mxu0 0.0
        %1956 = vmatprep.subr.mxu0 0.0
        %1957 = vmatpush1.msra.mxu0 0.0
        %1958 = vmatprep.subr.mxu0 0.0
        %1959 = vmatpush1.msra.mxu0 0.0
        %1960 = vmatprep.subr.mxu0 0.0
        %1961 = vmatpush1.msra.mxu0 0.0
        %1962 = vmatprep.subr.mxu0 0.0
        %1963 = vmatpush1.msra.mxu0 0.0
        %1964 = vmatprep.subr.mxu0 0.0
        %1965 = vmatpush1.msra.mxu0 0.0
        %1966 = vmatprep.subr.mxu0 0.0
        %1967 = vmatpush1.msra.mxu0 0.0
        %1968 = vmatprep.subr.mxu0 0.0
        %1969 = vmatpush1.msra.mxu0 0.0
        %1970 = vmatprep.subr.mxu0 0.0
        %1971 = vmatpush1.msra.mxu0 0.0
        %1972 = vmatprep.subr.mxu0 0.0
        %1973 = vmatpush1.msra.mxu0 0.0
        %1974 = vmatprep.mubr.f32.mxu0 0.0
        %1975 = vmatmul.mubr.f32.gmra.mrb[0].mxu0 %v1887
        %v1976 = vpop.f32.mrb[0].mxu0
        %v1977 = vadd.f32 0.0, %v1976
        %v1978 = vpop.f32.mrb[0].mxu0
        %v1979 = vadd.f32 0.0, %v1978
        %1980 = vmatprep.mubr.f32.mxu0 0.0
        %1981 = vmatmul.mubr.f32.gmra.mrb[0].mxu0 %v1890
        %v1982 = vpop.f32.mrb[0].mxu0
        %v1983 = vadd.f32 0.0, %v1982
        %v1984 = vpop.f32.mrb[0].mxu0
        %v1985 = vadd.f32 0.0, %v1984
        %1986 = vmatprep.mubr.f32.mxu0 0.0
        %1987 = vmatmul.mubr.f32.gmra.mrb[0].mxu0 %v1893
        %v1988 = vpop.f32.mrb[0].mxu0
        %v1989 = vadd.f32 0.0, %v1988
        %v1990 = vpop.f32.mrb[0].mxu0
        %v1991 = vadd.f32 0.0, %v1990
        %1992 = vmatprep.mubr.f32.mxu0 0.0
        %1993 = vmatmul.mubr.f32.gmra.mrb[0].mxu0 %v1896
        %v1994 = vpop.f32.mrb[0].mxu0
        %v1995 = vadd.f32 0.0, %v1994
        %v1996 = vpop.f32.mrb[0].mxu0
        %v1997 = vadd.f32 0.0, %v1996
        %1998 = vmatprep.mubr.f32.mxu0 0.0
        %1999 = vmatmul.mubr.f32.gmra.mrb[0].mxu0 %v1899
        %v2000 = vpop.f32.mrb[0].mxu0
        %v2001 = vadd.f32 0.0, %v2000
        %v2002 = vpop.f32.mrb[0].mxu0
        %v2003 = vadd.f32 0.0, %v2002
        %2004 = vmatprep.mubr.f32.mxu0 0.0
        %2005 = vmatmul.mubr.f32.gmra.mrb[0].mxu0 %v1902
        %v2006 = vpop.f32.mrb[0].mxu0
        %v2007 = vadd.f32 0.0, %v2006
        %v2008 = vpop.f32.mrb[0].mxu0
        %v2009 = vadd.f32 0.0, %v2008
        %2010 = vmatprep.mubr.f32.mxu0 0.0
        %2011 = vmatmul.mubr.f32.gmra.mrb[0].mxu0 %v1905
        %v2012 = vpop.f32.mrb[0].mxu0
        %v2013 = vadd.f32 0.0, %v2012
        %v2014 = vpop.f32.mrb[0].mxu0
        %v2015 = vadd.f32 0.0, %v2014
        %2016 = vmatprep.mubr.f32.mxu0 0.0
        %2017 = vmatmul.mubr.f32.gmra.mrb[0].mxu0 %v1908
        %v2018 = vpop.f32.mrb[0].mxu0
        %v2019 = vadd.f32 0.0, %v2018
        %v2020 = vpop.f32.mrb[0].mxu0
        %v2021 = vadd.f32 0.0, %v2020
        %2022 = vdwg.mxu0
        %2023 = vmatprep.subr.mxu0 0.0
        %2024 = vmatpush1.msra.mxu0 %v1864
        %2025 = vmatprep.subr.mxu0 0.0
        %2026 = vmatpush1.msra.mxu0 %v1867
        %2027 = vmatprep.subr.mxu0 0.0
        %2028 = vmatpush1.msra.mxu0 %v1870
        %2029 = vmatprep.subr.mxu0 0.0
        %2030 = vmatpush1.msra.mxu0 %v1873
        %2031 = vmatprep.subr.mxu0 0.0
        %2032 = vmatpush1.msra.mxu0 %v1876
        %2033 = vmatprep.subr.mxu0 0.0
        %2034 = vmatpush1.msra.mxu0 %v1879
        %2035 = vmatprep.subr.mxu0 0.0
        %2036 = vmatpush1.msra.mxu0 %v1882
        %2037 = vmatprep.subr.mxu0 0.0
        %2038 = vmatpush1.msra.mxu0 %v1885
        %2039 = vmatprep.subr.mxu0 0.0
        %2040 = vmatpush1.msra.mxu0 0.0
        %2041 = vmatprep.subr.mxu0 0.0
        %2042 = vmatpush1.msra.mxu0 0.0
        %2043 = vmatprep.subr.mxu0 0.0
        %2044 = vmatpush1.msra.mxu0 0.0
        %2045 = vmatprep.subr.mxu0 0.0
        %2046 = vmatpush1.msra.mxu0 0.0
        %2047 = vmatprep.subr.mxu0 0.0
        %2048 = vmatpush1.msra.mxu0 0.0
        %2049 = vmatprep.subr.mxu0 0.0
        %2050 = vmatpush1.msra.mxu0 0.0
        %2051 = vmatprep.subr.mxu0 0.0
        %2052 = vmatpush1.msra.mxu0 0.0
        %2053 = vmatprep.subr.mxu0 0.0
        %2054 = vmatpush1.msra.mxu0 0.0
        %2055 = vmatprep.subr.mxu0 0.0
        %2056 = vmatpush1.msra.mxu0 0.0
        %2057 = vmatprep.subr.mxu0 0.0
        %2058 = vmatpush1.msra.mxu0 0.0
        %2059 = vmatprep.subr.mxu0 0.0
        %2060 = vmatpush1.msra.mxu0 0.0
        %2061 = vmatprep.subr.mxu0 0.0
        %2062 = vmatpush1.msra.mxu0 0.0
        %2063 = vmatprep.subr.mxu0 0.0
        %2064 = vmatpush1.msra.mxu0 0.0
        %2065 = vmatprep.subr.mxu0 0.0
        %2066 = vmatpush1.msra.mxu0 0.0
        %2067 = vmatprep.subr.mxu0 0.0
        %2068 = vmatpush1.msra.mxu0 0.0
        %2069 = vmatprep.subr.mxu0 0.0
        %2070 = vmatpush1.msra.mxu0 0.0
        %2071 = vmatprep.subr.mxu0 0.0
        %2072 = vmatpush1.msra.mxu0 0.0
        %2073 = vmatprep.subr.mxu0 0.0
        %2074 = vmatpush1.msra.mxu0 0.0
        %2075 = vmatprep.subr.mxu0 0.0
        %2076 = vmatpush1.msra.mxu0 0.0
        %2077 = vmatprep.subr.mxu0 0.0
        %2078 = vmatpush1.msra.mxu0 0.0
        %2079 = vmatprep.subr.mxu0 0.0
        %2080 = vmatpush1.msra.mxu0 0.0
        %2081 = vmatprep.subr.mxu0 0.0
        %2082 = vmatpush1.msra.mxu0 0.0
        %2083 = vmatprep.subr.mxu0 0.0
        %2084 = vmatpush1.msra.mxu0 0.0
        %2085 = vmatprep.subr.mxu0 0.0
        %2086 = vmatpush1.msra.mxu0 0.0
        %2087 = vmatprep.mubr.f32.mxu0 0.0
        %2088 = vmatmul.mubr.f32.gmra.mrb[0].mxu0 %v1887
        %v2089 = vpop.f32.mrb[0].mxu0
        %v2090 = vadd.f32 0.0, %v2089
        %v2091 = vpop.f32.mrb[0].mxu0
        %2092 = vmatprep.mubr.f32.mxu0 0.0
        %2093 = vmatmul.mubr.f32.gmra.mrb[0].mxu0 %v1890
        %v2094 = vpop.f32.mrb[0].mxu0
        %v2095 = vadd.f32 0.0, %v2094
        %v2096 = vpop.f32.mrb[0].mxu0
        %2097 = vmatprep.mubr.f32.mxu0 0.0
        %2098 = vmatmul.mubr.f32.gmra.mrb[0].mxu0 %v1893
        %v2099 = vpop.f32.mrb[0].mxu0
        %v2100 = vadd.f32 0.0, %v2099
        %v2101 = vpop.f32.mrb[0].mxu0
        %2102 = vmatprep.mubr.f32.mxu0 0.0
        %2103 = vmatmul.mubr.f32.gmra.mrb[0].mxu0 %v1896
        %v2104 = vpop.f32.mrb[0].mxu0
        %v2105 = vadd.f32 0.0, %v2104
        %v2106 = vpop.f32.mrb[0].mxu0
        %2107 = vmatprep.mubr.f32.mxu0 0.0
        %2108 = vmatmul.mubr.f32.gmra.mrb[0].mxu0 %v1899
        %v2109 = vpop.f32.mrb[0].mxu0
        %v2110 = vadd.f32 0.0, %v2109
        %v2111 = vpop.f32.mrb[0].mxu0
        %2112 = vmatprep.mubr.f32.mxu0 0.0
        %2113 = vmatmul.mubr.f32.gmra.mrb[0].mxu0 %v1902
        %v2114 = vpop.f32.mrb[0].mxu0
        %v2115 = vadd.f32 0.0, %v2114
        %v2116 = vpop.f32.mrb[0].mxu0
        %2117 = vmatprep.mubr.f32.mxu0 0.0
        %2118 = vmatmul.mubr.f32.gmra.mrb[0].mxu0 %v1905
        %v2119 = vpop.f32.mrb[0].mxu0
        %v2120 = vadd.f32 0.0, %v2119
        %v2121 = vpop.f32.mrb[0].mxu0
        %2122 = vmatprep.mubr.f32.mxu0 0.0
        %2123 = vmatmul.mubr.f32.gmra.mrb[0].mxu0 %v1908
        %v2124 = vpop.f32.mrb[0].mxu0
        %v2125 = vadd.f32 0.0, %v2124
        %v2126 = vpop.f32.mrb[0].mxu0
        %2127 = vdwg.mxu0
        %v2128 = vadd.f32 %v1829, %v1977
        %v2129 = vadd.f32 %v1830, %v1979
        %v2130 = vadd.f32 %v1831, %v2090
        %v2131 = vadd.f32 %v1832, %v1983
        %v2132 = vadd.f32 %v1833, %v1985
        %v2133 = vadd.f32 %v1834, %v2095
        %v2134 = vadd.f32 %v1835, %v1989
        %v2135 = vadd.f32 %v1836, %v1991
        %v2136 = vadd.f32 %v1837, %v2100
        %v2137 = vadd.f32 %v1838, %v1995
        %v2138 = vadd.f32 %v1839, %v1997
        %v2139 = vadd.f32 %v1840, %v2105
        %v2140 = vadd.f32 %v1841, %v2001
        %v2141 = vadd.f32 %v1842, %v2003
        %v2142 = vadd.f32 %v1843, %v2110
        %v2143 = vadd.f32 %v1844, %v2007
        %v2144 = vadd.f32 %v1845, %v2009
        %v2145 = vadd.f32 %v1846, %v2115
        %v2146 = vadd.f32 %v1847, %v2013
        %v2147 = vadd.f32 %v1848, %v2015
        %v2148 = vadd.f32 %v1849, %v2120
        %v2149 = vadd.f32 %v1850, %v2019
        %v2150 = vadd.f32 %v1851, %v2021
        %v2151 = vadd.f32 %v1852, %v2125
        %v2152 = vld [vmem:[#allocation7] sm:$0x7]
        %v2154 = vlaneseq
        %v2155 = vshrl.u32 %v2154, 7
        %v2156 = vsub.s32 0, %v2155
        %v2157 = vrot.slane %v2152, %v2156
        %v2158 = vlaneseq
        %v2159 = vshrl.u32 %v2158, 7
        %v2160 = vsub.s32 1, %v2159
        %v2161 = vrot.slane %v2152, %v2160
        %v2162 = vlaneseq
        %v2163 = vshrl.u32 %v2162, 7
        %v2164 = vsub.s32 2, %v2163
        %v2165 = vrot.slane %v2152, %v2164
        %v2169 = vadd.f32 %v2128, %v2157
        %v2170 = vadd.f32 %v2129, %v2161
        %v2171 = vadd.f32 %v2130, %v2165
        %v2172 = vadd.f32 %v2131, %v2157
        %v2173 = vadd.f32 %v2132, %v2161
        %v2174 = vadd.f32 %v2133, %v2165
        %v2175 = vadd.f32 %v2134, %v2157
        %v2176 = vadd.f32 %v2135, %v2161
        %v2177 = vadd.f32 %v2136, %v2165
        %v2178 = vadd.f32 %v2137, %v2157
        %v2179 = vadd.f32 %v2138, %v2161
        %v2180 = vadd.f32 %v2139, %v2165
        %v2181 = vadd.f32 %v2140, %v2157
        %v2182 = vadd.f32 %v2141, %v2161
        %v2183 = vadd.f32 %v2142, %v2165
        %v2184 = vadd.f32 %v2143, %v2157
        %v2185 = vadd.f32 %v2144, %v2161
        %v2186 = vadd.f32 %v2145, %v2165
        %v2187 = vadd.f32 %v2146, %v2157
        %v2188 = vadd.f32 %v2147, %v2161
        %v2189 = vadd.f32 %v2148, %v2165
        %v2190 = vadd.f32 %v2149, %v2157
        %v2191 = vadd.f32 %v2150, %v2161
        %v2192 = vadd.f32 %v2151, %v2165
        %v2193 = vmax.f32 %v2169, 0.0
        %v2194 = vmax.f32 %v2170, 0.0
        %v2195 = vmax.f32 %v2171, 0.0
        %v2196 = vmax.f32 %v2172, 0.0
        %v2197 = vmax.f32 %v2173, 0.0
        %v2198 = vmax.f32 %v2174, 0.0
        %v2199 = vmax.f32 %v2175, 0.0
        %v2200 = vmax.f32 %v2176, 0.0
        %v2201 = vmax.f32 %v2177, 0.0
        %v2202 = vmax.f32 %v2178, 0.0
        %v2203 = vmax.f32 %v2179, 0.0
        %v2204 = vmax.f32 %v2180, 0.0
        %v2205 = vmax.f32 %v2181, 0.0
        %v2206 = vmax.f32 %v2182, 0.0
        %v2207 = vmax.f32 %v2183, 0.0
        %v2208 = vmax.f32 %v2184, 0.0
        %v2209 = vmax.f32 %v2185, 0.0
        %v2210 = vmax.f32 %v2186, 0.0
        %v2211 = vmax.f32 %v2187, 0.0
        %v2212 = vmax.f32 %v2188, 0.0
        %v2213 = vmax.f32 %v2189, 0.0
        %v2214 = vmax.f32 %v2190, 0.0
        %v2215 = vmax.f32 %v2191, 0.0
        %v2216 = vmax.f32 %v2192, 0.0
        %2233 = vrot.lane.b32.xlu0 %v2194, 76
        %v2234 = vpop.permute.xlu0 %2233
        %2235 = vrot.lane.b32.xlu0 %v2195, 76
        %v2236 = vpop.permute.xlu0 %2235
        %2237 = vrot.lane.b32.xlu0 %v2197, 76
        %v2238 = vpop.permute.xlu0 %2237
        %2239 = vrot.lane.b32.xlu0 %v2198, 76
        %v2240 = vpop.permute.xlu0 %2239
        %2241 = vrot.lane.b32.xlu0 %v2200, 76
        %v2242 = vpop.permute.xlu0 %2241
        %2243 = vrot.lane.b32.xlu0 %v2201, 76
        %v2244 = vpop.permute.xlu0 %2243
        %2245 = vrot.lane.b32.xlu0 %v2203, 76
        %v2246 = vpop.permute.xlu0 %2245
        %2247 = vrot.lane.b32.xlu0 %v2204, 76
        %v2248 = vpop.permute.xlu0 %2247
        %2249 = vrot.lane.b32.xlu0 %v2206, 76
        %v2250 = vpop.permute.xlu0 %2249
        %2251 = vrot.lane.b32.xlu0 %v2207, 76
        %v2252 = vpop.permute.xlu0 %2251
        %2253 = vrot.lane.b32.xlu0 %v2209, 76
        %v2254 = vpop.permute.xlu0 %2253
        %2255 = vrot.lane.b32.xlu0 %v2210, 76
        %v2256 = vpop.permute.xlu0 %2255
        %2257 = vrot.lane.b32.xlu0 %v2212, 76
        %v2258 = vpop.permute.xlu0 %2257
        %2259 = vrot.lane.b32.xlu0 %v2213, 76
        %v2260 = vpop.permute.xlu0 %2259
        %2261 = vrot.lane.b32.xlu0 %v2215, 76
        %v2262 = vpop.permute.xlu0 %2261
        %2263 = vrot.lane.b32.xlu0 %v2216, 76
        %v2264 = vpop.permute.xlu0 %2263
        %vm2265 = vcmask 621568
        %v2266 = vsel %vm2265, %v2234, %v2236
        %v2267 = vsel %vm2265, %v2238, %v2240
        %v2268 = vsel %vm2265, %v2242, %v2244
        %v2269 = vsel %vm2265, %v2246, %v2248
        %v2270 = vsel %vm2265, %v2250, %v2252
        %v2271 = vsel %vm2265, %v2254, %v2256
        %v2272 = vsel %vm2265, %v2258, %v2260
        %v2273 = vsel %vm2265, %v2262, %v2264
        %v2290 = vmax.f32 %v2193, %v2266
        %v2291 = vmax.f32 %v2194, %v2236
        %v2292 = vmax.f32 %v2196, %v2267
        %v2293 = vmax.f32 %v2197, %v2240
        %v2294 = vmax.f32 %v2199, %v2268
        %v2295 = vmax.f32 %v2200, %v2244
        %v2296 = vmax.f32 %v2202, %v2269
        %v2297 = vmax.f32 %v2203, %v2248
        %v2298 = vmax.f32 %v2205, %v2270
        %v2299 = vmax.f32 %v2206, %v2252
        %v2300 = vmax.f32 %v2208, %v2271
        %v2301 = vmax.f32 %v2209, %v2256
        %v2302 = vmax.f32 %v2211, %v2272
        %v2303 = vmax.f32 %v2212, %v2260
        %v2304 = vmax.f32 %v2214, %v2273
        %v2305 = vmax.f32 %v2215, %v2264
        %v2306 = vld [vmem:[#allocation8] sm:$0xff]
        %v2307 = vld [vmem:[#allocation8 + $0x8] sm:$0xff]
        %v2308 = vld [vmem:[#allocation8 + $0x10] sm:$0xff]
        %v2309 = vld [vmem:[#allocation8 + $0x18] sm:$0x3f]
        %vm2310 = vcmask 490496
        %v2312 = vsel %vm2310, %v2306, 0
        %v2315 = vsel %vm2310, %v2307, 0
        %v2318 = vsel %vm2310, %v2308, 0
        %v2321 = vsel %vm2310, %v2309, 0
        %vm2323 = vcmask 1043456
        %v2325 = vsel %vm2323, %v2304, 0
        %v2328 = vsel %vm2323, %v2305, 0
        %2330 = vmatprep.subr.mxu0 %v2291
        %2331 = vmatpush1.msra.mxu0 %v2290
        %2332 = vmatprep.subr.mxu0 %v2293
        %2333 = vmatpush1.msra.mxu0 %v2292
        %2334 = vmatprep.subr.mxu0 %v2295
        %2335 = vmatpush1.msra.mxu0 %v2294
        %2336 = vmatprep.subr.mxu0 %v2297
        %2337 = vmatpush1.msra.mxu0 %v2296
        %2338 = vmatprep.subr.mxu0 %v2299
        %2339 = vmatpush1.msra.mxu0 %v2298
        %2340 = vmatprep.subr.mxu0 %v2301
        %2341 = vmatpush1.msra.mxu0 %v2300
        %2342 = vmatprep.subr.mxu0 %v2303
        %2343 = vmatpush1.msra.mxu0 %v2302
        %2344 = vmatprep.subr.mxu0 %v2328
        %2345 = vmatpush1.msra.mxu0 %v2325
        %2346 = vmatprep.subr.mxu0 0.0
        %2347 = vmatpush1.msra.mxu0 0.0
        %2348 = vmatprep.subr.mxu0 0.0
        %2349 = vmatpush1.msra.mxu0 0.0
        %2350 = vmatprep.subr.mxu0 0.0
        %2351 = vmatpush1.msra.mxu0 0.0
        %2352 = vmatprep.subr.mxu0 0.0
        %2353 = vmatpush1.msra.mxu0 0.0
        %2354 = vmatprep.subr.mxu0 0.0
        %2355 = vmatpush1.msra.mxu0 0.0
        %2356 = vmatprep.subr.mxu0 0.0
        %2357 = vmatpush1.msra.mxu0 0.0
        %2358 = vmatprep.subr.mxu0 0.0
        %2359 = vmatpush1.msra.mxu0 0.0
        %2360 = vmatprep.subr.mxu0 0.0
        %2361 = vmatpush1.msra.mxu0 0.0
        %2362 = vmatprep.subr.mxu0 0.0
        %2363 = vmatpush1.msra.mxu0 0.0
        %2364 = vmatprep.subr.mxu0 0.0
        %2365 = vmatpush1.msra.mxu0 0.0
        %2366 = vmatprep.subr.mxu0 0.0
        %2367 = vmatpush1.msra.mxu0 0.0
        %2368 = vmatprep.subr.mxu0 0.0
        %2369 = vmatpush1.msra.mxu0 0.0
        %2370 = vmatprep.subr.mxu0 0.0
        %2371 = vmatpush1.msra.mxu0 0.0
        %2372 = vmatprep.subr.mxu0 0.0
        %2373 = vmatpush1.msra.mxu0 0.0
        %2374 = vmatprep.subr.mxu0 0.0
        %2375 = vmatpush1.msra.mxu0 0.0
        %2376 = vmatprep.subr.mxu0 0.0
        %2377 = vmatpush1.msra.mxu0 0.0
        %2378 = vmatprep.subr.mxu0 0.0
        %2379 = vmatpush1.msra.mxu0 0.0
        %2380 = vmatprep.subr.mxu0 0.0
        %2381 = vmatpush1.msra.mxu0 0.0
        %2382 = vmatprep.subr.mxu0 0.0
        %2383 = vmatpush1.msra.mxu0 0.0
        %2384 = vmatprep.subr.mxu0 0.0
        %2385 = vmatpush1.msra.mxu0 0.0
        %2386 = vmatprep.subr.mxu0 0.0
        %2387 = vmatpush1.msra.mxu0 0.0
        %2388 = vmatprep.subr.mxu0 0.0
        %2389 = vmatpush1.msra.mxu0 0.0
        %2390 = vmatprep.subr.mxu0 0.0
        %2391 = vmatpush1.msra.mxu0 0.0
        %2392 = vmatprep.subr.mxu0 0.0
        %2393 = vmatpush1.msra.mxu0 0.0
        %2394 = vmatprep.mubr.f32.mxu0 0.0
        %2395 = vmatmul.mubr.f32.gmra.mrb[0].mxu0 %v2312
        %v2396 = vpop.f32.mrb[0].mxu0
        %v2397 = vadd.f32 0.0, %v2396
        %v2398 = vpop.f32.mrb[0].mxu0
        %v2399 = vadd.f32 0.0, %v2398
        %2400 = vmatprep.mubr.f32.mxu0 0.0
        %2401 = vmatmul.mubr.f32.gmra.mrb[0].mxu0 %v2315
        %v2402 = vpop.f32.mrb[0].mxu0
        %v2403 = vadd.f32 0.0, %v2402
        %v2404 = vpop.f32.mrb[0].mxu0
        %v2405 = vadd.f32 0.0, %v2404
        %2406 = vmatprep.mubr.f32.mxu0 0.0
        %2407 = vmatmul.mubr.f32.gmra.mrb[0].mxu0 %v2318
        %v2408 = vpop.f32.mrb[0].mxu0
        %v2409 = vadd.f32 0.0, %v2408
        %v2410 = vpop.f32.mrb[0].mxu0
        %v2411 = vadd.f32 0.0, %v2410
        %2412 = vmatprep.mubr.f32.mxu0 0.0
        %2413 = vmatmul.mubr.f32.gmra.mrb[0].mxu0 %v2321
        %v2414 = vpop.f32.mrb[0].mxu0
        %v2415 = vadd.f32 0.0, %v2414
        %v2416 = vpop.f32.mrb[0].mxu0
        %v2417 = vadd.f32 0.0, %v2416
        %2418 = vdwg.mxu0
        %v2419 = vld [vmem:[#allocation10] sm:$0xff]
        %v2420 = vld [vmem:[#allocation10 + $0x8] sm:$0xff]
        %v2421 = vld [vmem:[#allocation10 + $0x10] sm:$0xff]
        %v2422 = vld [vmem:[#allocation10 + $0x18] sm:$0x3f]
        %v2424 = vsel %vm2310, %v2419, 0
        %v2427 = vsel %vm2310, %v2420, 0
        %v2430 = vsel %vm2310, %v2421, 0
        %v2433 = vsel %vm2310, %v2422, 0
        %2435 = vmatprep.subr.mxu0 %v2291
        %2436 = vmatpush1.msra.mxu0 %v2290
        %2437 = vmatprep.subr.mxu0 %v2293
        %2438 = vmatpush1.msra.mxu0 %v2292
        %2439 = vmatprep.subr.mxu0 %v2295
        %2440 = vmatpush1.msra.mxu0 %v2294
        %2441 = vmatprep.subr.mxu0 %v2297
        %2442 = vmatpush1.msra.mxu0 %v2296
        %2443 = vmatprep.subr.mxu0 %v2299
        %2444 = vmatpush1.msra.mxu0 %v2298
        %2445 = vmatprep.subr.mxu0 %v2301
        %2446 = vmatpush1.msra.mxu0 %v2300
        %2447 = vmatprep.subr.mxu0 %v2303
        %2448 = vmatpush1.msra.mxu0 %v2302
        %2449 = vmatprep.subr.mxu0 %v2328
        %2450 = vmatpush1.msra.mxu0 %v2325
        %2451 = vmatprep.subr.mxu0 0.0
        %2452 = vmatpush1.msra.mxu0 0.0
        %2453 = vmatprep.subr.mxu0 0.0
        %2454 = vmatpush1.msra.mxu0 0.0
        %2455 = vmatprep.subr.mxu0 0.0
        %2456 = vmatpush1.msra.mxu0 0.0
        %2457 = vmatprep.subr.mxu0 0.0
        %2458 = vmatpush1.msra.mxu0 0.0
        %2459 = vmatprep.subr.mxu0 0.0
        %2460 = vmatpush1.msra.mxu0 0.0
        %2461 = vmatprep.subr.mxu0 0.0
        %2462 = vmatpush1.msra.mxu0 0.0
        %2463 = vmatprep.subr.mxu0 0.0
        %2464 = vmatpush1.msra.mxu0 0.0
        %2465 = vmatprep.subr.mxu0 0.0
        %2466 = vmatpush1.msra.mxu0 0.0
        %2467 = vmatprep.subr.mxu0 0.0
        %2468 = vmatpush1.msra.mxu0 0.0
        %2469 = vmatprep.subr.mxu0 0.0
        %2470 = vmatpush1.msra.mxu0 0.0
        %2471 = vmatprep.subr.mxu0 0.0
        %2472 = vmatpush1.msra.mxu0 0.0
        %2473 = vmatprep.subr.mxu0 0.0
        %2474 = vmatpush1.msra.mxu0 0.0
        %2475 = vmatprep.subr.mxu0 0.0
        %2476 = vmatpush1.msra.mxu0 0.0
        %2477 = vmatprep.subr.mxu0 0.0
        %2478 = vmatpush1.msra.mxu0 0.0
        %2479 = vmatprep.subr.mxu0 0.0
        %2480 = vmatpush1.msra.mxu0 0.0
        %2481 = vmatprep.subr.mxu0 0.0
        %2482 = vmatpush1.msra.mxu0 0.0
        %2483 = vmatprep.subr.mxu0 0.0
        %2484 = vmatpush1.msra.mxu0 0.0
        %2485 = vmatprep.subr.mxu0 0.0
        %2486 = vmatpush1.msra.mxu0 0.0
        %2487 = vmatprep.subr.mxu0 0.0
        %2488 = vmatpush1.msra.mxu0 0.0
        %2489 = vmatprep.subr.mxu0 0.0
        %2490 = vmatpush1.msra.mxu0 0.0
        %2491 = vmatprep.subr.mxu0 0.0
        %2492 = vmatpush1.msra.mxu0 0.0
        %2493 = vmatprep.subr.mxu0 0.0
        %2494 = vmatpush1.msra.mxu0 0.0
        %2495 = vmatprep.subr.mxu0 0.0
        %2496 = vmatpush1.msra.mxu0 0.0
        %2497 = vmatprep.subr.mxu0 0.0
        %2498 = vmatpush1.msra.mxu0 0.0
        %2499 = vmatprep.mubr.f32.mxu0 0.0
        %2500 = vmatmul.mubr.f32.gmra.mrb[0].mxu0 %v2424
        %v2501 = vpop.f32.mrb[0].mxu0
        %v2502 = vadd.f32 0.0, %v2501
        %v2503 = vpop.f32.mrb[0].mxu0
        %v2504 = vadd.f32 0.0, %v2503
        %2505 = vmatprep.mubr.f32.mxu0 0.0
        %2506 = vmatmul.mubr.f32.gmra.mrb[0].mxu0 %v2427
        %v2507 = vpop.f32.mrb[0].mxu0
        %v2508 = vadd.f32 0.0, %v2507
        %v2509 = vpop.f32.mrb[0].mxu0
        %v2510 = vadd.f32 0.0, %v2509
        %2511 = vmatprep.mubr.f32.mxu0 0.0
        %2512 = vmatmul.mubr.f32.gmra.mrb[0].mxu0 %v2430
        %v2513 = vpop.f32.mrb[0].mxu0
        %v2514 = vadd.f32 0.0, %v2513
        %v2515 = vpop.f32.mrb[0].mxu0
        %v2516 = vadd.f32 0.0, %v2515
        %2517 = vmatprep.mubr.f32.mxu0 0.0
        %2518 = vmatmul.mubr.f32.gmra.mrb[0].mxu0 %v2433
        %v2519 = vpop.f32.mrb[0].mxu0
        %v2520 = vadd.f32 0.0, %v2519
        %v2521 = vpop.f32.mrb[0].mxu0
        %v2522 = vadd.f32 0.0, %v2521
        %2523 = vdwg.mxu0
        %v2524 = vmax.f32 %v2397, %v2502
        %v2525 = vmax.f32 %v2399, %v2504
        %v2526 = vmax.f32 %v2403, %v2508
        %v2527 = vmax.f32 %v2405, %v2510
        %v2528 = vmax.f32 %v2409, %v2514
        %v2529 = vmax.f32 %v2411, %v2516
        %v2530 = vmax.f32 %v2415, %v2520
        %v2531 = vmax.f32 %v2417, %v2522
        %v2532 = vld [vmem:[#allocation11] sm:$0xff]
        %v2533 = vld [vmem:[#allocation11 + $0x8] sm:$0xff]
        %v2534 = vld [vmem:[#allocation11 + $0x10] sm:$0xff]
        %v2535 = vld [vmem:[#allocation11 + $0x18] sm:$0xff]
        %v2536 = vld [vmem:[#allocation11 + $0x20] sm:$0xff]
        %v2537 = vld [vmem:[#allocation11 + $0x28] sm:$0xff]
        %v2538 = vld [vmem:[#allocation11 + $0x30] sm:$0xff]
        %v2539 = vld [vmem:[#allocation11 + $0x38] sm:$0xff]
        %v2540 = vld [vmem:[#allocation11 + $0x40] sm:$0xff]
        %v2541 = vld [vmem:[#allocation11 + $0x48] sm:$0xff]
        %v2542 = vld [vmem:[#allocation11 + $0x50] sm:$0xff]
        %v2543 = vld [vmem:[#allocation11 + $0x58] sm:$0xff]
        %v2544 = vld [vmem:[#allocation11 + $0x60] sm:$0xff]
        %v2545 = vld [vmem:[#allocation11 + $0x68] sm:$0xff]
        %v2546 = vld [vmem:[#allocation11 + $0x70] sm:$0xff]
        %v2547 = vld [vmem:[#allocation11 + $0x78] sm:$0xff]
        %v2548 = vld [vmem:[#allocation11 + $0x80] sm:$0xff]
        %v2549 = vld [vmem:[#allocation11 + $0x88] sm:$0xff]
        %v2550 = vld [vmem:[#allocation11 + $0x90] sm:$0xff]
        %v2551 = vld [vmem:[#allocation11 + $0x98] sm:$0xff]
        %v2552 = vld [vmem:[#allocation11 + $0xa0] sm:$0xff]
        %v2553 = vld [vmem:[#allocation11 + $0xa8] sm:$0xff]
        %v2554 = vld [vmem:[#allocation11 + $0xb0] sm:$0xff]
        %v2555 = vld [vmem:[#allocation11 + $0xb8] sm:$0xff]
        %v2556 = vld [vmem:[#allocation11 + $0xc0] sm:$0xff]
        %v2557 = vld [vmem:[#allocation11 + $0xc8] sm:$0xff]
        %v2558 = vld [vmem:[#allocation11 + $0xd0] sm:$0xff]
        %v2559 = vld [vmem:[#allocation11 + $0xd8] sm:$0xff]
        %v2560 = vld [vmem:[#allocation11 + $0xe0] sm:$0xff]
        %v2561 = vld [vmem:[#allocation11 + $0xe8] sm:$0xff]
        %v2562 = vld [vmem:[#allocation11 + $0xf0] sm:$0xff]
        %v2563 = vld [vmem:[#allocation11 + $0xf8] sm:$0xff]
        %v2564 = vld [vmem:[#allocation11 + $0x100] sm:$0xff]
        %v2565 = vld [vmem:[#allocation11 + $0x108] sm:$0xff]
        %v2566 = vld [vmem:[#allocation11 + $0x110] sm:$0xff]
        %v2567 = vld [vmem:[#allocation11 + $0x118] sm:$0xff]
        %v2568 = vld [vmem:[#allocation11 + $0x120] sm:$0xff]
        %v2569 = vld [vmem:[#allocation11 + $0x128] sm:$0xff]
        %v2570 = vld [vmem:[#allocation11 + $0x130] sm:$0xff]
        %v2571 = vld [vmem:[#allocation11 + $0x138] sm:$0xff]
        %v2572 = vld [vmem:[#allocation11 + $0x140] sm:$0xff]
        %v2573 = vld [vmem:[#allocation11 + $0x148] sm:$0xff]
        %v2574 = vld [vmem:[#allocation11 + $0x150] sm:$0xff]
        %v2575 = vld [vmem:[#allocation11 + $0x158] sm:$0xff]
        %v2576 = vld [vmem:[#allocation11 + $0x160] sm:$0xff]
        %v2577 = vld [vmem:[#allocation11 + $0x168] sm:$0xff]
        %v2578 = vld [vmem:[#allocation11 + $0x170] sm:$0xff]
        %v2579 = vld [vmem:[#allocation11 + $0x178] sm:$0xff]
        %v2580 = vld [vmem:[#allocation11 + $0x180] sm:$0xff]
        %v2581 = vld [vmem:[#allocation11 + $0x188] sm:$0xff]
        %v2582 = vld [vmem:[#allocation11 + $0x190] sm:$0xff]
        %v2583 = vld [vmem:[#allocation11 + $0x198] sm:$0xff]
        %v2584 = vld [vmem:[#allocation11 + $0x1a0] sm:$0xff]
        %v2585 = vld [vmem:[#allocation11 + $0x1a8] sm:$0xff]
        %v2586 = vld [vmem:[#allocation11 + $0x1b0] sm:$0xff]
        %v2587 = vld [vmem:[#allocation11 + $0x1b8] sm:$0xff]
        %v2588 = vld [vmem:[#allocation11 + $0x1c0] sm:$0xff]
        %v2589 = vld [vmem:[#allocation11 + $0x1c8] sm:$0xff]
        %v2590 = vld [vmem:[#allocation11 + $0x1d0] sm:$0xff]
        %v2591 = vld [vmem:[#allocation11 + $0x1d8] sm:$0xff]
        %v2592 = vld [vmem:[#allocation11 + $0x1e0] sm:$0xff]
        %v2593 = vld [vmem:[#allocation11 + $0x1e8] sm:$0xff]
        %v2594 = vld [vmem:[#allocation11 + $0x1f0] sm:$0xff]
        %v2595 = vld [vmem:[#allocation11 + $0x1f8] sm:$0xff]
        %v2596 = vld [vmem:[#allocation11 + $0x200] sm:$0xff]
        %v2597 = vld [vmem:[#allocation11 + $0x208] sm:$0xff]
        %v2598 = vld [vmem:[#allocation11 + $0x210] sm:$0xff]
        %v2599 = vld [vmem:[#allocation11 + $0x218] sm:$0xff]
        %v2600 = vld [vmem:[#allocation11 + $0x220] sm:$0xff]
        %v2601 = vld [vmem:[#allocation11 + $0x228] sm:$0xff]
        %v2602 = vld [vmem:[#allocation11 + $0x230] sm:$0xff]
        %v2603 = vld [vmem:[#allocation11 + $0x238] sm:$0xff]
        %v2604 = vld [vmem:[#allocation11 + $0x240] sm:$0xff]
        %v2605 = vld [vmem:[#allocation11 + $0x248] sm:$0xff]
        %v2606 = vld [vmem:[#allocation11 + $0x250] sm:$0xff]
        %v2607 = vld [vmem:[#allocation11 + $0x258] sm:$0xff]
        %v2608 = vld [vmem:[#allocation11 + $0x260] sm:$0xff]
        %v2609 = vld [vmem:[#allocation11 + $0x268] sm:$0xff]
        %v2610 = vld [vmem:[#allocation11 + $0x270] sm:$0xff]
        %v2611 = vld [vmem:[#allocation11 + $0x278] sm:$0xff]
        %v2612 = vld [vmem:[#allocation11 + $0x280] sm:$0xff]
        %v2613 = vld [vmem:[#allocation11 + $0x288] sm:$0xff]
        %v2614 = vld [vmem:[#allocation11 + $0x290] sm:$0xff]
        %v2615 = vld [vmem:[#allocation11 + $0x298] sm:$0xff]
        %v2616 = vld [vmem:[#allocation11 + $0x2a0] sm:$0xff]
        %v2617 = vld [vmem:[#allocation11 + $0x2a8] sm:$0xff]
        %v2618 = vld [vmem:[#allocation11 + $0x2b0] sm:$0xff]
        %v2619 = vld [vmem:[#allocation11 + $0x2b8] sm:$0xff]
        %v2620 = vld [vmem:[#allocation11 + $0x2c0] sm:$0xf]
        %v2621 = vld [vmem:[#allocation11 + $0x2c8] sm:$0xf]
        %v2622 = vld [vmem:[#allocation11 + $0x2d0] sm:$0xf]
        %v2623 = vld [vmem:[#allocation11 + $0x2d8] sm:$0xf]
        %s2624 = scalar_lea.vmem [#allocation11], 736
        %v2625 = vld [vmem:[%s2624] sm:$0xff]
        %v2626 = vld [vmem:[%s2624 + $0x8] sm:$0xff]
        %v2627 = vld [vmem:[%s2624 + $0x10] sm:$0xff]
        %v2628 = vld [vmem:[%s2624 + $0x18] sm:$0xff]
        %v2629 = vld [vmem:[%s2624 + $0x20] sm:$0xff]
        %v2630 = vld [vmem:[%s2624 + $0x28] sm:$0xff]
        %v2631 = vld [vmem:[%s2624 + $0x30] sm:$0xff]
        %v2632 = vld [vmem:[%s2624 + $0x38] sm:$0xff]
        %v2633 = vld [vmem:[%s2624 + $0x40] sm:$0xff]
        %v2634 = vld [vmem:[%s2624 + $0x48] sm:$0xff]
        %v2635 = vld [vmem:[%s2624 + $0x50] sm:$0xff]
        %v2636 = vld [vmem:[%s2624 + $0x58] sm:$0xff]
        %v2637 = vld [vmem:[%s2624 + $0x60] sm:$0xff]
        %v2638 = vld [vmem:[%s2624 + $0x68] sm:$0xff]
        %v2639 = vld [vmem:[%s2624 + $0x70] sm:$0xff]
        %v2640 = vld [vmem:[%s2624 + $0x78] sm:$0xff]
        %v2641 = vld [vmem:[%s2624 + $0x80] sm:$0xff]
        %v2642 = vld [vmem:[%s2624 + $0x88] sm:$0xff]
        %v2643 = vld [vmem:[%s2624 + $0x90] sm:$0xff]
        %v2644 = vld [vmem:[%s2624 + $0x98] sm:$0xff]
        %v2645 = vld [vmem:[%s2624 + $0xa0] sm:$0xff]
        %v2646 = vld [vmem:[%s2624 + $0xa8] sm:$0xff]
        %v2647 = vld [vmem:[%s2624 + $0xb0] sm:$0xff]
        %v2648 = vld [vmem:[%s2624 + $0xb8] sm:$0xff]
        %v2649 = vld [vmem:[%s2624 + $0xc0] sm:$0xff]
        %v2650 = vld [vmem:[%s2624 + $0xc8] sm:$0xff]
        %v2651 = vld [vmem:[%s2624 + $0xd0] sm:$0xff]
        %v2652 = vld [vmem:[%s2624 + $0xd8] sm:$0xff]
        %v2653 = vld [vmem:[%s2624 + $0xe0] sm:$0xff]
        %v2654 = vld [vmem:[%s2624 + $0xe8] sm:$0xff]
        %v2655 = vld [vmem:[%s2624 + $0xf0] sm:$0xff]
        %v2656 = vld [vmem:[%s2624 + $0xf8] sm:$0xff]
        %v2657 = vld [vmem:[%s2624 + $0x100] sm:$0xff]
        %v2658 = vld [vmem:[%s2624 + $0x108] sm:$0xff]
        %v2659 = vld [vmem:[%s2624 + $0x110] sm:$0xff]
        %v2660 = vld [vmem:[%s2624 + $0x118] sm:$0xff]
        %v2661 = vld [vmem:[%s2624 + $0x120] sm:$0xff]
        %v2662 = vld [vmem:[%s2624 + $0x128] sm:$0xff]
        %v2663 = vld [vmem:[%s2624 + $0x130] sm:$0xff]
        %v2664 = vld [vmem:[%s2624 + $0x138] sm:$0xff]
        %v2665 = vld [vmem:[%s2624 + $0x140] sm:$0xff]
        %v2666 = vld [vmem:[%s2624 + $0x148] sm:$0xff]
        %v2667 = vld [vmem:[%s2624 + $0x150] sm:$0xff]
        %v2668 = vld [vmem:[%s2624 + $0x158] sm:$0xff]
        %v2669 = vld [vmem:[%s2624 + $0x160] sm:$0xff]
        %v2670 = vld [vmem:[%s2624 + $0x168] sm:$0xff]
        %v2671 = vld [vmem:[%s2624 + $0x170] sm:$0xff]
        %v2672 = vld [vmem:[%s2624 + $0x178] sm:$0xff]
        %v2673 = vld [vmem:[%s2624 + $0x180] sm:$0xff]
        %v2674 = vld [vmem:[%s2624 + $0x188] sm:$0xff]
        %v2675 = vld [vmem:[%s2624 + $0x190] sm:$0xff]
        %v2676 = vld [vmem:[%s2624 + $0x198] sm:$0xff]
        %v2677 = vld [vmem:[%s2624 + $0x1a0] sm:$0xff]
        %v2678 = vld [vmem:[%s2624 + $0x1a8] sm:$0xff]
        %v2679 = vld [vmem:[%s2624 + $0x1b0] sm:$0xff]
        %v2680 = vld [vmem:[%s2624 + $0x1b8] sm:$0xff]
        %v2681 = vld [vmem:[%s2624 + $0x1c0] sm:$0xff]
        %v2682 = vld [vmem:[%s2624 + $0x1c8] sm:$0xff]
        %v2683 = vld [vmem:[%s2624 + $0x1d0] sm:$0xff]
        %v2684 = vld [vmem:[%s2624 + $0x1d8] sm:$0xff]
        %v2685 = vld [vmem:[%s2624 + $0x1e0] sm:$0xff]
        %v2686 = vld [vmem:[%s2624 + $0x1e8] sm:$0xff]
        %v2687 = vld [vmem:[%s2624 + $0x1f0] sm:$0xff]
        %v2688 = vld [vmem:[%s2624 + $0x1f8] sm:$0xff]
        %v2689 = vld [vmem:[%s2624 + $0x200] sm:$0xff]
        %v2690 = vld [vmem:[%s2624 + $0x208] sm:$0xff]
        %v2691 = vld [vmem:[%s2624 + $0x210] sm:$0xff]
        %v2692 = vld [vmem:[%s2624 + $0x218] sm:$0xff]
        %v2693 = vld [vmem:[%s2624 + $0x220] sm:$0xff]
        %v2694 = vld [vmem:[%s2624 + $0x228] sm:$0xff]
        %v2695 = vld [vmem:[%s2624 + $0x230] sm:$0xff]
        %v2696 = vld [vmem:[%s2624 + $0x238] sm:$0xff]
        %v2697 = vld [vmem:[%s2624 + $0x240] sm:$0xff]
        %v2698 = vld [vmem:[%s2624 + $0x248] sm:$0xff]
        %v2699 = vld [vmem:[%s2624 + $0x250] sm:$0xff]
        %v2700 = vld [vmem:[%s2624 + $0x258] sm:$0xff]
        %v2701 = vld [vmem:[%s2624 + $0x260] sm:$0xff]
        %v2702 = vld [vmem:[%s2624 + $0x268] sm:$0xff]
        %v2703 = vld [vmem:[%s2624 + $0x270] sm:$0xff]
        %v2704 = vld [vmem:[%s2624 + $0x278] sm:$0xff]
        %v2705 = vld [vmem:[%s2624 + $0x280] sm:$0xff]
        %v2706 = vld [vmem:[%s2624 + $0x288] sm:$0xff]
        %v2707 = vld [vmem:[%s2624 + $0x290] sm:$0xff]
        %v2708 = vld [vmem:[%s2624 + $0x298] sm:$0xff]
        %v2709 = vld [vmem:[%s2624 + $0x2a0] sm:$0xff]
        %v2710 = vld [vmem:[%s2624 + $0x2a8] sm:$0xff]
        %v2711 = vld [vmem:[%s2624 + $0x2b0] sm:$0xff]
        %v2712 = vld [vmem:[%s2624 + $0x2b8] sm:$0xff]
        %v2713 = vld [vmem:[%s2624 + $0x2c0] sm:$0xf]
        %v2714 = vld [vmem:[%s2624 + $0x2c8] sm:$0xf]
        %v2715 = vld [vmem:[%s2624 + $0x2d0] sm:$0xf]
        %v2716 = vld [vmem:[%s2624 + $0x2d8] sm:$0xf]
        %vm2725 = vcmask 1046528
        %v2726 = vrot.slane %v2524, 1
        %v2727 = vrot.slane %v2526, 1
        %v2728 = vsel %vm2725, %v2726, %v2727
        %v2729 = vrot.slane %v2525, 1
        %v2730 = vrot.slane %v2527, 1
        %v2731 = vsel %vm2725, %v2729, %v2730
        %v2732 = vrot.slane %v2528, 1
        %v2733 = vsel %vm2725, %v2727, %v2732
        %v2734 = vrot.slane %v2529, 1
        %v2735 = vsel %vm2725, %v2730, %v2734
        %v2736 = vrot.slane %v2530, 1
        %v2737 = vsel %vm2725, %v2732, %v2736
        %v2738 = vrot.slane %v2531, 1
        %v2739 = vsel %vm2725, %v2734, %v2738
        %vm2744 = vcmask 424960
        %v2745 = vsel %vm2744, %v2731, 0
        %v2747 = vsel %vm2744, %v2735, 0
        %v2749 = vsel %vm2744, %v2739, 0
        %v2751 = vsel %vm2744, %v2738, 0
        %v2754 = vsel %vm2323, %v2713, 0
        %v2757 = vsel %vm2323, %v2714, 0
        %v2760 = vsel %vm2323, %v2715, 0
        %v2763 = vsel %vm2323, %v2716, 0
        %2765 = vmatprep.subr.mxu0 %v2626
        %2766 = vmatpush1.msra.mxu0 %v2625
        %2767 = vmatprep.subr.mxu0 %v2630
        %2768 = vmatpush1.msra.mxu0 %v2629
        %2769 = vmatprep.subr.mxu0 %v2634
        %2770 = vmatpush1.msra.mxu0 %v2633
        %2771 = vmatprep.subr.mxu0 %v2638
        %2772 = vmatpush1.msra.mxu0 %v2637
        %2773 = vmatprep.subr.mxu0 %v2642
        %2774 = vmatpush1.msra.mxu0 %v2641
        %2775 = vmatprep.subr.mxu0 %v2646
        %2776 = vmatpush1.msra.mxu0 %v2645
        %2777 = vmatprep.subr.mxu0 %v2650
        %2778 = vmatpush1.msra.mxu0 %v2649
        %2779 = vmatprep.subr.mxu0 %v2654
        %2780 = vmatpush1.msra.mxu0 %v2653
        %2781 = vmatprep.subr.mxu0 %v2658
        %2782 = vmatpush1.msra.mxu0 %v2657
        %2783 = vmatprep.subr.mxu0 %v2662
        %2784 = vmatpush1.msra.mxu0 %v2661
        %2785 = vmatprep.subr.mxu0 %v2666
        %2786 = vmatpush1.msra.mxu0 %v2665
        %2787 = vmatprep.subr.mxu0 %v2670
        %2788 = vmatpush1.msra.mxu0 %v2669
        %2789 = vmatprep.subr.mxu0 %v2674
        %2790 = vmatpush1.msra.mxu0 %v2673
        %2791 = vmatprep.subr.mxu0 %v2678
        %2792 = vmatpush1.msra.mxu0 %v2677
        %2793 = vmatprep.subr.mxu0 %v2682
        %2794 = vmatpush1.msra.mxu0 %v2681
        %2795 = vmatprep.subr.mxu0 %v2686
        %2796 = vmatpush1.msra.mxu0 %v2685
        %2797 = vmatprep.subr.mxu0 %v2690
        %2798 = vmatpush1.msra.mxu0 %v2689
        %2799 = vmatprep.subr.mxu0 %v2694
        %2800 = vmatpush1.msra.mxu0 %v2693
        %2801 = vmatprep.subr.mxu0 %v2698
        %2802 = vmatpush1.msra.mxu0 %v2697
        %2803 = vmatprep.subr.mxu0 %v2702
        %2804 = vmatpush1.msra.mxu0 %v2701
        %2805 = vmatprep.subr.mxu0 %v2706
        %2806 = vmatpush1.msra.mxu0 %v2705
        %2807 = vmatprep.subr.mxu0 %v2710
        %2808 = vmatpush1.msra.mxu0 %v2709
        %2809 = vmatprep.subr.mxu0 %v2757
        %2810 = vmatpush1.msra.mxu0 %v2754
        %2811 = vmatprep.subr.mxu0 0.0
        %2812 = vmatpush1.msra.mxu0 0.0
        %2813 = vmatprep.subr.mxu0 0.0
        %2814 = vmatpush1.msra.mxu0 0.0
        %2815 = vmatprep.subr.mxu0 0.0
        %2816 = vmatpush1.msra.mxu0 0.0
        %2817 = vmatprep.subr.mxu0 0.0
        %2818 = vmatpush1.msra.mxu0 0.0
        %2819 = vmatprep.subr.mxu0 0.0
        %2820 = vmatpush1.msra.mxu0 0.0
        %2821 = vmatprep.subr.mxu0 0.0
        %2822 = vmatpush1.msra.mxu0 0.0
        %2823 = vmatprep.subr.mxu0 0.0
        %2824 = vmatpush1.msra.mxu0 0.0
        %2825 = vmatprep.subr.mxu0 0.0
        %2826 = vmatpush1.msra.mxu0 0.0
        %2827 = vmatprep.subr.mxu0 0.0
        %2828 = vmatpush1.msra.mxu0 0.0
        %2829 = vmatprep.mubr.f32.mxu0 %v2745
        %2830 = vmatmul.mubr.f32.gmra.mrb[0].mxu0 %v2728
        %v2831 = vpop.f32.mrb[0].mxu0
        %v2832 = vadd.f32 0.0, %v2831
        %v2833 = vpop.f32.mrb[0].mxu0
        %v2834 = vadd.f32 0.0, %v2833
        %2835 = vmatprep.mubr.f32.mxu0 %v2747
        %2836 = vmatmul.mubr.f32.gmra.mrb[0].mxu0 %v2733
        %v2837 = vpop.f32.mrb[0].mxu0
        %v2838 = vadd.f32 0.0, %v2837
        %v2839 = vpop.f32.mrb[0].mxu0
        %v2840 = vadd.f32 0.0, %v2839
        %2841 = vmatprep.mubr.f32.mxu0 %v2749
        %2842 = vmatmul.mubr.f32.gmra.mrb[0].mxu0 %v2737
        %v2843 = vpop.f32.mrb[0].mxu0
        %v2844 = vadd.f32 0.0, %v2843
        %v2845 = vpop.f32.mrb[0].mxu0
        %v2846 = vadd.f32 0.0, %v2845
        %2847 = vmatprep.mubr.f32.mxu0 %v2751
        %2848 = vmatmul.mubr.f32.gmra.mrb[0].mxu0 %v2736
        %v2849 = vpop.f32.mrb[0].mxu0
        %v2850 = vadd.f32 0.0, %v2849
        %v2851 = vpop.f32.mrb[0].mxu0
        %v2852 = vadd.f32 0.0, %v2851
        %2853 = vdwg.mxu0
        %2854 = vmatprep.subr.mxu0 %v2628
        %2855 = vmatpush1.msra.mxu0 %v2627
        %2856 = vmatprep.subr.mxu0 %v2632
        %2857 = vmatpush1.msra.mxu0 %v2631
        %2858 = vmatprep.subr.mxu0 %v2636
        %2859 = vmatpush1.msra.mxu0 %v2635
        %2860 = vmatprep.subr.mxu0 %v2640
        %2861 = vmatpush1.msra.mxu0 %v2639
        %2862 = vmatprep.subr.mxu0 %v2644
        %2863 = vmatpush1.msra.mxu0 %v2643
        %2864 = vmatprep.subr.mxu0 %v2648
        %2865 = vmatpush1.msra.mxu0 %v2647
        %2866 = vmatprep.subr.mxu0 %v2652
        %2867 = vmatpush1.msra.mxu0 %v2651
        %2868 = vmatprep.subr.mxu0 %v2656
        %2869 = vmatpush1.msra.mxu0 %v2655
        %2870 = vmatprep.subr.mxu0 %v2660
        %2871 = vmatpush1.msra.mxu0 %v2659
        %2872 = vmatprep.subr.mxu0 %v2664
        %2873 = vmatpush1.msra.mxu0 %v2663
        %2874 = vmatprep.subr.mxu0 %v2668
        %2875 = vmatpush1.msra.mxu0 %v2667
        %2876 = vmatprep.subr.mxu0 %v2672
        %2877 = vmatpush1.msra.mxu0 %v2671
        %2878 = vmatprep.subr.mxu0 %v2676
        %2879 = vmatpush1.msra.mxu0 %v2675
        %2880 = vmatprep.subr.mxu0 %v2680
        %2881 = vmatpush1.msra.mxu0 %v2679
        %2882 = vmatprep.subr.mxu0 %v2684
        %2883 = vmatpush1.msra.mxu0 %v2683
        %2884 = vmatprep.subr.mxu0 %v2688
        %2885 = vmatpush1.msra.mxu0 %v2687
        %2886 = vmatprep.subr.mxu0 %v2692
        %2887 = vmatpush1.msra.mxu0 %v2691
        %2888 = vmatprep.subr.mxu0 %v2696
        %2889 = vmatpush1.msra.mxu0 %v2695
        %2890 = vmatprep.subr.mxu0 %v2700
        %2891 = vmatpush1.msra.mxu0 %v2699
        %2892 = vmatprep.subr.mxu0 %v2704
        %2893 = vmatpush1.msra.mxu0 %v2703
        %2894 = vmatprep.subr.mxu0 %v2708
        %2895 = vmatpush1.msra.mxu0 %v2707
        %2896 = vmatprep.subr.mxu0 %v2712
        %2897 = vmatpush1.msra.mxu0 %v2711
        %2898 = vmatprep.subr.mxu0 %v2763
        %2899 = vmatpush1.msra.mxu0 %v2760
        %2900 = vmatprep.subr.mxu0 0.0
        %2901 = vmatpush1.msra.mxu0 0.0
        %2902 = vmatprep.subr.mxu0 0.0
        %2903 = vmatpush1.msra.mxu0 0.0
        %2904 = vmatprep.subr.mxu0 0.0
        %2905 = vmatpush1.msra.mxu0 0.0
        %2906 = vmatprep.subr.mxu0 0.0
        %2907 = vmatpush1.msra.mxu0 0.0
        %2908 = vmatprep.subr.mxu0 0.0
        %2909 = vmatpush1.msra.mxu0 0.0
        %2910 = vmatprep.subr.mxu0 0.0
        %2911 = vmatpush1.msra.mxu0 0.0
        %2912 = vmatprep.subr.mxu0 0.0
        %2913 = vmatpush1.msra.mxu0 0.0
        %2914 = vmatprep.subr.mxu0 0.0
        %2915 = vmatpush1.msra.mxu0 0.0
        %2916 = vmatprep.subr.mxu0 0.0
        %2917 = vmatpush1.msra.mxu0 0.0
        %2918 = vmatprep.mubr.f32.mxu0 %v2745
        %2919 = vmatmul.mubr.f32.gmra.mrb[0].mxu0 %v2728
        %v2920 = vpop.f32.mrb[0].mxu0
        %v2921 = vadd.f32 0.0, %v2920
        %v2922 = vpop.f32.mrb[0].mxu0
        %v2923 = vadd.f32 0.0, %v2922
        %2924 = vmatprep.mubr.f32.mxu0 %v2747
        %2925 = vmatmul.mubr.f32.gmra.mrb[0].mxu0 %v2733
        %v2926 = vpop.f32.mrb[0].mxu0
        %v2927 = vadd.f32 0.0, %v2926
        %v2928 = vpop.f32.mrb[0].mxu0
        %v2929 = vadd.f32 0.0, %v2928
        %2930 = vmatprep.mubr.f32.mxu0 %v2749
        %2931 = vmatmul.mubr.f32.gmra.mrb[0].mxu0 %v2737
        %v2932 = vpop.f32.mrb[0].mxu0
        %v2933 = vadd.f32 0.0, %v2932
        %v2934 = vpop.f32.mrb[0].mxu0
        %v2935 = vadd.f32 0.0, %v2934
        %2936 = vmatprep.mubr.f32.mxu0 %v2751
        %2937 = vmatmul.mubr.f32.gmra.mrb[0].mxu0 %v2736
        %v2938 = vpop.f32.mrb[0].mxu0
        %v2939 = vadd.f32 0.0, %v2938
        %v2940 = vpop.f32.mrb[0].mxu0
        %v2941 = vadd.f32 0.0, %v2940
        %2942 = vdwg.mxu0
        %v2943 = vsel %vm2744, %v2525, 0
        %v2945 = vsel %vm2744, %v2527, 0
        %v2947 = vsel %vm2744, %v2529, 0
        %v2949 = vsel %vm2744, %v2531, 0
        %v2952 = vsel %vm2323, %v2620, 0
        %v2955 = vsel %vm2323, %v2621, 0
        %v2958 = vsel %vm2323, %v2622, 0
        %v2961 = vsel %vm2323, %v2623, 0
        %2963 = vmatprep.subr.mxu0 %v2533
        %2964 = vmatpush1.msra.mxu0 %v2532
        %2965 = vmatprep.subr.mxu0 %v2537
        %2966 = vmatpush1.msra.mxu0 %v2536
        %2967 = vmatprep.subr.mxu0 %v2541
        %2968 = vmatpush1.msra.mxu0 %v2540
        %2969 = vmatprep.subr.mxu0 %v2545
        %2970 = vmatpush1.msra.mxu0 %v2544
        %2971 = vmatprep.subr.mxu0 %v2549
        %2972 = vmatpush1.msra.mxu0 %v2548
        %2973 = vmatprep.subr.mxu0 %v2553
        %2974 = vmatpush1.msra.mxu0 %v2552
        %2975 = vmatprep.subr.mxu0 %v2557
        %2976 = vmatpush1.msra.mxu0 %v2556
        %2977 = vmatprep.subr.mxu0 %v2561
        %2978 = vmatpush1.msra.mxu0 %v2560
        %2979 = vmatprep.subr.mxu0 %v2565
        %2980 = vmatpush1.msra.mxu0 %v2564
        %2981 = vmatprep.subr.mxu0 %v2569
        %2982 = vmatpush1.msra.mxu0 %v2568
        %2983 = vmatprep.subr.mxu0 %v2573
        %2984 = vmatpush1.msra.mxu0 %v2572
        %2985 = vmatprep.subr.mxu0 %v2577
        %2986 = vmatpush1.msra.mxu0 %v2576
        %2987 = vmatprep.subr.mxu0 %v2581
        %2988 = vmatpush1.msra.mxu0 %v2580
        %2989 = vmatprep.subr.mxu0 %v2585
        %2990 = vmatpush1.msra.mxu0 %v2584
        %2991 = vmatprep.subr.mxu0 %v2589
        %2992 = vmatpush1.msra.mxu0 %v2588
        %2993 = vmatprep.subr.mxu0 %v2593
        %2994 = vmatpush1.msra.mxu0 %v2592
        %2995 = vmatprep.subr.mxu0 %v2597
        %2996 = vmatpush1.msra.mxu0 %v2596
        %2997 = vmatprep.subr.mxu0 %v2601
        %2998 = vmatpush1.msra.mxu0 %v2600
        %2999 = vmatprep.subr.mxu0 %v2605
        %3000 = vmatpush1.msra.mxu0 %v2604
        %3001 = vmatprep.subr.mxu0 %v2609
        %3002 = vmatpush1.msra.mxu0 %v2608
        %3003 = vmatprep.subr.mxu0 %v2613
        %3004 = vmatpush1.msra.mxu0 %v2612
        %3005 = vmatprep.subr.mxu0 %v2617
        %3006 = vmatpush1.msra.mxu0 %v2616
        %3007 = vmatprep.subr.mxu0 %v2955
        %3008 = vmatpush1.msra.mxu0 %v2952
        %3009 = vmatprep.subr.mxu0 0.0
        %3010 = vmatpush1.msra.mxu0 0.0
        %3011 = vmatprep.subr.mxu0 0.0
        %3012 = vmatpush1.msra.mxu0 0.0
        %3013 = vmatprep.subr.mxu0 0.0
        %3014 = vmatpush1.msra.mxu0 0.0
        %3015 = vmatprep.subr.mxu0 0.0
        %3016 = vmatpush1.msra.mxu0 0.0
        %3017 = vmatprep.subr.mxu0 0.0
        %3018 = vmatpush1.msra.mxu0 0.0
        %3019 = vmatprep.subr.mxu0 0.0
        %3020 = vmatpush1.msra.mxu0 0.0
        %3021 = vmatprep.subr.mxu0 0.0
        %3022 = vmatpush1.msra.mxu0 0.0
        %3023 = vmatprep.subr.mxu0 0.0
        %3024 = vmatpush1.msra.mxu0 0.0
        %3025 = vmatprep.subr.mxu0 0.0
        %3026 = vmatpush1.msra.mxu0 0.0
        %3027 = vmatprep.mubr.f32.mxu0 %v2943
        %3028 = vmatmul.mubr.f32.gmra.mrb[0].mxu0 %v2524
        %v3029 = vpop.f32.mrb[0].mxu0
        %v3030 = vadd.f32 %v2832, %v3029
        %v3031 = vpop.f32.mrb[0].mxu0
        %v3032 = vadd.f32 %v2834, %v3031
        %3033 = vmatprep.mubr.f32.mxu0 %v2945
        %3034 = vmatmul.mubr.f32.gmra.mrb[0].mxu0 %v2526
        %v3035 = vpop.f32.mrb[0].mxu0
        %v3036 = vadd.f32 %v2838, %v3035
        %v3037 = vpop.f32.mrb[0].mxu0
        %v3038 = vadd.f32 %v2840, %v3037
        %3039 = vmatprep.mubr.f32.mxu0 %v2947
        %3040 = vmatmul.mubr.f32.gmra.mrb[0].mxu0 %v2528
        %v3041 = vpop.f32.mrb[0].mxu0
        %v3042 = vadd.f32 %v2844, %v3041
        %v3043 = vpop.f32.mrb[0].mxu0
        %v3044 = vadd.f32 %v2846, %v3043
        %3045 = vmatprep.mubr.f32.mxu0 %v2949
        %3046 = vmatmul.mubr.f32.gmra.mrb[0].mxu0 %v2530
        %v3047 = vpop.f32.mrb[0].mxu0
        %v3048 = vadd.f32 %v2850, %v3047
        %v3049 = vpop.f32.mrb[0].mxu0
        %v3050 = vadd.f32 %v2852, %v3049
        %3051 = vdwg.mxu0
        %3052 = vmatprep.subr.mxu0 %v2535
        %3053 = vmatpush1.msra.mxu0 %v2534
        %3054 = vmatprep.subr.mxu0 %v2539
        %3055 = vmatpush1.msra.mxu0 %v2538
        %3056 = vmatprep.subr.mxu0 %v2543
        %3057 = vmatpush1.msra.mxu0 %v2542
        %3058 = vmatprep.subr.mxu0 %v2547
        %3059 = vmatpush1.msra.mxu0 %v2546
        %3060 = vmatprep.subr.mxu0 %v2551
        %3061 = vmatpush1.msra.mxu0 %v2550
        %3062 = vmatprep.subr.mxu0 %v2555
        %3063 = vmatpush1.msra.mxu0 %v2554
        %3064 = vmatprep.subr.mxu0 %v2559
        %3065 = vmatpush1.msra.mxu0 %v2558
        %3066 = vmatprep.subr.mxu0 %v2563
        %3067 = vmatpush1.msra.mxu0 %v2562
        %3068 = vmatprep.subr.mxu0 %v2567
        %3069 = vmatpush1.msra.mxu0 %v2566
        %3070 = vmatprep.subr.mxu0 %v2571
        %3071 = vmatpush1.msra.mxu0 %v2570
        %3072 = vmatprep.subr.mxu0 %v2575
        %3073 = vmatpush1.msra.mxu0 %v2574
        %3074 = vmatprep.subr.mxu0 %v2579
        %3075 = vmatpush1.msra.mxu0 %v2578
        %3076 = vmatprep.subr.mxu0 %v2583
        %3077 = vmatpush1.msra.mxu0 %v2582
        %3078 = vmatprep.subr.mxu0 %v2587
        %3079 = vmatpush1.msra.mxu0 %v2586
        %3080 = vmatprep.subr.mxu0 %v2591
        %3081 = vmatpush1.msra.mxu0 %v2590
        %3082 = vmatprep.subr.mxu0 %v2595
        %3083 = vmatpush1.msra.mxu0 %v2594
        %3084 = vmatprep.subr.mxu0 %v2599
        %3085 = vmatpush1.msra.mxu0 %v2598
        %3086 = vmatprep.subr.mxu0 %v2603
        %3087 = vmatpush1.msra.mxu0 %v2602
        %3088 = vmatprep.subr.mxu0 %v2607
        %3089 = vmatpush1.msra.mxu0 %v2606
        %3090 = vmatprep.subr.mxu0 %v2611
        %3091 = vmatpush1.msra.mxu0 %v2610
        %3092 = vmatprep.subr.mxu0 %v2615
        %3093 = vmatpush1.msra.mxu0 %v2614
        %3094 = vmatprep.subr.mxu0 %v2619
        %3095 = vmatpush1.msra.mxu0 %v2618
        %3096 = vmatprep.subr.mxu0 %v2961
        %3097 = vmatpush1.msra.mxu0 %v2958
        %3098 = vmatprep.subr.mxu0 0.0
        %3099 = vmatpush1.msra.mxu0 0.0
        %3100 = vmatprep.subr.mxu0 0.0
        %3101 = vmatpush1.msra.mxu0 0.0
        %3102 = vmatprep.subr.mxu0 0.0
        %3103 = vmatpush1.msra.mxu0 0.0
        %3104 = vmatprep.subr.mxu0 0.0
        %3105 = vmatpush1.msra.mxu0 0.0
        %3106 = vmatprep.subr.mxu0 0.0
        %3107 = vmatpush1.msra.mxu0 0.0
        %3108 = vmatprep.subr.mxu0 0.0
        %3109 = vmatpush1.msra.mxu0 0.0
        %3110 = vmatprep.subr.mxu0 0.0
        %3111 = vmatpush1.msra.mxu0 0.0
        %3112 = vmatprep.subr.mxu0 0.0
        %3113 = vmatpush1.msra.mxu0 0.0
        %3114 = vmatprep.subr.mxu0 0.0
        %3115 = vmatpush1.msra.mxu0 0.0
        %3116 = vmatprep.mubr.f32.mxu0 %v2943
        %3117 = vmatmul.mubr.f32.gmra.mrb[0].mxu0 %v2524
        %v3118 = vpop.f32.mrb[0].mxu0
        %v3119 = vadd.f32 %v2921, %v3118
        %v3120 = vpop.f32.mrb[0].mxu0
        %v3121 = vadd.f32 %v2923, %v3120
        %3122 = vmatprep.mubr.f32.mxu0 %v2945
        %3123 = vmatmul.mubr.f32.gmra.mrb[0].mxu0 %v2526
        %v3124 = vpop.f32.mrb[0].mxu0
        %v3125 = vadd.f32 %v2927, %v3124
        %v3126 = vpop.f32.mrb[0].mxu0
        %v3127 = vadd.f32 %v2929, %v3126
        %3128 = vmatprep.mubr.f32.mxu0 %v2947
        %3129 = vmatmul.mubr.f32.gmra.mrb[0].mxu0 %v2528
        %v3130 = vpop.f32.mrb[0].mxu0
        %v3131 = vadd.f32 %v2933, %v3130
        %v3132 = vpop.f32.mrb[0].mxu0
        %v3133 = vadd.f32 %v2935, %v3132
        %3134 = vmatprep.mubr.f32.mxu0 %v2949
        %3135 = vmatmul.mubr.f32.gmra.mrb[0].mxu0 %v2530
        %v3136 = vpop.f32.mrb[0].mxu0
        %v3137 = vadd.f32 %v2939, %v3136
        %v3138 = vpop.f32.mrb[0].mxu0
        %v3139 = vadd.f32 %v2941, %v3138
        %3140 = vdwg.mxu0
        %s3141 = scalar_lea.vmem [#allocation11], 1472
        %v3142 = vld [vmem:[%s3141] sm:$0xff]
        %v3143 = vld [vmem:[%s3141 + $0x8] sm:$0xff]
        %v3144 = vld [vmem:[%s3141 + $0x10] sm:$0xff]
        %v3145 = vld [vmem:[%s3141 + $0x18] sm:$0xff]
        %v3146 = vld [vmem:[%s3141 + $0x20] sm:$0xff]
        %v3147 = vld [vmem:[%s3141 + $0x28] sm:$0xff]
        %v3148 = vld [vmem:[%s3141 + $0x30] sm:$0xff]
        %v3149 = vld [vmem:[%s3141 + $0x38] sm:$0xff]
        %v3150 = vld [vmem:[%s3141 + $0x40] sm:$0xff]
        %v3151 = vld [vmem:[%s3141 + $0x48] sm:$0xff]
        %v3152 = vld [vmem:[%s3141 + $0x50] sm:$0xff]
        %v3153 = vld [vmem:[%s3141 + $0x58] sm:$0xff]
        %v3154 = vld [vmem:[%s3141 + $0x60] sm:$0xff]
        %v3155 = vld [vmem:[%s3141 + $0x68] sm:$0xff]
        %v3156 = vld [vmem:[%s3141 + $0x70] sm:$0xff]
        %v3157 = vld [vmem:[%s3141 + $0x78] sm:$0xff]
        %v3158 = vld [vmem:[%s3141 + $0x80] sm:$0xff]
        %v3159 = vld [vmem:[%s3141 + $0x88] sm:$0xff]
        %v3160 = vld [vmem:[%s3141 + $0x90] sm:$0xff]
        %v3161 = vld [vmem:[%s3141 + $0x98] sm:$0xff]
        %v3162 = vld [vmem:[%s3141 + $0xa0] sm:$0xff]
        %v3163 = vld [vmem:[%s3141 + $0xa8] sm:$0xff]
        %v3164 = vld [vmem:[%s3141 + $0xb0] sm:$0xff]
        %v3165 = vld [vmem:[%s3141 + $0xb8] sm:$0xff]
        %v3166 = vld [vmem:[%s3141 + $0xc0] sm:$0xff]
        %v3167 = vld [vmem:[%s3141 + $0xc8] sm:$0xff]
        %v3168 = vld [vmem:[%s3141 + $0xd0] sm:$0xff]
        %v3169 = vld [vmem:[%s3141 + $0xd8] sm:$0xff]
        %v3170 = vld [vmem:[%s3141 + $0xe0] sm:$0xff]
        %v3171 = vld [vmem:[%s3141 + $0xe8] sm:$0xff]
        %v3172 = vld [vmem:[%s3141 + $0xf0] sm:$0xff]
        %v3173 = vld [vmem:[%s3141 + $0xf8] sm:$0xff]
        %v3174 = vld [vmem:[%s3141 + $0x100] sm:$0xff]
        %v3175 = vld [vmem:[%s3141 + $0x108] sm:$0xff]
        %v3176 = vld [vmem:[%s3141 + $0x110] sm:$0xff]
        %v3177 = vld [vmem:[%s3141 + $0x118] sm:$0xff]
        %v3178 = vld [vmem:[%s3141 + $0x120] sm:$0xff]
        %v3179 = vld [vmem:[%s3141 + $0x128] sm:$0xff]
        %v3180 = vld [vmem:[%s3141 + $0x130] sm:$0xff]
        %v3181 = vld [vmem:[%s3141 + $0x138] sm:$0xff]
        %v3182 = vld [vmem:[%s3141 + $0x140] sm:$0xff]
        %v3183 = vld [vmem:[%s3141 + $0x148] sm:$0xff]
        %v3184 = vld [vmem:[%s3141 + $0x150] sm:$0xff]
        %v3185 = vld [vmem:[%s3141 + $0x158] sm:$0xff]
        %v3186 = vld [vmem:[%s3141 + $0x160] sm:$0xff]
        %v3187 = vld [vmem:[%s3141 + $0x168] sm:$0xff]
        %v3188 = vld [vmem:[%s3141 + $0x170] sm:$0xff]
        %v3189 = vld [vmem:[%s3141 + $0x178] sm:$0xff]
        %v3190 = vld [vmem:[%s3141 + $0x180] sm:$0xff]
        %v3191 = vld [vmem:[%s3141 + $0x188] sm:$0xff]
        %v3192 = vld [vmem:[%s3141 + $0x190] sm:$0xff]
        %v3193 = vld [vmem:[%s3141 + $0x198] sm:$0xff]
        %v3194 = vld [vmem:[%s3141 + $0x1a0] sm:$0xff]
        %v3195 = vld [vmem:[%s3141 + $0x1a8] sm:$0xff]
        %v3196 = vld [vmem:[%s3141 + $0x1b0] sm:$0xff]
        %v3197 = vld [vmem:[%s3141 + $0x1b8] sm:$0xff]
        %v3198 = vld [vmem:[%s3141 + $0x1c0] sm:$0xff]
        %v3199 = vld [vmem:[%s3141 + $0x1c8] sm:$0xff]
        %v3200 = vld [vmem:[%s3141 + $0x1d0] sm:$0xff]
        %v3201 = vld [vmem:[%s3141 + $0x1d8] sm:$0xff]
        %v3202 = vld [vmem:[%s3141 + $0x1e0] sm:$0xff]
        %v3203 = vld [vmem:[%s3141 + $0x1e8] sm:$0xff]
        %v3204 = vld [vmem:[%s3141 + $0x1f0] sm:$0xff]
        %v3205 = vld [vmem:[%s3141 + $0x1f8] sm:$0xff]
        %v3206 = vld [vmem:[%s3141 + $0x200] sm:$0xff]
        %v3207 = vld [vmem:[%s3141 + $0x208] sm:$0xff]
        %v3208 = vld [vmem:[%s3141 + $0x210] sm:$0xff]
        %v3209 = vld [vmem:[%s3141 + $0x218] sm:$0xff]
        %v3210 = vld [vmem:[%s3141 + $0x220] sm:$0xff]
        %v3211 = vld [vmem:[%s3141 + $0x228] sm:$0xff]
        %v3212 = vld [vmem:[%s3141 + $0x230] sm:$0xff]
        %v3213 = vld [vmem:[%s3141 + $0x238] sm:$0xff]
        %v3214 = vld [vmem:[%s3141 + $0x240] sm:$0xff]
        %v3215 = vld [vmem:[%s3141 + $0x248] sm:$0xff]
        %v3216 = vld [vmem:[%s3141 + $0x250] sm:$0xff]
        %v3217 = vld [vmem:[%s3141 + $0x258] sm:$0xff]
        %v3218 = vld [vmem:[%s3141 + $0x260] sm:$0xff]
        %v3219 = vld [vmem:[%s3141 + $0x268] sm:$0xff]
        %v3220 = vld [vmem:[%s3141 + $0x270] sm:$0xff]
        %v3221 = vld [vmem:[%s3141 + $0x278] sm:$0xff]
        %v3222 = vld [vmem:[%s3141 + $0x280] sm:$0xff]
        %v3223 = vld [vmem:[%s3141 + $0x288] sm:$0xff]
        %v3224 = vld [vmem:[%s3141 + $0x290] sm:$0xff]
        %v3225 = vld [vmem:[%s3141 + $0x298] sm:$0xff]
        %v3226 = vld [vmem:[%s3141 + $0x2a0] sm:$0xff]
        %v3227 = vld [vmem:[%s3141 + $0x2a8] sm:$0xff]
        %v3228 = vld [vmem:[%s3141 + $0x2b0] sm:$0xff]
        %v3229 = vld [vmem:[%s3141 + $0x2b8] sm:$0xff]
        %v3230 = vld [vmem:[%s3141 + $0x2c0] sm:$0xf]
        %v3231 = vld [vmem:[%s3141 + $0x2c8] sm:$0xf]
        %v3232 = vld [vmem:[%s3141 + $0x2d0] sm:$0xf]
        %v3233 = vld [vmem:[%s3141 + $0x2d8] sm:$0xf]
        %vm3234 = vcmask 1045504
        %v3235 = vrot.slane %v2524, 2
        %v3236 = vrot.slane %v2526, 2
        %v3237 = vsel %vm3234, %v3235, %v3236
        %v3238 = vrot.slane %v2525, 2
        %v3239 = vrot.slane %v2527, 2
        %v3240 = vsel %vm3234, %v3238, %v3239
        %v3241 = vrot.slane %v2528, 2
        %v3242 = vsel %vm3234, %v3236, %v3241
        %v3243 = vrot.slane %v2529, 2
        %v3244 = vsel %vm3234, %v3239, %v3243
        %v3245 = vrot.slane %v2530, 2
        %v3246 = vsel %vm3234, %v3241, %v3245
        %v3247 = vrot.slane %v2531, 2
        %v3248 = vsel %vm3234, %v3243, %v3247
        %v3253 = vsel %vm2744, %v3240, 0
        %v3255 = vsel %vm2744, %v3244, 0
        %v3257 = vsel %vm2744, %v3248, 0
        %v3259 = vsel %vm2744, %v3247, 0
        %v3262 = vsel %vm2323, %v3230, 0
        %v3265 = vsel %vm2323, %v3231, 0
        %v3268 = vsel %vm2323, %v3232, 0
        %v3271 = vsel %vm2323, %v3233, 0
        %3273 = vmatprep.subr.mxu0 %v3143
        %3274 = vmatpush1.msra.mxu0 %v3142
        %3275 = vmatprep.subr.mxu0 %v3147
        %3276 = vmatpush1.msra.mxu0 %v3146
        %3277 = vmatprep.subr.mxu0 %v3151
        %3278 = vmatpush1.msra.mxu0 %v3150
        %3279 = vmatprep.subr.mxu0 %v3155
        %3280 = vmatpush1.msra.mxu0 %v3154
        %3281 = vmatprep.subr.mxu0 %v3159
        %3282 = vmatpush1.msra.mxu0 %v3158
        %3283 = vmatprep.subr.mxu0 %v3163
        %3284 = vmatpush1.msra.mxu0 %v3162
        %3285 = vmatprep.subr.mxu0 %v3167
        %3286 = vmatpush1.msra.mxu0 %v3166
        %3287 = vmatprep.subr.mxu0 %v3171
        %3288 = vmatpush1.msra.mxu0 %v3170
        %3289 = vmatprep.subr.mxu0 %v3175
        %3290 = vmatpush1.msra.mxu0 %v3174
        %3291 = vmatprep.subr.mxu0 %v3179
        %3292 = vmatpush1.msra.mxu0 %v3178
        %3293 = vmatprep.subr.mxu0 %v3183
        %3294 = vmatpush1.msra.mxu0 %v3182
        %3295 = vmatprep.subr.mxu0 %v3187
        %3296 = vmatpush1.msra.mxu0 %v3186
        %3297 = vmatprep.subr.mxu0 %v3191
        %3298 = vmatpush1.msra.mxu0 %v3190
        %3299 = vmatprep.subr.mxu0 %v3195
        %3300 = vmatpush1.msra.mxu0 %v3194
        %3301 = vmatprep.subr.mxu0 %v3199
        %3302 = vmatpush1.msra.mxu0 %v3198
        %3303 = vmatprep.subr.mxu0 %v3203
        %3304 = vmatpush1.msra.mxu0 %v3202
        %3305 = vmatprep.subr.mxu0 %v3207
        %3306 = vmatpush1.msra.mxu0 %v3206
        %3307 = vmatprep.subr.mxu0 %v3211
        %3308 = vmatpush1.msra.mxu0 %v3210
        %3309 = vmatprep.subr.mxu0 %v3215
        %3310 = vmatpush1.msra.mxu0 %v3214
        %3311 = vmatprep.subr.mxu0 %v3219
        %3312 = vmatpush1.msra.mxu0 %v3218
        %3313 = vmatprep.subr.mxu0 %v3223
        %3314 = vmatpush1.msra.mxu0 %v3222
        %3315 = vmatprep.subr.mxu0 %v3227
        %3316 = vmatpush1.msra.mxu0 %v3226
        %3317 = vmatprep.subr.mxu0 %v3265
        %3318 = vmatpush1.msra.mxu0 %v3262
        %3319 = vmatprep.subr.mxu0 0.0
        %3320 = vmatpush1.msra.mxu0 0.0
        %3321 = vmatprep.subr.mxu0 0.0
        %3322 = vmatpush1.msra.mxu0 0.0
        %3323 = vmatprep.subr.mxu0 0.0
        %3324 = vmatpush1.msra.mxu0 0.0
        %3325 = vmatprep.subr.mxu0 0.0
        %3326 = vmatpush1.msra.mxu0 0.0
        %3327 = vmatprep.subr.mxu0 0.0
        %3328 = vmatpush1.msra.mxu0 0.0
        %3329 = vmatprep.subr.mxu0 0.0
        %3330 = vmatpush1.msra.mxu0 0.0
        %3331 = vmatprep.subr.mxu0 0.0
        %3332 = vmatpush1.msra.mxu0 0.0
        %3333 = vmatprep.subr.mxu0 0.0
        %3334 = vmatpush1.msra.mxu0 0.0
        %3335 = vmatprep.subr.mxu0 0.0
        %3336 = vmatpush1.msra.mxu0 0.0
        %3337 = vmatprep.mubr.f32.mxu0 %v3253
        %3338 = vmatmul.mubr.f32.gmra.mrb[0].mxu0 %v3237
        %v3339 = vpop.f32.mrb[0].mxu0
        %v3340 = vadd.f32 0.0, %v3339
        %v3341 = vpop.f32.mrb[0].mxu0
        %v3342 = vadd.f32 0.0, %v3341
        %3343 = vmatprep.mubr.f32.mxu0 %v3255
        %3344 = vmatmul.mubr.f32.gmra.mrb[0].mxu0 %v3242
        %v3345 = vpop.f32.mrb[0].mxu0
        %v3346 = vadd.f32 0.0, %v3345
        %v3347 = vpop.f32.mrb[0].mxu0
        %v3348 = vadd.f32 0.0, %v3347
        %3349 = vmatprep.mubr.f32.mxu0 %v3257
        %3350 = vmatmul.mubr.f32.gmra.mrb[0].mxu0 %v3246
        %v3351 = vpop.f32.mrb[0].mxu0
        %v3352 = vadd.f32 0.0, %v3351
        %v3353 = vpop.f32.mrb[0].mxu0
        %v3354 = vadd.f32 0.0, %v3353
        %3355 = vmatprep.mubr.f32.mxu0 %v3259
        %3356 = vmatmul.mubr.f32.gmra.mrb[0].mxu0 %v3245
        %v3357 = vpop.f32.mrb[0].mxu0
        %v3358 = vadd.f32 0.0, %v3357
        %v3359 = vpop.f32.mrb[0].mxu0
        %v3360 = vadd.f32 0.0, %v3359
        %3361 = vdwg.mxu0
        %3362 = vmatprep.subr.mxu0 %v3145
        %3363 = vmatpush1.msra.mxu0 %v3144
        %3364 = vmatprep.subr.mxu0 %v3149
        %3365 = vmatpush1.msra.mxu0 %v3148
        %3366 = vmatprep.subr.mxu0 %v3153
        %3367 = vmatpush1.msra.mxu0 %v3152
        %3368 = vmatprep.subr.mxu0 %v3157
        %3369 = vmatpush1.msra.mxu0 %v3156
        %3370 = vmatprep.subr.mxu0 %v3161
        %3371 = vmatpush1.msra.mxu0 %v3160
        %3372 = vmatprep.subr.mxu0 %v3165
        %3373 = vmatpush1.msra.mxu0 %v3164
        %3374 = vmatprep.subr.mxu0 %v3169
        %3375 = vmatpush1.msra.mxu0 %v3168
        %3376 = vmatprep.subr.mxu0 %v3173
        %3377 = vmatpush1.msra.mxu0 %v3172
        %3378 = vmatprep.subr.mxu0 %v3177
        %3379 = vmatpush1.msra.mxu0 %v3176
        %3380 = vmatprep.subr.mxu0 %v3181
        %3381 = vmatpush1.msra.mxu0 %v3180
        %3382 = vmatprep.subr.mxu0 %v3185
        %3383 = vmatpush1.msra.mxu0 %v3184
        %3384 = vmatprep.subr.mxu0 %v3189
        %3385 = vmatpush1.msra.mxu0 %v3188
        %3386 = vmatprep.subr.mxu0 %v3193
        %3387 = vmatpush1.msra.mxu0 %v3192
        %3388 = vmatprep.subr.mxu0 %v3197
        %3389 = vmatpush1.msra.mxu0 %v3196
        %3390 = vmatprep.subr.mxu0 %v3201
        %3391 = vmatpush1.msra.mxu0 %v3200
        %3392 = vmatprep.subr.mxu0 %v3205
        %3393 = vmatpush1.msra.mxu0 %v3204
        %3394 = vmatprep.subr.mxu0 %v3209
        %3395 = vmatpush1.msra.mxu0 %v3208
        %3396 = vmatprep.subr.mxu0 %v3213
        %3397 = vmatpush1.msra.mxu0 %v3212
        %3398 = vmatprep.subr.mxu0 %v3217
        %3399 = vmatpush1.msra.mxu0 %v3216
        %3400 = vmatprep.subr.mxu0 %v3221
        %3401 = vmatpush1.msra.mxu0 %v3220
        %3402 = vmatprep.subr.mxu0 %v3225
        %3403 = vmatpush1.msra.mxu0 %v3224
        %3404 = vmatprep.subr.mxu0 %v3229
        %3405 = vmatpush1.msra.mxu0 %v3228
        %3406 = vmatprep.subr.mxu0 %v3271
        %3407 = vmatpush1.msra.mxu0 %v3268
        %3408 = vmatprep.subr.mxu0 0.0
        %3409 = vmatpush1.msra.mxu0 0.0
        %3410 = vmatprep.subr.mxu0 0.0
        %3411 = vmatpush1.msra.mxu0 0.0
        %3412 = vmatprep.subr.mxu0 0.0
        %3413 = vmatpush1.msra.mxu0 0.0
        %3414 = vmatprep.subr.mxu0 0.0
        %3415 = vmatpush1.msra.mxu0 0.0
        %3416 = vmatprep.subr.mxu0 0.0
        %3417 = vmatpush1.msra.mxu0 0.0
        %3418 = vmatprep.subr.mxu0 0.0
        %3419 = vmatpush1.msra.mxu0 0.0
        %3420 = vmatprep.subr.mxu0 0.0
        %3421 = vmatpush1.msra.mxu0 0.0
        %3422 = vmatprep.subr.mxu0 0.0
        %3423 = vmatpush1.msra.mxu0 0.0
        %3424 = vmatprep.subr.mxu0 0.0
        %3425 = vmatpush1.msra.mxu0 0.0
        %3426 = vmatprep.mubr.f32.mxu0 %v3253
        %3427 = vmatmul.mubr.f32.gmra.mrb[0].mxu0 %v3237
        %v3428 = vpop.f32.mrb[0].mxu0
        %v3429 = vadd.f32 0.0, %v3428
        %v3430 = vpop.f32.mrb[0].mxu0
        %v3431 = vadd.f32 0.0, %v3430
        %3432 = vmatprep.mubr.f32.mxu0 %v3255
        %3433 = vmatmul.mubr.f32.gmra.mrb[0].mxu0 %v3242
        %v3434 = vpop.f32.mrb[0].mxu0
        %v3435 = vadd.f32 0.0, %v3434
        %v3436 = vpop.f32.mrb[0].mxu0
        %v3437 = vadd.f32 0.0, %v3436
        %3438 = vmatprep.mubr.f32.mxu0 %v3257
        %3439 = vmatmul.mubr.f32.gmra.mrb[0].mxu0 %v3246
        %v3440 = vpop.f32.mrb[0].mxu0
        %v3441 = vadd.f32 0.0, %v3440
        %v3442 = vpop.f32.mrb[0].mxu0
        %v3443 = vadd.f32 0.0, %v3442
        %3444 = vmatprep.mubr.f32.mxu0 %v3259
        %3445 = vmatmul.mubr.f32.gmra.mrb[0].mxu0 %v3245
        %v3446 = vpop.f32.mrb[0].mxu0
        %v3447 = vadd.f32 0.0, %v3446
        %v3448 = vpop.f32.mrb[0].mxu0
        %v3449 = vadd.f32 0.0, %v3448
        %3450 = vdwg.mxu0
        %v3451 = vadd.f32 %v3030, %v3340
        %v3452 = vadd.f32 %v3032, %v3342
        %v3453 = vadd.f32 %v3119, %v3429
        %v3454 = vadd.f32 %v3121, %v3431
        %v3455 = vadd.f32 %v3036, %v3346
        %v3456 = vadd.f32 %v3038, %v3348
        %v3457 = vadd.f32 %v3125, %v3435
        %v3458 = vadd.f32 %v3127, %v3437
        %v3459 = vadd.f32 %v3042, %v3352
        %v3460 = vadd.f32 %v3044, %v3354
        %v3461 = vadd.f32 %v3131, %v3441
        %v3462 = vadd.f32 %v3133, %v3443
        %v3463 = vadd.f32 %v3048, %v3358
        %v3464 = vadd.f32 %v3050, %v3360
        %v3465 = vadd.f32 %v3137, %v3447
        %v3466 = vadd.f32 %v3139, %v3449
        %s3467 = scalar_lea.vmem [#allocation11], 2208
        %v3468 = vld [vmem:[%s3467] sm:$0xff]
        %v3469 = vld [vmem:[%s3467 + $0x8] sm:$0xff]
        %v3470 = vld [vmem:[%s3467 + $0x10] sm:$0xff]
        %v3471 = vld [vmem:[%s3467 + $0x18] sm:$0xff]
        %v3472 = vld [vmem:[%s3467 + $0x20] sm:$0xff]
        %v3473 = vld [vmem:[%s3467 + $0x28] sm:$0xff]
        %v3474 = vld [vmem:[%s3467 + $0x30] sm:$0xff]
        %v3475 = vld [vmem:[%s3467 + $0x38] sm:$0xff]
        %v3476 = vld [vmem:[%s3467 + $0x40] sm:$0xff]
        %v3477 = vld [vmem:[%s3467 + $0x48] sm:$0xff]
        %v3478 = vld [vmem:[%s3467 + $0x50] sm:$0xff]
        %v3479 = vld [vmem:[%s3467 + $0x58] sm:$0xff]
        %v3480 = vld [vmem:[%s3467 + $0x60] sm:$0xff]
        %v3481 = vld [vmem:[%s3467 + $0x68] sm:$0xff]
        %v3482 = vld [vmem:[%s3467 + $0x70] sm:$0xff]
        %v3483 = vld [vmem:[%s3467 + $0x78] sm:$0xff]
        %v3484 = vld [vmem:[%s3467 + $0x80] sm:$0xff]
        %v3485 = vld [vmem:[%s3467 + $0x88] sm:$0xff]
        %v3486 = vld [vmem:[%s3467 + $0x90] sm:$0xff]
        %v3487 = vld [vmem:[%s3467 + $0x98] sm:$0xff]
        %v3488 = vld [vmem:[%s3467 + $0xa0] sm:$0xff]
        %v3489 = vld [vmem:[%s3467 + $0xa8] sm:$0xff]
        %v3490 = vld [vmem:[%s3467 + $0xb0] sm:$0xff]
        %v3491 = vld [vmem:[%s3467 + $0xb8] sm:$0xff]
        %v3492 = vld [vmem:[%s3467 + $0xc0] sm:$0xff]
        %v3493 = vld [vmem:[%s3467 + $0xc8] sm:$0xff]
        %v3494 = vld [vmem:[%s3467 + $0xd0] sm:$0xff]
        %v3495 = vld [vmem:[%s3467 + $0xd8] sm:$0xff]
        %v3496 = vld [vmem:[%s3467 + $0xe0] sm:$0xff]
        %v3497 = vld [vmem:[%s3467 + $0xe8] sm:$0xff]
        %v3498 = vld [vmem:[%s3467 + $0xf0] sm:$0xff]
        %v3499 = vld [vmem:[%s3467 + $0xf8] sm:$0xff]
        %v3500 = vld [vmem:[%s3467 + $0x100] sm:$0xff]
        %v3501 = vld [vmem:[%s3467 + $0x108] sm:$0xff]
        %v3502 = vld [vmem:[%s3467 + $0x110] sm:$0xff]
        %v3503 = vld [vmem:[%s3467 + $0x118] sm:$0xff]
        %v3504 = vld [vmem:[%s3467 + $0x120] sm:$0xff]
        %v3505 = vld [vmem:[%s3467 + $0x128] sm:$0xff]
        %v3506 = vld [vmem:[%s3467 + $0x130] sm:$0xff]
        %v3507 = vld [vmem:[%s3467 + $0x138] sm:$0xff]
        %v3508 = vld [vmem:[%s3467 + $0x140] sm:$0xff]
        %v3509 = vld [vmem:[%s3467 + $0x148] sm:$0xff]
        %v3510 = vld [vmem:[%s3467 + $0x150] sm:$0xff]
        %v3511 = vld [vmem:[%s3467 + $0x158] sm:$0xff]
        %v3512 = vld [vmem:[%s3467 + $0x160] sm:$0xff]
        %v3513 = vld [vmem:[%s3467 + $0x168] sm:$0xff]
        %v3514 = vld [vmem:[%s3467 + $0x170] sm:$0xff]
        %v3515 = vld [vmem:[%s3467 + $0x178] sm:$0xff]
        %v3516 = vld [vmem:[%s3467 + $0x180] sm:$0xff]
        %v3517 = vld [vmem:[%s3467 + $0x188] sm:$0xff]
        %v3518 = vld [vmem:[%s3467 + $0x190] sm:$0xff]
        %v3519 = vld [vmem:[%s3467 + $0x198] sm:$0xff]
        %v3520 = vld [vmem:[%s3467 + $0x1a0] sm:$0xff]
        %v3521 = vld [vmem:[%s3467 + $0x1a8] sm:$0xff]
        %v3522 = vld [vmem:[%s3467 + $0x1b0] sm:$0xff]
        %v3523 = vld [vmem:[%s3467 + $0x1b8] sm:$0xff]
        %v3524 = vld [vmem:[%s3467 + $0x1c0] sm:$0xff]
        %v3525 = vld [vmem:[%s3467 + $0x1c8] sm:$0xff]
        %v3526 = vld [vmem:[%s3467 + $0x1d0] sm:$0xff]
        %v3527 = vld [vmem:[%s3467 + $0x1d8] sm:$0xff]
        %v3528 = vld [vmem:[%s3467 + $0x1e0] sm:$0xff]
        %v3529 = vld [vmem:[%s3467 + $0x1e8] sm:$0xff]
        %v3530 = vld [vmem:[%s3467 + $0x1f0] sm:$0xff]
        %v3531 = vld [vmem:[%s3467 + $0x1f8] sm:$0xff]
        %v3532 = vld [vmem:[%s3467 + $0x200] sm:$0xff]
        %v3533 = vld [vmem:[%s3467 + $0x208] sm:$0xff]
        %v3534 = vld [vmem:[%s3467 + $0x210] sm:$0xff]
        %v3535 = vld [vmem:[%s3467 + $0x218] sm:$0xff]
        %v3536 = vld [vmem:[%s3467 + $0x220] sm:$0xff]
        %v3537 = vld [vmem:[%s3467 + $0x228] sm:$0xff]
        %v3538 = vld [vmem:[%s3467 + $0x230] sm:$0xff]
        %v3539 = vld [vmem:[%s3467 + $0x238] sm:$0xff]
        %v3540 = vld [vmem:[%s3467 + $0x240] sm:$0xff]
        %v3541 = vld [vmem:[%s3467 + $0x248] sm:$0xff]
        %v3542 = vld [vmem:[%s3467 + $0x250] sm:$0xff]
        %v3543 = vld [vmem:[%s3467 + $0x258] sm:$0xff]
        %v3544 = vld [vmem:[%s3467 + $0x260] sm:$0xff]
        %v3545 = vld [vmem:[%s3467 + $0x268] sm:$0xff]
        %v3546 = vld [vmem:[%s3467 + $0x270] sm:$0xff]
        %v3547 = vld [vmem:[%s3467 + $0x278] sm:$0xff]
        %v3548 = vld [vmem:[%s3467 + $0x280] sm:$0xff]
        %v3549 = vld [vmem:[%s3467 + $0x288] sm:$0xff]
        %v3550 = vld [vmem:[%s3467 + $0x290] sm:$0xff]
        %v3551 = vld [vmem:[%s3467 + $0x298] sm:$0xff]
        %v3552 = vld [vmem:[%s3467 + $0x2a0] sm:$0xff]
        %v3553 = vld [vmem:[%s3467 + $0x2a8] sm:$0xff]
        %v3554 = vld [vmem:[%s3467 + $0x2b0] sm:$0xff]
        %v3555 = vld [vmem:[%s3467 + $0x2b8] sm:$0xff]
        %v3556 = vld [vmem:[%s3467 + $0x2c0] sm:$0xf]
        %v3557 = vld [vmem:[%s3467 + $0x2c8] sm:$0xf]
        %v3558 = vld [vmem:[%s3467 + $0x2d0] sm:$0xf]
        %v3559 = vld [vmem:[%s3467 + $0x2d8] sm:$0xf]
        %vm3560 = vcmask 1044480
        %v3561 = vrot.slane %v2524, 3
        %v3562 = vrot.slane %v2526, 3
        %v3563 = vsel %vm3560, %v3561, %v3562
        %v3564 = vrot.slane %v2525, 3
        %v3565 = vrot.slane %v2527, 3
        %v3566 = vsel %vm3560, %v3564, %v3565
        %v3567 = vrot.slane %v2528, 3
        %v3568 = vsel %vm3560, %v3562, %v3567
        %v3569 = vrot.slane %v2529, 3
        %v3570 = vsel %vm3560, %v3565, %v3569
        %v3571 = vrot.slane %v2530, 3
        %v3572 = vsel %vm3560, %v3567, %v3571
        %v3573 = vrot.slane %v2531, 3
        %v3574 = vsel %vm3560, %v3569, %v3573
        %v3579 = vsel %vm2744, %v3566, 0
        %v3581 = vsel %vm2744, %v3570, 0
        %v3583 = vsel %vm2744, %v3574, 0
        %v3585 = vsel %vm2744, %v3573, 0
        %v3588 = vsel %vm2323, %v3556, 0
        %v3591 = vsel %vm2323, %v3557, 0
        %v3594 = vsel %vm2323, %v3558, 0
        %v3597 = vsel %vm2323, %v3559, 0
        %3599 = vmatprep.subr.mxu0 %v3469
        %3600 = vmatpush1.msra.mxu0 %v3468
        %3601 = vmatprep.subr.mxu0 %v3473
        %3602 = vmatpush1.msra.mxu0 %v3472
        %3603 = vmatprep.subr.mxu0 %v3477
        %3604 = vmatpush1.msra.mxu0 %v3476
        %3605 = vmatprep.subr.mxu0 %v3481
        %3606 = vmatpush1.msra.mxu0 %v3480
        %3607 = vmatprep.subr.mxu0 %v3485
        %3608 = vmatpush1.msra.mxu0 %v3484
        %3609 = vmatprep.subr.mxu0 %v3489
        %3610 = vmatpush1.msra.mxu0 %v3488
        %3611 = vmatprep.subr.mxu0 %v3493
        %3612 = vmatpush1.msra.mxu0 %v3492
        %3613 = vmatprep.subr.mxu0 %v3497
        %3614 = vmatpush1.msra.mxu0 %v3496
        %3615 = vmatprep.subr.mxu0 %v3501
        %3616 = vmatpush1.msra.mxu0 %v3500
        %3617 = vmatprep.subr.mxu0 %v3505
        %3618 = vmatpush1.msra.mxu0 %v3504
        %3619 = vmatprep.subr.mxu0 %v3509
        %3620 = vmatpush1.msra.mxu0 %v3508
        %3621 = vmatprep.subr.mxu0 %v3513
        %3622 = vmatpush1.msra.mxu0 %v3512
        %3623 = vmatprep.subr.mxu0 %v3517
        %3624 = vmatpush1.msra.mxu0 %v3516
        %3625 = vmatprep.subr.mxu0 %v3521
        %3626 = vmatpush1.msra.mxu0 %v3520
        %3627 = vmatprep.subr.mxu0 %v3525
        %3628 = vmatpush1.msra.mxu0 %v3524
        %3629 = vmatprep.subr.mxu0 %v3529
        %3630 = vmatpush1.msra.mxu0 %v3528
        %3631 = vmatprep.subr.mxu0 %v3533
        %3632 = vmatpush1.msra.mxu0 %v3532
        %3633 = vmatprep.subr.mxu0 %v3537
        %3634 = vmatpush1.msra.mxu0 %v3536
        %3635 = vmatprep.subr.mxu0 %v3541
        %3636 = vmatpush1.msra.mxu0 %v3540
        %3637 = vmatprep.subr.mxu0 %v3545
        %3638 = vmatpush1.msra.mxu0 %v3544
        %3639 = vmatprep.subr.mxu0 %v3549
        %3640 = vmatpush1.msra.mxu0 %v3548
        %3641 = vmatprep.subr.mxu0 %v3553
        %3642 = vmatpush1.msra.mxu0 %v3552
        %3643 = vmatprep.subr.mxu0 %v3591
        %3644 = vmatpush1.msra.mxu0 %v3588
        %3645 = vmatprep.subr.mxu0 0.0
        %3646 = vmatpush1.msra.mxu0 0.0
        %3647 = vmatprep.subr.mxu0 0.0
        %3648 = vmatpush1.msra.mxu0 0.0
        %3649 = vmatprep.subr.mxu0 0.0
        %3650 = vmatpush1.msra.mxu0 0.0
        %3651 = vmatprep.subr.mxu0 0.0
        %3652 = vmatpush1.msra.mxu0 0.0
        %3653 = vmatprep.subr.mxu0 0.0
        %3654 = vmatpush1.msra.mxu0 0.0
        %3655 = vmatprep.subr.mxu0 0.0
        %3656 = vmatpush1.msra.mxu0 0.0
        %3657 = vmatprep.subr.mxu0 0.0
        %3658 = vmatpush1.msra.mxu0 0.0
        %3659 = vmatprep.subr.mxu0 0.0
        %3660 = vmatpush1.msra.mxu0 0.0
        %3661 = vmatprep.subr.mxu0 0.0
        %3662 = vmatpush1.msra.mxu0 0.0
        %3663 = vmatprep.mubr.f32.mxu0 %v3579
        %3664 = vmatmul.mubr.f32.gmra.mrb[0].mxu0 %v3563
        %v3665 = vpop.f32.mrb[0].mxu0
        %v3666 = vadd.f32 0.0, %v3665
        %v3667 = vpop.f32.mrb[0].mxu0
        %v3668 = vadd.f32 0.0, %v3667
        %3669 = vmatprep.mubr.f32.mxu0 %v3581
        %3670 = vmatmul.mubr.f32.gmra.mrb[0].mxu0 %v3568
        %v3671 = vpop.f32.mrb[0].mxu0
        %v3672 = vadd.f32 0.0, %v3671
        %v3673 = vpop.f32.mrb[0].mxu0
        %v3674 = vadd.f32 0.0, %v3673
        %3675 = vmatprep.mubr.f32.mxu0 %v3583
        %3676 = vmatmul.mubr.f32.gmra.mrb[0].mxu0 %v3572
        %v3677 = vpop.f32.mrb[0].mxu0
        %v3678 = vadd.f32 0.0, %v3677
        %v3679 = vpop.f32.mrb[0].mxu0
        %v3680 = vadd.f32 0.0, %v3679
        %3681 = vmatprep.mubr.f32.mxu0 %v3585
        %3682 = vmatmul.mubr.f32.gmra.mrb[0].mxu0 %v3571
        %v3683 = vpop.f32.mrb[0].mxu0
        %v3684 = vadd.f32 0.0, %v3683
        %v3685 = vpop.f32.mrb[0].mxu0
        %v3686 = vadd.f32 0.0, %v3685
        %3687 = vdwg.mxu0
        %3688 = vmatprep.subr.mxu0 %v3471
        %3689 = vmatpush1.msra.mxu0 %v3470
        %3690 = vmatprep.subr.mxu0 %v3475
        %3691 = vmatpush1.msra.mxu0 %v3474
        %3692 = vmatprep.subr.mxu0 %v3479
        %3693 = vmatpush1.msra.mxu0 %v3478
        %3694 = vmatprep.subr.mxu0 %v3483
        %3695 = vmatpush1.msra.mxu0 %v3482
        %3696 = vmatprep.subr.mxu0 %v3487
        %3697 = vmatpush1.msra.mxu0 %v3486
        %3698 = vmatprep.subr.mxu0 %v3491
        %3699 = vmatpush1.msra.mxu0 %v3490
        %3700 = vmatprep.subr.mxu0 %v3495
        %3701 = vmatpush1.msra.mxu0 %v3494
        %3702 = vmatprep.subr.mxu0 %v3499
        %3703 = vmatpush1.msra.mxu0 %v3498
        %3704 = vmatprep.subr.mxu0 %v3503
        %3705 = vmatpush1.msra.mxu0 %v3502
        %3706 = vmatprep.subr.mxu0 %v3507
        %3707 = vmatpush1.msra.mxu0 %v3506
        %3708 = vmatprep.subr.mxu0 %v3511
        %3709 = vmatpush1.msra.mxu0 %v3510
        %3710 = vmatprep.subr.mxu0 %v3515
        %3711 = vmatpush1.msra.mxu0 %v3514
        %3712 = vmatprep.subr.mxu0 %v3519
        %3713 = vmatpush1.msra.mxu0 %v3518
        %3714 = vmatprep.subr.mxu0 %v3523
        %3715 = vmatpush1.msra.mxu0 %v3522
        %3716 = vmatprep.subr.mxu0 %v3527
        %3717 = vmatpush1.msra.mxu0 %v3526
        %3718 = vmatprep.subr.mxu0 %v3531
        %3719 = vmatpush1.msra.mxu0 %v3530
        %3720 = vmatprep.subr.mxu0 %v3535
        %3721 = vmatpush1.msra.mxu0 %v3534
        %3722 = vmatprep.subr.mxu0 %v3539
        %3723 = vmatpush1.msra.mxu0 %v3538
        %3724 = vmatprep.subr.mxu0 %v3543
        %3725 = vmatpush1.msra.mxu0 %v3542
        %3726 = vmatprep.subr.mxu0 %v3547
        %3727 = vmatpush1.msra.mxu0 %v3546
        %3728 = vmatprep.subr.mxu0 %v3551
        %3729 = vmatpush1.msra.mxu0 %v3550
        %3730 = vmatprep.subr.mxu0 %v3555
        %3731 = vmatpush1.msra.mxu0 %v3554
        %3732 = vmatprep.subr.mxu0 %v3597
        %3733 = vmatpush1.msra.mxu0 %v3594
        %3734 = vmatprep.subr.mxu0 0.0
        %3735 = vmatpush1.msra.mxu0 0.0
        %3736 = vmatprep.subr.mxu0 0.0
        %3737 = vmatpush1.msra.mxu0 0.0
        %3738 = vmatprep.subr.mxu0 0.0
        %3739 = vmatpush1.msra.mxu0 0.0
        %3740 = vmatprep.subr.mxu0 0.0
        %3741 = vmatpush1.msra.mxu0 0.0
        %3742 = vmatprep.subr.mxu0 0.0
        %3743 = vmatpush1.msra.mxu0 0.0
        %3744 = vmatprep.subr.mxu0 0.0
        %3745 = vmatpush1.msra.mxu0 0.0
        %3746 = vmatprep.subr.mxu0 0.0
        %3747 = vmatpush1.msra.mxu0 0.0
        %3748 = vmatprep.subr.mxu0 0.0
        %3749 = vmatpush1.msra.mxu0 0.0
        %3750 = vmatprep.subr.mxu0 0.0
        %3751 = vmatpush1.msra.mxu0 0.0
        %3752 = vmatprep.mubr.f32.mxu0 %v3579
        %3753 = vmatmul.mubr.f32.gmra.mrb[0].mxu0 %v3563
        %v3754 = vpop.f32.mrb[0].mxu0
        %v3755 = vadd.f32 0.0, %v3754
        %v3756 = vpop.f32.mrb[0].mxu0
        %v3757 = vadd.f32 0.0, %v3756
        %3758 = vmatprep.mubr.f32.mxu0 %v3581
        %3759 = vmatmul.mubr.f32.gmra.mrb[0].mxu0 %v3568
        %v3760 = vpop.f32.mrb[0].mxu0
        %v3761 = vadd.f32 0.0, %v3760
        %v3762 = vpop.f32.mrb[0].mxu0
        %v3763 = vadd.f32 0.0, %v3762
        %3764 = vmatprep.mubr.f32.mxu0 %v3583
        %3765 = vmatmul.mubr.f32.gmra.mrb[0].mxu0 %v3572
        %v3766 = vpop.f32.mrb[0].mxu0
        %v3767 = vadd.f32 0.0, %v3766
        %v3768 = vpop.f32.mrb[0].mxu0
        %v3769 = vadd.f32 0.0, %v3768
        %3770 = vmatprep.mubr.f32.mxu0 %v3585
        %3771 = vmatmul.mubr.f32.gmra.mrb[0].mxu0 %v3571
        %v3772 = vpop.f32.mrb[0].mxu0
        %v3773 = vadd.f32 0.0, %v3772
        %v3774 = vpop.f32.mrb[0].mxu0
        %v3775 = vadd.f32 0.0, %v3774
        %3776 = vdwg.mxu0
        %v3777 = vadd.f32 %v3451, %v3666
        %v3778 = vadd.f32 %v3452, %v3668
        %v3779 = vadd.f32 %v3453, %v3755
        %v3780 = vadd.f32 %v3454, %v3757
        %v3781 = vadd.f32 %v3455, %v3672
        %v3782 = vadd.f32 %v3456, %v3674
        %v3783 = vadd.f32 %v3457, %v3761
        %v3784 = vadd.f32 %v3458, %v3763
        %v3785 = vadd.f32 %v3459, %v3678
        %v3786 = vadd.f32 %v3460, %v3680
        %v3787 = vadd.f32 %v3461, %v3767
        %v3788 = vadd.f32 %v3462, %v3769
        %v3789 = vadd.f32 %v3463, %v3684
        %v3790 = vadd.f32 %v3464, %v3686
        %v3791 = vadd.f32 %v3465, %v3773
        %v3792 = vadd.f32 %v3466, %v3775
        %s3793 = scalar_lea.vmem [#allocation11], 2944
        %v3794 = vld [vmem:[%s3793] sm:$0xff]
        %v3795 = vld [vmem:[%s3793 + $0x8] sm:$0xff]
        %v3796 = vld [vmem:[%s3793 + $0x10] sm:$0xff]
        %v3797 = vld [vmem:[%s3793 + $0x18] sm:$0xff]
        %v3798 = vld [vmem:[%s3793 + $0x20] sm:$0xff]
        %v3799 = vld [vmem:[%s3793 + $0x28] sm:$0xff]
        %v3800 = vld [vmem:[%s3793 + $0x30] sm:$0xff]
        %v3801 = vld [vmem:[%s3793 + $0x38] sm:$0xff]
        %v3802 = vld [vmem:[%s3793 + $0x40] sm:$0xff]
        %v3803 = vld [vmem:[%s3793 + $0x48] sm:$0xff]
        %v3804 = vld [vmem:[%s3793 + $0x50] sm:$0xff]
        %v3805 = vld [vmem:[%s3793 + $0x58] sm:$0xff]
        %v3806 = vld [vmem:[%s3793 + $0x60] sm:$0xff]
        %v3807 = vld [vmem:[%s3793 + $0x68] sm:$0xff]
        %v3808 = vld [vmem:[%s3793 + $0x70] sm:$0xff]
        %v3809 = vld [vmem:[%s3793 + $0x78] sm:$0xff]
        %v3810 = vld [vmem:[%s3793 + $0x80] sm:$0xff]
        %v3811 = vld [vmem:[%s3793 + $0x88] sm:$0xff]
        %v3812 = vld [vmem:[%s3793 + $0x90] sm:$0xff]
        %v3813 = vld [vmem:[%s3793 + $0x98] sm:$0xff]
        %v3814 = vld [vmem:[%s3793 + $0xa0] sm:$0xff]
        %v3815 = vld [vmem:[%s3793 + $0xa8] sm:$0xff]
        %v3816 = vld [vmem:[%s3793 + $0xb0] sm:$0xff]
        %v3817 = vld [vmem:[%s3793 + $0xb8] sm:$0xff]
        %v3818 = vld [vmem:[%s3793 + $0xc0] sm:$0xff]
        %v3819 = vld [vmem:[%s3793 + $0xc8] sm:$0xff]
        %v3820 = vld [vmem:[%s3793 + $0xd0] sm:$0xff]
        %v3821 = vld [vmem:[%s3793 + $0xd8] sm:$0xff]
        %v3822 = vld [vmem:[%s3793 + $0xe0] sm:$0xff]
        %v3823 = vld [vmem:[%s3793 + $0xe8] sm:$0xff]
        %v3824 = vld [vmem:[%s3793 + $0xf0] sm:$0xff]
        %v3825 = vld [vmem:[%s3793 + $0xf8] sm:$0xff]
        %v3826 = vld [vmem:[%s3793 + $0x100] sm:$0xff]
        %v3827 = vld [vmem:[%s3793 + $0x108] sm:$0xff]
        %v3828 = vld [vmem:[%s3793 + $0x110] sm:$0xff]
        %v3829 = vld [vmem:[%s3793 + $0x118] sm:$0xff]
        %v3830 = vld [vmem:[%s3793 + $0x120] sm:$0xff]
        %v3831 = vld [vmem:[%s3793 + $0x128] sm:$0xff]
        %v3832 = vld [vmem:[%s3793 + $0x130] sm:$0xff]
        %v3833 = vld [vmem:[%s3793 + $0x138] sm:$0xff]
        %v3834 = vld [vmem:[%s3793 + $0x140] sm:$0xff]
        %v3835 = vld [vmem:[%s3793 + $0x148] sm:$0xff]
        %v3836 = vld [vmem:[%s3793 + $0x150] sm:$0xff]
        %v3837 = vld [vmem:[%s3793 + $0x158] sm:$0xff]
        %v3838 = vld [vmem:[%s3793 + $0x160] sm:$0xff]
        %v3839 = vld [vmem:[%s3793 + $0x168] sm:$0xff]
        %v3840 = vld [vmem:[%s3793 + $0x170] sm:$0xff]
        %v3841 = vld [vmem:[%s3793 + $0x178] sm:$0xff]
        %v3842 = vld [vmem:[%s3793 + $0x180] sm:$0xff]
        %v3843 = vld [vmem:[%s3793 + $0x188] sm:$0xff]
        %v3844 = vld [vmem:[%s3793 + $0x190] sm:$0xff]
        %v3845 = vld [vmem:[%s3793 + $0x198] sm:$0xff]
        %v3846 = vld [vmem:[%s3793 + $0x1a0] sm:$0xff]
        %v3847 = vld [vmem:[%s3793 + $0x1a8] sm:$0xff]
        %v3848 = vld [vmem:[%s3793 + $0x1b0] sm:$0xff]
        %v3849 = vld [vmem:[%s3793 + $0x1b8] sm:$0xff]
        %v3850 = vld [vmem:[%s3793 + $0x1c0] sm:$0xff]
        %v3851 = vld [vmem:[%s3793 + $0x1c8] sm:$0xff]
        %v3852 = vld [vmem:[%s3793 + $0x1d0] sm:$0xff]
        %v3853 = vld [vmem:[%s3793 + $0x1d8] sm:$0xff]
        %v3854 = vld [vmem:[%s3793 + $0x1e0] sm:$0xff]
        %v3855 = vld [vmem:[%s3793 + $0x1e8] sm:$0xff]
        %v3856 = vld [vmem:[%s3793 + $0x1f0] sm:$0xff]
        %v3857 = vld [vmem:[%s3793 + $0x1f8] sm:$0xff]
        %v3858 = vld [vmem:[%s3793 + $0x200] sm:$0xff]
        %v3859 = vld [vmem:[%s3793 + $0x208] sm:$0xff]
        %v3860 = vld [vmem:[%s3793 + $0x210] sm:$0xff]
        %v3861 = vld [vmem:[%s3793 + $0x218] sm:$0xff]
        %v3862 = vld [vmem:[%s3793 + $0x220] sm:$0xff]
        %v3863 = vld [vmem:[%s3793 + $0x228] sm:$0xff]
        %v3864 = vld [vmem:[%s3793 + $0x230] sm:$0xff]
        %v3865 = vld [vmem:[%s3793 + $0x238] sm:$0xff]
        %v3866 = vld [vmem:[%s3793 + $0x240] sm:$0xff]
        %v3867 = vld [vmem:[%s3793 + $0x248] sm:$0xff]
        %v3868 = vld [vmem:[%s3793 + $0x250] sm:$0xff]
        %v3869 = vld [vmem:[%s3793 + $0x258] sm:$0xff]
        %v3870 = vld [vmem:[%s3793 + $0x260] sm:$0xff]
        %v3871 = vld [vmem:[%s3793 + $0x268] sm:$0xff]
        %v3872 = vld [vmem:[%s3793 + $0x270] sm:$0xff]
        %v3873 = vld [vmem:[%s3793 + $0x278] sm:$0xff]
        %v3874 = vld [vmem:[%s3793 + $0x280] sm:$0xff]
        %v3875 = vld [vmem:[%s3793 + $0x288] sm:$0xff]
        %v3876 = vld [vmem:[%s3793 + $0x290] sm:$0xff]
        %v3877 = vld [vmem:[%s3793 + $0x298] sm:$0xff]
        %v3878 = vld [vmem:[%s3793 + $0x2a0] sm:$0xff]
        %v3879 = vld [vmem:[%s3793 + $0x2a8] sm:$0xff]
        %v3880 = vld [vmem:[%s3793 + $0x2b0] sm:$0xff]
        %v3881 = vld [vmem:[%s3793 + $0x2b8] sm:$0xff]
        %v3882 = vld [vmem:[%s3793 + $0x2c0] sm:$0xf]
        %v3883 = vld [vmem:[%s3793 + $0x2c8] sm:$0xf]
        %v3884 = vld [vmem:[%s3793 + $0x2d0] sm:$0xf]
        %v3885 = vld [vmem:[%s3793 + $0x2d8] sm:$0xf]
        %v3886 = vrot.slane %v2524, 4
        %v3887 = vrot.slane %v2526, 4
        %v3888 = vsel %vm2323, %v3886, %v3887
        %v3889 = vrot.slane %v2525, 4
        %v3890 = vrot.slane %v2527, 4
        %v3891 = vsel %vm2323, %v3889, %v3890
        %v3892 = vrot.slane %v2528, 4
        %v3893 = vsel %vm2323, %v3887, %v3892
        %v3894 = vrot.slane %v2529, 4
        %v3895 = vsel %vm2323, %v3890, %v3894
        %v3896 = vrot.slane %v2530, 4
        %v3897 = vsel %vm2323, %v3892, %v3896
        %v3898 = vrot.slane %v2531, 4
        %v3899 = vsel %vm2323, %v3894, %v3898
        %v3904 = vsel %vm2744, %v3891, 0
        %v3906 = vsel %vm2744, %v3895, 0
        %v3908 = vsel %vm2744, %v3899, 0
        %v3910 = vsel %vm2744, %v3898, 0
        %v3913 = vsel %vm2323, %v3882, 0
        %v3916 = vsel %vm2323, %v3883, 0
        %v3919 = vsel %vm2323, %v3884, 0
        %v3922 = vsel %vm2323, %v3885, 0
        %3924 = vmatprep.subr.mxu0 %v3795
        %3925 = vmatpush1.msra.mxu0 %v3794
        %3926 = vmatprep.subr.mxu0 %v3799
        %3927 = vmatpush1.msra.mxu0 %v3798
        %3928 = vmatprep.subr.mxu0 %v3803
        %3929 = vmatpush1.msra.mxu0 %v3802
        %3930 = vmatprep.subr.mxu0 %v3807
        %3931 = vmatpush1.msra.mxu0 %v3806
        %3932 = vmatprep.subr.mxu0 %v3811
        %3933 = vmatpush1.msra.mxu0 %v3810
        %3934 = vmatprep.subr.mxu0 %v3815
        %3935 = vmatpush1.msra.mxu0 %v3814
        %3936 = vmatprep.subr.mxu0 %v3819
        %3937 = vmatpush1.msra.mxu0 %v3818
        %3938 = vmatprep.subr.mxu0 %v3823
        %3939 = vmatpush1.msra.mxu0 %v3822
        %3940 = vmatprep.subr.mxu0 %v3827
        %3941 = vmatpush1.msra.mxu0 %v3826
        %3942 = vmatprep.subr.mxu0 %v3831
        %3943 = vmatpush1.msra.mxu0 %v3830
        %3944 = vmatprep.subr.mxu0 %v3835
        %3945 = vmatpush1.msra.mxu0 %v3834
        %3946 = vmatprep.subr.mxu0 %v3839
        %3947 = vmatpush1.msra.mxu0 %v3838
        %3948 = vmatprep.subr.mxu0 %v3843
        %3949 = vmatpush1.msra.mxu0 %v3842
        %3950 = vmatprep.subr.mxu0 %v3847
        %3951 = vmatpush1.msra.mxu0 %v3846
        %3952 = vmatprep.subr.mxu0 %v3851
        %3953 = vmatpush1.msra.mxu0 %v3850
        %3954 = vmatprep.subr.mxu0 %v3855
        %3955 = vmatpush1.msra.mxu0 %v3854
        %3956 = vmatprep.subr.mxu0 %v3859
        %3957 = vmatpush1.msra.mxu0 %v3858
        %3958 = vmatprep.subr.mxu0 %v3863
        %3959 = vmatpush1.msra.mxu0 %v3862
        %3960 = vmatprep.subr.mxu0 %v3867
        %3961 = vmatpush1.msra.mxu0 %v3866
        %3962 = vmatprep.subr.mxu0 %v3871
        %3963 = vmatpush1.msra.mxu0 %v3870
        %3964 = vmatprep.subr.mxu0 %v3875
        %3965 = vmatpush1.msra.mxu0 %v3874
        %3966 = vmatprep.subr.mxu0 %v3879
        %3967 = vmatpush1.msra.mxu0 %v3878
        %3968 = vmatprep.subr.mxu0 %v3916
        %3969 = vmatpush1.msra.mxu0 %v3913
        %3970 = vmatprep.subr.mxu0 0.0
        %3971 = vmatpush1.msra.mxu0 0.0
        %3972 = vmatprep.subr.mxu0 0.0
        %3973 = vmatpush1.msra.mxu0 0.0
        %3974 = vmatprep.subr.mxu0 0.0
        %3975 = vmatpush1.msra.mxu0 0.0
        %3976 = vmatprep.subr.mxu0 0.0
        %3977 = vmatpush1.msra.mxu0 0.0
        %3978 = vmatprep.subr.mxu0 0.0
        %3979 = vmatpush1.msra.mxu0 0.0
        %3980 = vmatprep.subr.mxu0 0.0
        %3981 = vmatpush1.msra.mxu0 0.0
        %3982 = vmatprep.subr.mxu0 0.0
        %3983 = vmatpush1.msra.mxu0 0.0
        %3984 = vmatprep.subr.mxu0 0.0
        %3985 = vmatpush1.msra.mxu0 0.0
        %3986 = vmatprep.subr.mxu0 0.0
        %3987 = vmatpush1.msra.mxu0 0.0
        %3988 = vmatprep.mubr.f32.mxu0 %v3904
        %3989 = vmatmul.mubr.f32.gmra.mrb[0].mxu0 %v3888
        %v3990 = vpop.f32.mrb[0].mxu0
        %v3991 = vadd.f32 0.0, %v3990
        %v3992 = vpop.f32.mrb[0].mxu0
        %v3993 = vadd.f32 0.0, %v3992
        %3994 = vmatprep.mubr.f32.mxu0 %v3906
        %3995 = vmatmul.mubr.f32.gmra.mrb[0].mxu0 %v3893
        %v3996 = vpop.f32.mrb[0].mxu0
        %v3997 = vadd.f32 0.0, %v3996
        %v3998 = vpop.f32.mrb[0].mxu0
        %v3999 = vadd.f32 0.0, %v3998
        %4000 = vmatprep.mubr.f32.mxu0 %v3908
        %4001 = vmatmul.mubr.f32.gmra.mrb[0].mxu0 %v3897
        %v4002 = vpop.f32.mrb[0].mxu0
        %v4003 = vadd.f32 0.0, %v4002
        %v4004 = vpop.f32.mrb[0].mxu0
        %v4005 = vadd.f32 0.0, %v4004
        %4006 = vmatprep.mubr.f32.mxu0 %v3910
        %4007 = vmatmul.mubr.f32.gmra.mrb[0].mxu0 %v3896
        %v4008 = vpop.f32.mrb[0].mxu0
        %v4009 = vadd.f32 0.0, %v4008
        %v4010 = vpop.f32.mrb[0].mxu0
        %v4011 = vadd.f32 0.0, %v4010
        %4012 = vdwg.mxu0
        %4013 = vmatprep.subr.mxu0 %v3797
        %4014 = vmatpush1.msra.mxu0 %v3796
        %4015 = vmatprep.subr.mxu0 %v3801
        %4016 = vmatpush1.msra.mxu0 %v3800
        %4017 = vmatprep.subr.mxu0 %v3805
        %4018 = vmatpush1.msra.mxu0 %v3804
        %4019 = vmatprep.subr.mxu0 %v3809
        %4020 = vmatpush1.msra.mxu0 %v3808
        %4021 = vmatprep.subr.mxu0 %v3813
        %4022 = vmatpush1.msra.mxu0 %v3812
        %4023 = vmatprep.subr.mxu0 %v3817
        %4024 = vmatpush1.msra.mxu0 %v3816
        %4025 = vmatprep.subr.mxu0 %v3821
        %4026 = vmatpush1.msra.mxu0 %v3820
        %4027 = vmatprep.subr.mxu0 %v3825
        %4028 = vmatpush1.msra.mxu0 %v3824
        %4029 = vmatprep.subr.mxu0 %v3829
        %4030 = vmatpush1.msra.mxu0 %v3828
        %4031 = vmatprep.subr.mxu0 %v3833
        %4032 = vmatpush1.msra.mxu0 %v3832
        %4033 = vmatprep.subr.mxu0 %v3837
        %4034 = vmatpush1.msra.mxu0 %v3836
        %4035 = vmatprep.subr.mxu0 %v3841
        %4036 = vmatpush1.msra.mxu0 %v3840
        %4037 = vmatprep.subr.mxu0 %v3845
        %4038 = vmatpush1.msra.mxu0 %v3844
        %4039 = vmatprep.subr.mxu0 %v3849
        %4040 = vmatpush1.msra.mxu0 %v3848
        %4041 = vmatprep.subr.mxu0 %v3853
        %4042 = vmatpush1.msra.mxu0 %v3852
        %4043 = vmatprep.subr.mxu0 %v3857
        %4044 = vmatpush1.msra.mxu0 %v3856
        %4045 = vmatprep.subr.mxu0 %v3861
        %4046 = vmatpush1.msra.mxu0 %v3860
        %4047 = vmatprep.subr.mxu0 %v3865
        %4048 = vmatpush1.msra.mxu0 %v3864
        %4049 = vmatprep.subr.mxu0 %v3869
        %4050 = vmatpush1.msra.mxu0 %v3868
        %4051 = vmatprep.subr.mxu0 %v3873
        %4052 = vmatpush1.msra.mxu0 %v3872
        %4053 = vmatprep.subr.mxu0 %v3877
        %4054 = vmatpush1.msra.mxu0 %v3876
        %4055 = vmatprep.subr.mxu0 %v3881
        %4056 = vmatpush1.msra.mxu0 %v3880
        %4057 = vmatprep.subr.mxu0 %v3922
        %4058 = vmatpush1.msra.mxu0 %v3919
        %4059 = vmatprep.subr.mxu0 0.0
        %4060 = vmatpush1.msra.mxu0 0.0
        %4061 = vmatprep.subr.mxu0 0.0
        %4062 = vmatpush1.msra.mxu0 0.0
        %4063 = vmatprep.subr.mxu0 0.0
        %4064 = vmatpush1.msra.mxu0 0.0
        %4065 = vmatprep.subr.mxu0 0.0
        %4066 = vmatpush1.msra.mxu0 0.0
        %4067 = vmatprep.subr.mxu0 0.0
        %4068 = vmatpush1.msra.mxu0 0.0
        %4069 = vmatprep.subr.mxu0 0.0
        %4070 = vmatpush1.msra.mxu0 0.0
        %4071 = vmatprep.subr.mxu0 0.0
        %4072 = vmatpush1.msra.mxu0 0.0
        %4073 = vmatprep.subr.mxu0 0.0
        %4074 = vmatpush1.msra.mxu0 0.0
        %4075 = vmatprep.subr.mxu0 0.0
        %4076 = vmatpush1.msra.mxu0 0.0
        %4077 = vmatprep.mubr.f32.mxu0 %v3904
        %4078 = vmatmul.mubr.f32.gmra.mrb[0].mxu0 %v3888
        %v4079 = vpop.f32.mrb[0].mxu0
        %v4080 = vadd.f32 0.0, %v4079
        %v4081 = vpop.f32.mrb[0].mxu0
        %v4082 = vadd.f32 0.0, %v4081
        %4083 = vmatprep.mubr.f32.mxu0 %v3906
        %4084 = vmatmul.mubr.f32.gmra.mrb[0].mxu0 %v3893
        %v4085 = vpop.f32.mrb[0].mxu0
        %v4086 = vadd.f32 0.0, %v4085
        %v4087 = vpop.f32.mrb[0].mxu0
        %v4088 = vadd.f32 0.0, %v4087
        %4089 = vmatprep.mubr.f32.mxu0 %v3908
        %4090 = vmatmul.mubr.f32.gmra.mrb[0].mxu0 %v3897
        %v4091 = vpop.f32.mrb[0].mxu0
        %v4092 = vadd.f32 0.0, %v4091
        %v4093 = vpop.f32.mrb[0].mxu0
        %v4094 = vadd.f32 0.0, %v4093
        %4095 = vmatprep.mubr.f32.mxu0 %v3910
        %4096 = vmatmul.mubr.f32.gmra.mrb[0].mxu0 %v3896
        %v4097 = vpop.f32.mrb[0].mxu0
        %v4098 = vadd.f32 0.0, %v4097
        %v4099 = vpop.f32.mrb[0].mxu0
        %v4100 = vadd.f32 0.0, %v4099
        %4101 = vdwg.mxu0
        %v4102 = vadd.f32 %v3777, %v3991
        %v4103 = vadd.f32 %v3778, %v3993
        %v4104 = vadd.f32 %v3779, %v4080
        %v4105 = vadd.f32 %v3780, %v4082
        %v4106 = vadd.f32 %v3781, %v3997
        %v4107 = vadd.f32 %v3782, %v3999
        %v4108 = vadd.f32 %v3783, %v4086
        %v4109 = vadd.f32 %v3784, %v4088
        %v4110 = vadd.f32 %v3785, %v4003
        %v4111 = vadd.f32 %v3786, %v4005
        %v4112 = vadd.f32 %v3787, %v4092
        %v4113 = vadd.f32 %v3788, %v4094
        %v4114 = vadd.f32 %v3789, %v4009
        %v4115 = vadd.f32 %v3790, %v4011
        %v4116 = vadd.f32 %v3791, %v4098
        %v4117 = vadd.f32 %v3792, %v4100
        %v4118 = vld [vmem:[#allocation13] sm:$0xf]
        %v4120 = vlaneseq
        %v4121 = vshrl.u32 %v4120, 7
        %v4122 = vsub.s32 0, %v4121
        %v4123 = vrot.slane %v4118, %v4122
        %v4124 = vlaneseq
        %v4125 = vshrl.u32 %v4124, 7
        %v4126 = vsub.s32 1, %v4125
        %v4127 = vrot.slane %v4118, %v4126
        %v4128 = vlaneseq
        %v4129 = vshrl.u32 %v4128, 7
        %v4130 = vsub.s32 2, %v4129
        %v4131 = vrot.slane %v4118, %v4130
        %v4132 = vlaneseq
        %v4133 = vshrl.u32 %v4132, 7
        %v4134 = vsub.s32 3, %v4133
        %v4135 = vrot.slane %v4118, %v4134
        %v4140 = vadd.f32 %v4102, %v4123
        %v4141 = vadd.f32 %v4103, %v4127
        %v4142 = vadd.f32 %v4104, %v4131
        %v4143 = vadd.f32 %v4105, %v4135
        %v4144 = vadd.f32 %v4106, %v4123
        %v4145 = vadd.f32 %v4107, %v4127
        %v4146 = vadd.f32 %v4108, %v4131
        %v4147 = vadd.f32 %v4109, %v4135
        %v4148 = vadd.f32 %v4110, %v4123
        %v4149 = vadd.f32 %v4111, %v4127
        %v4150 = vadd.f32 %v4112, %v4131
        %v4151 = vadd.f32 %v4113, %v4135
        %v4152 = vadd.f32 %v4114, %v4123
        %v4153 = vadd.f32 %v4115, %v4127
        %v4154 = vadd.f32 %v4116, %v4131
        %v4155 = vadd.f32 %v4117, %v4135
        %v4156 = vmax.f32 %v4140, 0.0
        %v4157 = vmax.f32 %v4141, 0.0
        %v4158 = vmax.f32 %v4142, 0.0
        %v4159 = vmax.f32 %v4143, 0.0
        %v4160 = vmax.f32 %v4144, 0.0
        %v4161 = vmax.f32 %v4145, 0.0
        %v4162 = vmax.f32 %v4146, 0.0
        %v4163 = vmax.f32 %v4147, 0.0
        %v4164 = vmax.f32 %v4148, 0.0
        %v4165 = vmax.f32 %v4149, 0.0
        %v4166 = vmax.f32 %v4150, 0.0
        %v4167 = vmax.f32 %v4151, 0.0
        %v4168 = vmax.f32 %v4152, 0.0
        %v4169 = vmax.f32 %v4153, 0.0
        %v4170 = vmax.f32 %v4154, 0.0
        %v4171 = vmax.f32 %v4155, 0.0
        %4184 = vrot.lane.b32.xlu0 %v4157, 48
        %v4185 = vpop.permute.xlu0 %4184
        %4186 = vrot.lane.b32.xlu0 %v4158, 48
        %v4187 = vpop.permute.xlu0 %4186
        %4188 = vrot.lane.b32.xlu0 %v4159, 48
        %v4189 = vpop.permute.xlu0 %4188
        %4190 = vrot.lane.b32.xlu0 %v4161, 48
        %v4191 = vpop.permute.xlu0 %4190
        %4192 = vrot.lane.b32.xlu0 %v4162, 48
        %v4193 = vpop.permute.xlu0 %4192
        %4194 = vrot.lane.b32.xlu0 %v4163, 48
        %v4195 = vpop.permute.xlu0 %4194
        %4196 = vrot.lane.b32.xlu0 %v4165, 48
        %v4197 = vpop.permute.xlu0 %4196
        %4198 = vrot.lane.b32.xlu0 %v4166, 48
        %v4199 = vpop.permute.xlu0 %4198
        %4200 = vrot.lane.b32.xlu0 %v4167, 48
        %v4201 = vpop.permute.xlu0 %4200
        %4202 = vrot.lane.b32.xlu0 %v4169, 48
        %v4203 = vpop.permute.xlu0 %4202
        %4204 = vrot.lane.b32.xlu0 %v4170, 48
        %v4205 = vpop.permute.xlu0 %4204
        %4206 = vrot.lane.b32.xlu0 %v4171, 48
        %v4207 = vpop.permute.xlu0 %4206
        %vm4208 = vcmask 392192
        %v4209 = vsel %vm4208, %v4185, %v4187
        %v4210 = vsel %vm4208, %v4187, %v4189
        %v4211 = vsel %vm4208, %v4191, %v4193
        %v4212 = vsel %vm4208, %v4193, %v4195
        %v4213 = vsel %vm4208, %v4197, %v4199
        %v4214 = vsel %vm4208, %v4199, %v4201
        %v4215 = vsel %vm4208, %v4203, %v4205
        %v4216 = vsel %vm4208, %v4205, %v4207
        %v4225 = vmax.f32 %v4156, %v4209
        %v4226 = vmax.f32 %v4157, %v4210
        %v4227 = vmax.f32 %v4160, %v4211
        %v4228 = vmax.f32 %v4161, %v4212
        %v4229 = vmax.f32 %v4164, %v4213
        %v4230 = vmax.f32 %v4165, %v4214
        %v4231 = vmax.f32 %v4168, %v4215
        %v4232 = vmax.f32 %v4169, %v4216
        %v4233 = vld [vmem:[#allocation14] sm:$0xff]
        %v4234 = vld [vmem:[#allocation14 + $0x8] sm:$0x1f]
        %vm4235 = vcmask 211968
        %v4237 = vsel %vm4235, %v4233, 0
        %v4240 = vsel %vm4235, %v4234, 0
        %vm4242 = vcmask 1041408
        %v4244 = vsel %vm4242, %v4231, 0
        %v4247 = vsel %vm4242, %v4232, 0
        %4249 = vmatprep.subr.mxu0 %v4226
        %4250 = vmatpush1.msra.mxu0 %v4225
        %4251 = vmatprep.subr.mxu0 %v4228
        %4252 = vmatpush1.msra.mxu0 %v4227
        %4253 = vmatprep.subr.mxu0 %v4230
        %4254 = vmatpush1.msra.mxu0 %v4229
        %4255 = vmatprep.subr.mxu0 %v4247
        %4256 = vmatpush1.msra.mxu0 %v4244
        %4257 = vmatprep.subr.mxu0 0.0
        %4258 = vmatpush1.msra.mxu0 0.0
        %4259 = vmatprep.subr.mxu0 0.0
        %4260 = vmatpush1.msra.mxu0 0.0
        %4261 = vmatprep.subr.mxu0 0.0
        %4262 = vmatpush1.msra.mxu0 0.0
        %4263 = vmatprep.subr.mxu0 0.0
        %4264 = vmatpush1.msra.mxu0 0.0
        %4265 = vmatprep.subr.mxu0 0.0
        %4266 = vmatpush1.msra.mxu0 0.0
        %4267 = vmatprep.subr.mxu0 0.0
        %4268 = vmatpush1.msra.mxu0 0.0
        %4269 = vmatprep.subr.mxu0 0.0
        %4270 = vmatpush1.msra.mxu0 0.0
        %4271 = vmatprep.subr.mxu0 0.0
        %4272 = vmatpush1.msra.mxu0 0.0
        %4273 = vmatprep.subr.mxu0 0.0
        %4274 = vmatpush1.msra.mxu0 0.0
        %4275 = vmatprep.subr.mxu0 0.0
        %4276 = vmatpush1.msra.mxu0 0.0
        %4277 = vmatprep.subr.mxu0 0.0
        %4278 = vmatpush1.msra.mxu0 0.0
        %4279 = vmatprep.subr.mxu0 0.0
        %4280 = vmatpush1.msra.mxu0 0.0
        %4281 = vmatprep.subr.mxu0 0.0
        %4282 = vmatpush1.msra.mxu0 0.0
        %4283 = vmatprep.subr.mxu0 0.0
        %4284 = vmatpush1.msra.mxu0 0.0
        %4285 = vmatprep.subr.mxu0 0.0
        %4286 = vmatpush1.msra.mxu0 0.0
        %4287 = vmatprep.subr.mxu0 0.0
        %4288 = vmatpush1.msra.mxu0 0.0
        %4289 = vmatprep.subr.mxu0 0.0
        %4290 = vmatpush1.msra.mxu0 0.0
        %4291 = vmatprep.subr.mxu0 0.0
        %4292 = vmatpush1.msra.mxu0 0.0
        %4293 = vmatprep.subr.mxu0 0.0
        %4294 = vmatpush1.msra.mxu0 0.0
        %4295 = vmatprep.subr.mxu0 0.0
        %4296 = vmatpush1.msra.mxu0 0.0
        %4297 = vmatprep.subr.mxu0 0.0
        %4298 = vmatpush1.msra.mxu0 0.0
        %4299 = vmatprep.subr.mxu0 0.0
        %4300 = vmatpush1.msra.mxu0 0.0
        %4301 = vmatprep.subr.mxu0 0.0
        %4302 = vmatpush1.msra.mxu0 0.0
        %4303 = vmatprep.subr.mxu0 0.0
        %4304 = vmatpush1.msra.mxu0 0.0
        %4305 = vmatprep.subr.mxu0 0.0
        %4306 = vmatpush1.msra.mxu0 0.0
        %4307 = vmatprep.subr.mxu0 0.0
        %4308 = vmatpush1.msra.mxu0 0.0
        %4309 = vmatprep.subr.mxu0 0.0
        %4310 = vmatpush1.msra.mxu0 0.0
        %4311 = vmatprep.subr.mxu0 0.0
        %4312 = vmatpush1.msra.mxu0 0.0
        %4313 = vmatprep.mubr.f32.mxu0 0.0
        %4314 = vmatmul.mubr.f32.gmra.mrb[0].mxu0 %v4237
        %v4315 = vpop.f32.mrb[0].mxu0
        %v4316 = vadd.f32 0.0, %v4315
        %v4317 = vpop.f32.mrb[0].mxu0
        %v4318 = vadd.f32 0.0, %v4317
        %4319 = vmatprep.mubr.f32.mxu0 0.0
        %4320 = vmatmul.mubr.f32.gmra.mrb[0].mxu0 %v4240
        %v4321 = vpop.f32.mrb[0].mxu0
        %v4322 = vadd.f32 0.0, %v4321
        %v4323 = vpop.f32.mrb[0].mxu0
        %v4324 = vadd.f32 0.0, %v4323
        %4325 = vdwg.mxu0
        %v4326 = vld [vmem:[#allocation16] sm:$0xff]
        %v4327 = vld [vmem:[#allocation16 + $0x8] sm:$0x1f]
        %v4329 = vsel %vm4235, %v4326, 0
        %v4332 = vsel %vm4235, %v4327, 0
        %4334 = vmatprep.subr.mxu0 %v4226
        %4335 = vmatpush1.msra.mxu0 %v4225
        %4336 = vmatprep.subr.mxu0 %v4228
        %4337 = vmatpush1.msra.mxu0 %v4227
        %4338 = vmatprep.subr.mxu0 %v4230
        %4339 = vmatpush1.msra.mxu0 %v4229
        %4340 = vmatprep.subr.mxu0 %v4247
        %4341 = vmatpush1.msra.mxu0 %v4244
        %4342 = vmatprep.subr.mxu0 0.0
        %4343 = vmatpush1.msra.mxu0 0.0
        %4344 = vmatprep.subr.mxu0 0.0
        %4345 = vmatpush1.msra.mxu0 0.0
        %4346 = vmatprep.subr.mxu0 0.0
        %4347 = vmatpush1.msra.mxu0 0.0
        %4348 = vmatprep.subr.mxu0 0.0
        %4349 = vmatpush1.msra.mxu0 0.0
        %4350 = vmatprep.subr.mxu0 0.0
        %4351 = vmatpush1.msra.mxu0 0.0
        %4352 = vmatprep.subr.mxu0 0.0
        %4353 = vmatpush1.msra.mxu0 0.0
        %4354 = vmatprep.subr.mxu0 0.0
        %4355 = vmatpush1.msra.mxu0 0.0
        %4356 = vmatprep.subr.mxu0 0.0
        %4357 = vmatpush1.msra.mxu0 0.0
        %4358 = vmatprep.subr.mxu0 0.0
        %4359 = vmatpush1.msra.mxu0 0.0
        %4360 = vmatprep.subr.mxu0 0.0
        %4361 = vmatpush1.msra.mxu0 0.0
        %4362 = vmatprep.subr.mxu0 0.0
        %4363 = vmatpush1.msra.mxu0 0.0
        %4364 = vmatprep.subr.mxu0 0.0
        %4365 = vmatpush1.msra.mxu0 0.0
        %4366 = vmatprep.subr.mxu0 0.0
        %4367 = vmatpush1.msra.mxu0 0.0
        %4368 = vmatprep.subr.mxu0 0.0
        %4369 = vmatpush1.msra.mxu0 0.0
        %4370 = vmatprep.subr.mxu0 0.0
        %4371 = vmatpush1.msra.mxu0 0.0
        %4372 = vmatprep.subr.mxu0 0.0
        %4373 = vmatpush1.msra.mxu0 0.0
        %4374 = vmatprep.subr.mxu0 0.0
        %4375 = vmatpush1.msra.mxu0 0.0
        %4376 = vmatprep.subr.mxu0 0.0
        %4377 = vmatpush1.msra.mxu0 0.0
        %4378 = vmatprep.subr.mxu0 0.0
        %4379 = vmatpush1.msra.mxu0 0.0
        %4380 = vmatprep.subr.mxu0 0.0
        %4381 = vmatpush1.msra.mxu0 0.0
        %4382 = vmatprep.subr.mxu0 0.0
        %4383 = vmatpush1.msra.mxu0 0.0
        %4384 = vmatprep.subr.mxu0 0.0
        %4385 = vmatpush1.msra.mxu0 0.0
        %4386 = vmatprep.subr.mxu0 0.0
        %4387 = vmatpush1.msra.mxu0 0.0
        %4388 = vmatprep.subr.mxu0 0.0
        %4389 = vmatpush1.msra.mxu0 0.0
        %4390 = vmatprep.subr.mxu0 0.0
        %4391 = vmatpush1.msra.mxu0 0.0
        %4392 = vmatprep.subr.mxu0 0.0
        %4393 = vmatpush1.msra.mxu0 0.0
        %4394 = vmatprep.subr.mxu0 0.0
        %4395 = vmatpush1.msra.mxu0 0.0
        %4396 = vmatprep.subr.mxu0 0.0
        %4397 = vmatpush1.msra.mxu0 0.0
        %4398 = vmatprep.mubr.f32.mxu0 0.0
        %4399 = vmatmul.mubr.f32.gmra.mrb[0].mxu0 %v4329
        %v4400 = vpop.f32.mrb[0].mxu0
        %v4401 = vadd.f32 0.0, %v4400
        %v4402 = vpop.f32.mrb[0].mxu0
        %v4403 = vadd.f32 0.0, %v4402
        %4404 = vmatprep.mubr.f32.mxu0 0.0
        %4405 = vmatmul.mubr.f32.gmra.mrb[0].mxu0 %v4332
        %v4406 = vpop.f32.mrb[0].mxu0
        %v4407 = vadd.f32 0.0, %v4406
        %v4408 = vpop.f32.mrb[0].mxu0
        %v4409 = vadd.f32 0.0, %v4408
        %4410 = vdwg.mxu0
        %v4411 = vmax.f32 %v4316, %v4401
        %v4412 = vmax.f32 %v4318, %v4403
        %v4413 = vmax.f32 %v4322, %v4407
        %v4414 = vmax.f32 %v4324, %v4409
        %v4415 = vld [vmem:[#allocation17] sm:$0xff]
        %v4416 = vld [vmem:[#allocation17 + $0x8] sm:$0xff]
        %v4417 = vld [vmem:[#allocation17 + $0x10] sm:$0xff]
        %v4418 = vld [vmem:[#allocation17 + $0x18] sm:$0xff]
        %v4419 = vld [vmem:[#allocation17 + $0x20] sm:$0xff]
        %v4420 = vld [vmem:[#allocation17 + $0x28] sm:$0xff]
        %v4421 = vld [vmem:[#allocation17 + $0x30] sm:$0xff]
        %v4422 = vld [vmem:[#allocation17 + $0x38] sm:$0xff]
        %v4423 = vld [vmem:[#allocation17 + $0x40] sm:$0xff]
        %v4424 = vld [vmem:[#allocation17 + $0x48] sm:$0xff]
        %v4425 = vld [vmem:[#allocation17 + $0x50] sm:$0xff]
        %v4426 = vld [vmem:[#allocation17 + $0x58] sm:$0xff]
        %v4427 = vld [vmem:[#allocation17 + $0x60] sm:$0xff]
        %v4428 = vld [vmem:[#allocation17 + $0x68] sm:$0xff]
        %v4429 = vld [vmem:[#allocation17 + $0x70] sm:$0xff]
        %v4430 = vld [vmem:[#allocation17 + $0x78] sm:$0xff]
        %v4431 = vld [vmem:[#allocation17 + $0x80] sm:$0xff]
        %v4432 = vld [vmem:[#allocation17 + $0x88] sm:$0xff]
        %v4433 = vld [vmem:[#allocation17 + $0x90] sm:$0xff]
        %v4434 = vld [vmem:[#allocation17 + $0x98] sm:$0xff]
        %v4435 = vld [vmem:[#allocation17 + $0xa0] sm:$0xff]
        %v4436 = vld [vmem:[#allocation17 + $0xa8] sm:$0xff]
        %v4437 = vld [vmem:[#allocation17 + $0xb0] sm:$0xff]
        %v4438 = vld [vmem:[#allocation17 + $0xb8] sm:$0xff]
        %v4439 = vld [vmem:[#allocation17 + $0xc0] sm:$0xff]
        %v4440 = vld [vmem:[#allocation17 + $0xc8] sm:$0xff]
        %s4441 = scalar_lea.vmem [#allocation17], 208
        %v4442 = vld [vmem:[%s4441] sm:$0xff]
        %v4443 = vld [vmem:[%s4441 + $0x8] sm:$0xff]
        %v4444 = vld [vmem:[%s4441 + $0x10] sm:$0xff]
        %v4445 = vld [vmem:[%s4441 + $0x18] sm:$0xff]
        %v4446 = vld [vmem:[%s4441 + $0x20] sm:$0xff]
        %v4447 = vld [vmem:[%s4441 + $0x28] sm:$0xff]
        %v4448 = vld [vmem:[%s4441 + $0x30] sm:$0xff]
        %v4449 = vld [vmem:[%s4441 + $0x38] sm:$0xff]
        %v4450 = vld [vmem:[%s4441 + $0x40] sm:$0xff]
        %v4451 = vld [vmem:[%s4441 + $0x48] sm:$0xff]
        %v4452 = vld [vmem:[%s4441 + $0x50] sm:$0xff]
        %v4453 = vld [vmem:[%s4441 + $0x58] sm:$0xff]
        %v4454 = vld [vmem:[%s4441 + $0x60] sm:$0xff]
        %v4455 = vld [vmem:[%s4441 + $0x68] sm:$0xff]
        %v4456 = vld [vmem:[%s4441 + $0x70] sm:$0xff]
        %v4457 = vld [vmem:[%s4441 + $0x78] sm:$0xff]
        %v4458 = vld [vmem:[%s4441 + $0x80] sm:$0xff]
        %v4459 = vld [vmem:[%s4441 + $0x88] sm:$0xff]
        %v4460 = vld [vmem:[%s4441 + $0x90] sm:$0xff]
        %v4461 = vld [vmem:[%s4441 + $0x98] sm:$0xff]
        %v4462 = vld [vmem:[%s4441 + $0xa0] sm:$0xff]
        %v4463 = vld [vmem:[%s4441 + $0xa8] sm:$0xff]
        %v4464 = vld [vmem:[%s4441 + $0xb0] sm:$0xff]
        %v4465 = vld [vmem:[%s4441 + $0xb8] sm:$0xff]
        %v4466 = vld [vmem:[%s4441 + $0xc0] sm:$0xff]
        %v4467 = vld [vmem:[%s4441 + $0xc8] sm:$0xff]
        %v4470 = vrot.slane %v4411, 1
        %v4471 = vrot.slane %v4412, 1
        %vm4473 = vcmask 654336
        %v4474 = vsel %vm4473, %v4471, 0
        %4476 = vmatprep.subr.mxu0 0.0
        %4477 = vmatpush1.msra.mxu0 %v4442
        %4478 = vmatprep.subr.mxu0 0.0
        %4479 = vmatpush1.msra.mxu0 %v4443
        %4480 = vmatprep.subr.mxu0 0.0
        %4481 = vmatpush1.msra.mxu0 %v4444
        %4482 = vmatprep.subr.mxu0 0.0
        %4483 = vmatpush1.msra.mxu0 %v4445
        %4484 = vmatprep.subr.mxu0 0.0
        %4485 = vmatpush1.msra.mxu0 %v4446
        %4486 = vmatprep.subr.mxu0 0.0
        %4487 = vmatpush1.msra.mxu0 %v4447
        %4488 = vmatprep.subr.mxu0 0.0
        %4489 = vmatpush1.msra.mxu0 %v4448
        %4490 = vmatprep.subr.mxu0 0.0
        %4491 = vmatpush1.msra.mxu0 %v4449
        %4492 = vmatprep.subr.mxu0 0.0
        %4493 = vmatpush1.msra.mxu0 %v4450
        %4494 = vmatprep.subr.mxu0 0.0
        %4495 = vmatpush1.msra.mxu0 %v4451
        %4496 = vmatprep.subr.mxu0 0.0
        %4497 = vmatpush1.msra.mxu0 %v4452
        %4498 = vmatprep.subr.mxu0 0.0
        %4499 = vmatpush1.msra.mxu0 %v4453
        %4500 = vmatprep.subr.mxu0 0.0
        %4501 = vmatpush1.msra.mxu0 %v4454
        %4502 = vmatprep.subr.mxu0 0.0
        %4503 = vmatpush1.msra.mxu0 %v4455
        %4504 = vmatprep.subr.mxu0 0.0
        %4505 = vmatpush1.msra.mxu0 %v4456
        %4506 = vmatprep.subr.mxu0 0.0
        %4507 = vmatpush1.msra.mxu0 %v4457
        %4508 = vmatprep.subr.mxu0 0.0
        %4509 = vmatpush1.msra.mxu0 %v4458
        %4510 = vmatprep.subr.mxu0 0.0
        %4511 = vmatpush1.msra.mxu0 %v4459
        %4512 = vmatprep.subr.mxu0 0.0
        %4513 = vmatpush1.msra.mxu0 %v4460
        %4514 = vmatprep.subr.mxu0 0.0
        %4515 = vmatpush1.msra.mxu0 %v4461
        %4516 = vmatprep.subr.mxu0 0.0
        %4517 = vmatpush1.msra.mxu0 %v4462
        %4518 = vmatprep.subr.mxu0 0.0
        %4519 = vmatpush1.msra.mxu0 %v4463
        %4520 = vmatprep.subr.mxu0 0.0
        %4521 = vmatpush1.msra.mxu0 %v4464
        %4522 = vmatprep.subr.mxu0 0.0
        %4523 = vmatpush1.msra.mxu0 %v4465
        %4524 = vmatprep.subr.mxu0 0.0
        %4525 = vmatpush1.msra.mxu0 %v4466
        %4526 = vmatprep.subr.mxu0 0.0
        %4527 = vmatpush1.msra.mxu0 %v4467
        %4528 = vmatprep.subr.mxu0 0.0
        %4529 = vmatpush1.msra.mxu0 0.0
        %4530 = vmatprep.subr.mxu0 0.0
        %4531 = vmatpush1.msra.mxu0 0.0
        %4532 = vmatprep.subr.mxu0 0.0
        %4533 = vmatpush1.msra.mxu0 0.0
        %4534 = vmatprep.subr.mxu0 0.0
        %4535 = vmatpush1.msra.mxu0 0.0
        %4536 = vmatprep.subr.mxu0 0.0
        %4537 = vmatpush1.msra.mxu0 0.0
        %4538 = vmatprep.subr.mxu0 0.0
        %4539 = vmatpush1.msra.mxu0 0.0
        %4540 = vmatprep.mubr.f32.mxu0 %v4474
        %4541 = vmatmul.mubr.f32.gmra.mrb[0].mxu0 %v4470
        %v4542 = vpop.f32.mrb[0].mxu0
        %v4543 = vadd.f32 0.0, %v4542
        %v4544 = vpop.f32.mrb[0].mxu0
        %4545 = vdwg.mxu0
        %v4546 = vsel %vm4473, %v4412, 0
        %4548 = vmatprep.subr.mxu0 0.0
        %4549 = vmatpush1.msra.mxu0 %v4415
        %4550 = vmatprep.subr.mxu0 0.0
        %4551 = vmatpush1.msra.mxu0 %v4416
        %4552 = vmatprep.subr.mxu0 0.0
        %4553 = vmatpush1.msra.mxu0 %v4417
        %4554 = vmatprep.subr.mxu0 0.0
        %4555 = vmatpush1.msra.mxu0 %v4418
        %4556 = vmatprep.subr.mxu0 0.0
        %4557 = vmatpush1.msra.mxu0 %v4419
        %4558 = vmatprep.subr.mxu0 0.0
        %4559 = vmatpush1.msra.mxu0 %v4420
        %4560 = vmatprep.subr.mxu0 0.0
        %4561 = vmatpush1.msra.mxu0 %v4421
        %4562 = vmatprep.subr.mxu0 0.0
        %4563 = vmatpush1.msra.mxu0 %v4422
        %4564 = vmatprep.subr.mxu0 0.0
        %4565 = vmatpush1.msra.mxu0 %v4423
        %4566 = vmatprep.subr.mxu0 0.0
        %4567 = vmatpush1.msra.mxu0 %v4424
        %4568 = vmatprep.subr.mxu0 0.0
        %4569 = vmatpush1.msra.mxu0 %v4425
        %4570 = vmatprep.subr.mxu0 0.0
        %4571 = vmatpush1.msra.mxu0 %v4426
        %4572 = vmatprep.subr.mxu0 0.0
        %4573 = vmatpush1.msra.mxu0 %v4427
        %4574 = vmatprep.subr.mxu0 0.0
        %4575 = vmatpush1.msra.mxu0 %v4428
        %4576 = vmatprep.subr.mxu0 0.0
        %4577 = vmatpush1.msra.mxu0 %v4429
        %4578 = vmatprep.subr.mxu0 0.0
        %4579 = vmatpush1.msra.mxu0 %v4430
        %4580 = vmatprep.subr.mxu0 0.0
        %4581 = vmatpush1.msra.mxu0 %v4431
        %4582 = vmatprep.subr.mxu0 0.0
        %4583 = vmatpush1.msra.mxu0 %v4432
        %4584 = vmatprep.subr.mxu0 0.0
        %4585 = vmatpush1.msra.mxu0 %v4433
        %4586 = vmatprep.subr.mxu0 0.0
        %4587 = vmatpush1.msra.mxu0 %v4434
        %4588 = vmatprep.subr.mxu0 0.0
        %4589 = vmatpush1.msra.mxu0 %v4435
        %4590 = vmatprep.subr.mxu0 0.0
        %4591 = vmatpush1.msra.mxu0 %v4436
        %4592 = vmatprep.subr.mxu0 0.0
        %4593 = vmatpush1.msra.mxu0 %v4437
        %4594 = vmatprep.subr.mxu0 0.0
        %4595 = vmatpush1.msra.mxu0 %v4438
        %4596 = vmatprep.subr.mxu0 0.0
        %4597 = vmatpush1.msra.mxu0 %v4439
        %4598 = vmatprep.subr.mxu0 0.0
        %4599 = vmatpush1.msra.mxu0 %v4440
        %4600 = vmatprep.subr.mxu0 0.0
        %4601 = vmatpush1.msra.mxu0 0.0
        %4602 = vmatprep.subr.mxu0 0.0
        %4603 = vmatpush1.msra.mxu0 0.0
        %4604 = vmatprep.subr.mxu0 0.0
        %4605 = vmatpush1.msra.mxu0 0.0
        %4606 = vmatprep.subr.mxu0 0.0
        %4607 = vmatpush1.msra.mxu0 0.0
        %4608 = vmatprep.subr.mxu0 0.0
        %4609 = vmatpush1.msra.mxu0 0.0
        %4610 = vmatprep.subr.mxu0 0.0
        %4611 = vmatpush1.msra.mxu0 0.0
        %4612 = vmatprep.mubr.f32.mxu0 %v4546
        %4613 = vmatmul.mubr.f32.gmra.mrb[0].mxu0 %v4411
        %v4614 = vpop.f32.mrb[0].mxu0
        %v4615 = vadd.f32 %v4543, %v4614
        %v4616 = vpop.f32.mrb[0].mxu0
        %4617 = vdwg.mxu0
        %s4618 = scalar_lea.vmem [#allocation17], 416
        %v4619 = vld [vmem:[%s4618] sm:$0xff]
        %v4620 = vld [vmem:[%s4618 + $0x8] sm:$0xff]
        %v4621 = vld [vmem:[%s4618 + $0x10] sm:$0xff]
        %v4622 = vld [vmem:[%s4618 + $0x18] sm:$0xff]
        %v4623 = vld [vmem:[%s4618 + $0x20] sm:$0xff]
        %v4624 = vld [vmem:[%s4618 + $0x28] sm:$0xff]
        %v4625 = vld [vmem:[%s4618 + $0x30] sm:$0xff]
        %v4626 = vld [vmem:[%s4618 + $0x38] sm:$0xff]
        %v4627 = vld [vmem:[%s4618 + $0x40] sm:$0xff]
        %v4628 = vld [vmem:[%s4618 + $0x48] sm:$0xff]
        %v4629 = vld [vmem:[%s4618 + $0x50] sm:$0xff]
        %v4630 = vld [vmem:[%s4618 + $0x58] sm:$0xff]
        %v4631 = vld [vmem:[%s4618 + $0x60] sm:$0xff]
        %v4632 = vld [vmem:[%s4618 + $0x68] sm:$0xff]
        %v4633 = vld [vmem:[%s4618 + $0x70] sm:$0xff]
        %v4634 = vld [vmem:[%s4618 + $0x78] sm:$0xff]
        %v4635 = vld [vmem:[%s4618 + $0x80] sm:$0xff]
        %v4636 = vld [vmem:[%s4618 + $0x88] sm:$0xff]
        %v4637 = vld [vmem:[%s4618 + $0x90] sm:$0xff]
        %v4638 = vld [vmem:[%s4618 + $0x98] sm:$0xff]
        %v4639 = vld [vmem:[%s4618 + $0xa0] sm:$0xff]
        %v4640 = vld [vmem:[%s4618 + $0xa8] sm:$0xff]
        %v4641 = vld [vmem:[%s4618 + $0xb0] sm:$0xff]
        %v4642 = vld [vmem:[%s4618 + $0xb8] sm:$0xff]
        %v4643 = vld [vmem:[%s4618 + $0xc0] sm:$0xff]
        %v4644 = vld [vmem:[%s4618 + $0xc8] sm:$0xff]
        %v4645 = vrot.slane %v4411, 2
        %v4646 = vrot.slane %v4412, 2
        %v4648 = vsel %vm4473, %v4646, 0
        %4650 = vmatprep.subr.mxu0 0.0
        %4651 = vmatpush1.msra.mxu0 %v4619
        %4652 = vmatprep.subr.mxu0 0.0
        %4653 = vmatpush1.msra.mxu0 %v4620
        %4654 = vmatprep.subr.mxu0 0.0
        %4655 = vmatpush1.msra.mxu0 %v4621
        %4656 = vmatprep.subr.mxu0 0.0
        %4657 = vmatpush1.msra.mxu0 %v4622
        %4658 = vmatprep.subr.mxu0 0.0
        %4659 = vmatpush1.msra.mxu0 %v4623
        %4660 = vmatprep.subr.mxu0 0.0
        %4661 = vmatpush1.msra.mxu0 %v4624
        %4662 = vmatprep.subr.mxu0 0.0
        %4663 = vmatpush1.msra.mxu0 %v4625
        %4664 = vmatprep.subr.mxu0 0.0
        %4665 = vmatpush1.msra.mxu0 %v4626
        %4666 = vmatprep.subr.mxu0 0.0
        %4667 = vmatpush1.msra.mxu0 %v4627
        %4668 = vmatprep.subr.mxu0 0.0
        %4669 = vmatpush1.msra.mxu0 %v4628
        %4670 = vmatprep.subr.mxu0 0.0
        %4671 = vmatpush1.msra.mxu0 %v4629
        %4672 = vmatprep.subr.mxu0 0.0
        %4673 = vmatpush1.msra.mxu0 %v4630
        %4674 = vmatprep.subr.mxu0 0.0
        %4675 = vmatpush1.msra.mxu0 %v4631
        %4676 = vmatprep.subr.mxu0 0.0
        %4677 = vmatpush1.msra.mxu0 %v4632
        %4678 = vmatprep.subr.mxu0 0.0
        %4679 = vmatpush1.msra.mxu0 %v4633
        %4680 = vmatprep.subr.mxu0 0.0
        %4681 = vmatpush1.msra.mxu0 %v4634
        %4682 = vmatprep.subr.mxu0 0.0
        %4683 = vmatpush1.msra.mxu0 %v4635
        %4684 = vmatprep.subr.mxu0 0.0
        %4685 = vmatpush1.msra.mxu0 %v4636
        %4686 = vmatprep.subr.mxu0 0.0
        %4687 = vmatpush1.msra.mxu0 %v4637
        %4688 = vmatprep.subr.mxu0 0.0
        %4689 = vmatpush1.msra.mxu0 %v4638
        %4690 = vmatprep.subr.mxu0 0.0
        %4691 = vmatpush1.msra.mxu0 %v4639
        %4692 = vmatprep.subr.mxu0 0.0
        %4693 = vmatpush1.msra.mxu0 %v4640
        %4694 = vmatprep.subr.mxu0 0.0
        %4695 = vmatpush1.msra.mxu0 %v4641
        %4696 = vmatprep.subr.mxu0 0.0
        %4697 = vmatpush1.msra.mxu0 %v4642
        %4698 = vmatprep.subr.mxu0 0.0
        %4699 = vmatpush1.msra.mxu0 %v4643
        %4700 = vmatprep.subr.mxu0 0.0
        %4701 = vmatpush1.msra.mxu0 %v4644
        %4702 = vmatprep.subr.mxu0 0.0
        %4703 = vmatpush1.msra.mxu0 0.0
        %4704 = vmatprep.subr.mxu0 0.0
        %4705 = vmatpush1.msra.mxu0 0.0
        %4706 = vmatprep.subr.mxu0 0.0
        %4707 = vmatpush1.msra.mxu0 0.0
        %4708 = vmatprep.subr.mxu0 0.0
        %4709 = vmatpush1.msra.mxu0 0.0
        %4710 = vmatprep.subr.mxu0 0.0
        %4711 = vmatpush1.msra.mxu0 0.0
        %4712 = vmatprep.subr.mxu0 0.0
        %4713 = vmatpush1.msra.mxu0 0.0
        %4714 = vmatprep.mubr.f32.mxu0 %v4648
        %4715 = vmatmul.mubr.f32.gmra.mrb[0].mxu0 %v4645
        %v4716 = vpop.f32.mrb[0].mxu0
        %v4717 = vadd.f32 0.0, %v4716
        %v4718 = vpop.f32.mrb[0].mxu0
        %4719 = vdwg.mxu0
        %v4720 = vadd.f32 %v4615, %v4717
        %s4721 = scalar_lea.vmem [#allocation17], 624
        %v4722 = vld [vmem:[%s4721] sm:$0xff]
        %v4723 = vld [vmem:[%s4721 + $0x8] sm:$0xff]
        %v4724 = vld [vmem:[%s4721 + $0x10] sm:$0xff]
        %v4725 = vld [vmem:[%s4721 + $0x18] sm:$0xff]
        %v4726 = vld [vmem:[%s4721 + $0x20] sm:$0xff]
        %v4727 = vld [vmem:[%s4721 + $0x28] sm:$0xff]
        %v4728 = vld [vmem:[%s4721 + $0x30] sm:$0xff]
        %v4729 = vld [vmem:[%s4721 + $0x38] sm:$0xff]
        %v4730 = vld [vmem:[%s4721 + $0x40] sm:$0xff]
        %v4731 = vld [vmem:[%s4721 + $0x48] sm:$0xff]
        %v4732 = vld [vmem:[%s4721 + $0x50] sm:$0xff]
        %v4733 = vld [vmem:[%s4721 + $0x58] sm:$0xff]
        %v4734 = vld [vmem:[%s4721 + $0x60] sm:$0xff]
        %v4735 = vld [vmem:[%s4721 + $0x68] sm:$0xff]
        %v4736 = vld [vmem:[%s4721 + $0x70] sm:$0xff]
        %v4737 = vld [vmem:[%s4721 + $0x78] sm:$0xff]
        %v4738 = vld [vmem:[%s4721 + $0x80] sm:$0xff]
        %v4739 = vld [vmem:[%s4721 + $0x88] sm:$0xff]
        %v4740 = vld [vmem:[%s4721 + $0x90] sm:$0xff]
        %v4741 = vld [vmem:[%s4721 + $0x98] sm:$0xff]
        %v4742 = vld [vmem:[%s4721 + $0xa0] sm:$0xff]
        %v4743 = vld [vmem:[%s4721 + $0xa8] sm:$0xff]
        %v4744 = vld [vmem:[%s4721 + $0xb0] sm:$0xff]
        %v4745 = vld [vmem:[%s4721 + $0xb8] sm:$0xff]
        %v4746 = vld [vmem:[%s4721 + $0xc0] sm:$0xff]
        %v4747 = vld [vmem:[%s4721 + $0xc8] sm:$0xff]
        %v4748 = vrot.slane %v4411, 3
        %v4749 = vrot.slane %v4412, 3
        %v4751 = vsel %vm4473, %v4749, 0
        %4753 = vmatprep.subr.mxu0 0.0
        %4754 = vmatpush1.msra.mxu0 %v4722
        %4755 = vmatprep.subr.mxu0 0.0
        %4756 = vmatpush1.msra.mxu0 %v4723
        %4757 = vmatprep.subr.mxu0 0.0
        %4758 = vmatpush1.msra.mxu0 %v4724
        %4759 = vmatprep.subr.mxu0 0.0
        %4760 = vmatpush1.msra.mxu0 %v4725
        %4761 = vmatprep.subr.mxu0 0.0
        %4762 = vmatpush1.msra.mxu0 %v4726
        %4763 = vmatprep.subr.mxu0 0.0
        %4764 = vmatpush1.msra.mxu0 %v4727
        %4765 = vmatprep.subr.mxu0 0.0
        %4766 = vmatpush1.msra.mxu0 %v4728
        %4767 = vmatprep.subr.mxu0 0.0
        %4768 = vmatpush1.msra.mxu0 %v4729
        %4769 = vmatprep.subr.mxu0 0.0
        %4770 = vmatpush1.msra.mxu0 %v4730
        %4771 = vmatprep.subr.mxu0 0.0
        %4772 = vmatpush1.msra.mxu0 %v4731
        %4773 = vmatprep.subr.mxu0 0.0
        %4774 = vmatpush1.msra.mxu0 %v4732
        %4775 = vmatprep.subr.mxu0 0.0
        %4776 = vmatpush1.msra.mxu0 %v4733
        %4777 = vmatprep.subr.mxu0 0.0
        %4778 = vmatpush1.msra.mxu0 %v4734
        %4779 = vmatprep.subr.mxu0 0.0
        %4780 = vmatpush1.msra.mxu0 %v4735
        %4781 = vmatprep.subr.mxu0 0.0
        %4782 = vmatpush1.msra.mxu0 %v4736
        %4783 = vmatprep.subr.mxu0 0.0
        %4784 = vmatpush1.msra.mxu0 %v4737
        %4785 = vmatprep.subr.mxu0 0.0
        %4786 = vmatpush1.msra.mxu0 %v4738
        %4787 = vmatprep.subr.mxu0 0.0
        %4788 = vmatpush1.msra.mxu0 %v4739
        %4789 = vmatprep.subr.mxu0 0.0
        %4790 = vmatpush1.msra.mxu0 %v4740
        %4791 = vmatprep.subr.mxu0 0.0
        %4792 = vmatpush1.msra.mxu0 %v4741
        %4793 = vmatprep.subr.mxu0 0.0
        %4794 = vmatpush1.msra.mxu0 %v4742
        %4795 = vmatprep.subr.mxu0 0.0
        %4796 = vmatpush1.msra.mxu0 %v4743
        %4797 = vmatprep.subr.mxu0 0.0
        %4798 = vmatpush1.msra.mxu0 %v4744
        %4799 = vmatprep.subr.mxu0 0.0
        %4800 = vmatpush1.msra.mxu0 %v4745
        %4801 = vmatprep.subr.mxu0 0.0
        %4802 = vmatpush1.msra.mxu0 %v4746
        %4803 = vmatprep.subr.mxu0 0.0
        %4804 = vmatpush1.msra.mxu0 %v4747
        %4805 = vmatprep.subr.mxu0 0.0
        %4806 = vmatpush1.msra.mxu0 0.0
        %4807 = vmatprep.subr.mxu0 0.0
        %4808 = vmatpush1.msra.mxu0 0.0
        %4809 = vmatprep.subr.mxu0 0.0
        %4810 = vmatpush1.msra.mxu0 0.0
        %4811 = vmatprep.subr.mxu0 0.0
        %4812 = vmatpush1.msra.mxu0 0.0
        %4813 = vmatprep.subr.mxu0 0.0
        %4814 = vmatpush1.msra.mxu0 0.0
        %4815 = vmatprep.subr.mxu0 0.0
        %4816 = vmatpush1.msra.mxu0 0.0
        %4817 = vmatprep.mubr.f32.mxu0 %v4751
        %4818 = vmatmul.mubr.f32.gmra.mrb[0].mxu0 %v4748
        %v4819 = vpop.f32.mrb[0].mxu0
        %v4820 = vadd.f32 0.0, %v4819
        %v4821 = vpop.f32.mrb[0].mxu0
        %4822 = vdwg.mxu0
        %v4823 = vadd.f32 %v4720, %v4820
        %s4824 = scalar_lea.vmem [#allocation17], 832
        %v4825 = vld [vmem:[%s4824] sm:$0xff]
        %v4826 = vld [vmem:[%s4824 + $0x8] sm:$0xff]
        %v4827 = vld [vmem:[%s4824 + $0x10] sm:$0xff]
        %v4828 = vld [vmem:[%s4824 + $0x18] sm:$0xff]
        %v4829 = vld [vmem:[%s4824 + $0x20] sm:$0xff]
        %v4830 = vld [vmem:[%s4824 + $0x28] sm:$0xff]
        %v4831 = vld [vmem:[%s4824 + $0x30] sm:$0xff]
        %v4832 = vld [vmem:[%s4824 + $0x38] sm:$0xff]
        %v4833 = vld [vmem:[%s4824 + $0x40] sm:$0xff]
        %v4834 = vld [vmem:[%s4824 + $0x48] sm:$0xff]
        %v4835 = vld [vmem:[%s4824 + $0x50] sm:$0xff]
        %v4836 = vld [vmem:[%s4824 + $0x58] sm:$0xff]
        %v4837 = vld [vmem:[%s4824 + $0x60] sm:$0xff]
        %v4838 = vld [vmem:[%s4824 + $0x68] sm:$0xff]
        %v4839 = vld [vmem:[%s4824 + $0x70] sm:$0xff]
        %v4840 = vld [vmem:[%s4824 + $0x78] sm:$0xff]
        %v4841 = vld [vmem:[%s4824 + $0x80] sm:$0xff]
        %v4842 = vld [vmem:[%s4824 + $0x88] sm:$0xff]
        %v4843 = vld [vmem:[%s4824 + $0x90] sm:$0xff]
        %v4844 = vld [vmem:[%s4824 + $0x98] sm:$0xff]
        %v4845 = vld [vmem:[%s4824 + $0xa0] sm:$0xff]
        %v4846 = vld [vmem:[%s4824 + $0xa8] sm:$0xff]
        %v4847 = vld [vmem:[%s4824 + $0xb0] sm:$0xff]
        %v4848 = vld [vmem:[%s4824 + $0xb8] sm:$0xff]
        %v4849 = vld [vmem:[%s4824 + $0xc0] sm:$0xff]
        %v4850 = vld [vmem:[%s4824 + $0xc8] sm:$0xff]
        %v4851 = vrot.slane %v4411, 4
        %v4852 = vrot.slane %v4412, 4
        %v4854 = vsel %vm4473, %v4852, 0
        %4856 = vmatprep.subr.mxu0 0.0
        %4857 = vmatpush1.msra.mxu0 %v4825
        %4858 = vmatprep.subr.mxu0 0.0
        %4859 = vmatpush1.msra.mxu0 %v4826
        %4860 = vmatprep.subr.mxu0 0.0
        %4861 = vmatpush1.msra.mxu0 %v4827
        %4862 = vmatprep.subr.mxu0 0.0
        %4863 = vmatpush1.msra.mxu0 %v4828
        %4864 = vmatprep.subr.mxu0 0.0
        %4865 = vmatpush1.msra.mxu0 %v4829
        %4866 = vmatprep.subr.mxu0 0.0
        %4867 = vmatpush1.msra.mxu0 %v4830
        %4868 = vmatprep.subr.mxu0 0.0
        %4869 = vmatpush1.msra.mxu0 %v4831
        %4870 = vmatprep.subr.mxu0 0.0
        %4871 = vmatpush1.msra.mxu0 %v4832
        %4872 = vmatprep.subr.mxu0 0.0
        %4873 = vmatpush1.msra.mxu0 %v4833
        %4874 = vmatprep.subr.mxu0 0.0
        %4875 = vmatpush1.msra.mxu0 %v4834
        %4876 = vmatprep.subr.mxu0 0.0
        %4877 = vmatpush1.msra.mxu0 %v4835
        %4878 = vmatprep.subr.mxu0 0.0
        %4879 = vmatpush1.msra.mxu0 %v4836
        %4880 = vmatprep.subr.mxu0 0.0
        %4881 = vmatpush1.msra.mxu0 %v4837
        %4882 = vmatprep.subr.mxu0 0.0
        %4883 = vmatpush1.msra.mxu0 %v4838
        %4884 = vmatprep.subr.mxu0 0.0
        %4885 = vmatpush1.msra.mxu0 %v4839
        %4886 = vmatprep.subr.mxu0 0.0
        %4887 = vmatpush1.msra.mxu0 %v4840
        %4888 = vmatprep.subr.mxu0 0.0
        %4889 = vmatpush1.msra.mxu0 %v4841
        %4890 = vmatprep.subr.mxu0 0.0
        %4891 = vmatpush1.msra.mxu0 %v4842
        %4892 = vmatprep.subr.mxu0 0.0
        %4893 = vmatpush1.msra.mxu0 %v4843
        %4894 = vmatprep.subr.mxu0 0.0
        %4895 = vmatpush1.msra.mxu0 %v4844
        %4896 = vmatprep.subr.mxu0 0.0
        %4897 = vmatpush1.msra.mxu0 %v4845
        %4898 = vmatprep.subr.mxu0 0.0
        %4899 = vmatpush1.msra.mxu0 %v4846
        %4900 = vmatprep.subr.mxu0 0.0
        %4901 = vmatpush1.msra.mxu0 %v4847
        %4902 = vmatprep.subr.mxu0 0.0
        %4903 = vmatpush1.msra.mxu0 %v4848
        %4904 = vmatprep.subr.mxu0 0.0
        %4905 = vmatpush1.msra.mxu0 %v4849
        %4906 = vmatprep.subr.mxu0 0.0
        %4907 = vmatpush1.msra.mxu0 %v4850
        %4908 = vmatprep.subr.mxu0 0.0
        %4909 = vmatpush1.msra.mxu0 0.0
        %4910 = vmatprep.subr.mxu0 0.0
        %4911 = vmatpush1.msra.mxu0 0.0
        %4912 = vmatprep.subr.mxu0 0.0
        %4913 = vmatpush1.msra.mxu0 0.0
        %4914 = vmatprep.subr.mxu0 0.0
        %4915 = vmatpush1.msra.mxu0 0.0
        %4916 = vmatprep.subr.mxu0 0.0
        %4917 = vmatpush1.msra.mxu0 0.0
        %4918 = vmatprep.subr.mxu0 0.0
        %4919 = vmatpush1.msra.mxu0 0.0
        %4920 = vmatprep.mubr.f32.mxu0 %v4854
        %4921 = vmatmul.mubr.f32.gmra.mrb[0].mxu0 %v4851
        %v4922 = vpop.f32.mrb[0].mxu0
        %v4923 = vadd.f32 0.0, %v4922
        %v4924 = vpop.f32.mrb[0].mxu0
        %4925 = vdwg.mxu0
        %v4926 = vadd.f32 %v4823, %v4923
        %s4927 = scalar_lea.vmem [#allocation17], 1040
        %v4928 = vld [vmem:[%s4927] sm:$0xff]
        %v4929 = vld [vmem:[%s4927 + $0x8] sm:$0xff]
        %v4930 = vld [vmem:[%s4927 + $0x10] sm:$0xff]
        %v4931 = vld [vmem:[%s4927 + $0x18] sm:$0xff]
        %v4932 = vld [vmem:[%s4927 + $0x20] sm:$0xff]
        %v4933 = vld [vmem:[%s4927 + $0x28] sm:$0xff]
        %v4934 = vld [vmem:[%s4927 + $0x30] sm:$0xff]
        %v4935 = vld [vmem:[%s4927 + $0x38] sm:$0xff]
        %v4936 = vld [vmem:[%s4927 + $0x40] sm:$0xff]
        %v4937 = vld [vmem:[%s4927 + $0x48] sm:$0xff]
        %v4938 = vld [vmem:[%s4927 + $0x50] sm:$0xff]
        %v4939 = vld [vmem:[%s4927 + $0x58] sm:$0xff]
        %v4940 = vld [vmem:[%s4927 + $0x60] sm:$0xff]
        %v4941 = vld [vmem:[%s4927 + $0x68] sm:$0xff]
        %v4942 = vld [vmem:[%s4927 + $0x70] sm:$0xff]
        %v4943 = vld [vmem:[%s4927 + $0x78] sm:$0xff]
        %v4944 = vld [vmem:[%s4927 + $0x80] sm:$0xff]
        %v4945 = vld [vmem:[%s4927 + $0x88] sm:$0xff]
        %v4946 = vld [vmem:[%s4927 + $0x90] sm:$0xff]
        %v4947 = vld [vmem:[%s4927 + $0x98] sm:$0xff]
        %v4948 = vld [vmem:[%s4927 + $0xa0] sm:$0xff]
        %v4949 = vld [vmem:[%s4927 + $0xa8] sm:$0xff]
        %v4950 = vld [vmem:[%s4927 + $0xb0] sm:$0xff]
        %v4951 = vld [vmem:[%s4927 + $0xb8] sm:$0xff]
        %v4952 = vld [vmem:[%s4927 + $0xc0] sm:$0xff]
        %v4953 = vld [vmem:[%s4927 + $0xc8] sm:$0xff]
        %v4954 = vrot.slane %v4411, 5
        %v4955 = vrot.slane %v4412, 5
        %v4957 = vsel %vm4473, %v4955, 0
        %4959 = vmatprep.subr.mxu0 0.0
        %4960 = vmatpush1.msra.mxu0 %v4928
        %4961 = vmatprep.subr.mxu0 0.0
        %4962 = vmatpush1.msra.mxu0 %v4929
        %4963 = vmatprep.subr.mxu0 0.0
        %4964 = vmatpush1.msra.mxu0 %v4930
        %4965 = vmatprep.subr.mxu0 0.0
        %4966 = vmatpush1.msra.mxu0 %v4931
        %4967 = vmatprep.subr.mxu0 0.0
        %4968 = vmatpush1.msra.mxu0 %v4932
        %4969 = vmatprep.subr.mxu0 0.0
        %4970 = vmatpush1.msra.mxu0 %v4933
        %4971 = vmatprep.subr.mxu0 0.0
        %4972 = vmatpush1.msra.mxu0 %v4934
        %4973 = vmatprep.subr.mxu0 0.0
        %4974 = vmatpush1.msra.mxu0 %v4935
        %4975 = vmatprep.subr.mxu0 0.0
        %4976 = vmatpush1.msra.mxu0 %v4936
        %4977 = vmatprep.subr.mxu0 0.0
        %4978 = vmatpush1.msra.mxu0 %v4937
        %4979 = vmatprep.subr.mxu0 0.0
        %4980 = vmatpush1.msra.mxu0 %v4938
        %4981 = vmatprep.subr.mxu0 0.0
        %4982 = vmatpush1.msra.mxu0 %v4939
        %4983 = vmatprep.subr.mxu0 0.0
        %4984 = vmatpush1.msra.mxu0 %v4940
        %4985 = vmatprep.subr.mxu0 0.0
        %4986 = vmatpush1.msra.mxu0 %v4941
        %4987 = vmatprep.subr.mxu0 0.0
        %4988 = vmatpush1.msra.mxu0 %v4942
        %4989 = vmatprep.subr.mxu0 0.0
        %4990 = vmatpush1.msra.mxu0 %v4943
        %4991 = vmatprep.subr.mxu0 0.0
        %4992 = vmatpush1.msra.mxu0 %v4944
        %4993 = vmatprep.subr.mxu0 0.0
        %4994 = vmatpush1.msra.mxu0 %v4945
        %4995 = vmatprep.subr.mxu0 0.0
        %4996 = vmatpush1.msra.mxu0 %v4946
        %4997 = vmatprep.subr.mxu0 0.0
        %4998 = vmatpush1.msra.mxu0 %v4947
        %4999 = vmatprep.subr.mxu0 0.0
        %5000 = vmatpush1.msra.mxu0 %v4948
        %5001 = vmatprep.subr.mxu0 0.0
        %5002 = vmatpush1.msra.mxu0 %v4949
        %5003 = vmatprep.subr.mxu0 0.0
        %5004 = vmatpush1.msra.mxu0 %v4950
        %5005 = vmatprep.subr.mxu0 0.0
        %5006 = vmatpush1.msra.mxu0 %v4951
        %5007 = vmatprep.subr.mxu0 0.0
        %5008 = vmatpush1.msra.mxu0 %v4952
        %5009 = vmatprep.subr.mxu0 0.0
        %5010 = vmatpush1.msra.mxu0 %v4953
        %5011 = vmatprep.subr.mxu0 0.0
        %5012 = vmatpush1.msra.mxu0 0.0
        %5013 = vmatprep.subr.mxu0 0.0
        %5014 = vmatpush1.msra.mxu0 0.0
        %5015 = vmatprep.subr.mxu0 0.0
        %5016 = vmatpush1.msra.mxu0 0.0
        %5017 = vmatprep.subr.mxu0 0.0
        %5018 = vmatpush1.msra.mxu0 0.0
        %5019 = vmatprep.subr.mxu0 0.0
        %5020 = vmatpush1.msra.mxu0 0.0
        %5021 = vmatprep.subr.mxu0 0.0
        %5022 = vmatpush1.msra.mxu0 0.0
        %5023 = vmatprep.mubr.f32.mxu0 %v4957
        %5024 = vmatmul.mubr.f32.gmra.mrb[0].mxu0 %v4954
        %v5025 = vpop.f32.mrb[0].mxu0
        %v5026 = vadd.f32 0.0, %v5025
        %v5027 = vpop.f32.mrb[0].mxu0
        %5028 = vdwg.mxu0
        %v5029 = vadd.f32 %v4926, %v5026
        %s5030 = scalar_lea.vmem [#allocation17], 1248
        %v5031 = vld [vmem:[%s5030] sm:$0xff]
        %v5032 = vld [vmem:[%s5030 + $0x8] sm:$0xff]
        %v5033 = vld [vmem:[%s5030 + $0x10] sm:$0xff]
        %v5034 = vld [vmem:[%s5030 + $0x18] sm:$0xff]
        %v5035 = vld [vmem:[%s5030 + $0x20] sm:$0xff]
        %v5036 = vld [vmem:[%s5030 + $0x28] sm:$0xff]
        %v5037 = vld [vmem:[%s5030 + $0x30] sm:$0xff]
        %v5038 = vld [vmem:[%s5030 + $0x38] sm:$0xff]
        %v5039 = vld [vmem:[%s5030 + $0x40] sm:$0xff]
        %v5040 = vld [vmem:[%s5030 + $0x48] sm:$0xff]
        %v5041 = vld [vmem:[%s5030 + $0x50] sm:$0xff]
        %v5042 = vld [vmem:[%s5030 + $0x58] sm:$0xff]
        %v5043 = vld [vmem:[%s5030 + $0x60] sm:$0xff]
        %v5044 = vld [vmem:[%s5030 + $0x68] sm:$0xff]
        %v5045 = vld [vmem:[%s5030 + $0x70] sm:$0xff]
        %v5046 = vld [vmem:[%s5030 + $0x78] sm:$0xff]
        %v5047 = vld [vmem:[%s5030 + $0x80] sm:$0xff]
        %v5048 = vld [vmem:[%s5030 + $0x88] sm:$0xff]
        %v5049 = vld [vmem:[%s5030 + $0x90] sm:$0xff]
        %v5050 = vld [vmem:[%s5030 + $0x98] sm:$0xff]
        %v5051 = vld [vmem:[%s5030 + $0xa0] sm:$0xff]
        %v5052 = vld [vmem:[%s5030 + $0xa8] sm:$0xff]
        %v5053 = vld [vmem:[%s5030 + $0xb0] sm:$0xff]
        %v5054 = vld [vmem:[%s5030 + $0xb8] sm:$0xff]
        %v5055 = vld [vmem:[%s5030 + $0xc0] sm:$0xff]
        %v5056 = vld [vmem:[%s5030 + $0xc8] sm:$0xff]
        %v5057 = vrot.slane %v4411, 6
        %v5058 = vrot.slane %v4412, 6
        %v5060 = vsel %vm4473, %v5058, 0
        %5062 = vmatprep.subr.mxu0 0.0
        %5063 = vmatpush1.msra.mxu0 %v5031
        %5064 = vmatprep.subr.mxu0 0.0
        %5065 = vmatpush1.msra.mxu0 %v5032
        %5066 = vmatprep.subr.mxu0 0.0
        %5067 = vmatpush1.msra.mxu0 %v5033
        %5068 = vmatprep.subr.mxu0 0.0
        %5069 = vmatpush1.msra.mxu0 %v5034
        %5070 = vmatprep.subr.mxu0 0.0
        %5071 = vmatpush1.msra.mxu0 %v5035
        %5072 = vmatprep.subr.mxu0 0.0
        %5073 = vmatpush1.msra.mxu0 %v5036
        %5074 = vmatprep.subr.mxu0 0.0
        %5075 = vmatpush1.msra.mxu0 %v5037
        %5076 = vmatprep.subr.mxu0 0.0
        %5077 = vmatpush1.msra.mxu0 %v5038
        %5078 = vmatprep.subr.mxu0 0.0
        %5079 = vmatpush1.msra.mxu0 %v5039
        %5080 = vmatprep.subr.mxu0 0.0
        %5081 = vmatpush1.msra.mxu0 %v5040
        %5082 = vmatprep.subr.mxu0 0.0
        %5083 = vmatpush1.msra.mxu0 %v5041
        %5084 = vmatprep.subr.mxu0 0.0
        %5085 = vmatpush1.msra.mxu0 %v5042
        %5086 = vmatprep.subr.mxu0 0.0
        %5087 = vmatpush1.msra.mxu0 %v5043
        %5088 = vmatprep.subr.mxu0 0.0
        %5089 = vmatpush1.msra.mxu0 %v5044
        %5090 = vmatprep.subr.mxu0 0.0
        %5091 = vmatpush1.msra.mxu0 %v5045
        %5092 = vmatprep.subr.mxu0 0.0
        %5093 = vmatpush1.msra.mxu0 %v5046
        %5094 = vmatprep.subr.mxu0 0.0
        %5095 = vmatpush1.msra.mxu0 %v5047
        %5096 = vmatprep.subr.mxu0 0.0
        %5097 = vmatpush1.msra.mxu0 %v5048
        %5098 = vmatprep.subr.mxu0 0.0
        %5099 = vmatpush1.msra.mxu0 %v5049
        %5100 = vmatprep.subr.mxu0 0.0
        %5101 = vmatpush1.msra.mxu0 %v5050
        %5102 = vmatprep.subr.mxu0 0.0
        %5103 = vmatpush1.msra.mxu0 %v5051
        %5104 = vmatprep.subr.mxu0 0.0
        %5105 = vmatpush1.msra.mxu0 %v5052
        %5106 = vmatprep.subr.mxu0 0.0
        %5107 = vmatpush1.msra.mxu0 %v5053
        %5108 = vmatprep.subr.mxu0 0.0
        %5109 = vmatpush1.msra.mxu0 %v5054
        %5110 = vmatprep.subr.mxu0 0.0
        %5111 = vmatpush1.msra.mxu0 %v5055
        %5112 = vmatprep.subr.mxu0 0.0
        %5113 = vmatpush1.msra.mxu0 %v5056
        %5114 = vmatprep.subr.mxu0 0.0
        %5115 = vmatpush1.msra.mxu0 0.0
        %5116 = vmatprep.subr.mxu0 0.0
        %5117 = vmatpush1.msra.mxu0 0.0
        %5118 = vmatprep.subr.mxu0 0.0
        %5119 = vmatpush1.msra.mxu0 0.0
        %5120 = vmatprep.subr.mxu0 0.0
        %5121 = vmatpush1.msra.mxu0 0.0
        %5122 = vmatprep.subr.mxu0 0.0
        %5123 = vmatpush1.msra.mxu0 0.0
        %5124 = vmatprep.subr.mxu0 0.0
        %5125 = vmatpush1.msra.mxu0 0.0
        %5126 = vmatprep.mubr.f32.mxu0 %v5060
        %5127 = vmatmul.mubr.f32.gmra.mrb[0].mxu0 %v5057
        %v5128 = vpop.f32.mrb[0].mxu0
        %v5129 = vadd.f32 0.0, %v5128
        %v5130 = vpop.f32.mrb[0].mxu0
        %5131 = vdwg.mxu0
        %v5132 = vadd.f32 %v5029, %v5129
        %s5133 = scalar_lea.vmem [#allocation17], 1456
        %v5134 = vld [vmem:[%s5133] sm:$0xff]
        %v5135 = vld [vmem:[%s5133 + $0x8] sm:$0xff]
        %v5136 = vld [vmem:[%s5133 + $0x10] sm:$0xff]
        %v5137 = vld [vmem:[%s5133 + $0x18] sm:$0xff]
        %v5138 = vld [vmem:[%s5133 + $0x20] sm:$0xff]
        %v5139 = vld [vmem:[%s5133 + $0x28] sm:$0xff]
        %v5140 = vld [vmem:[%s5133 + $0x30] sm:$0xff]
        %v5141 = vld [vmem:[%s5133 + $0x38] sm:$0xff]
        %v5142 = vld [vmem:[%s5133 + $0x40] sm:$0xff]
        %v5143 = vld [vmem:[%s5133 + $0x48] sm:$0xff]
        %v5144 = vld [vmem:[%s5133 + $0x50] sm:$0xff]
        %v5145 = vld [vmem:[%s5133 + $0x58] sm:$0xff]
        %v5146 = vld [vmem:[%s5133 + $0x60] sm:$0xff]
        %v5147 = vld [vmem:[%s5133 + $0x68] sm:$0xff]
        %v5148 = vld [vmem:[%s5133 + $0x70] sm:$0xff]
        %v5149 = vld [vmem:[%s5133 + $0x78] sm:$0xff]
        %v5150 = vld [vmem:[%s5133 + $0x80] sm:$0xff]
        %v5151 = vld [vmem:[%s5133 + $0x88] sm:$0xff]
        %v5152 = vld [vmem:[%s5133 + $0x90] sm:$0xff]
        %v5153 = vld [vmem:[%s5133 + $0x98] sm:$0xff]
        %v5154 = vld [vmem:[%s5133 + $0xa0] sm:$0xff]
        %v5155 = vld [vmem:[%s5133 + $0xa8] sm:$0xff]
        %v5156 = vld [vmem:[%s5133 + $0xb0] sm:$0xff]
        %v5157 = vld [vmem:[%s5133 + $0xb8] sm:$0xff]
        %v5158 = vld [vmem:[%s5133 + $0xc0] sm:$0xff]
        %v5159 = vld [vmem:[%s5133 + $0xc8] sm:$0xff]
        %v5160 = vrot.slane %v4411, 7
        %v5161 = vrot.slane %v4412, 7
        %v5163 = vsel %vm4473, %v5161, 0
        %5165 = vmatprep.subr.mxu0 0.0
        %5166 = vmatpush1.msra.mxu0 %v5134
        %5167 = vmatprep.subr.mxu0 0.0
        %5168 = vmatpush1.msra.mxu0 %v5135
        %5169 = vmatprep.subr.mxu0 0.0
        %5170 = vmatpush1.msra.mxu0 %v5136
        %5171 = vmatprep.subr.mxu0 0.0
        %5172 = vmatpush1.msra.mxu0 %v5137
        %5173 = vmatprep.subr.mxu0 0.0
        %5174 = vmatpush1.msra.mxu0 %v5138
        %5175 = vmatprep.subr.mxu0 0.0
        %5176 = vmatpush1.msra.mxu0 %v5139
        %5177 = vmatprep.subr.mxu0 0.0
        %5178 = vmatpush1.msra.mxu0 %v5140
        %5179 = vmatprep.subr.mxu0 0.0
        %5180 = vmatpush1.msra.mxu0 %v5141
        %5181 = vmatprep.subr.mxu0 0.0
        %5182 = vmatpush1.msra.mxu0 %v5142
        %5183 = vmatprep.subr.mxu0 0.0
        %5184 = vmatpush1.msra.mxu0 %v5143
        %5185 = vmatprep.subr.mxu0 0.0
        %5186 = vmatpush1.msra.mxu0 %v5144
        %5187 = vmatprep.subr.mxu0 0.0
        %5188 = vmatpush1.msra.mxu0 %v5145
        %5189 = vmatprep.subr.mxu0 0.0
        %5190 = vmatpush1.msra.mxu0 %v5146
        %5191 = vmatprep.subr.mxu0 0.0
        %5192 = vmatpush1.msra.mxu0 %v5147
        %5193 = vmatprep.subr.mxu0 0.0
        %5194 = vmatpush1.msra.mxu0 %v5148
        %5195 = vmatprep.subr.mxu0 0.0
        %5196 = vmatpush1.msra.mxu0 %v5149
        %5197 = vmatprep.subr.mxu0 0.0
        %5198 = vmatpush1.msra.mxu0 %v5150
        %5199 = vmatprep.subr.mxu0 0.0
        %5200 = vmatpush1.msra.mxu0 %v5151
        %5201 = vmatprep.subr.mxu0 0.0
        %5202 = vmatpush1.msra.mxu0 %v5152
        %5203 = vmatprep.subr.mxu0 0.0
        %5204 = vmatpush1.msra.mxu0 %v5153
        %5205 = vmatprep.subr.mxu0 0.0
        %5206 = vmatpush1.msra.mxu0 %v5154
        %5207 = vmatprep.subr.mxu0 0.0
        %5208 = vmatpush1.msra.mxu0 %v5155
        %5209 = vmatprep.subr.mxu0 0.0
        %5210 = vmatpush1.msra.mxu0 %v5156
        %5211 = vmatprep.subr.mxu0 0.0
        %5212 = vmatpush1.msra.mxu0 %v5157
        %5213 = vmatprep.subr.mxu0 0.0
        %5214 = vmatpush1.msra.mxu0 %v5158
        %5215 = vmatprep.subr.mxu0 0.0
        %5216 = vmatpush1.msra.mxu0 %v5159
        %5217 = vmatprep.subr.mxu0 0.0
        %5218 = vmatpush1.msra.mxu0 0.0
        %5219 = vmatprep.subr.mxu0 0.0
        %5220 = vmatpush1.msra.mxu0 0.0
        %5221 = vmatprep.subr.mxu0 0.0
        %5222 = vmatpush1.msra.mxu0 0.0
        %5223 = vmatprep.subr.mxu0 0.0
        %5224 = vmatpush1.msra.mxu0 0.0
        %5225 = vmatprep.subr.mxu0 0.0
        %5226 = vmatpush1.msra.mxu0 0.0
        %5227 = vmatprep.subr.mxu0 0.0
        %5228 = vmatpush1.msra.mxu0 0.0
        %5229 = vmatprep.mubr.f32.mxu0 %v5163
        %5230 = vmatmul.mubr.f32.gmra.mrb[0].mxu0 %v5160
        %v5231 = vpop.f32.mrb[0].mxu0
        %v5232 = vadd.f32 0.0, %v5231
        %v5233 = vpop.f32.mrb[0].mxu0
        %5234 = vdwg.mxu0
        %v5235 = vadd.f32 %v5132, %v5232
        %s5236 = scalar_lea.vmem [#allocation17], 1664
        %v5237 = vld [vmem:[%s5236] sm:$0xff]
        %v5238 = vld [vmem:[%s5236 + $0x8] sm:$0xff]
        %v5239 = vld [vmem:[%s5236 + $0x10] sm:$0xff]
        %v5240 = vld [vmem:[%s5236 + $0x18] sm:$0xff]
        %v5241 = vld [vmem:[%s5236 + $0x20] sm:$0xff]
        %v5242 = vld [vmem:[%s5236 + $0x28] sm:$0xff]
        %v5243 = vld [vmem:[%s5236 + $0x30] sm:$0xff]
        %v5244 = vld [vmem:[%s5236 + $0x38] sm:$0xff]
        %v5245 = vld [vmem:[%s5236 + $0x40] sm:$0xff]
        %v5246 = vld [vmem:[%s5236 + $0x48] sm:$0xff]
        %v5247 = vld [vmem:[%s5236 + $0x50] sm:$0xff]
        %v5248 = vld [vmem:[%s5236 + $0x58] sm:$0xff]
        %v5249 = vld [vmem:[%s5236 + $0x60] sm:$0xff]
        %v5250 = vld [vmem:[%s5236 + $0x68] sm:$0xff]
        %v5251 = vld [vmem:[%s5236 + $0x70] sm:$0xff]
        %v5252 = vld [vmem:[%s5236 + $0x78] sm:$0xff]
        %v5253 = vld [vmem:[%s5236 + $0x80] sm:$0xff]
        %v5254 = vld [vmem:[%s5236 + $0x88] sm:$0xff]
        %v5255 = vld [vmem:[%s5236 + $0x90] sm:$0xff]
        %v5256 = vld [vmem:[%s5236 + $0x98] sm:$0xff]
        %v5257 = vld [vmem:[%s5236 + $0xa0] sm:$0xff]
        %v5258 = vld [vmem:[%s5236 + $0xa8] sm:$0xff]
        %v5259 = vld [vmem:[%s5236 + $0xb0] sm:$0xff]
        %v5260 = vld [vmem:[%s5236 + $0xb8] sm:$0xff]
        %v5261 = vld [vmem:[%s5236 + $0xc0] sm:$0xff]
        %v5262 = vld [vmem:[%s5236 + $0xc8] sm:$0xff]
        %v5264 = vsel %vm4473, %v4414, 0
        %5266 = vmatprep.subr.mxu0 0.0
        %5267 = vmatpush1.msra.mxu0 %v5237
        %5268 = vmatprep.subr.mxu0 0.0
        %5269 = vmatpush1.msra.mxu0 %v5238
        %5270 = vmatprep.subr.mxu0 0.0
        %5271 = vmatpush1.msra.mxu0 %v5239
        %5272 = vmatprep.subr.mxu0 0.0
        %5273 = vmatpush1.msra.mxu0 %v5240
        %5274 = vmatprep.subr.mxu0 0.0
        %5275 = vmatpush1.msra.mxu0 %v5241
        %5276 = vmatprep.subr.mxu0 0.0
        %5277 = vmatpush1.msra.mxu0 %v5242
        %5278 = vmatprep.subr.mxu0 0.0
        %5279 = vmatpush1.msra.mxu0 %v5243
        %5280 = vmatprep.subr.mxu0 0.0
        %5281 = vmatpush1.msra.mxu0 %v5244
        %5282 = vmatprep.subr.mxu0 0.0
        %5283 = vmatpush1.msra.mxu0 %v5245
        %5284 = vmatprep.subr.mxu0 0.0
        %5285 = vmatpush1.msra.mxu0 %v5246
        %5286 = vmatprep.subr.mxu0 0.0
        %5287 = vmatpush1.msra.mxu0 %v5247
        %5288 = vmatprep.subr.mxu0 0.0
        %5289 = vmatpush1.msra.mxu0 %v5248
        %5290 = vmatprep.subr.mxu0 0.0
        %5291 = vmatpush1.msra.mxu0 %v5249
        %5292 = vmatprep.subr.mxu0 0.0
        %5293 = vmatpush1.msra.mxu0 %v5250
        %5294 = vmatprep.subr.mxu0 0.0
        %5295 = vmatpush1.msra.mxu0 %v5251
        %5296 = vmatprep.subr.mxu0 0.0
        %5297 = vmatpush1.msra.mxu0 %v5252
        %5298 = vmatprep.subr.mxu0 0.0
        %5299 = vmatpush1.msra.mxu0 %v5253
        %5300 = vmatprep.subr.mxu0 0.0
        %5301 = vmatpush1.msra.mxu0 %v5254
        %5302 = vmatprep.subr.mxu0 0.0
        %5303 = vmatpush1.msra.mxu0 %v5255
        %5304 = vmatprep.subr.mxu0 0.0
        %5305 = vmatpush1.msra.mxu0 %v5256
        %5306 = vmatprep.subr.mxu0 0.0
        %5307 = vmatpush1.msra.mxu0 %v5257
        %5308 = vmatprep.subr.mxu0 0.0
        %5309 = vmatpush1.msra.mxu0 %v5258
        %5310 = vmatprep.subr.mxu0 0.0
        %5311 = vmatpush1.msra.mxu0 %v5259
        %5312 = vmatprep.subr.mxu0 0.0
        %5313 = vmatpush1.msra.mxu0 %v5260
        %5314 = vmatprep.subr.mxu0 0.0
        %5315 = vmatpush1.msra.mxu0 %v5261
        %5316 = vmatprep.subr.mxu0 0.0
        %5317 = vmatpush1.msra.mxu0 %v5262
        %5318 = vmatprep.subr.mxu0 0.0
        %5319 = vmatpush1.msra.mxu0 0.0
        %5320 = vmatprep.subr.mxu0 0.0
        %5321 = vmatpush1.msra.mxu0 0.0
        %5322 = vmatprep.subr.mxu0 0.0
        %5323 = vmatpush1.msra.mxu0 0.0
        %5324 = vmatprep.subr.mxu0 0.0
        %5325 = vmatpush1.msra.mxu0 0.0
        %5326 = vmatprep.subr.mxu0 0.0
        %5327 = vmatpush1.msra.mxu0 0.0
        %5328 = vmatprep.subr.mxu0 0.0
        %5329 = vmatpush1.msra.mxu0 0.0
        %5330 = vmatprep.mubr.f32.mxu0 %v5264
        %5331 = vmatmul.mubr.f32.gmra.mrb[0].mxu0 %v4413
        %v5332 = vpop.f32.mrb[0].mxu0
        %v5333 = vadd.f32 0.0, %v5332
        %v5334 = vpop.f32.mrb[0].mxu0
        %5335 = vdwg.mxu0
        %v5336 = vadd.f32 %v5235, %v5333
        %s5337 = scalar_lea.vmem [#allocation17], 1872
        %v5338 = vld [vmem:[%s5337] sm:$0xff]
        %v5339 = vld [vmem:[%s5337 + $0x8] sm:$0xff]
        %v5340 = vld [vmem:[%s5337 + $0x10] sm:$0xff]
        %v5341 = vld [vmem:[%s5337 + $0x18] sm:$0xff]
        %v5342 = vld [vmem:[%s5337 + $0x20] sm:$0xff]
        %v5343 = vld [vmem:[%s5337 + $0x28] sm:$0xff]
        %v5344 = vld [vmem:[%s5337 + $0x30] sm:$0xff]
        %v5345 = vld [vmem:[%s5337 + $0x38] sm:$0xff]
        %v5346 = vld [vmem:[%s5337 + $0x40] sm:$0xff]
        %v5347 = vld [vmem:[%s5337 + $0x48] sm:$0xff]
        %v5348 = vld [vmem:[%s5337 + $0x50] sm:$0xff]
        %v5349 = vld [vmem:[%s5337 + $0x58] sm:$0xff]
        %v5350 = vld [vmem:[%s5337 + $0x60] sm:$0xff]
        %v5351 = vld [vmem:[%s5337 + $0x68] sm:$0xff]
        %v5352 = vld [vmem:[%s5337 + $0x70] sm:$0xff]
        %v5353 = vld [vmem:[%s5337 + $0x78] sm:$0xff]
        %v5354 = vld [vmem:[%s5337 + $0x80] sm:$0xff]
        %v5355 = vld [vmem:[%s5337 + $0x88] sm:$0xff]
        %v5356 = vld [vmem:[%s5337 + $0x90] sm:$0xff]
        %v5357 = vld [vmem:[%s5337 + $0x98] sm:$0xff]
        %v5358 = vld [vmem:[%s5337 + $0xa0] sm:$0xff]
        %v5359 = vld [vmem:[%s5337 + $0xa8] sm:$0xff]
        %v5360 = vld [vmem:[%s5337 + $0xb0] sm:$0xff]
        %v5361 = vld [vmem:[%s5337 + $0xb8] sm:$0xff]
        %v5362 = vld [vmem:[%s5337 + $0xc0] sm:$0xff]
        %v5363 = vld [vmem:[%s5337 + $0xc8] sm:$0xff]
        %v5365 = vrot.slane %v4413, 1
        %v5366 = vrot.slane %v4414, 1
        %v5368 = vsel %vm4473, %v5366, 0
        %5370 = vmatprep.subr.mxu0 0.0
        %5371 = vmatpush1.msra.mxu0 %v5338
        %5372 = vmatprep.subr.mxu0 0.0
        %5373 = vmatpush1.msra.mxu0 %v5339
        %5374 = vmatprep.subr.mxu0 0.0
        %5375 = vmatpush1.msra.mxu0 %v5340
        %5376 = vmatprep.subr.mxu0 0.0
        %5377 = vmatpush1.msra.mxu0 %v5341
        %5378 = vmatprep.subr.mxu0 0.0
        %5379 = vmatpush1.msra.mxu0 %v5342
        %5380 = vmatprep.subr.mxu0 0.0
        %5381 = vmatpush1.msra.mxu0 %v5343
        %5382 = vmatprep.subr.mxu0 0.0
        %5383 = vmatpush1.msra.mxu0 %v5344
        %5384 = vmatprep.subr.mxu0 0.0
        %5385 = vmatpush1.msra.mxu0 %v5345
        %5386 = vmatprep.subr.mxu0 0.0
        %5387 = vmatpush1.msra.mxu0 %v5346
        %5388 = vmatprep.subr.mxu0 0.0
        %5389 = vmatpush1.msra.mxu0 %v5347
        %5390 = vmatprep.subr.mxu0 0.0
        %5391 = vmatpush1.msra.mxu0 %v5348
        %5392 = vmatprep.subr.mxu0 0.0
        %5393 = vmatpush1.msra.mxu0 %v5349
        %5394 = vmatprep.subr.mxu0 0.0
        %5395 = vmatpush1.msra.mxu0 %v5350
        %5396 = vmatprep.subr.mxu0 0.0
        %5397 = vmatpush1.msra.mxu0 %v5351
        %5398 = vmatprep.subr.mxu0 0.0
        %5399 = vmatpush1.msra.mxu0 %v5352
        %5400 = vmatprep.subr.mxu0 0.0
        %5401 = vmatpush1.msra.mxu0 %v5353
        %5402 = vmatprep.subr.mxu0 0.0
        %5403 = vmatpush1.msra.mxu0 %v5354
        %5404 = vmatprep.subr.mxu0 0.0
        %5405 = vmatpush1.msra.mxu0 %v5355
        %5406 = vmatprep.subr.mxu0 0.0
        %5407 = vmatpush1.msra.mxu0 %v5356
        %5408 = vmatprep.subr.mxu0 0.0
        %5409 = vmatpush1.msra.mxu0 %v5357
        %5410 = vmatprep.subr.mxu0 0.0
        %5411 = vmatpush1.msra.mxu0 %v5358
        %5412 = vmatprep.subr.mxu0 0.0
        %5413 = vmatpush1.msra.mxu0 %v5359
        %5414 = vmatprep.subr.mxu0 0.0
        %5415 = vmatpush1.msra.mxu0 %v5360
        %5416 = vmatprep.subr.mxu0 0.0
        %5417 = vmatpush1.msra.mxu0 %v5361
        %5418 = vmatprep.subr.mxu0 0.0
        %5419 = vmatpush1.msra.mxu0 %v5362
        %5420 = vmatprep.subr.mxu0 0.0
        %5421 = vmatpush1.msra.mxu0 %v5363
        %5422 = vmatprep.subr.mxu0 0.0
        %5423 = vmatpush1.msra.mxu0 0.0
        %5424 = vmatprep.subr.mxu0 0.0
        %5425 = vmatpush1.msra.mxu0 0.0
        %5426 = vmatprep.subr.mxu0 0.0
        %5427 = vmatpush1.msra.mxu0 0.0
        %5428 = vmatprep.subr.mxu0 0.0
        %5429 = vmatpush1.msra.mxu0 0.0
        %5430 = vmatprep.subr.mxu0 0.0
        %5431 = vmatpush1.msra.mxu0 0.0
        %5432 = vmatprep.subr.mxu0 0.0
        %5433 = vmatpush1.msra.mxu0 0.0
        %5434 = vmatprep.mubr.f32.mxu0 %v5368
        %5435 = vmatmul.mubr.f32.gmra.mrb[0].mxu0 %v5365
        %v5436 = vpop.f32.mrb[0].mxu0
        %v5437 = vadd.f32 0.0, %v5436
        %v5438 = vpop.f32.mrb[0].mxu0
        %5439 = vdwg.mxu0
        %v5440 = vadd.f32 %v5336, %v5437
        %s5441 = scalar_lea.vmem [#allocation17], 2080
        %v5442 = vld [vmem:[%s5441] sm:$0xff]
        %v5443 = vld [vmem:[%s5441 + $0x8] sm:$0xff]
        %v5444 = vld [vmem:[%s5441 + $0x10] sm:$0xff]
        %v5445 = vld [vmem:[%s5441 + $0x18] sm:$0xff]
        %v5446 = vld [vmem:[%s5441 + $0x20] sm:$0xff]
        %v5447 = vld [vmem:[%s5441 + $0x28] sm:$0xff]
        %v5448 = vld [vmem:[%s5441 + $0x30] sm:$0xff]
        %v5449 = vld [vmem:[%s5441 + $0x38] sm:$0xff]
        %v5450 = vld [vmem:[%s5441 + $0x40] sm:$0xff]
        %v5451 = vld [vmem:[%s5441 + $0x48] sm:$0xff]
        %v5452 = vld [vmem:[%s5441 + $0x50] sm:$0xff]
        %v5453 = vld [vmem:[%s5441 + $0x58] sm:$0xff]
        %v5454 = vld [vmem:[%s5441 + $0x60] sm:$0xff]
        %v5455 = vld [vmem:[%s5441 + $0x68] sm:$0xff]
        %v5456 = vld [vmem:[%s5441 + $0x70] sm:$0xff]
        %v5457 = vld [vmem:[%s5441 + $0x78] sm:$0xff]
        %v5458 = vld [vmem:[%s5441 + $0x80] sm:$0xff]
        %v5459 = vld [vmem:[%s5441 + $0x88] sm:$0xff]
        %v5460 = vld [vmem:[%s5441 + $0x90] sm:$0xff]
        %v5461 = vld [vmem:[%s5441 + $0x98] sm:$0xff]
        %v5462 = vld [vmem:[%s5441 + $0xa0] sm:$0xff]
        %v5463 = vld [vmem:[%s5441 + $0xa8] sm:$0xff]
        %v5464 = vld [vmem:[%s5441 + $0xb0] sm:$0xff]
        %v5465 = vld [vmem:[%s5441 + $0xb8] sm:$0xff]
        %v5466 = vld [vmem:[%s5441 + $0xc0] sm:$0xff]
        %v5467 = vld [vmem:[%s5441 + $0xc8] sm:$0xff]
        %v5468 = vrot.slane %v4413, 2
        %v5469 = vrot.slane %v4414, 2
        %v5471 = vsel %vm4473, %v5469, 0
        %5473 = vmatprep.subr.mxu0 0.0
        %5474 = vmatpush1.msra.mxu0 %v5442
        %5475 = vmatprep.subr.mxu0 0.0
        %5476 = vmatpush1.msra.mxu0 %v5443
        %5477 = vmatprep.subr.mxu0 0.0
        %5478 = vmatpush1.msra.mxu0 %v5444
        %5479 = vmatprep.subr.mxu0 0.0
        %5480 = vmatpush1.msra.mxu0 %v5445
        %5481 = vmatprep.subr.mxu0 0.0
        %5482 = vmatpush1.msra.mxu0 %v5446
        %5483 = vmatprep.subr.mxu0 0.0
        %5484 = vmatpush1.msra.mxu0 %v5447
        %5485 = vmatprep.subr.mxu0 0.0
        %5486 = vmatpush1.msra.mxu0 %v5448
        %5487 = vmatprep.subr.mxu0 0.0
        %5488 = vmatpush1.msra.mxu0 %v5449
        %5489 = vmatprep.subr.mxu0 0.0
        %5490 = vmatpush1.msra.mxu0 %v5450
        %5491 = vmatprep.subr.mxu0 0.0
        %5492 = vmatpush1.msra.mxu0 %v5451
        %5493 = vmatprep.subr.mxu0 0.0
        %5494 = vmatpush1.msra.mxu0 %v5452
        %5495 = vmatprep.subr.mxu0 0.0
        %5496 = vmatpush1.msra.mxu0 %v5453
        %5497 = vmatprep.subr.mxu0 0.0
        %5498 = vmatpush1.msra.mxu0 %v5454
        %5499 = vmatprep.subr.mxu0 0.0
        %5500 = vmatpush1.msra.mxu0 %v5455
        %5501 = vmatprep.subr.mxu0 0.0
        %5502 = vmatpush1.msra.mxu0 %v5456
        %5503 = vmatprep.subr.mxu0 0.0
        %5504 = vmatpush1.msra.mxu0 %v5457
        %5505 = vmatprep.subr.mxu0 0.0
        %5506 = vmatpush1.msra.mxu0 %v5458
        %5507 = vmatprep.subr.mxu0 0.0
        %5508 = vmatpush1.msra.mxu0 %v5459
        %5509 = vmatprep.subr.mxu0 0.0
        %5510 = vmatpush1.msra.mxu0 %v5460
        %5511 = vmatprep.subr.mxu0 0.0
        %5512 = vmatpush1.msra.mxu0 %v5461
        %5513 = vmatprep.subr.mxu0 0.0
        %5514 = vmatpush1.msra.mxu0 %v5462
        %5515 = vmatprep.subr.mxu0 0.0
        %5516 = vmatpush1.msra.mxu0 %v5463
        %5517 = vmatprep.subr.mxu0 0.0
        %5518 = vmatpush1.msra.mxu0 %v5464
        %5519 = vmatprep.subr.mxu0 0.0
        %5520 = vmatpush1.msra.mxu0 %v5465
        %5521 = vmatprep.subr.mxu0 0.0
        %5522 = vmatpush1.msra.mxu0 %v5466
        %5523 = vmatprep.subr.mxu0 0.0
        %5524 = vmatpush1.msra.mxu0 %v5467
        %5525 = vmatprep.subr.mxu0 0.0
        %5526 = vmatpush1.msra.mxu0 0.0
        %5527 = vmatprep.subr.mxu0 0.0
        %5528 = vmatpush1.msra.mxu0 0.0
        %5529 = vmatprep.subr.mxu0 0.0
        %5530 = vmatpush1.msra.mxu0 0.0
        %5531 = vmatprep.subr.mxu0 0.0
        %5532 = vmatpush1.msra.mxu0 0.0
        %5533 = vmatprep.subr.mxu0 0.0
        %5534 = vmatpush1.msra.mxu0 0.0
        %5535 = vmatprep.subr.mxu0 0.0
        %5536 = vmatpush1.msra.mxu0 0.0
        %5537 = vmatprep.mubr.f32.mxu0 %v5471
        %5538 = vmatmul.mubr.f32.gmra.mrb[0].mxu0 %v5468
        %v5539 = vpop.f32.mrb[0].mxu0
        %v5540 = vadd.f32 0.0, %v5539
        %v5541 = vpop.f32.mrb[0].mxu0
        %5542 = vdwg.mxu0
        %v5543 = vadd.f32 %v5440, %v5540
        %s5544 = scalar_lea.vmem [#allocation17], 2288
        %v5545 = vld [vmem:[%s5544] sm:$0xff]
        %v5546 = vld [vmem:[%s5544 + $0x8] sm:$0xff]
        %v5547 = vld [vmem:[%s5544 + $0x10] sm:$0xff]
        %v5548 = vld [vmem:[%s5544 + $0x18] sm:$0xff]
        %v5549 = vld [vmem:[%s5544 + $0x20] sm:$0xff]
        %v5550 = vld [vmem:[%s5544 + $0x28] sm:$0xff]
        %v5551 = vld [vmem:[%s5544 + $0x30] sm:$0xff]
        %v5552 = vld [vmem:[%s5544 + $0x38] sm:$0xff]
        %v5553 = vld [vmem:[%s5544 + $0x40] sm:$0xff]
        %v5554 = vld [vmem:[%s5544 + $0x48] sm:$0xff]
        %v5555 = vld [vmem:[%s5544 + $0x50] sm:$0xff]
        %v5556 = vld [vmem:[%s5544 + $0x58] sm:$0xff]
        %v5557 = vld [vmem:[%s5544 + $0x60] sm:$0xff]
        %v5558 = vld [vmem:[%s5544 + $0x68] sm:$0xff]
        %v5559 = vld [vmem:[%s5544 + $0x70] sm:$0xff]
        %v5560 = vld [vmem:[%s5544 + $0x78] sm:$0xff]
        %v5561 = vld [vmem:[%s5544 + $0x80] sm:$0xff]
        %v5562 = vld [vmem:[%s5544 + $0x88] sm:$0xff]
        %v5563 = vld [vmem:[%s5544 + $0x90] sm:$0xff]
        %v5564 = vld [vmem:[%s5544 + $0x98] sm:$0xff]
        %v5565 = vld [vmem:[%s5544 + $0xa0] sm:$0xff]
        %v5566 = vld [vmem:[%s5544 + $0xa8] sm:$0xff]
        %v5567 = vld [vmem:[%s5544 + $0xb0] sm:$0xff]
        %v5568 = vld [vmem:[%s5544 + $0xb8] sm:$0xff]
        %v5569 = vld [vmem:[%s5544 + $0xc0] sm:$0xff]
        %v5570 = vld [vmem:[%s5544 + $0xc8] sm:$0xff]
        %v5571 = vrot.slane %v4413, 3
        %v5572 = vrot.slane %v4414, 3
        %v5574 = vsel %vm4473, %v5572, 0
        %5576 = vmatprep.subr.mxu0 0.0
        %5577 = vmatpush1.msra.mxu0 %v5545
        %5578 = vmatprep.subr.mxu0 0.0
        %5579 = vmatpush1.msra.mxu0 %v5546
        %5580 = vmatprep.subr.mxu0 0.0
        %5581 = vmatpush1.msra.mxu0 %v5547
        %5582 = vmatprep.subr.mxu0 0.0
        %5583 = vmatpush1.msra.mxu0 %v5548
        %5584 = vmatprep.subr.mxu0 0.0
        %5585 = vmatpush1.msra.mxu0 %v5549
        %5586 = vmatprep.subr.mxu0 0.0
        %5587 = vmatpush1.msra.mxu0 %v5550
        %5588 = vmatprep.subr.mxu0 0.0
        %5589 = vmatpush1.msra.mxu0 %v5551
        %5590 = vmatprep.subr.mxu0 0.0
        %5591 = vmatpush1.msra.mxu0 %v5552
        %5592 = vmatprep.subr.mxu0 0.0
        %5593 = vmatpush1.msra.mxu0 %v5553
        %5594 = vmatprep.subr.mxu0 0.0
        %5595 = vmatpush1.msra.mxu0 %v5554
        %5596 = vmatprep.subr.mxu0 0.0
        %5597 = vmatpush1.msra.mxu0 %v5555
        %5598 = vmatprep.subr.mxu0 0.0
        %5599 = vmatpush1.msra.mxu0 %v5556
        %5600 = vmatprep.subr.mxu0 0.0
        %5601 = vmatpush1.msra.mxu0 %v5557
        %5602 = vmatprep.subr.mxu0 0.0
        %5603 = vmatpush1.msra.mxu0 %v5558
        %5604 = vmatprep.subr.mxu0 0.0
        %5605 = vmatpush1.msra.mxu0 %v5559
        %5606 = vmatprep.subr.mxu0 0.0
        %5607 = vmatpush1.msra.mxu0 %v5560
        %5608 = vmatprep.subr.mxu0 0.0
        %5609 = vmatpush1.msra.mxu0 %v5561
        %5610 = vmatprep.subr.mxu0 0.0
        %5611 = vmatpush1.msra.mxu0 %v5562
        %5612 = vmatprep.subr.mxu0 0.0
        %5613 = vmatpush1.msra.mxu0 %v5563
        %5614 = vmatprep.subr.mxu0 0.0
        %5615 = vmatpush1.msra.mxu0 %v5564
        %5616 = vmatprep.subr.mxu0 0.0
        %5617 = vmatpush1.msra.mxu0 %v5565
        %5618 = vmatprep.subr.mxu0 0.0
        %5619 = vmatpush1.msra.mxu0 %v5566
        %5620 = vmatprep.subr.mxu0 0.0
        %5621 = vmatpush1.msra.mxu0 %v5567
        %5622 = vmatprep.subr.mxu0 0.0
        %5623 = vmatpush1.msra.mxu0 %v5568
        %5624 = vmatprep.subr.mxu0 0.0
        %5625 = vmatpush1.msra.mxu0 %v5569
        %5626 = vmatprep.subr.mxu0 0.0
        %5627 = vmatpush1.msra.mxu0 %v5570
        %5628 = vmatprep.subr.mxu0 0.0
        %5629 = vmatpush1.msra.mxu0 0.0
        %5630 = vmatprep.subr.mxu0 0.0
        %5631 = vmatpush1.msra.mxu0 0.0
        %5632 = vmatprep.subr.mxu0 0.0
        %5633 = vmatpush1.msra.mxu0 0.0
        %5634 = vmatprep.subr.mxu0 0.0
        %5635 = vmatpush1.msra.mxu0 0.0
        %5636 = vmatprep.subr.mxu0 0.0
        %5637 = vmatpush1.msra.mxu0 0.0
        %5638 = vmatprep.subr.mxu0 0.0
        %5639 = vmatpush1.msra.mxu0 0.0
        %5640 = vmatprep.mubr.f32.mxu0 %v5574
        %5641 = vmatmul.mubr.f32.gmra.mrb[0].mxu0 %v5571
        %v5642 = vpop.f32.mrb[0].mxu0
        %v5643 = vadd.f32 0.0, %v5642
        %v5644 = vpop.f32.mrb[0].mxu0
        %5645 = vdwg.mxu0
        %v5646 = vadd.f32 %v5543, %v5643
        %s5647 = scalar_lea.vmem [#allocation17], 2496
        %v5648 = vld [vmem:[%s5647] sm:$0xff]
        %v5649 = vld [vmem:[%s5647 + $0x8] sm:$0xff]
        %v5650 = vld [vmem:[%s5647 + $0x10] sm:$0xff]
        %v5651 = vld [vmem:[%s5647 + $0x18] sm:$0xff]
        %v5652 = vld [vmem:[%s5647 + $0x20] sm:$0xff]
        %v5653 = vld [vmem:[%s5647 + $0x28] sm:$0xff]
        %v5654 = vld [vmem:[%s5647 + $0x30] sm:$0xff]
        %v5655 = vld [vmem:[%s5647 + $0x38] sm:$0xff]
        %v5656 = vld [vmem:[%s5647 + $0x40] sm:$0xff]
        %v5657 = vld [vmem:[%s5647 + $0x48] sm:$0xff]
        %v5658 = vld [vmem:[%s5647 + $0x50] sm:$0xff]
        %v5659 = vld [vmem:[%s5647 + $0x58] sm:$0xff]
        %v5660 = vld [vmem:[%s5647 + $0x60] sm:$0xff]
        %v5661 = vld [vmem:[%s5647 + $0x68] sm:$0xff]
        %v5662 = vld [vmem:[%s5647 + $0x70] sm:$0xff]
        %v5663 = vld [vmem:[%s5647 + $0x78] sm:$0xff]
        %v5664 = vld [vmem:[%s5647 + $0x80] sm:$0xff]
        %v5665 = vld [vmem:[%s5647 + $0x88] sm:$0xff]
        %v5666 = vld [vmem:[%s5647 + $0x90] sm:$0xff]
        %v5667 = vld [vmem:[%s5647 + $0x98] sm:$0xff]
        %v5668 = vld [vmem:[%s5647 + $0xa0] sm:$0xff]
        %v5669 = vld [vmem:[%s5647 + $0xa8] sm:$0xff]
        %v5670 = vld [vmem:[%s5647 + $0xb0] sm:$0xff]
        %v5671 = vld [vmem:[%s5647 + $0xb8] sm:$0xff]
        %v5672 = vld [vmem:[%s5647 + $0xc0] sm:$0xff]
        %v5673 = vld [vmem:[%s5647 + $0xc8] sm:$0xff]
        %v5674 = vrot.slane %v4413, 4
        %v5675 = vrot.slane %v4414, 4
        %v5677 = vsel %vm4473, %v5675, 0
        %5679 = vmatprep.subr.mxu0 0.0
        %5680 = vmatpush1.msra.mxu0 %v5648
        %5681 = vmatprep.subr.mxu0 0.0
        %5682 = vmatpush1.msra.mxu0 %v5649
        %5683 = vmatprep.subr.mxu0 0.0
        %5684 = vmatpush1.msra.mxu0 %v5650
        %5685 = vmatprep.subr.mxu0 0.0
        %5686 = vmatpush1.msra.mxu0 %v5651
        %5687 = vmatprep.subr.mxu0 0.0
        %5688 = vmatpush1.msra.mxu0 %v5652
        %5689 = vmatprep.subr.mxu0 0.0
        %5690 = vmatpush1.msra.mxu0 %v5653
        %5691 = vmatprep.subr.mxu0 0.0
        %5692 = vmatpush1.msra.mxu0 %v5654
        %5693 = vmatprep.subr.mxu0 0.0
        %5694 = vmatpush1.msra.mxu0 %v5655
        %5695 = vmatprep.subr.mxu0 0.0
        %5696 = vmatpush1.msra.mxu0 %v5656
        %5697 = vmatprep.subr.mxu0 0.0
        %5698 = vmatpush1.msra.mxu0 %v5657
        %5699 = vmatprep.subr.mxu0 0.0
        %5700 = vmatpush1.msra.mxu0 %v5658
        %5701 = vmatprep.subr.mxu0 0.0
        %5702 = vmatpush1.msra.mxu0 %v5659
        %5703 = vmatprep.subr.mxu0 0.0
        %5704 = vmatpush1.msra.mxu0 %v5660
        %5705 = vmatprep.subr.mxu0 0.0
        %5706 = vmatpush1.msra.mxu0 %v5661
        %5707 = vmatprep.subr.mxu0 0.0
        %5708 = vmatpush1.msra.mxu0 %v5662
        %5709 = vmatprep.subr.mxu0 0.0
        %5710 = vmatpush1.msra.mxu0 %v5663
        %5711 = vmatprep.subr.mxu0 0.0
        %5712 = vmatpush1.msra.mxu0 %v5664
        %5713 = vmatprep.subr.mxu0 0.0
        %5714 = vmatpush1.msra.mxu0 %v5665
        %5715 = vmatprep.subr.mxu0 0.0
        %5716 = vmatpush1.msra.mxu0 %v5666
        %5717 = vmatprep.subr.mxu0 0.0
        %5718 = vmatpush1.msra.mxu0 %v5667
        %5719 = vmatprep.subr.mxu0 0.0
        %5720 = vmatpush1.msra.mxu0 %v5668
        %5721 = vmatprep.subr.mxu0 0.0
        %5722 = vmatpush1.msra.mxu0 %v5669
        %5723 = vmatprep.subr.mxu0 0.0
        %5724 = vmatpush1.msra.mxu0 %v5670
        %5725 = vmatprep.subr.mxu0 0.0
        %5726 = vmatpush1.msra.mxu0 %v5671
        %5727 = vmatprep.subr.mxu0 0.0
        %5728 = vmatpush1.msra.mxu0 %v5672
        %5729 = vmatprep.subr.mxu0 0.0
        %5730 = vmatpush1.msra.mxu0 %v5673
        %5731 = vmatprep.subr.mxu0 0.0
        %5732 = vmatpush1.msra.mxu0 0.0
        %5733 = vmatprep.subr.mxu0 0.0
        %5734 = vmatpush1.msra.mxu0 0.0
        %5735 = vmatprep.subr.mxu0 0.0
        %5736 = vmatpush1.msra.mxu0 0.0
        %5737 = vmatprep.subr.mxu0 0.0
        %5738 = vmatpush1.msra.mxu0 0.0
        %5739 = vmatprep.subr.mxu0 0.0
        %5740 = vmatpush1.msra.mxu0 0.0
        %5741 = vmatprep.subr.mxu0 0.0
        %5742 = vmatpush1.msra.mxu0 0.0
        %5743 = vmatprep.mubr.f32.mxu0 %v5677
        %5744 = vmatmul.mubr.f32.gmra.mrb[0].mxu0 %v5674
        %v5745 = vpop.f32.mrb[0].mxu0
        %v5746 = vadd.f32 0.0, %v5745
        %v5747 = vpop.f32.mrb[0].mxu0
        %5748 = vdwg.mxu0
        %v5749 = vadd.f32 %v5646, %v5746
        %v5750 = vld [vmem:[#allocation19] sm:$0x1]
        %v5751 = vadd.f32 %v5749, %v5750
        %v5752 = vmax.f32 %v5751, 0.0
        %v5753 = vld [vmem:[#allocation20] sm:$0xff]
        %v5754 = vld [vmem:[#allocation20 + $0x8] sm:$0xff]
        %v5755 = vld [vmem:[#allocation20 + $0x10] sm:$0xff]
        %v5756 = vld [vmem:[#allocation20 + $0x18] sm:$0xff]
        %v5757 = vld [vmem:[#allocation20 + $0x20] sm:$0xff]
        %v5758 = vld [vmem:[#allocation20 + $0x28] sm:$0xff]
        %v5759 = vld [vmem:[#allocation20 + $0x30] sm:$0xff]
        %v5760 = vld [vmem:[#allocation20 + $0x38] sm:$0xff]
        %v5761 = vld [vmem:[#allocation20 + $0x40] sm:$0xff]
        %v5762 = vld [vmem:[#allocation20 + $0x48] sm:$0xff]
        %v5763 = vld [vmem:[#allocation20 + $0x50] sm:$0xff]
        %v5764 = vld [vmem:[#allocation20 + $0x58] sm:$0xff]
        %v5765 = vld [vmem:[#allocation20 + $0x60] sm:$0xff]
        %v5766 = vld [vmem:[#allocation20 + $0x68] sm:$0xff]
        %v5767 = vld [vmem:[#allocation20 + $0x70] sm:$0xff]
        %v5768 = vld [vmem:[#allocation20 + $0x78] sm:$0xff]
        %v5769 = vld [vmem:[#allocation22] sm:$0x1]
        %5770 = vmatprep.subr.mxu0 0.0
        %5771 = vmatpush1.msra.mxu0 %v5753
        %5772 = vmatprep.subr.mxu0 0.0
        %5773 = vmatpush1.msra.mxu0 %v5754
        %5774 = vmatprep.subr.mxu0 0.0
        %5775 = vmatpush1.msra.mxu0 %v5755
        %5776 = vmatprep.subr.mxu0 0.0
        %5777 = vmatpush1.msra.mxu0 %v5756
        %5778 = vmatprep.subr.mxu0 0.0
        %5779 = vmatpush1.msra.mxu0 %v5757
        %5780 = vmatprep.subr.mxu0 0.0
        %5781 = vmatpush1.msra.mxu0 %v5758
        %5782 = vmatprep.subr.mxu0 0.0
        %5783 = vmatpush1.msra.mxu0 %v5759
        %5784 = vmatprep.subr.mxu0 0.0
        %5785 = vmatpush1.msra.mxu0 %v5760
        %5786 = vmatprep.subr.mxu0 0.0
        %5787 = vmatpush1.msra.mxu0 %v5761
        %5788 = vmatprep.subr.mxu0 0.0
        %5789 = vmatpush1.msra.mxu0 %v5762
        %5790 = vmatprep.subr.mxu0 0.0
        %5791 = vmatpush1.msra.mxu0 %v5763
        %5792 = vmatprep.subr.mxu0 0.0
        %5793 = vmatpush1.msra.mxu0 %v5764
        %5794 = vmatprep.subr.mxu0 0.0
        %5795 = vmatpush1.msra.mxu0 %v5765
        %5796 = vmatprep.subr.mxu0 0.0
        %5797 = vmatpush1.msra.mxu0 %v5766
        %5798 = vmatprep.subr.mxu0 0.0
        %5799 = vmatpush1.msra.mxu0 %v5767
        %5800 = vmatprep.subr.mxu0 0.0
        %5801 = vmatpush1.msra.mxu0 %v5768
        %5802 = vmatprep.subr.mxu0 0.0
        %5803 = vmatpush1.msra.mxu0 0.0
        %5804 = vmatprep.subr.mxu0 0.0
        %5805 = vmatpush1.msra.mxu0 0.0
        %5806 = vmatprep.subr.mxu0 0.0
        %5807 = vmatpush1.msra.mxu0 0.0
        %5808 = vmatprep.subr.mxu0 0.0
        %5809 = vmatpush1.msra.mxu0 0.0
        %5810 = vmatprep.subr.mxu0 0.0
        %5811 = vmatpush1.msra.mxu0 0.0
        %5812 = vmatprep.subr.mxu0 0.0
        %5813 = vmatpush1.msra.mxu0 0.0
        %5814 = vmatprep.subr.mxu0 0.0
        %5815 = vmatpush1.msra.mxu0 0.0
        %5816 = vmatprep.subr.mxu0 0.0
        %5817 = vmatpush1.msra.mxu0 0.0
        %5818 = vmatprep.subr.mxu0 0.0
        %5819 = vmatpush1.msra.mxu0 0.0
        %5820 = vmatprep.subr.mxu0 0.0
        %5821 = vmatpush1.msra.mxu0 0.0
        %5822 = vmatprep.subr.mxu0 0.0
        %5823 = vmatpush1.msra.mxu0 0.0
        %5824 = vmatprep.subr.mxu0 0.0
        %5825 = vmatpush1.msra.mxu0 0.0
        %5826 = vmatprep.subr.mxu0 0.0
        %5827 = vmatpush1.msra.mxu0 0.0
        %5828 = vmatprep.subr.mxu0 0.0
        %5829 = vmatpush1.msra.mxu0 0.0
        %5830 = vmatprep.subr.mxu0 0.0
        %5831 = vmatpush1.msra.mxu0 0.0
        %5832 = vmatprep.subr.mxu0 0.0
        %5833 = vmatpush1.msra.mxu0 0.0
        %5834 = vmatprep.mubr.f32.mxu0 0.0
        %5835 = vmatmul.mubr.f32.gmra.mrb[0].mxu0 %v5752
        %v5836 = vpop.f32.mrb[0].mxu0
        %v5837 = vadd.f32 %v5769, %v5836
        %v5838 = vpop.f32.mrb[0].mxu0
        %5839 = vdwg.mxu0
        %v5840 = vmax.f32 %v5837, 0.0
        %v5841 = vld [vmem:[#allocation23] sm:$0xff]
        %v5842 = vld [vmem:[#allocation23 + $0x8] sm:$0xff]
        %v5843 = vld [vmem:[#allocation23 + $0x10] sm:$0xff]
        %v5844 = vld [vmem:[#allocation23 + $0x18] sm:$0xff]
        %v5845 = vld [vmem:[#allocation23 + $0x20] sm:$0xff]
        %v5846 = vld [vmem:[#allocation23 + $0x28] sm:$0xff]
        %v5847 = vld [vmem:[#allocation23 + $0x30] sm:$0xff]
        %v5848 = vld [vmem:[#allocation23 + $0x38] sm:$0xff]
        %v5849 = vld [vmem:[#allocation23 + $0x40] sm:$0xff]
        %v5850 = vld [vmem:[#allocation23 + $0x48] sm:$0xff]
        %v5851 = vld [vmem:[#allocation23 + $0x50] sm:$0xff]
        %v5852 = vld [vmem:[#allocation23 + $0x58] sm:$0xff]
        %v5853 = vld [vmem:[#allocation23 + $0x60] sm:$0xff]
        %v5854 = vld [vmem:[#allocation23 + $0x68] sm:$0xff]
        %v5855 = vld [vmem:[#allocation23 + $0x70] sm:$0xff]
        %v5856 = vld [vmem:[#allocation23 + $0x78] sm:$0xff]
        %v5857 = vld [vmem:[#allocation25] sm:$0x1]
        %5858 = vmatprep.subr.mxu0 0.0
        %5859 = vmatpush1.msra.mxu0 %v5841
        %5860 = vmatprep.subr.mxu0 0.0
        %5861 = vmatpush1.msra.mxu0 %v5842
        %5862 = vmatprep.subr.mxu0 0.0
        %5863 = vmatpush1.msra.mxu0 %v5843
        %5864 = vmatprep.subr.mxu0 0.0
        %5865 = vmatpush1.msra.mxu0 %v5844
        %5866 = vmatprep.subr.mxu0 0.0
        %5867 = vmatpush1.msra.mxu0 %v5845
        %5868 = vmatprep.subr.mxu0 0.0
        %5869 = vmatpush1.msra.mxu0 %v5846
        %5870 = vmatprep.subr.mxu0 0.0
        %5871 = vmatpush1.msra.mxu0 %v5847
        %5872 = vmatprep.subr.mxu0 0.0
        %5873 = vmatpush1.msra.mxu0 %v5848
        %5874 = vmatprep.subr.mxu0 0.0
        %5875 = vmatpush1.msra.mxu0 %v5849
        %5876 = vmatprep.subr.mxu0 0.0
        %5877 = vmatpush1.msra.mxu0 %v5850
        %5878 = vmatprep.subr.mxu0 0.0
        %5879 = vmatpush1.msra.mxu0 %v5851
        %5880 = vmatprep.subr.mxu0 0.0
        %5881 = vmatpush1.msra.mxu0 %v5852
        %5882 = vmatprep.subr.mxu0 0.0
        %5883 = vmatpush1.msra.mxu0 %v5853
        %5884 = vmatprep.subr.mxu0 0.0
        %5885 = vmatpush1.msra.mxu0 %v5854
        %5886 = vmatprep.subr.mxu0 0.0
        %5887 = vmatpush1.msra.mxu0 %v5855
        %5888 = vmatprep.subr.mxu0 0.0
        %5889 = vmatpush1.msra.mxu0 %v5856
        %5890 = vmatprep.subr.mxu0 0.0
        %5891 = vmatpush1.msra.mxu0 0.0
        %5892 = vmatprep.subr.mxu0 0.0
        %5893 = vmatpush1.msra.mxu0 0.0
        %5894 = vmatprep.subr.mxu0 0.0
        %5895 = vmatpush1.msra.mxu0 0.0
        %5896 = vmatprep.subr.mxu0 0.0
        %5897 = vmatpush1.msra.mxu0 0.0
        %5898 = vmatprep.subr.mxu0 0.0
        %5899 = vmatpush1.msra.mxu0 0.0
        %5900 = vmatprep.subr.mxu0 0.0
        %5901 = vmatpush1.msra.mxu0 0.0
        %5902 = vmatprep.subr.mxu0 0.0
        %5903 = vmatpush1.msra.mxu0 0.0
        %5904 = vmatprep.subr.mxu0 0.0
        %5905 = vmatpush1.msra.mxu0 0.0
        %5906 = vmatprep.subr.mxu0 0.0
        %5907 = vmatpush1.msra.mxu0 0.0
        %5908 = vmatprep.subr.mxu0 0.0
        %5909 = vmatpush1.msra.mxu0 0.0
        %5910 = vmatprep.subr.mxu0 0.0
        %5911 = vmatpush1.msra.mxu0 0.0
        %5912 = vmatprep.subr.mxu0 0.0
        %5913 = vmatpush1.msra.mxu0 0.0
        %5914 = vmatprep.subr.mxu0 0.0
        %5915 = vmatpush1.msra.mxu0 0.0
        %5916 = vmatprep.subr.mxu0 0.0
        %5917 = vmatpush1.msra.mxu0 0.0
        %5918 = vmatprep.subr.mxu0 0.0
        %5919 = vmatpush1.msra.mxu0 0.0
        %5920 = vmatprep.subr.mxu0 0.0
        %5921 = vmatpush1.msra.mxu0 0.0
        %5922 = vmatprep.mubr.f32.mxu0 0.0
        %5923 = vmatmul.mubr.f32.gmra.mrb[0].mxu0 %v5840
        %v5924 = vpop.f32.mrb[0].mxu0
        %v5925 = vadd.f32 %v5857, %v5924
        %v5926 = vpop.f32.mrb[0].mxu0
        %5927 = vdwg.mxu0
        %5928 = vst [vmem:[%s704] sm:$0x1] %v5925
        %s5929 = sand.u32 %s367, 1
        %s5930 = scalar_lea.sflag [#allocation4], %s5929
        %s5931 = sand.u32 %s367, 1
        %s5932 = scalar_lea.vmem [#allocation26], %s5931
        // Predicated region
        $region141: #{lenet5_forward.1} parent=79 // pred_check
          %p5933 = pneg %p377
        $region142: #{lenet5_forward.1} parent=79 // pred_check_branch
          %5935 = sbr.rel (%p5933) target = $region144
        $region143: #{lenet5_forward.1} parent=79 // pred_region
          %s5937 = ssub.s32 16, 16
          %5938 = vsyncadd %s5930, %s5937
          %s5939 = smul.addr %s39, 16
          %s5940 = scalar_lea.hbm %s15, %s5939
          %s5942 = sshll.u32 %s5932, 4
          %s5943 = int_to_ptr.vmem [resolvable:$true] %s5942
          %5945 = dma.vmem_to_hbm [thread:$0]  %s5943, 16, %s5940, %s5930
        $region144: #{lenet5_forward.1} parent=79 // pred_fallthru
          _
      $region80: #{lenet5_forward.1} parent=5 // pred_fallthru
        _
      %p5946 = scmp.le.s32.totalorder 2, %s34
      // Predicated region
      $region145: #{lenet5_forward.1} parent=5 // pred_check
        %p5947 = pneg %p5946
      $region146: #{lenet5_forward.1} parent=5 // pred_check_branch
        %5949 = sbr.rel (%p5947) target = $region148
      $region147: #{lenet5_forward.1} parent=5 // pred_region
        %s5950 = ssub.s32 %s34, 2
        // Predicated region
        $region149: #{lenet5_forward.1} parent=147 // pred_check
          %p5951 = pneg %p383
        $region150: #{lenet5_forward.1} parent=147 // pred_check_branch
          %5953 = sbr.rel (%p5951) target = $region152
        $region151: #{lenet5_forward.1} parent=147 // pred_region
          %s5954 = sand.u32 %s368, 1
          %s5955 = scalar_lea.sflag [#allocation4], %s5954
          %s5956 = sand.u32 %s368, 1
          %s5957 = scalar_lea.vmem [#allocation26], %s5956
          %5958 = dma.done %s5955, 16
        $region152: #{lenet5_forward.1} parent=147 // pred_fallthru
          _
      $region148: #{lenet5_forward.1} parent=5 // pred_fallthru
        _
    $region6: #{lenet5_forward.1} parent=1 // loop_footer
      %s38 = sadd.s32 1, %s34
    $region7: #{lenet5_forward.1} parent=1 // loop_footer_branch
      %33 = sbr.rel target = $region3
    $region8: #{lenet5_forward.1} parent=1 // loop_exit
      _
    %5959 = vsyncpa [#allocation3], 1
    %s5960 = scalar_lea.sflag [#allocation3], 1
    %5961 = vsyncpa %s5960, 1
    %5962 = vsyncpa [#allocation6], 1
    %5963 = vsyncpa [#allocation9], 1
    %5964 = vsyncpa [#allocation12], 1
    %5965 = vsyncpa [#allocation15], 1
    %5966 = vsyncpa [#allocation18], 1
    %5967 = vsyncpa [#allocation21], 1
    %5968 = vsyncpa [#allocation24], 1
    %5969 = vsyncpa [#allocation4], 1
    %s5970 = scalar_lea.sflag [#allocation4], 1
    %5971 = vsyncpa %s5970, 1

</llo_original>
